<compile_context>
chip_gen: v7x
topology: tpu7x:2x2x1
jax: 0.10.0
libtpu: 0.0.40
codegen_flags: <defaults>
</compile_context>

<pallas_src>
import functools

import jax
import jax.numpy as jnp
from jax.experimental import pallas as pl
from jax.experimental.pallas import tpu as pltpu


_VMEM = pl.BlockSpec(memory_space=pltpu.MemorySpace.VMEM)

# Fixed LeNet geometry from the PyTorch module (lin1 = 16*7*7 forces 28x28 in).
_H1, _W1 = 28, 28          # conv1 spatial
_H2, _W2 = 14, 14          # conv2 spatial (after pool1)
_H3, _W3 = 7, 7            # after pool2
_C1, _C2 = 6, 16           # conv output channels
_K = 5                     # conv kernel size


# ----------------------------- kernel helpers -------------------------------

def _lane_roll(v, d):
    """out[:, i] = v[:, (i + d) mod M] via two static lane slices + concat.

    Wrapped columns are only ever read at positions that the pool-compaction /
    conv2 padding masks discard, so the wrap never affects the result.
    """
    m = v.shape[-1]
    s = d % m
    if s == 0:
        return v
    return jnp.concatenate([v[:, s:], v[:, :s]], axis=1)


def _pool2x2_max(y, w):
    """Max over the 2x2 window whose top-left corner is each column.

    Columns are (n, h, w)-ordered with row stride `w`.  Requires even H, W:
    the subsequent compaction never selects h = H-1 / w = W-1 columns, so the
    wrapped / cross-image values produced by the shifts are never used.
    """
    return jnp.maximum(
        jnp.maximum(y, _lane_roll(y, 1)),
        jnp.maximum(_lane_roll(y, w), _lane_roll(y, w + 1)))


# ------------------------------- the kernel ---------------------------------

def _cnn_kernel(p1_ref, w1_ref, b1_ref, sel1_ref,
                msk_ref, w2_ref, b2_ref, sel2_ref,
                wf1_ref, bf1_ref, wf2_ref, bf2_ref, wf3_ref, bf3_ref,
                out_ref, xfc_ref, *, n_img):
    """Entire CNN forward pass.

    p1_ref  : (25, N*784)  bf16  transposed im2col patches of the input
    w1_ref  : (6, 25)      bf16  conv1 weight
    b1_ref  : (6, 1)       f32
    sel1_ref: (784, 196)   bf16  per-image pool1 compaction (batch independent)
    msk_ref : (25, N*196)  bf16  conv2 'same'-padding tap validity masks
    w2_ref  : (25, 16, 6)  bf16  conv2 weight, one (C_out, C_in) slab per tap
    b2_ref  : (16, 1)      f32
    sel2_ref: (196, 49)    bf16  per-image pool2 compaction
    wf*_ref : FC weights (in, out) bf16; bf*_ref: FC biases (1, out) f32
    out_ref : (N, 10)      f32
    xfc_ref : (N, 784)     f32   scratch: FC input in torch NCHW-flatten order
    """
    f32 = jnp.float32
    s1, s2, s3 = _H1 * _W1, _H2 * _W2, _H3 * _W3      # 784, 196, 49

    # conv1 (single matmul over im2col patches) + bias + ReLU.  (6, N*784)
    y1 = jnp.dot(w1_ref[...], p1_ref[...], preferred_element_type=f32)
    y1 = jnp.maximum(y1 + b1_ref[...], 0.0)

    # pool1: 2x2/stride-2 max via lane shifts, then per-image bf16 compaction.
    m1 = _pool2x2_max(y1, _W1)
    pooled1 = jnp.concatenate(
        [jnp.dot(m1[:, n * s1:(n + 1) * s1].astype(jnp.bfloat16),
                 sel1_ref[...], preferred_element_type=f32)
         for n in range(n_img)], axis=1)              # (6, N*196) f32

    # conv2: 'same' 5x5 conv as 25 shifted + masked tap matmuls (in-VMEM
    # im2col), accumulated in f32.
    p1b = pooled1.astype(jnp.bfloat16)
    y2 = None
    for t in range(_K * _K):
        dh, dw = t // _K - _K // 2, t % _K - _K // 2
        tap = _lane_roll(p1b, dh * _W2 + dw) * msk_ref[t:t + 1, :]
        contrib = jnp.dot(w2_ref[t], tap, preferred_element_type=f32)
        y2 = contrib if y2 is None else y2 + contrib
    y2 = jnp.maximum(y2 + b2_ref[...], 0.0)           # (16, N*196)

    # pool2 + NCHW flatten: per-image compaction, then scatter the 16 channel
    # rows into the (N, 784) FC-input scratch (lane<->sublane move done with
    # 16 tiny row stores per image instead of an in-kernel reshape/transpose).
    m2 = _pool2x2_max(y2, _W2)
    for n in range(n_img):
        blk = jnp.dot(m2[:, n * s2:(n + 1) * s2].astype(jnp.bfloat16),
                      sel2_ref[...], preferred_element_type=f32)   # (16, 49)
        for c in range(_C2):
            xfc_ref[n:n + 1, c * s3:(c + 1) * s3] = blk[c:c + 1, :]

    # fused FC stack: lin1+ReLU -> lin2+ReLU -> lin3; intermediates in vregs.
    h = jnp.dot(xfc_ref[...].astype(jnp.bfloat16), wf1_ref[...],
                preferred_element_type=f32)
    h = jnp.maximum(h + bf1_ref[...], 0.0)
    h = jnp.dot(h.astype(jnp.bfloat16), wf2_ref[...], preferred_element_type=f32)
    h = jnp.maximum(h + bf2_ref[...], 0.0)
    h = jnp.dot(h.astype(jnp.bfloat16), wf3_ref[...], preferred_element_type=f32)
    out_ref[...] = h + bf3_ref[...]


# ---------------------------- host-side helpers ------------------------------

def _pool_select(h, w):
    """(h*w, (h//2)*(w//2)) 0/1 (bf16-exact) matrix selecting the top-left
    corner of each 2x2 window; batch-independent (per image)."""
    ho, wo = h // 2, w // 2
    q = jnp.arange(ho * wo)
    p0 = (2 * (q // wo)) * w + 2 * (q % wo)
    return (jnp.arange(h * w)[:, None] == p0[None, :]).astype(jnp.bfloat16)


def _conv2_tap_masks(h, w, k):
    """(k*k, h*w) bf16 validity masks for 'same'-padded shifted taps (per image)."""
    col = jnp.arange(h * w)
    hh, ww = col // w, col % w
    rows = []
    for t in range(k * k):
        dh, dw = t // k - k // 2, t % k - k // 2
        rows.append((hh + dh >= 0) & (hh + dh < h) & (ww + dw >= 0) & (ww + dw < w))
    return jnp.stack(rows).astype(jnp.bfloat16)


def _im2col_t(x_cnhw, k):
    """x: (C, N, H, W) -> (C*k*k, N*H*W) transposed 'same' patches, rows
    (ci, kh, kw)-major (matches torch weight.reshape(C_out, -1))."""
    C, N, H, W = x_cnhw.shape
    pad = k // 2
    xp = jnp.pad(x_cnhw, ((0, 0), (0, 0), (pad, pad), (pad, pad)))
    taps = [xp[:, :, kh:kh + H, kw:kw + W] for kh in range(k) for kw in range(k)]
    return jnp.stack(taps, axis=1).reshape(C * k * k, N * H * W)


def prepare_params(params):
    """One-time (outside the jitted forward): pre-transpose / pre-cast weights
    into kernel layout and build the batch-independent pool / padding tables."""
    bf, f32 = jnp.bfloat16, jnp.float32
    return {
        "w1": params["conv1_w"].reshape(_C1, _K * _K).astype(bf),          # (6, 25)
        "b1": params["conv1_b"].reshape(_C1, 1).astype(f32),
        "w2": params["conv2_w"].transpose(2, 3, 0, 1)
                                .reshape(_K * _K, _C2, _C1).astype(bf),    # (25, 16, 6)
        "b2": params["conv2_b"].reshape(_C2, 1).astype(f32),
        "wf1": params["lin1_w"].T.astype(bf),                              # (784, 120)
        "bf1": params["lin1_b"].reshape(1, -1).astype(f32),
        "wf2": params["lin2_w"].T.astype(bf),                              # (120, 84)
        "bf2": params["lin2_b"].reshape(1, -1).astype(f32),
        "wf3": params["lin3_w"].T.astype(bf),                              # (84, 10)
        "bf3": params["lin3_b"].reshape(1, -1).astype(f32),
        "sel1": _pool_select(_H1, _W1),                                    # (784, 196)
        "sel2": _pool_select(_H2, _W2),                                    # (196, 49)
        "msk_img": _conv2_tap_masks(_H2, _W2, _K),                         # (25, 196)
    }


@jax.jit
def cnn_forward(prep, x):
    """x: (N, 1, 28, 28) NCHW -> logits (N, 10). Whole network in one pallas_call."""
    N = x.shape[0]
    patches1 = _im2col_t(x.transpose(1, 0, 2, 3), _K).astype(jnp.bfloat16)  # (25, N*784)
    mask2 = jnp.tile(prep["msk_img"], (1, N))                               # (25, N*196)
    kernel = functools.partial(_cnn_kernel, n_img=N)
    return pl.pallas_call(
        kernel,
        out_shape=jax.ShapeDtypeStruct((N, 10), jnp.float32),
        in_specs=[_VMEM] * 14,
        out_specs=_VMEM,
        scratch_shapes=[pltpu.VMEM((N, _C2 * _H3 * _W3), jnp.float32)],
    )(patches1, prep["w1"], prep["b1"], prep["sel1"],
      mask2, prep["w2"], prep["b2"], prep["sel2"],
      prep["wf1"], prep["bf1"], prep["wf2"], prep["bf2"],
      prep["wf3"], prep["bf3"])


# Pure-JAX f32 reference (sanity check only).
def cnn_forward_ref(params, x):
    def conv(x, w, b):
        y = jax.lax.conv_general_dilated(
            x, w, window_strides=(1, 1), padding="SAME",
            dimension_numbers=("NCHW", "OIHW", "NCHW"),
            precision=jax.lax.Precision.HIGHEST)
        return jax.nn.relu(y + b[None, :, None, None])

    def pool(x):
        N, C, H, W = x.shape
        return x.reshape(N, C, H // 2, 2, W // 2, 2).max(axis=(3, 5))

    x = pool(conv(x, params["conv1_w"], params["conv1_b"]))
    x = pool(conv(x, params["conv2_w"], params["conv2_b"]))
    x = x.reshape(x.shape[0], -1)
    x = jax.nn.relu(x @ params["lin1_w"].T + params["lin1_b"])
    x = jax.nn.relu(x @ params["lin2_w"].T + params["lin2_b"])
    return x @ params["lin3_w"].T + params["lin3_b"]


def init_params(key):
    ks = jax.random.split(key, 10)

    def nrm(k, shape, scale=0.1):
        return (scale * jax.random.normal(k, shape)).astype(jnp.float32)

    return {
        "conv1_w": nrm(ks[0], (6, 1, 5, 5)),
        "conv1_b": nrm(ks[1], (6,)),
        "conv2_w": nrm(ks[2], (16, 6, 5, 5)),
        "conv2_b": nrm(ks[3], (16,)),
        "lin1_w": nrm(ks[4], (120, 16 * 7 * 7), scale=0.05),
        "lin1_b": nrm(ks[5], (120,)),
        "lin2_w": nrm(ks[6], (84, 120), scale=0.05),
        "lin2_b": nrm(ks[7], (84,)),
        "lin3_w": nrm(ks[8], (10, 84), scale=0.05),
        "lin3_b": nrm(ks[9], (10,)),
    }


if __name__ == "__main__":
    key = jax.random.PRNGKey(0)
    k_param, k_x = jax.random.split(key)
    params = init_params(k_param)
    # MNIST-style input (28x28 is required by lin1 = 16*7*7): batch=2, NCHW.
    x = jax.random.normal(k_x, (2, 1, 28, 28), dtype=jnp.float32)

    prep = prepare_params(params)   # one-time weight layout/cast, outside jit

    y = jax.block_until_ready(cnn_forward(prep, x))
    assert y.shape == (2, 10) and y.dtype == jnp.float32

    y_ref = jax.block_until_ready(jax.jit(cnn_forward_ref)(params, x))
    assert jnp.allclose(y, y_ref, rtol=2e-2, atol=2e-2), (y, y_ref)

    print("KERNEL_OK")
</pallas_src>

<mosaic_0001>
module attributes {stable_mosaic.version = 11 : i64} {
  func.func @_cnn_kernel(%arg0: memref<25x1568xbf16, #tpu.memory_space<vmem>>, %arg1: memref<6x25xbf16, #tpu.memory_space<vmem>>, %arg2: memref<6x1xf32, #tpu.memory_space<vmem>>, %arg3: memref<784x196xbf16, #tpu.memory_space<vmem>>, %arg4: memref<25x392xbf16, #tpu.memory_space<vmem>>, %arg5: memref<25x16x6xbf16, #tpu.memory_space<vmem>>, %arg6: memref<16x1xf32, #tpu.memory_space<vmem>>, %arg7: memref<196x49xbf16, #tpu.memory_space<vmem>>, %arg8: memref<784x120xbf16, #tpu.memory_space<vmem>>, %arg9: memref<1x120xf32, #tpu.memory_space<vmem>>, %arg10: memref<120x84xbf16, #tpu.memory_space<vmem>>, %arg11: memref<1x84xf32, #tpu.memory_space<vmem>>, %arg12: memref<84x10xbf16, #tpu.memory_space<vmem>>, %arg13: memref<1x10xf32, #tpu.memory_space<vmem>>, %arg14: memref<2x10xf32, #tpu.memory_space<vmem>>, %arg15: memref<2x784xf32, #tpu.memory_space<vmem>>) attributes {dimension_semantics = [], scalar_prefetch = 0 : i64, scratch_operands = 1 : i64, tpu.core_type = #tpu.core_type<tc>} {
    %c0 = arith.constant 0 : index
    %c0_0 = arith.constant 0 : index
    %0 = vector.load %arg1[%c0, %c0_0] : memref<6x25xbf16, #tpu.memory_space<vmem>>, vector<6x25xbf16>
    %c0_1 = arith.constant 0 : index
    %c0_2 = arith.constant 0 : index
    %1 = vector.load %arg0[%c0_1, %c0_2] : memref<25x1568xbf16, #tpu.memory_space<vmem>>, vector<25x1568xbf16>
    %cst = arith.constant dense<0.000000e+00> : vector<6x1568xf32>
    %2 = tpu.matmul %0, %1, %cst {dimension_numbers = #tpu.dot_dimension_numbers<[1], [0], [0], [1], [0, 0, 1, 1], [], []>} : vector<6x25xbf16>, vector<25x1568xbf16>, vector<6x1568xf32> -> vector<6x1568xf32>
    %c0_3 = arith.constant 0 : index
    %c0_4 = arith.constant 0 : index
    %3 = vector.load %arg2[%c0_3, %c0_4] : memref<6x1xf32, #tpu.memory_space<vmem>>, vector<6x1xf32>
    %4 = vector.broadcast %3 : vector<6x1xf32> to vector<6x1568xf32>
    %5 = arith.addf %2, %4 : vector<6x1568xf32>
    %cst_5 = arith.constant 0.000000e+00 : f32
    %6 = vector.broadcast %cst_5 : f32 to vector<6x1568xf32>
    %7 = arith.maximumf %5, %6 : vector<6x1568xf32>
    %8 = vector.extract_strided_slice %7 {offsets = [0, 1], sizes = [6, 1567], strides = [1, 1]} : vector<6x1568xf32> to vector<6x1567xf32>
    %9 = vector.extract_strided_slice %7 {offsets = [0, 0], sizes = [6, 1], strides = [1, 1]} : vector<6x1568xf32> to vector<6x1xf32>
    %10 = tpu.concatenate %8, %9 in 1 : vector<6x1567xf32>, vector<6x1xf32> -> vector<6x1568xf32>
    %11 = arith.maximumf %7, %10 : vector<6x1568xf32>
    %12 = vector.extract_strided_slice %7 {offsets = [0, 28], sizes = [6, 1540], strides = [1, 1]} : vector<6x1568xf32> to vector<6x1540xf32>
    %13 = vector.extract_strided_slice %7 {offsets = [0, 0], sizes = [6, 28], strides = [1, 1]} : vector<6x1568xf32> to vector<6x28xf32>
    %14 = tpu.concatenate %12, %13 in 1 : vector<6x1540xf32>, vector<6x28xf32> -> vector<6x1568xf32>
    %15 = vector.extract_strided_slice %7 {offsets = [0, 29], sizes = [6, 1539], strides = [1, 1]} : vector<6x1568xf32> to vector<6x1539xf32>
    %16 = vector.extract_strided_slice %7 {offsets = [0, 0], sizes = [6, 29], strides = [1, 1]} : vector<6x1568xf32> to vector<6x29xf32>
    %17 = tpu.concatenate %15, %16 in 1 : vector<6x1539xf32>, vector<6x29xf32> -> vector<6x1568xf32>
    %18 = arith.maximumf %14, %17 : vector<6x1568xf32>
    %19 = arith.maximumf %11, %18 : vector<6x1568xf32>
    %20 = vector.extract_strided_slice %19 {offsets = [0, 0], sizes = [6, 784], strides = [1, 1]} : vector<6x1568xf32> to vector<6x784xf32>
    %21 = arith.truncf %20 : vector<6x784xf32> to vector<6x784xbf16>
    %c0_6 = arith.constant 0 : index
    %c0_7 = arith.constant 0 : index
    %22 = vector.load %arg3[%c0_6, %c0_7] : memref<784x196xbf16, #tpu.memory_space<vmem>>, vector<784x196xbf16>
    %cst_8 = arith.constant dense<0.000000e+00> : vector<6x196xf32>
    %23 = tpu.matmul %21, %22, %cst_8 {dimension_numbers = #tpu.dot_dimension_numbers<[1], [0], [0], [1], [0, 0, 1, 1], [], []>} : vector<6x784xbf16>, vector<784x196xbf16>, vector<6x196xf32> -> vector<6x196xf32>
    %24 = vector.extract_strided_slice %19 {offsets = [0, 784], sizes = [6, 784], strides = [1, 1]} : vector<6x1568xf32> to vector<6x784xf32>
    %25 = arith.truncf %24 : vector<6x784xf32> to vector<6x784xbf16>
    %c0_9 = arith.constant 0 : index
    %c0_10 = arith.constant 0 : index
    %26 = vector.load %arg3[%c0_9, %c0_10] : memref<784x196xbf16, #tpu.memory_space<vmem>>, vector<784x196xbf16>
    %cst_11 = arith.constant dense<0.000000e+00> : vector<6x196xf32>
    %27 = tpu.matmul %25, %26, %cst_11 {dimension_numbers = #tpu.dot_dimension_numbers<[1], [0], [0], [1], [0, 0, 1, 1], [], []>} : vector<6x784xbf16>, vector<784x196xbf16>, vector<6x196xf32> -> vector<6x196xf32>
    %28 = tpu.concatenate %23, %27 in 1 : vector<6x196xf32>, vector<6x196xf32> -> vector<6x392xf32>
    %29 = arith.truncf %28 : vector<6x392xf32> to vector<6x392xbf16>
    %30 = vector.extract_strided_slice %29 {offsets = [0, 362], sizes = [6, 30], strides = [1, 1]} : vector<6x392xbf16> to vector<6x30xbf16>
    %31 = vector.extract_strided_slice %29 {offsets = [0, 0], sizes = [6, 362], strides = [1, 1]} : vector<6x392xbf16> to vector<6x362xbf16>
    %32 = tpu.concatenate %30, %31 in 1 : vector<6x30xbf16>, vector<6x362xbf16> -> vector<6x392xbf16>
    %c0_12 = arith.constant 0 : index
    %c0_13 = arith.constant 0 : index
    %33 = vector.load %arg4[%c0_12, %c0_13] : memref<25x392xbf16, #tpu.memory_space<vmem>>, vector<1x392xbf16>
    %34 = vector.broadcast %33 : vector<1x392xbf16> to vector<6x392xbf16>
    %35 = arith.mulf %32, %34 : vector<6x392xbf16>
    %c0_14 = arith.constant 0 : index
    %c0_15 = arith.constant 0 : index
    %c0_16 = arith.constant 0 : index
    %36 = vector.load %arg5[%c0_14, %c0_15, %c0_16] : memref<25x16x6xbf16, #tpu.memory_space<vmem>>, vector<1x16x6xbf16>
    %37 = vector.shape_cast %36 : vector<1x16x6xbf16> to vector<16x6xbf16>
    %cst_17 = arith.constant dense<0.000000e+00> : vector<16x392xf32>
    %38 = tpu.matmul %37, %35, %cst_17 {dimension_numbers = #tpu.dot_dimension_numbers<[1], [0], [0], [1], [0, 0, 1, 1], [], []>} : vector<16x6xbf16>, vector<6x392xbf16>, vector<16x392xf32> -> vector<16x392xf32>
    %39 = vector.extract_strided_slice %29 {offsets = [0, 363], sizes = [6, 29], strides = [1, 1]} : vector<6x392xbf16> to vector<6x29xbf16>
    %40 = vector.extract_strided_slice %29 {offsets = [0, 0], sizes = [6, 363], strides = [1, 1]} : vector<6x392xbf16> to vector<6x363xbf16>
    %41 = tpu.concatenate %39, %40 in 1 : vector<6x29xbf16>, vector<6x363xbf16> -> vector<6x392xbf16>
    %c1 = arith.constant 1 : index
    %c0_18 = arith.constant 0 : index
    %42 = vector.load %arg4[%c1, %c0_18] : memref<25x392xbf16, #tpu.memory_space<vmem>>, vector<1x392xbf16>
    %43 = vector.broadcast %42 : vector<1x392xbf16> to vector<6x392xbf16>
    %44 = arith.mulf %41, %43 : vector<6x392xbf16>
    %c1_19 = arith.constant 1 : index
    %c0_20 = arith.constant 0 : index
    %c0_21 = arith.constant 0 : index
    %45 = vector.load %arg5[%c1_19, %c0_20, %c0_21] : memref<25x16x6xbf16, #tpu.memory_space<vmem>>, vector<1x16x6xbf16>
    %46 = vector.shape_cast %45 : vector<1x16x6xbf16> to vector<16x6xbf16>
    %cst_22 = arith.constant dense<0.000000e+00> : vector<16x392xf32>
    %47 = tpu.matmul %46, %44, %cst_22 {dimension_numbers = #tpu.dot_dimension_numbers<[1], [0], [0], [1], [0, 0, 1, 1], [], []>} : vector<16x6xbf16>, vector<6x392xbf16>, vector<16x392xf32> -> vector<16x392xf32>
    %48 = arith.addf %38, %47 : vector<16x392xf32>
    %49 = vector.extract_strided_slice %29 {offsets = [0, 364], sizes = [6, 28], strides = [1, 1]} : vector<6x392xbf16> to vector<6x28xbf16>
    %50 = vector.extract_strided_slice %29 {offsets = [0, 0], sizes = [6, 364], strides = [1, 1]} : vector<6x392xbf16> to vector<6x364xbf16>
    %51 = tpu.concatenate %49, %50 in 1 : vector<6x28xbf16>, vector<6x364xbf16> -> vector<6x392xbf16>
    %c2 = arith.constant 2 : index
    %c0_23 = arith.constant 0 : index
    %52 = vector.load %arg4[%c2, %c0_23] : memref<25x392xbf16, #tpu.memory_space<vmem>>, vector<1x392xbf16>
    %53 = vector.broadcast %52 : vector<1x392xbf16> to vector<6x392xbf16>
    %54 = arith.mulf %51, %53 : vector<6x392xbf16>
    %c2_24 = arith.constant 2 : index
    %c0_25 = arith.constant 0 : index
    %c0_26 = arith.constant 0 : index
    %55 = vector.load %arg5[%c2_24, %c0_25, %c0_26] : memref<25x16x6xbf16, #tpu.memory_space<vmem>>, vector<1x16x6xbf16>
    %56 = vector.shape_cast %55 : vector<1x16x6xbf16> to vector<16x6xbf16>
    %cst_27 = arith.constant dense<0.000000e+00> : vector<16x392xf32>
    %57 = tpu.matmul %56, %54, %cst_27 {dimension_numbers = #tpu.dot_dimension_numbers<[1], [0], [0], [1], [0, 0, 1, 1], [], []>} : vector<16x6xbf16>, vector<6x392xbf16>, vector<16x392xf32> -> vector<16x392xf32>
    %58 = arith.addf %48, %57 : vector<16x392xf32>
    %59 = vector.extract_strided_slice %29 {offsets = [0, 365], sizes = [6, 27], strides = [1, 1]} : vector<6x392xbf16> to vector<6x27xbf16>
    %60 = vector.extract_strided_slice %29 {offsets = [0, 0], sizes = [6, 365], strides = [1, 1]} : vector<6x392xbf16> to vector<6x365xbf16>
    %61 = tpu.concatenate %59, %60 in 1 : vector<6x27xbf16>, vector<6x365xbf16> -> vector<6x392xbf16>
    %c3 = arith.constant 3 : index
    %c0_28 = arith.constant 0 : index
    %62 = vector.load %arg4[%c3, %c0_28] : memref<25x392xbf16, #tpu.memory_space<vmem>>, vector<1x392xbf16>
    %63 = vector.broadcast %62 : vector<1x392xbf16> to vector<6x392xbf16>
    %64 = arith.mulf %61, %63 : vector<6x392xbf16>
    %c3_29 = arith.constant 3 : index
    %c0_30 = arith.constant 0 : index
    %c0_31 = arith.constant 0 : index
    %65 = vector.load %arg5[%c3_29, %c0_30, %c0_31] : memref<25x16x6xbf16, #tpu.memory_space<vmem>>, vector<1x16x6xbf16>
    %66 = vector.shape_cast %65 : vector<1x16x6xbf16> to vector<16x6xbf16>
    %cst_32 = arith.constant dense<0.000000e+00> : vector<16x392xf32>
    %67 = tpu.matmul %66, %64, %cst_32 {dimension_numbers = #tpu.dot_dimension_numbers<[1], [0], [0], [1], [0, 0, 1, 1], [], []>} : vector<16x6xbf16>, vector<6x392xbf16>, vector<16x392xf32> -> vector<16x392xf32>
    %68 = arith.addf %58, %67 : vector<16x392xf32>
    %69 = vector.extract_strided_slice %29 {offsets = [0, 366], sizes = [6, 26], strides = [1, 1]} : vector<6x392xbf16> to vector<6x26xbf16>
    %70 = vector.extract_strided_slice %29 {offsets = [0, 0], sizes = [6, 366], strides = [1, 1]} : vector<6x392xbf16> to vector<6x366xbf16>
    %71 = tpu.concatenate %69, %70 in 1 : vector<6x26xbf16>, vector<6x366xbf16> -> vector<6x392xbf16>
    %c4 = arith.constant 4 : index
    %c0_33 = arith.constant 0 : index
    %72 = vector.load %arg4[%c4, %c0_33] : memref<25x392xbf16, #tpu.memory_space<vmem>>, vector<1x392xbf16>
    %73 = vector.broadcast %72 : vector<1x392xbf16> to vector<6x392xbf16>
    %74 = arith.mulf %71, %73 : vector<6x392xbf16>
    %c4_34 = arith.constant 4 : index
    %c0_35 = arith.constant 0 : index
    %c0_36 = arith.constant 0 : index
    %75 = vector.load %arg5[%c4_34, %c0_35, %c0_36] : memref<25x16x6xbf16, #tpu.memory_space<vmem>>, vector<1x16x6xbf16>
    %76 = vector.shape_cast %75 : vector<1x16x6xbf16> to vector<16x6xbf16>
    %cst_37 = arith.constant dense<0.000000e+00> : vector<16x392xf32>
    %77 = tpu.matmul %76, %74, %cst_37 {dimension_numbers = #tpu.dot_dimension_numbers<[1], [0], [0], [1], [0, 0, 1, 1], [], []>} : vector<16x6xbf16>, vector<6x392xbf16>, vector<16x392xf32> -> vector<16x392xf32>
    %78 = arith.addf %68, %77 : vector<16x392xf32>
    %79 = vector.extract_strided_slice %29 {offsets = [0, 376], sizes = [6, 16], strides = [1, 1]} : vector<6x392xbf16> to vector<6x16xbf16>
    %80 = vector.extract_strided_slice %29 {offsets = [0, 0], sizes = [6, 376], strides = [1, 1]} : vector<6x392xbf16> to vector<6x376xbf16>
    %81 = tpu.concatenate %79, %80 in 1 : vector<6x16xbf16>, vector<6x376xbf16> -> vector<6x392xbf16>
    %c5 = arith.constant 5 : index
    %c0_38 = arith.constant 0 : index
    %82 = vector.load %arg4[%c5, %c0_38] : memref<25x392xbf16, #tpu.memory_space<vmem>>, vector<1x392xbf16>
    %83 = vector.broadcast %82 : vector<1x392xbf16> to vector<6x392xbf16>
    %84 = arith.mulf %81, %83 : vector<6x392xbf16>
    %c5_39 = arith.constant 5 : index
    %c0_40 = arith.constant 0 : index
    %c0_41 = arith.constant 0 : index
    %85 = vector.load %arg5[%c5_39, %c0_40, %c0_41] : memref<25x16x6xbf16, #tpu.memory_space<vmem>>, vector<1x16x6xbf16>
    %86 = vector.shape_cast %85 : vector<1x16x6xbf16> to vector<16x6xbf16>
    %cst_42 = arith.constant dense<0.000000e+00> : vector<16x392xf32>
    %87 = tpu.matmul %86, %84, %cst_42 {dimension_numbers = #tpu.dot_dimension_numbers<[1], [0], [0], [1], [0, 0, 1, 1], [], []>} : vector<16x6xbf16>, vector<6x392xbf16>, vector<16x392xf32> -> vector<16x392xf32>
    %88 = arith.addf %78, %87 : vector<16x392xf32>
    %89 = vector.extract_strided_slice %29 {offsets = [0, 377], sizes = [6, 15], strides = [1, 1]} : vector<6x392xbf16> to vector<6x15xbf16>
    %90 = vector.extract_strided_slice %29 {offsets = [0, 0], sizes = [6, 377], strides = [1, 1]} : vector<6x392xbf16> to vector<6x377xbf16>
    %91 = tpu.concatenate %89, %90 in 1 : vector<6x15xbf16>, vector<6x377xbf16> -> vector<6x392xbf16>
    %c6 = arith.constant 6 : index
    %c0_43 = arith.constant 0 : index
    %92 = vector.load %arg4[%c6, %c0_43] : memref<25x392xbf16, #tpu.memory_space<vmem>>, vector<1x392xbf16>
    %93 = vector.broadcast %92 : vector<1x392xbf16> to vector<6x392xbf16>
    %94 = arith.mulf %91, %93 : vector<6x392xbf16>
    %c6_44 = arith.constant 6 : index
    %c0_45 = arith.constant 0 : index
    %c0_46 = arith.constant 0 : index
    %95 = vector.load %arg5[%c6_44, %c0_45, %c0_46] : memref<25x16x6xbf16, #tpu.memory_space<vmem>>, vector<1x16x6xbf16>
    %96 = vector.shape_cast %95 : vector<1x16x6xbf16> to vector<16x6xbf16>
    %cst_47 = arith.constant dense<0.000000e+00> : vector<16x392xf32>
    %97 = tpu.matmul %96, %94, %cst_47 {dimension_numbers = #tpu.dot_dimension_numbers<[1], [0], [0], [1], [0, 0, 1, 1], [], []>} : vector<16x6xbf16>, vector<6x392xbf16>, vector<16x392xf32> -> vector<16x392xf32>
    %98 = arith.addf %88, %97 : vector<16x392xf32>
    %99 = vector.extract_strided_slice %29 {offsets = [0, 378], sizes = [6, 14], strides = [1, 1]} : vector<6x392xbf16> to vector<6x14xbf16>
    %100 = vector.extract_strided_slice %29 {offsets = [0, 0], sizes = [6, 378], strides = [1, 1]} : vector<6x392xbf16> to vector<6x378xbf16>
    %101 = tpu.concatenate %99, %100 in 1 : vector<6x14xbf16>, vector<6x378xbf16> -> vector<6x392xbf16>
    %c7 = arith.constant 7 : index
    %c0_48 = arith.constant 0 : index
    %102 = vector.load %arg4[%c7, %c0_48] : memref<25x392xbf16, #tpu.memory_space<vmem>>, vector<1x392xbf16>
    %103 = vector.broadcast %102 : vector<1x392xbf16> to vector<6x392xbf16>
    %104 = arith.mulf %101, %103 : vector<6x392xbf16>
    %c7_49 = arith.constant 7 : index
    %c0_50 = arith.constant 0 : index
    %c0_51 = arith.constant 0 : index
    %105 = vector.load %arg5[%c7_49, %c0_50, %c0_51] : memref<25x16x6xbf16, #tpu.memory_space<vmem>>, vector<1x16x6xbf16>
    %106 = vector.shape_cast %105 : vector<1x16x6xbf16> to vector<16x6xbf16>
    %cst_52 = arith.constant dense<0.000000e+00> : vector<16x392xf32>
    %107 = tpu.matmul %106, %104, %cst_52 {dimension_numbers = #tpu.dot_dimension_numbers<[1], [0], [0], [1], [0, 0, 1, 1], [], []>} : vector<16x6xbf16>, vector<6x392xbf16>, vector<16x392xf32> -> vector<16x392xf32>
    %108 = arith.addf %98, %107 : vector<16x392xf32>
    %109 = vector.extract_strided_slice %29 {offsets = [0, 379], sizes = [6, 13], strides = [1, 1]} : vector<6x392xbf16> to vector<6x13xbf16>
    %110 = vector.extract_strided_slice %29 {offsets = [0, 0], sizes = [6, 379], strides = [1, 1]} : vector<6x392xbf16> to vector<6x379xbf16>
    %111 = tpu.concatenate %109, %110 in 1 : vector<6x13xbf16>, vector<6x379xbf16> -> vector<6x392xbf16>
    %c8 = arith.constant 8 : index
    %c0_53 = arith.constant 0 : index
    %112 = vector.load %arg4[%c8, %c0_53] : memref<25x392xbf16, #tpu.memory_space<vmem>>, vector<1x392xbf16>
    %113 = vector.broadcast %112 : vector<1x392xbf16> to vector<6x392xbf16>
    %114 = arith.mulf %111, %113 : vector<6x392xbf16>
    %c8_54 = arith.constant 8 : index
    %c0_55 = arith.constant 0 : index
    %c0_56 = arith.constant 0 : index
    %115 = vector.load %arg5[%c8_54, %c0_55, %c0_56] : memref<25x16x6xbf16, #tpu.memory_space<vmem>>, vector<1x16x6xbf16>
    %116 = vector.shape_cast %115 : vector<1x16x6xbf16> to vector<16x6xbf16>
    %cst_57 = arith.constant dense<0.000000e+00> : vector<16x392xf32>
    %117 = tpu.matmul %116, %114, %cst_57 {dimension_numbers = #tpu.dot_dimension_numbers<[1], [0], [0], [1], [0, 0, 1, 1], [], []>} : vector<16x6xbf16>, vector<6x392xbf16>, vector<16x392xf32> -> vector<16x392xf32>
    %118 = arith.addf %108, %117 : vector<16x392xf32>
    %119 = vector.extract_strided_slice %29 {offsets = [0, 380], sizes = [6, 12], strides = [1, 1]} : vector<6x392xbf16> to vector<6x12xbf16>
    %120 = vector.extract_strided_slice %29 {offsets = [0, 0], sizes = [6, 380], strides = [1, 1]} : vector<6x392xbf16> to vector<6x380xbf16>
    %121 = tpu.concatenate %119, %120 in 1 : vector<6x12xbf16>, vector<6x380xbf16> -> vector<6x392xbf16>
    %c9 = arith.constant 9 : index
    %c0_58 = arith.constant 0 : index
    %122 = vector.load %arg4[%c9, %c0_58] : memref<25x392xbf16, #tpu.memory_space<vmem>>, vector<1x392xbf16>
    %123 = vector.broadcast %122 : vector<1x392xbf16> to vector<6x392xbf16>
    %124 = arith.mulf %121, %123 : vector<6x392xbf16>
    %c9_59 = arith.constant 9 : index
    %c0_60 = arith.constant 0 : index
    %c0_61 = arith.constant 0 : index
    %125 = vector.load %arg5[%c9_59, %c0_60, %c0_61] : memref<25x16x6xbf16, #tpu.memory_space<vmem>>, vector<1x16x6xbf16>
    %126 = vector.shape_cast %125 : vector<1x16x6xbf16> to vector<16x6xbf16>
    %cst_62 = arith.constant dense<0.000000e+00> : vector<16x392xf32>
    %127 = tpu.matmul %126, %124, %cst_62 {dimension_numbers = #tpu.dot_dimension_numbers<[1], [0], [0], [1], [0, 0, 1, 1], [], []>} : vector<16x6xbf16>, vector<6x392xbf16>, vector<16x392xf32> -> vector<16x392xf32>
    %128 = arith.addf %118, %127 : vector<16x392xf32>
    %129 = vector.extract_strided_slice %29 {offsets = [0, 390], sizes = [6, 2], strides = [1, 1]} : vector<6x392xbf16> to vector<6x2xbf16>
    %130 = vector.extract_strided_slice %29 {offsets = [0, 0], sizes = [6, 390], strides = [1, 1]} : vector<6x392xbf16> to vector<6x390xbf16>
    %131 = tpu.concatenate %129, %130 in 1 : vector<6x2xbf16>, vector<6x390xbf16> -> vector<6x392xbf16>
    %c10 = arith.constant 10 : index
    %c0_63 = arith.constant 0 : index
    %132 = vector.load %arg4[%c10, %c0_63] : memref<25x392xbf16, #tpu.memory_space<vmem>>, vector<1x392xbf16>
    %133 = vector.broadcast %132 : vector<1x392xbf16> to vector<6x392xbf16>
    %134 = arith.mulf %131, %133 : vector<6x392xbf16>
    %c10_64 = arith.constant 10 : index
    %c0_65 = arith.constant 0 : index
    %c0_66 = arith.constant 0 : index
    %135 = vector.load %arg5[%c10_64, %c0_65, %c0_66] : memref<25x16x6xbf16, #tpu.memory_space<vmem>>, vector<1x16x6xbf16>
    %136 = vector.shape_cast %135 : vector<1x16x6xbf16> to vector<16x6xbf16>
    %cst_67 = arith.constant dense<0.000000e+00> : vector<16x392xf32>
    %137 = tpu.matmul %136, %134, %cst_67 {dimension_numbers = #tpu.dot_dimension_numbers<[1], [0], [0], [1], [0, 0, 1, 1], [], []>} : vector<16x6xbf16>, vector<6x392xbf16>, vector<16x392xf32> -> vector<16x392xf32>
    %138 = arith.addf %128, %137 : vector<16x392xf32>
    %139 = vector.extract_strided_slice %29 {offsets = [0, 391], sizes = [6, 1], strides = [1, 1]} : vector<6x392xbf16> to vector<6x1xbf16>
    %140 = vector.extract_strided_slice %29 {offsets = [0, 0], sizes = [6, 391], strides = [1, 1]} : vector<6x392xbf16> to vector<6x391xbf16>
    %141 = tpu.concatenate %139, %140 in 1 : vector<6x1xbf16>, vector<6x391xbf16> -> vector<6x392xbf16>
    %c11 = arith.constant 11 : index
    %c0_68 = arith.constant 0 : index
    %142 = vector.load %arg4[%c11, %c0_68] : memref<25x392xbf16, #tpu.memory_space<vmem>>, vector<1x392xbf16>
    %143 = vector.broadcast %142 : vector<1x392xbf16> to vector<6x392xbf16>
    %144 = arith.mulf %141, %143 : vector<6x392xbf16>
    %c11_69 = arith.constant 11 : index
    %c0_70 = arith.constant 0 : index
    %c0_71 = arith.constant 0 : index
    %145 = vector.load %arg5[%c11_69, %c0_70, %c0_71] : memref<25x16x6xbf16, #tpu.memory_space<vmem>>, vector<1x16x6xbf16>
    %146 = vector.shape_cast %145 : vector<1x16x6xbf16> to vector<16x6xbf16>
    %cst_72 = arith.constant dense<0.000000e+00> : vector<16x392xf32>
    %147 = tpu.matmul %146, %144, %cst_72 {dimension_numbers = #tpu.dot_dimension_numbers<[1], [0], [0], [1], [0, 0, 1, 1], [], []>} : vector<16x6xbf16>, vector<6x392xbf16>, vector<16x392xf32> -> vector<16x392xf32>
    %148 = arith.addf %138, %147 : vector<16x392xf32>
    %c12 = arith.constant 12 : index
    %c0_73 = arith.constant 0 : index
    %149 = vector.load %arg4[%c12, %c0_73] : memref<25x392xbf16, #tpu.memory_space<vmem>>, vector<1x392xbf16>
    %150 = vector.broadcast %149 : vector<1x392xbf16> to vector<6x392xbf16>
    %151 = arith.mulf %29, %150 : vector<6x392xbf16>
    %c12_74 = arith.constant 12 : index
    %c0_75 = arith.constant 0 : index
    %c0_76 = arith.constant 0 : index
    %152 = vector.load %arg5[%c12_74, %c0_75, %c0_76] : memref<25x16x6xbf16, #tpu.memory_space<vmem>>, vector<1x16x6xbf16>
    %153 = vector.shape_cast %152 : vector<1x16x6xbf16> to vector<16x6xbf16>
    %cst_77 = arith.constant dense<0.000000e+00> : vector<16x392xf32>
    %154 = tpu.matmul %153, %151, %cst_77 {dimension_numbers = #tpu.dot_dimension_numbers<[1], [0], [0], [1], [0, 0, 1, 1], [], []>} : vector<16x6xbf16>, vector<6x392xbf16>, vector<16x392xf32> -> vector<16x392xf32>
    %155 = arith.addf %148, %154 : vector<16x392xf32>
    %156 = vector.extract_strided_slice %29 {offsets = [0, 1], sizes = [6, 391], strides = [1, 1]} : vector<6x392xbf16> to vector<6x391xbf16>
    %157 = vector.extract_strided_slice %29 {offsets = [0, 0], sizes = [6, 1], strides = [1, 1]} : vector<6x392xbf16> to vector<6x1xbf16>
    %158 = tpu.concatenate %156, %157 in 1 : vector<6x391xbf16>, vector<6x1xbf16> -> vector<6x392xbf16>
    %c13 = arith.constant 13 : index
    %c0_78 = arith.constant 0 : index
    %159 = vector.load %arg4[%c13, %c0_78] : memref<25x392xbf16, #tpu.memory_space<vmem>>, vector<1x392xbf16>
    %160 = vector.broadcast %159 : vector<1x392xbf16> to vector<6x392xbf16>
    %161 = arith.mulf %158, %160 : vector<6x392xbf16>
    %c13_79 = arith.constant 13 : index
    %c0_80 = arith.constant 0 : index
    %c0_81 = arith.constant 0 : index
    %162 = vector.load %arg5[%c13_79, %c0_80, %c0_81] : memref<25x16x6xbf16, #tpu.memory_space<vmem>>, vector<1x16x6xbf16>
    %163 = vector.shape_cast %162 : vector<1x16x6xbf16> to vector<16x6xbf16>
    %cst_82 = arith.constant dense<0.000000e+00> : vector<16x392xf32>
    %164 = tpu.matmul %163, %161, %cst_82 {dimension_numbers = #tpu.dot_dimension_numbers<[1], [0], [0], [1], [0, 0, 1, 1], [], []>} : vector<16x6xbf16>, vector<6x392xbf16>, vector<16x392xf32> -> vector<16x392xf32>
    %165 = arith.addf %155, %164 : vector<16x392xf32>
    %166 = vector.extract_strided_slice %29 {offsets = [0, 2], sizes = [6, 390], strides = [1, 1]} : vector<6x392xbf16> to vector<6x390xbf16>
    %167 = vector.extract_strided_slice %29 {offsets = [0, 0], sizes = [6, 2], strides = [1, 1]} : vector<6x392xbf16> to vector<6x2xbf16>
    %168 = tpu.concatenate %166, %167 in 1 : vector<6x390xbf16>, vector<6x2xbf16> -> vector<6x392xbf16>
    %c14 = arith.constant 14 : index
    %c0_83 = arith.constant 0 : index
    %169 = vector.load %arg4[%c14, %c0_83] : memref<25x392xbf16, #tpu.memory_space<vmem>>, vector<1x392xbf16>
    %170 = vector.broadcast %169 : vector<1x392xbf16> to vector<6x392xbf16>
    %171 = arith.mulf %168, %170 : vector<6x392xbf16>
    %c14_84 = arith.constant 14 : index
    %c0_85 = arith.constant 0 : index
    %c0_86 = arith.constant 0 : index
    %172 = vector.load %arg5[%c14_84, %c0_85, %c0_86] : memref<25x16x6xbf16, #tpu.memory_space<vmem>>, vector<1x16x6xbf16>
    %173 = vector.shape_cast %172 : vector<1x16x6xbf16> to vector<16x6xbf16>
    %cst_87 = arith.constant dense<0.000000e+00> : vector<16x392xf32>
    %174 = tpu.matmul %173, %171, %cst_87 {dimension_numbers = #tpu.dot_dimension_numbers<[1], [0], [0], [1], [0, 0, 1, 1], [], []>} : vector<16x6xbf16>, vector<6x392xbf16>, vector<16x392xf32> -> vector<16x392xf32>
    %175 = arith.addf %165, %174 : vector<16x392xf32>
    %176 = vector.extract_strided_slice %29 {offsets = [0, 12], sizes = [6, 380], strides = [1, 1]} : vector<6x392xbf16> to vector<6x380xbf16>
    %177 = vector.extract_strided_slice %29 {offsets = [0, 0], sizes = [6, 12], strides = [1, 1]} : vector<6x392xbf16> to vector<6x12xbf16>
    %178 = tpu.concatenate %176, %177 in 1 : vector<6x380xbf16>, vector<6x12xbf16> -> vector<6x392xbf16>
    %c15 = arith.constant 15 : index
    %c0_88 = arith.constant 0 : index
    %179 = vector.load %arg4[%c15, %c0_88] : memref<25x392xbf16, #tpu.memory_space<vmem>>, vector<1x392xbf16>
    %180 = vector.broadcast %179 : vector<1x392xbf16> to vector<6x392xbf16>
    %181 = arith.mulf %178, %180 : vector<6x392xbf16>
    %c15_89 = arith.constant 15 : index
    %c0_90 = arith.constant 0 : index
    %c0_91 = arith.constant 0 : index
    %182 = vector.load %arg5[%c15_89, %c0_90, %c0_91] : memref<25x16x6xbf16, #tpu.memory_space<vmem>>, vector<1x16x6xbf16>
    %183 = vector.shape_cast %182 : vector<1x16x6xbf16> to vector<16x6xbf16>
    %cst_92 = arith.constant dense<0.000000e+00> : vector<16x392xf32>
    %184 = tpu.matmul %183, %181, %cst_92 {dimension_numbers = #tpu.dot_dimension_numbers<[1], [0], [0], [1], [0, 0, 1, 1], [], []>} : vector<16x6xbf16>, vector<6x392xbf16>, vector<16x392xf32> -> vector<16x392xf32>
    %185 = arith.addf %175, %184 : vector<16x392xf32>
    %186 = vector.extract_strided_slice %29 {offsets = [0, 13], sizes = [6, 379], strides = [1, 1]} : vector<6x392xbf16> to vector<6x379xbf16>
    %187 = vector.extract_strided_slice %29 {offsets = [0, 0], sizes = [6, 13], strides = [1, 1]} : vector<6x392xbf16> to vector<6x13xbf16>
    %188 = tpu.concatenate %186, %187 in 1 : vector<6x379xbf16>, vector<6x13xbf16> -> vector<6x392xbf16>
    %c16 = arith.constant 16 : index
    %c0_93 = arith.constant 0 : index
    %189 = vector.load %arg4[%c16, %c0_93] : memref<25x392xbf16, #tpu.memory_space<vmem>>, vector<1x392xbf16>
    %190 = vector.broadcast %189 : vector<1x392xbf16> to vector<6x392xbf16>
    %191 = arith.mulf %188, %190 : vector<6x392xbf16>
    %c16_94 = arith.constant 16 : index
    %c0_95 = arith.constant 0 : index
    %c0_96 = arith.constant 0 : index
    %192 = vector.load %arg5[%c16_94, %c0_95, %c0_96] : memref<25x16x6xbf16, #tpu.memory_space<vmem>>, vector<1x16x6xbf16>
    %193 = vector.shape_cast %192 : vector<1x16x6xbf16> to vector<16x6xbf16>
    %cst_97 = arith.constant dense<0.000000e+00> : vector<16x392xf32>
    %194 = tpu.matmul %193, %191, %cst_97 {dimension_numbers = #tpu.dot_dimension_numbers<[1], [0], [0], [1], [0, 0, 1, 1], [], []>} : vector<16x6xbf16>, vector<6x392xbf16>, vector<16x392xf32> -> vector<16x392xf32>
    %195 = arith.addf %185, %194 : vector<16x392xf32>
    %196 = vector.extract_strided_slice %29 {offsets = [0, 14], sizes = [6, 378], strides = [1, 1]} : vector<6x392xbf16> to vector<6x378xbf16>
    %197 = vector.extract_strided_slice %29 {offsets = [0, 0], sizes = [6, 14], strides = [1, 1]} : vector<6x392xbf16> to vector<6x14xbf16>
    %198 = tpu.concatenate %196, %197 in 1 : vector<6x378xbf16>, vector<6x14xbf16> -> vector<6x392xbf16>
    %c17 = arith.constant 17 : index
    %c0_98 = arith.constant 0 : index
    %199 = vector.load %arg4[%c17, %c0_98] : memref<25x392xbf16, #tpu.memory_space<vmem>>, vector<1x392xbf16>
    %200 = vector.broadcast %199 : vector<1x392xbf16> to vector<6x392xbf16>
    %201 = arith.mulf %198, %200 : vector<6x392xbf16>
    %c17_99 = arith.constant 17 : index
    %c0_100 = arith.constant 0 : index
    %c0_101 = arith.constant 0 : index
    %202 = vector.load %arg5[%c17_99, %c0_100, %c0_101] : memref<25x16x6xbf16, #tpu.memory_space<vmem>>, vector<1x16x6xbf16>
    %203 = vector.shape_cast %202 : vector<1x16x6xbf16> to vector<16x6xbf16>
    %cst_102 = arith.constant dense<0.000000e+00> : vector<16x392xf32>
    %204 = tpu.matmul %203, %201, %cst_102 {dimension_numbers = #tpu.dot_dimension_numbers<[1], [0], [0], [1], [0, 0, 1, 1], [], []>} : vector<16x6xbf16>, vector<6x392xbf16>, vector<16x392xf32> -> vector<16x392xf32>
    %205 = arith.addf %195, %204 : vector<16x392xf32>
    %206 = vector.extract_strided_slice %29 {offsets = [0, 15], sizes = [6, 377], strides = [1, 1]} : vector<6x392xbf16> to vector<6x377xbf16>
    %207 = vector.extract_strided_slice %29 {offsets = [0, 0], sizes = [6, 15], strides = [1, 1]} : vector<6x392xbf16> to vector<6x15xbf16>
    %208 = tpu.concatenate %206, %207 in 1 : vector<6x377xbf16>, vector<6x15xbf16> -> vector<6x392xbf16>
    %c18 = arith.constant 18 : index
    %c0_103 = arith.constant 0 : index
    %209 = vector.load %arg4[%c18, %c0_103] : memref<25x392xbf16, #tpu.memory_space<vmem>>, vector<1x392xbf16>
    %210 = vector.broadcast %209 : vector<1x392xbf16> to vector<6x392xbf16>
    %211 = arith.mulf %208, %210 : vector<6x392xbf16>
    %c18_104 = arith.constant 18 : index
    %c0_105 = arith.constant 0 : index
    %c0_106 = arith.constant 0 : index
    %212 = vector.load %arg5[%c18_104, %c0_105, %c0_106] : memref<25x16x6xbf16, #tpu.memory_space<vmem>>, vector<1x16x6xbf16>
    %213 = vector.shape_cast %212 : vector<1x16x6xbf16> to vector<16x6xbf16>
    %cst_107 = arith.constant dense<0.000000e+00> : vector<16x392xf32>
    %214 = tpu.matmul %213, %211, %cst_107 {dimension_numbers = #tpu.dot_dimension_numbers<[1], [0], [0], [1], [0, 0, 1, 1], [], []>} : vector<16x6xbf16>, vector<6x392xbf16>, vector<16x392xf32> -> vector<16x392xf32>
    %215 = arith.addf %205, %214 : vector<16x392xf32>
    %216 = vector.extract_strided_slice %29 {offsets = [0, 16], sizes = [6, 376], strides = [1, 1]} : vector<6x392xbf16> to vector<6x376xbf16>
    %217 = vector.extract_strided_slice %29 {offsets = [0, 0], sizes = [6, 16], strides = [1, 1]} : vector<6x392xbf16> to vector<6x16xbf16>
    %218 = tpu.concatenate %216, %217 in 1 : vector<6x376xbf16>, vector<6x16xbf16> -> vector<6x392xbf16>
    %c19 = arith.constant 19 : index
    %c0_108 = arith.constant 0 : index
    %219 = vector.load %arg4[%c19, %c0_108] : memref<25x392xbf16, #tpu.memory_space<vmem>>, vector<1x392xbf16>
    %220 = vector.broadcast %219 : vector<1x392xbf16> to vector<6x392xbf16>
    %221 = arith.mulf %218, %220 : vector<6x392xbf16>
    %c19_109 = arith.constant 19 : index
    %c0_110 = arith.constant 0 : index
    %c0_111 = arith.constant 0 : index
    %222 = vector.load %arg5[%c19_109, %c0_110, %c0_111] : memref<25x16x6xbf16, #tpu.memory_space<vmem>>, vector<1x16x6xbf16>
    %223 = vector.shape_cast %222 : vector<1x16x6xbf16> to vector<16x6xbf16>
    %cst_112 = arith.constant dense<0.000000e+00> : vector<16x392xf32>
    %224 = tpu.matmul %223, %221, %cst_112 {dimension_numbers = #tpu.dot_dimension_numbers<[1], [0], [0], [1], [0, 0, 1, 1], [], []>} : vector<16x6xbf16>, vector<6x392xbf16>, vector<16x392xf32> -> vector<16x392xf32>
    %225 = arith.addf %215, %224 : vector<16x392xf32>
    %226 = vector.extract_strided_slice %29 {offsets = [0, 26], sizes = [6, 366], strides = [1, 1]} : vector<6x392xbf16> to vector<6x366xbf16>
    %227 = vector.extract_strided_slice %29 {offsets = [0, 0], sizes = [6, 26], strides = [1, 1]} : vector<6x392xbf16> to vector<6x26xbf16>
    %228 = tpu.concatenate %226, %227 in 1 : vector<6x366xbf16>, vector<6x26xbf16> -> vector<6x392xbf16>
    %c20 = arith.constant 20 : index
    %c0_113 = arith.constant 0 : index
    %229 = vector.load %arg4[%c20, %c0_113] : memref<25x392xbf16, #tpu.memory_space<vmem>>, vector<1x392xbf16>
    %230 = vector.broadcast %229 : vector<1x392xbf16> to vector<6x392xbf16>
    %231 = arith.mulf %228, %230 : vector<6x392xbf16>
    %c20_114 = arith.constant 20 : index
    %c0_115 = arith.constant 0 : index
    %c0_116 = arith.constant 0 : index
    %232 = vector.load %arg5[%c20_114, %c0_115, %c0_116] : memref<25x16x6xbf16, #tpu.memory_space<vmem>>, vector<1x16x6xbf16>
    %233 = vector.shape_cast %232 : vector<1x16x6xbf16> to vector<16x6xbf16>
    %cst_117 = arith.constant dense<0.000000e+00> : vector<16x392xf32>
    %234 = tpu.matmul %233, %231, %cst_117 {dimension_numbers = #tpu.dot_dimension_numbers<[1], [0], [0], [1], [0, 0, 1, 1], [], []>} : vector<16x6xbf16>, vector<6x392xbf16>, vector<16x392xf32> -> vector<16x392xf32>
    %235 = arith.addf %225, %234 : vector<16x392xf32>
    %236 = vector.extract_strided_slice %29 {offsets = [0, 27], sizes = [6, 365], strides = [1, 1]} : vector<6x392xbf16> to vector<6x365xbf16>
    %237 = vector.extract_strided_slice %29 {offsets = [0, 0], sizes = [6, 27], strides = [1, 1]} : vector<6x392xbf16> to vector<6x27xbf16>
    %238 = tpu.concatenate %236, %237 in 1 : vector<6x365xbf16>, vector<6x27xbf16> -> vector<6x392xbf16>
    %c21 = arith.constant 21 : index
    %c0_118 = arith.constant 0 : index
    %239 = vector.load %arg4[%c21, %c0_118] : memref<25x392xbf16, #tpu.memory_space<vmem>>, vector<1x392xbf16>
    %240 = vector.broadcast %239 : vector<1x392xbf16> to vector<6x392xbf16>
    %241 = arith.mulf %238, %240 : vector<6x392xbf16>
    %c21_119 = arith.constant 21 : index
    %c0_120 = arith.constant 0 : index
    %c0_121 = arith.constant 0 : index
    %242 = vector.load %arg5[%c21_119, %c0_120, %c0_121] : memref<25x16x6xbf16, #tpu.memory_space<vmem>>, vector<1x16x6xbf16>
    %243 = vector.shape_cast %242 : vector<1x16x6xbf16> to vector<16x6xbf16>
    %cst_122 = arith.constant dense<0.000000e+00> : vector<16x392xf32>
    %244 = tpu.matmul %243, %241, %cst_122 {dimension_numbers = #tpu.dot_dimension_numbers<[1], [0], [0], [1], [0, 0, 1, 1], [], []>} : vector<16x6xbf16>, vector<6x392xbf16>, vector<16x392xf32> -> vector<16x392xf32>
    %245 = arith.addf %235, %244 : vector<16x392xf32>
    %246 = vector.extract_strided_slice %29 {offsets = [0, 28], sizes = [6, 364], strides = [1, 1]} : vector<6x392xbf16> to vector<6x364xbf16>
    %247 = vector.extract_strided_slice %29 {offsets = [0, 0], sizes = [6, 28], strides = [1, 1]} : vector<6x392xbf16> to vector<6x28xbf16>
    %248 = tpu.concatenate %246, %247 in 1 : vector<6x364xbf16>, vector<6x28xbf16> -> vector<6x392xbf16>
    %c22 = arith.constant 22 : index
    %c0_123 = arith.constant 0 : index
    %249 = vector.load %arg4[%c22, %c0_123] : memref<25x392xbf16, #tpu.memory_space<vmem>>, vector<1x392xbf16>
    %250 = vector.broadcast %249 : vector<1x392xbf16> to vector<6x392xbf16>
    %251 = arith.mulf %248, %250 : vector<6x392xbf16>
    %c22_124 = arith.constant 22 : index
    %c0_125 = arith.constant 0 : index
    %c0_126 = arith.constant 0 : index
    %252 = vector.load %arg5[%c22_124, %c0_125, %c0_126] : memref<25x16x6xbf16, #tpu.memory_space<vmem>>, vector<1x16x6xbf16>
    %253 = vector.shape_cast %252 : vector<1x16x6xbf16> to vector<16x6xbf16>
    %cst_127 = arith.constant dense<0.000000e+00> : vector<16x392xf32>
    %254 = tpu.matmul %253, %251, %cst_127 {dimension_numbers = #tpu.dot_dimension_numbers<[1], [0], [0], [1], [0, 0, 1, 1], [], []>} : vector<16x6xbf16>, vector<6x392xbf16>, vector<16x392xf32> -> vector<16x392xf32>
    %255 = arith.addf %245, %254 : vector<16x392xf32>
    %256 = vector.extract_strided_slice %29 {offsets = [0, 29], sizes = [6, 363], strides = [1, 1]} : vector<6x392xbf16> to vector<6x363xbf16>
    %257 = vector.extract_strided_slice %29 {offsets = [0, 0], sizes = [6, 29], strides = [1, 1]} : vector<6x392xbf16> to vector<6x29xbf16>
    %258 = tpu.concatenate %256, %257 in 1 : vector<6x363xbf16>, vector<6x29xbf16> -> vector<6x392xbf16>
    %c23 = arith.constant 23 : index
    %c0_128 = arith.constant 0 : index
    %259 = vector.load %arg4[%c23, %c0_128] : memref<25x392xbf16, #tpu.memory_space<vmem>>, vector<1x392xbf16>
    %260 = vector.broadcast %259 : vector<1x392xbf16> to vector<6x392xbf16>
    %261 = arith.mulf %258, %260 : vector<6x392xbf16>
    %c23_129 = arith.constant 23 : index
    %c0_130 = arith.constant 0 : index
    %c0_131 = arith.constant 0 : index
    %262 = vector.load %arg5[%c23_129, %c0_130, %c0_131] : memref<25x16x6xbf16, #tpu.memory_space<vmem>>, vector<1x16x6xbf16>
    %263 = vector.shape_cast %262 : vector<1x16x6xbf16> to vector<16x6xbf16>
    %cst_132 = arith.constant dense<0.000000e+00> : vector<16x392xf32>
    %264 = tpu.matmul %263, %261, %cst_132 {dimension_numbers = #tpu.dot_dimension_numbers<[1], [0], [0], [1], [0, 0, 1, 1], [], []>} : vector<16x6xbf16>, vector<6x392xbf16>, vector<16x392xf32> -> vector<16x392xf32>
    %265 = arith.addf %255, %264 : vector<16x392xf32>
    %266 = vector.extract_strided_slice %29 {offsets = [0, 30], sizes = [6, 362], strides = [1, 1]} : vector<6x392xbf16> to vector<6x362xbf16>
    %267 = vector.extract_strided_slice %29 {offsets = [0, 0], sizes = [6, 30], strides = [1, 1]} : vector<6x392xbf16> to vector<6x30xbf16>
    %268 = tpu.concatenate %266, %267 in 1 : vector<6x362xbf16>, vector<6x30xbf16> -> vector<6x392xbf16>
    %c24 = arith.constant 24 : index
    %c0_133 = arith.constant 0 : index
    %269 = vector.load %arg4[%c24, %c0_133] : memref<25x392xbf16, #tpu.memory_space<vmem>>, vector<1x392xbf16>
    %270 = vector.broadcast %269 : vector<1x392xbf16> to vector<6x392xbf16>
    %271 = arith.mulf %268, %270 : vector<6x392xbf16>
    %c24_134 = arith.constant 24 : index
    %c0_135 = arith.constant 0 : index
    %c0_136 = arith.constant 0 : index
    %272 = vector.load %arg5[%c24_134, %c0_135, %c0_136] : memref<25x16x6xbf16, #tpu.memory_space<vmem>>, vector<1x16x6xbf16>
    %273 = vector.shape_cast %272 : vector<1x16x6xbf16> to vector<16x6xbf16>
    %cst_137 = arith.constant dense<0.000000e+00> : vector<16x392xf32>
    %274 = tpu.matmul %273, %271, %cst_137 {dimension_numbers = #tpu.dot_dimension_numbers<[1], [0], [0], [1], [0, 0, 1, 1], [], []>} : vector<16x6xbf16>, vector<6x392xbf16>, vector<16x392xf32> -> vector<16x392xf32>
    %275 = arith.addf %265, %274 : vector<16x392xf32>
    %c0_138 = arith.constant 0 : index
    %c0_139 = arith.constant 0 : index
    %276 = vector.load %arg6[%c0_138, %c0_139] : memref<16x1xf32, #tpu.memory_space<vmem>>, vector<16x1xf32>
    %277 = vector.broadcast %276 : vector<16x1xf32> to vector<16x392xf32>
    %278 = arith.addf %275, %277 : vector<16x392xf32>
    %cst_140 = arith.constant 0.000000e+00 : f32
    %279 = vector.broadcast %cst_140 : f32 to vector<16x392xf32>
    %280 = arith.maximumf %278, %279 : vector<16x392xf32>
    %281 = vector.extract_strided_slice %280 {offsets = [0, 1], sizes = [16, 391], strides = [1, 1]} : vector<16x392xf32> to vector<16x391xf32>
    %282 = vector.extract_strided_slice %280 {offsets = [0, 0], sizes = [16, 1], strides = [1, 1]} : vector<16x392xf32> to vector<16x1xf32>
    %283 = tpu.concatenate %281, %282 in 1 : vector<16x391xf32>, vector<16x1xf32> -> vector<16x392xf32>
    %284 = arith.maximumf %280, %283 : vector<16x392xf32>
    %285 = vector.extract_strided_slice %280 {offsets = [0, 14], sizes = [16, 378], strides = [1, 1]} : vector<16x392xf32> to vector<16x378xf32>
    %286 = vector.extract_strided_slice %280 {offsets = [0, 0], sizes = [16, 14], strides = [1, 1]} : vector<16x392xf32> to vector<16x14xf32>
    %287 = tpu.concatenate %285, %286 in 1 : vector<16x378xf32>, vector<16x14xf32> -> vector<16x392xf32>
    %288 = vector.extract_strided_slice %280 {offsets = [0, 15], sizes = [16, 377], strides = [1, 1]} : vector<16x392xf32> to vector<16x377xf32>
    %289 = vector.extract_strided_slice %280 {offsets = [0, 0], sizes = [16, 15], strides = [1, 1]} : vector<16x392xf32> to vector<16x15xf32>
    %290 = tpu.concatenate %288, %289 in 1 : vector<16x377xf32>, vector<16x15xf32> -> vector<16x392xf32>
    %291 = arith.maximumf %287, %290 : vector<16x392xf32>
    %292 = arith.maximumf %284, %291 : vector<16x392xf32>
    %293 = vector.extract_strided_slice %292 {offsets = [0, 0], sizes = [16, 196], strides = [1, 1]} : vector<16x392xf32> to vector<16x196xf32>
    %294 = arith.truncf %293 : vector<16x196xf32> to vector<16x196xbf16>
    %c0_141 = arith.constant 0 : index
    %c0_142 = arith.constant 0 : index
    %295 = vector.load %arg7[%c0_141, %c0_142] : memref<196x49xbf16, #tpu.memory_space<vmem>>, vector<196x49xbf16>
    %cst_143 = arith.constant dense<0.000000e+00> : vector<16x49xf32>
    %296 = tpu.matmul %294, %295, %cst_143 {dimension_numbers = #tpu.dot_dimension_numbers<[1], [0], [0], [1], [0, 0, 1, 1], [], []>} : vector<16x196xbf16>, vector<196x49xbf16>, vector<16x49xf32> -> vector<16x49xf32>
    %297 = vector.extract_strided_slice %296 {offsets = [0, 0], sizes = [1, 49], strides = [1, 1]} : vector<16x49xf32> to vector<1x49xf32>
    %c0_144 = arith.constant 0 : index
    %c0_145 = arith.constant 0 : index
    %298 = vector.load %arg15[%c0_144, %c0_145] : memref<2x784xf32, #tpu.memory_space<vmem>>, vector<1x49xf32>
    tpu.vector_store %arg15[%c0_144, %c0_145], %297 {strides = array<i32>} : memref<2x784xf32, #tpu.memory_space<vmem>>, vector<1x49xf32>,
    %299 = vector.extract_strided_slice %296 {offsets = [1, 0], sizes = [1, 49], strides = [1, 1]} : vector<16x49xf32> to vector<1x49xf32>
    %c0_146 = arith.constant 0 : index
    %c49 = arith.constant 49 : index
    %300 = vector.load %arg15[%c0_146, %c49] : memref<2x784xf32, #tpu.memory_space<vmem>>, vector<1x49xf32>
    tpu.vector_store %arg15[%c0_146, %c49], %299 {strides = array<i32>} : memref<2x784xf32, #tpu.memory_space<vmem>>, vector<1x49xf32>,
    %301 = vector.extract_strided_slice %296 {offsets = [2, 0], sizes = [1, 49], strides = [1, 1]} : vector<16x49xf32> to vector<1x49xf32>
    %c0_147 = arith.constant 0 : index
    %c98 = arith.constant 98 : index
    %302 = vector.load %arg15[%c0_147, %c98] : memref<2x784xf32, #tpu.memory_space<vmem>>, vector<1x49xf32>
    tpu.vector_store %arg15[%c0_147, %c98], %301 {strides = array<i32>} : memref<2x784xf32, #tpu.memory_space<vmem>>, vector<1x49xf32>,
    %303 = vector.extract_strided_slice %296 {offsets = [3, 0], sizes = [1, 49], strides = [1, 1]} : vector<16x49xf32> to vector<1x49xf32>
    %c0_148 = arith.constant 0 : index
    %c147 = arith.constant 147 : index
    %304 = vector.load %arg15[%c0_148, %c147] : memref<2x784xf32, #tpu.memory_space<vmem>>, vector<1x49xf32>
    tpu.vector_store %arg15[%c0_148, %c147], %303 {strides = array<i32>} : memref<2x784xf32, #tpu.memory_space<vmem>>, vector<1x49xf32>,
    %305 = vector.extract_strided_slice %296 {offsets = [4, 0], sizes = [1, 49], strides = [1, 1]} : vector<16x49xf32> to vector<1x49xf32>
    %c0_149 = arith.constant 0 : index
    %c196 = arith.constant 196 : index
    %306 = vector.load %arg15[%c0_149, %c196] : memref<2x784xf32, #tpu.memory_space<vmem>>, vector<1x49xf32>
    tpu.vector_store %arg15[%c0_149, %c196], %305 {strides = array<i32>} : memref<2x784xf32, #tpu.memory_space<vmem>>, vector<1x49xf32>,
    %307 = vector.extract_strided_slice %296 {offsets = [5, 0], sizes = [1, 49], strides = [1, 1]} : vector<16x49xf32> to vector<1x49xf32>
    %c0_150 = arith.constant 0 : index
    %c245 = arith.constant 245 : index
    %308 = vector.load %arg15[%c0_150, %c245] : memref<2x784xf32, #tpu.memory_space<vmem>>, vector<1x49xf32>
    tpu.vector_store %arg15[%c0_150, %c245], %307 {strides = array<i32>} : memref<2x784xf32, #tpu.memory_space<vmem>>, vector<1x49xf32>,
    %309 = vector.extract_strided_slice %296 {offsets = [6, 0], sizes = [1, 49], strides = [1, 1]} : vector<16x49xf32> to vector<1x49xf32>
    %c0_151 = arith.constant 0 : index
    %c294 = arith.constant 294 : index
    %310 = vector.load %arg15[%c0_151, %c294] : memref<2x784xf32, #tpu.memory_space<vmem>>, vector<1x49xf32>
    tpu.vector_store %arg15[%c0_151, %c294], %309 {strides = array<i32>} : memref<2x784xf32, #tpu.memory_space<vmem>>, vector<1x49xf32>,
    %311 = vector.extract_strided_slice %296 {offsets = [7, 0], sizes = [1, 49], strides = [1, 1]} : vector<16x49xf32> to vector<1x49xf32>
    %c0_152 = arith.constant 0 : index
    %c343 = arith.constant 343 : index
    %312 = vector.load %arg15[%c0_152, %c343] : memref<2x784xf32, #tpu.memory_space<vmem>>, vector<1x49xf32>
    tpu.vector_store %arg15[%c0_152, %c343], %311 {strides = array<i32>} : memref<2x784xf32, #tpu.memory_space<vmem>>, vector<1x49xf32>,
    %313 = vector.extract_strided_slice %296 {offsets = [8, 0], sizes = [1, 49], strides = [1, 1]} : vector<16x49xf32> to vector<1x49xf32>
    %c0_153 = arith.constant 0 : index
    %c392 = arith.constant 392 : index
    %314 = vector.load %arg15[%c0_153, %c392] : memref<2x784xf32, #tpu.memory_space<vmem>>, vector<1x49xf32>
    tpu.vector_store %arg15[%c0_153, %c392], %313 {strides = array<i32>} : memref<2x784xf32, #tpu.memory_space<vmem>>, vector<1x49xf32>,
    %315 = vector.extract_strided_slice %296 {offsets = [9, 0], sizes = [1, 49], strides = [1, 1]} : vector<16x49xf32> to vector<1x49xf32>
    %c0_154 = arith.constant 0 : index
    %c441 = arith.constant 441 : index
    %316 = vector.load %arg15[%c0_154, %c441] : memref<2x784xf32, #tpu.memory_space<vmem>>, vector<1x49xf32>
    tpu.vector_store %arg15[%c0_154, %c441], %315 {strides = array<i32>} : memref<2x784xf32, #tpu.memory_space<vmem>>, vector<1x49xf32>,
    %317 = vector.extract_strided_slice %296 {offsets = [10, 0], sizes = [1, 49], strides = [1, 1]} : vector<16x49xf32> to vector<1x49xf32>
    %c0_155 = arith.constant 0 : index
    %c490 = arith.constant 490 : index
    %318 = vector.load %arg15[%c0_155, %c490] : memref<2x784xf32, #tpu.memory_space<vmem>>, vector<1x49xf32>
    tpu.vector_store %arg15[%c0_155, %c490], %317 {strides = array<i32>} : memref<2x784xf32, #tpu.memory_space<vmem>>, vector<1x49xf32>,
    %319 = vector.extract_strided_slice %296 {offsets = [11, 0], sizes = [1, 49], strides = [1, 1]} : vector<16x49xf32> to vector<1x49xf32>
    %c0_156 = arith.constant 0 : index
    %c539 = arith.constant 539 : index
    %320 = vector.load %arg15[%c0_156, %c539] : memref<2x784xf32, #tpu.memory_space<vmem>>, vector<1x49xf32>
    tpu.vector_store %arg15[%c0_156, %c539], %319 {strides = array<i32>} : memref<2x784xf32, #tpu.memory_space<vmem>>, vector<1x49xf32>,
    %321 = vector.extract_strided_slice %296 {offsets = [12, 0], sizes = [1, 49], strides = [1, 1]} : vector<16x49xf32> to vector<1x49xf32>
    %c0_157 = arith.constant 0 : index
    %c588 = arith.constant 588 : index
    %322 = vector.load %arg15[%c0_157, %c588] : memref<2x784xf32, #tpu.memory_space<vmem>>, vector<1x49xf32>
    tpu.vector_store %arg15[%c0_157, %c588], %321 {strides = array<i32>} : memref<2x784xf32, #tpu.memory_space<vmem>>, vector<1x49xf32>,
    %323 = vector.extract_strided_slice %296 {offsets = [13, 0], sizes = [1, 49], strides = [1, 1]} : vector<16x49xf32> to vector<1x49xf32>
    %c0_158 = arith.constant 0 : index
    %c637 = arith.constant 637 : index
    %324 = vector.load %arg15[%c0_158, %c637] : memref<2x784xf32, #tpu.memory_space<vmem>>, vector<1x49xf32>
    tpu.vector_store %arg15[%c0_158, %c637], %323 {strides = array<i32>} : memref<2x784xf32, #tpu.memory_space<vmem>>, vector<1x49xf32>,
    %325 = vector.extract_strided_slice %296 {offsets = [14, 0], sizes = [1, 49], strides = [1, 1]} : vector<16x49xf32> to vector<1x49xf32>
    %c0_159 = arith.constant 0 : index
    %c686 = arith.constant 686 : index
    %326 = vector.load %arg15[%c0_159, %c686] : memref<2x784xf32, #tpu.memory_space<vmem>>, vector<1x49xf32>
    tpu.vector_store %arg15[%c0_159, %c686], %325 {strides = array<i32>} : memref<2x784xf32, #tpu.memory_space<vmem>>, vector<1x49xf32>,
    %327 = vector.extract_strided_slice %296 {offsets = [15, 0], sizes = [1, 49], strides = [1, 1]} : vector<16x49xf32> to vector<1x49xf32>
    %c0_160 = arith.constant 0 : index
    %c735 = arith.constant 735 : index
    %328 = vector.load %arg15[%c0_160, %c735] : memref<2x784xf32, #tpu.memory_space<vmem>>, vector<1x49xf32>
    tpu.vector_store %arg15[%c0_160, %c735], %327 {strides = array<i32>} : memref<2x784xf32, #tpu.memory_space<vmem>>, vector<1x49xf32>,
    %329 = vector.extract_strided_slice %292 {offsets = [0, 196], sizes = [16, 196], strides = [1, 1]} : vector<16x392xf32> to vector<16x196xf32>
    %330 = arith.truncf %329 : vector<16x196xf32> to vector<16x196xbf16>
    %c0_161 = arith.constant 0 : index
    %c0_162 = arith.constant 0 : index
    %331 = vector.load %arg7[%c0_161, %c0_162] : memref<196x49xbf16, #tpu.memory_space<vmem>>, vector<196x49xbf16>
    %cst_163 = arith.constant dense<0.000000e+00> : vector<16x49xf32>
    %332 = tpu.matmul %330, %331, %cst_163 {dimension_numbers = #tpu.dot_dimension_numbers<[1], [0], [0], [1], [0, 0, 1, 1], [], []>} : vector<16x196xbf16>, vector<196x49xbf16>, vector<16x49xf32> -> vector<16x49xf32>
    %333 = vector.extract_strided_slice %332 {offsets = [0, 0], sizes = [1, 49], strides = [1, 1]} : vector<16x49xf32> to vector<1x49xf32>
    %c1_164 = arith.constant 1 : index
    %c0_165 = arith.constant 0 : index
    %334 = vector.load %arg15[%c1_164, %c0_165] : memref<2x784xf32, #tpu.memory_space<vmem>>, vector<1x49xf32>
    tpu.vector_store %arg15[%c1_164, %c0_165], %333 {strides = array<i32>} : memref<2x784xf32, #tpu.memory_space<vmem>>, vector<1x49xf32>,
    %335 = vector.extract_strided_slice %332 {offsets = [1, 0], sizes = [1, 49], strides = [1, 1]} : vector<16x49xf32> to vector<1x49xf32>
    %c1_166 = arith.constant 1 : index
    %c49_167 = arith.constant 49 : index
    %336 = vector.load %arg15[%c1_166, %c49_167] : memref<2x784xf32, #tpu.memory_space<vmem>>, vector<1x49xf32>
    tpu.vector_store %arg15[%c1_166, %c49_167], %335 {strides = array<i32>} : memref<2x784xf32, #tpu.memory_space<vmem>>, vector<1x49xf32>,
    %337 = vector.extract_strided_slice %332 {offsets = [2, 0], sizes = [1, 49], strides = [1, 1]} : vector<16x49xf32> to vector<1x49xf32>
    %c1_168 = arith.constant 1 : index
    %c98_169 = arith.constant 98 : index
    %338 = vector.load %arg15[%c1_168, %c98_169] : memref<2x784xf32, #tpu.memory_space<vmem>>, vector<1x49xf32>
    tpu.vector_store %arg15[%c1_168, %c98_169], %337 {strides = array<i32>} : memref<2x784xf32, #tpu.memory_space<vmem>>, vector<1x49xf32>,
    %339 = vector.extract_strided_slice %332 {offsets = [3, 0], sizes = [1, 49], strides = [1, 1]} : vector<16x49xf32> to vector<1x49xf32>
    %c1_170 = arith.constant 1 : index
    %c147_171 = arith.constant 147 : index
    %340 = vector.load %arg15[%c1_170, %c147_171] : memref<2x784xf32, #tpu.memory_space<vmem>>, vector<1x49xf32>
    tpu.vector_store %arg15[%c1_170, %c147_171], %339 {strides = array<i32>} : memref<2x784xf32, #tpu.memory_space<vmem>>, vector<1x49xf32>,
    %341 = vector.extract_strided_slice %332 {offsets = [4, 0], sizes = [1, 49], strides = [1, 1]} : vector<16x49xf32> to vector<1x49xf32>
    %c1_172 = arith.constant 1 : index
    %c196_173 = arith.constant 196 : index
    %342 = vector.load %arg15[%c1_172, %c196_173] : memref<2x784xf32, #tpu.memory_space<vmem>>, vector<1x49xf32>
    tpu.vector_store %arg15[%c1_172, %c196_173], %341 {strides = array<i32>} : memref<2x784xf32, #tpu.memory_space<vmem>>, vector<1x49xf32>,
    %343 = vector.extract_strided_slice %332 {offsets = [5, 0], sizes = [1, 49], strides = [1, 1]} : vector<16x49xf32> to vector<1x49xf32>
    %c1_174 = arith.constant 1 : index
    %c245_175 = arith.constant 245 : index
    %344 = vector.load %arg15[%c1_174, %c245_175] : memref<2x784xf32, #tpu.memory_space<vmem>>, vector<1x49xf32>
    tpu.vector_store %arg15[%c1_174, %c245_175], %343 {strides = array<i32>} : memref<2x784xf32, #tpu.memory_space<vmem>>, vector<1x49xf32>,
    %345 = vector.extract_strided_slice %332 {offsets = [6, 0], sizes = [1, 49], strides = [1, 1]} : vector<16x49xf32> to vector<1x49xf32>
    %c1_176 = arith.constant 1 : index
    %c294_177 = arith.constant 294 : index
    %346 = vector.load %arg15[%c1_176, %c294_177] : memref<2x784xf32, #tpu.memory_space<vmem>>, vector<1x49xf32>
    tpu.vector_store %arg15[%c1_176, %c294_177], %345 {strides = array<i32>} : memref<2x784xf32, #tpu.memory_space<vmem>>, vector<1x49xf32>,
    %347 = vector.extract_strided_slice %332 {offsets = [7, 0], sizes = [1, 49], strides = [1, 1]} : vector<16x49xf32> to vector<1x49xf32>
    %c1_178 = arith.constant 1 : index
    %c343_179 = arith.constant 343 : index
    %348 = vector.load %arg15[%c1_178, %c343_179] : memref<2x784xf32, #tpu.memory_space<vmem>>, vector<1x49xf32>
    tpu.vector_store %arg15[%c1_178, %c343_179], %347 {strides = array<i32>} : memref<2x784xf32, #tpu.memory_space<vmem>>, vector<1x49xf32>,
    %349 = vector.extract_strided_slice %332 {offsets = [8, 0], sizes = [1, 49], strides = [1, 1]} : vector<16x49xf32> to vector<1x49xf32>
    %c1_180 = arith.constant 1 : index
    %c392_181 = arith.constant 392 : index
    %350 = vector.load %arg15[%c1_180, %c392_181] : memref<2x784xf32, #tpu.memory_space<vmem>>, vector<1x49xf32>
    tpu.vector_store %arg15[%c1_180, %c392_181], %349 {strides = array<i32>} : memref<2x784xf32, #tpu.memory_space<vmem>>, vector<1x49xf32>,
    %351 = vector.extract_strided_slice %332 {offsets = [9, 0], sizes = [1, 49], strides = [1, 1]} : vector<16x49xf32> to vector<1x49xf32>
    %c1_182 = arith.constant 1 : index
    %c441_183 = arith.constant 441 : index
    %352 = vector.load %arg15[%c1_182, %c441_183] : memref<2x784xf32, #tpu.memory_space<vmem>>, vector<1x49xf32>
    tpu.vector_store %arg15[%c1_182, %c441_183], %351 {strides = array<i32>} : memref<2x784xf32, #tpu.memory_space<vmem>>, vector<1x49xf32>,
    %353 = vector.extract_strided_slice %332 {offsets = [10, 0], sizes = [1, 49], strides = [1, 1]} : vector<16x49xf32> to vector<1x49xf32>
    %c1_184 = arith.constant 1 : index
    %c490_185 = arith.constant 490 : index
    %354 = vector.load %arg15[%c1_184, %c490_185] : memref<2x784xf32, #tpu.memory_space<vmem>>, vector<1x49xf32>
    tpu.vector_store %arg15[%c1_184, %c490_185], %353 {strides = array<i32>} : memref<2x784xf32, #tpu.memory_space<vmem>>, vector<1x49xf32>,
    %355 = vector.extract_strided_slice %332 {offsets = [11, 0], sizes = [1, 49], strides = [1, 1]} : vector<16x49xf32> to vector<1x49xf32>
    %c1_186 = arith.constant 1 : index
    %c539_187 = arith.constant 539 : index
    %356 = vector.load %arg15[%c1_186, %c539_187] : memref<2x784xf32, #tpu.memory_space<vmem>>, vector<1x49xf32>
    tpu.vector_store %arg15[%c1_186, %c539_187], %355 {strides = array<i32>} : memref<2x784xf32, #tpu.memory_space<vmem>>, vector<1x49xf32>,
    %357 = vector.extract_strided_slice %332 {offsets = [12, 0], sizes = [1, 49], strides = [1, 1]} : vector<16x49xf32> to vector<1x49xf32>
    %c1_188 = arith.constant 1 : index
    %c588_189 = arith.constant 588 : index
    %358 = vector.load %arg15[%c1_188, %c588_189] : memref<2x784xf32, #tpu.memory_space<vmem>>, vector<1x49xf32>
    tpu.vector_store %arg15[%c1_188, %c588_189], %357 {strides = array<i32>} : memref<2x784xf32, #tpu.memory_space<vmem>>, vector<1x49xf32>,
    %359 = vector.extract_strided_slice %332 {offsets = [13, 0], sizes = [1, 49], strides = [1, 1]} : vector<16x49xf32> to vector<1x49xf32>
    %c1_190 = arith.constant 1 : index
    %c637_191 = arith.constant 637 : index
    %360 = vector.load %arg15[%c1_190, %c637_191] : memref<2x784xf32, #tpu.memory_space<vmem>>, vector<1x49xf32>
    tpu.vector_store %arg15[%c1_190, %c637_191], %359 {strides = array<i32>} : memref<2x784xf32, #tpu.memory_space<vmem>>, vector<1x49xf32>,
    %361 = vector.extract_strided_slice %332 {offsets = [14, 0], sizes = [1, 49], strides = [1, 1]} : vector<16x49xf32> to vector<1x49xf32>
    %c1_192 = arith.constant 1 : index
    %c686_193 = arith.constant 686 : index
    %362 = vector.load %arg15[%c1_192, %c686_193] : memref<2x784xf32, #tpu.memory_space<vmem>>, vector<1x49xf32>
    tpu.vector_store %arg15[%c1_192, %c686_193], %361 {strides = array<i32>} : memref<2x784xf32, #tpu.memory_space<vmem>>, vector<1x49xf32>,
    %363 = vector.extract_strided_slice %332 {offsets = [15, 0], sizes = [1, 49], strides = [1, 1]} : vector<16x49xf32> to vector<1x49xf32>
    %c1_194 = arith.constant 1 : index
    %c735_195 = arith.constant 735 : index
    %364 = vector.load %arg15[%c1_194, %c735_195] : memref<2x784xf32, #tpu.memory_space<vmem>>, vector<1x49xf32>
    tpu.vector_store %arg15[%c1_194, %c735_195], %363 {strides = array<i32>} : memref<2x784xf32, #tpu.memory_space<vmem>>, vector<1x49xf32>,
    %c0_196 = arith.constant 0 : index
    %c0_197 = arith.constant 0 : index
    %365 = vector.load %arg15[%c0_196, %c0_197] : memref<2x784xf32, #tpu.memory_space<vmem>>, vector<2x784xf32>
    %366 = arith.truncf %365 : vector<2x784xf32> to vector<2x784xbf16>
    %c0_198 = arith.constant 0 : index
    %c0_199 = arith.constant 0 : index
    %367 = vector.load %arg8[%c0_198, %c0_199] : memref<784x120xbf16, #tpu.memory_space<vmem>>, vector<784x120xbf16>
    %cst_200 = arith.constant dense<0.000000e+00> : vector<2x120xf32>
    %368 = tpu.matmul %366, %367, %cst_200 {dimension_numbers = #tpu.dot_dimension_numbers<[1], [0], [0], [1], [0, 0, 1, 1], [], []>} : vector<2x784xbf16>, vector<784x120xbf16>, vector<2x120xf32> -> vector<2x120xf32>
    %c0_201 = arith.constant 0 : index
    %c0_202 = arith.constant 0 : index
    %369 = vector.load %arg9[%c0_201, %c0_202] : memref<1x120xf32, #tpu.memory_space<vmem>>, vector<1x120xf32>
    %370 = vector.broadcast %369 : vector<1x120xf32> to vector<2x120xf32>
    %371 = arith.addf %368, %370 : vector<2x120xf32>
    %cst_203 = arith.constant 0.000000e+00 : f32
    %372 = vector.broadcast %cst_203 : f32 to vector<2x120xf32>
    %373 = arith.maximumf %371, %372 : vector<2x120xf32>
    %374 = arith.truncf %373 : vector<2x120xf32> to vector<2x120xbf16>
    %c0_204 = arith.constant 0 : index
    %c0_205 = arith.constant 0 : index
    %375 = vector.load %arg10[%c0_204, %c0_205] : memref<120x84xbf16, #tpu.memory_space<vmem>>, vector<120x84xbf16>
    %cst_206 = arith.constant dense<0.000000e+00> : vector<2x84xf32>
    %376 = tpu.matmul %374, %375, %cst_206 {dimension_numbers = #tpu.dot_dimension_numbers<[1], [0], [0], [1], [0, 0, 1, 1], [], []>} : vector<2x120xbf16>, vector<120x84xbf16>, vector<2x84xf32> -> vector<2x84xf32>
    %c0_207 = arith.constant 0 : index
    %c0_208 = arith.constant 0 : index
    %377 = vector.load %arg11[%c0_207, %c0_208] : memref<1x84xf32, #tpu.memory_space<vmem>>, vector<1x84xf32>
    %378 = vector.broadcast %377 : vector<1x84xf32> to vector<2x84xf32>
    %379 = arith.addf %376, %378 : vector<2x84xf32>
    %cst_209 = arith.constant 0.000000e+00 : f32
    %380 = vector.broadcast %cst_209 : f32 to vector<2x84xf32>
    %381 = arith.maximumf %379, %380 : vector<2x84xf32>
    %382 = arith.truncf %381 : vector<2x84xf32> to vector<2x84xbf16>
    %c0_210 = arith.constant 0 : index
    %c0_211 = arith.constant 0 : index
    %383 = vector.load %arg12[%c0_210, %c0_211] : memref<84x10xbf16, #tpu.memory_space<vmem>>, vector<84x10xbf16>
    %cst_212 = arith.constant dense<0.000000e+00> : vector<2x10xf32>
    %384 = tpu.matmul %382, %383, %cst_212 {dimension_numbers = #tpu.dot_dimension_numbers<[1], [0], [0], [1], [0, 0, 1, 1], [], []>} : vector<2x84xbf16>, vector<84x10xbf16>, vector<2x10xf32> -> vector<2x10xf32>
    %c0_213 = arith.constant 0 : index
    %c0_214 = arith.constant 0 : index
    %385 = vector.load %arg13[%c0_213, %c0_214] : memref<1x10xf32, #tpu.memory_space<vmem>>, vector<1x10xf32>
    %386 = vector.broadcast %385 : vector<1x10xf32> to vector<2x10xf32>
    %387 = arith.addf %384, %386 : vector<2x10xf32>
    %c0_215 = arith.constant 0 : index
    %c0_216 = arith.constant 0 : index
    %388 = vector.load %arg14[%c0_215, %c0_216] : memref<2x10xf32, #tpu.memory_space<vmem>>, vector<2x10xf32>
    tpu.vector_store %arg14[%c0_215, %c0_216], %387 {strides = array<i32>} : memref<2x10xf32, #tpu.memory_space<vmem>>, vector<2x10xf32>,
    return
  }
}

</mosaic_0001>

<llo_original>
// kernel: tile.9
$region0: #{tile.9}
  %s0 = inlined_call_operand.vmem [shape: bf16[25,2,196], index: 0, kind: input, shape index: {}]
  %s1 = inlined_call_operand.vmem [shape: bf16[25,392], index: 1, kind: output, shape index: {}]
  $region1: #{tile.9} parent=0
    #allocation0 [shape = 'u8[65536]{0}', space=vmem, size = 0x10000, scoped, tag = 'scoped mem for output reshape']
    #allocation1 [shape = 'u8[204800]{0}', space=vmem, size = 0x32000, scoped, tag = 'scoped mem for input reshape']
    %s3 = smul.u32 1, 2
    %s4 = sshllo.u32 0, %s3
    %s5 = smul.addr 1, 49
    %s6 = scalar_lea.vmem %s0, %s5
    %s7 = sshrl.u32 %s4, 1
    %s8 = sor.u32 %s4, %s7
    %s9 = sand.u32 %s8, 85
    %s10 = sshrl.u32 %s9, 1
    %s11 = sor.u32 %s9, %s10
    %s12 = sand.u32 51, %s11
    %s13 = sshrl.u32 %s12, 2
    %s14 = sor.u32 %s12, %s13
    %s15 = sand.u32 15, %s14
    %v16 = vld [vmem:[%s6] sm:%s15]
    %v17 = vunpack.c.l.bf16 %v16
    %v18 = vunpack.c.h.bf16 %v16
    %s19 = scalar_lea.vmem [#allocation1], 392
    %20 = vst [vmem:[%s19] sm:%s4] %v17
    %s21 = smul.addr 1, 48
    %s22 = scalar_lea.vmem %s0, %s21
    %s23 = sshrl.u32 %s4, 1
    %s24 = sor.u32 %s4, %s23
    %s25 = sand.u32 %s24, 85
    %s26 = sshrl.u32 %s25, 1
    %s27 = sor.u32 %s25, %s26
    %s28 = sand.u32 51, %s27
    %s29 = sshrl.u32 %s28, 2
    %s30 = sor.u32 %s28, %s29
    %s31 = sand.u32 15, %s30
    %v32 = vld [vmem:[%s22] sm:%s31]
    %v33 = vunpack.c.l.bf16 %v32
    %v34 = vunpack.c.h.bf16 %v32
    %s35 = scalar_lea.vmem [#allocation1], 384
    %36 = vst [vmem:[%s35] sm:%s4] %v33
    %s37 = smul.addr 1, 47
    %s38 = scalar_lea.vmem %s0, %s37
    %s39 = sshrl.u32 %s4, 1
    %s40 = sor.u32 %s4, %s39
    %s41 = sand.u32 %s40, 85
    %s42 = sshrl.u32 %s41, 1
    %s43 = sor.u32 %s41, %s42
    %s44 = sand.u32 51, %s43
    %s45 = sshrl.u32 %s44, 2
    %s46 = sor.u32 %s44, %s45
    %s47 = sand.u32 15, %s46
    %v48 = vld [vmem:[%s38] sm:%s47]
    %v49 = vunpack.c.l.bf16 %v48
    %v50 = vunpack.c.h.bf16 %v48
    %s51 = scalar_lea.vmem [#allocation1], 376
    %52 = vst [vmem:[%s51] sm:%s4] %v49
    %s53 = smul.addr 1, 46
    %s54 = scalar_lea.vmem %s0, %s53
    %s55 = sshrl.u32 %s4, 1
    %s56 = sor.u32 %s4, %s55
    %s57 = sand.u32 %s56, 85
    %s58 = sshrl.u32 %s57, 1
    %s59 = sor.u32 %s57, %s58
    %s60 = sand.u32 51, %s59
    %s61 = sshrl.u32 %s60, 2
    %s62 = sor.u32 %s60, %s61
    %s63 = sand.u32 15, %s62
    %v64 = vld [vmem:[%s54] sm:%s63]
    %v65 = vunpack.c.l.bf16 %v64
    %v66 = vunpack.c.h.bf16 %v64
    %s67 = scalar_lea.vmem [#allocation1], 368
    %68 = vst [vmem:[%s67] sm:%s4] %v65
    %s69 = smul.addr 1, 45
    %s70 = scalar_lea.vmem %s0, %s69
    %s71 = sshrl.u32 %s4, 1
    %s72 = sor.u32 %s4, %s71
    %s73 = sand.u32 %s72, 85
    %s74 = sshrl.u32 %s73, 1
    %s75 = sor.u32 %s73, %s74
    %s76 = sand.u32 51, %s75
    %s77 = sshrl.u32 %s76, 2
    %s78 = sor.u32 %s76, %s77
    %s79 = sand.u32 15, %s78
    %v80 = vld [vmem:[%s70] sm:%s79]
    %v81 = vunpack.c.l.bf16 %v80
    %v82 = vunpack.c.h.bf16 %v80
    %s83 = scalar_lea.vmem [#allocation1], 360
    %84 = vst [vmem:[%s83] sm:%s4] %v81
    %s85 = smul.addr 1, 44
    %s86 = scalar_lea.vmem %s0, %s85
    %s87 = sshrl.u32 %s4, 1
    %s88 = sor.u32 %s4, %s87
    %s89 = sand.u32 %s88, 85
    %s90 = sshrl.u32 %s89, 1
    %s91 = sor.u32 %s89, %s90
    %s92 = sand.u32 51, %s91
    %s93 = sshrl.u32 %s92, 2
    %s94 = sor.u32 %s92, %s93
    %s95 = sand.u32 15, %s94
    %v96 = vld [vmem:[%s86] sm:%s95]
    %v97 = vunpack.c.l.bf16 %v96
    %v98 = vunpack.c.h.bf16 %v96
    %s99 = scalar_lea.vmem [#allocation1], 352
    %100 = vst [vmem:[%s99] sm:%s4] %v97
    %s101 = smul.addr 1, 43
    %s102 = scalar_lea.vmem %s0, %s101
    %s103 = sshrl.u32 %s4, 1
    %s104 = sor.u32 %s4, %s103
    %s105 = sand.u32 %s104, 85
    %s106 = sshrl.u32 %s105, 1
    %s107 = sor.u32 %s105, %s106
    %s108 = sand.u32 51, %s107
    %s109 = sshrl.u32 %s108, 2
    %s110 = sor.u32 %s108, %s109
    %s111 = sand.u32 15, %s110
    %v112 = vld [vmem:[%s102] sm:%s111]
    %v113 = vunpack.c.l.bf16 %v112
    %v114 = vunpack.c.h.bf16 %v112
    %s115 = scalar_lea.vmem [#allocation1], 344
    %116 = vst [vmem:[%s115] sm:%s4] %v113
    %s117 = smul.addr 1, 42
    %s118 = scalar_lea.vmem %s0, %s117
    %s119 = sshrl.u32 %s4, 1
    %s120 = sor.u32 %s4, %s119
    %s121 = sand.u32 %s120, 85
    %s122 = sshrl.u32 %s121, 1
    %s123 = sor.u32 %s121, %s122
    %s124 = sand.u32 51, %s123
    %s125 = sshrl.u32 %s124, 2
    %s126 = sor.u32 %s124, %s125
    %s127 = sand.u32 15, %s126
    %v128 = vld [vmem:[%s118] sm:%s127]
    %v129 = vunpack.c.l.bf16 %v128
    %v130 = vunpack.c.h.bf16 %v128
    %s131 = scalar_lea.vmem [#allocation1], 336
    %132 = vst [vmem:[%s131] sm:%s4] %v129
    %s133 = smul.addr 1, 41
    %s134 = scalar_lea.vmem %s0, %s133
    %s135 = sshrl.u32 %s4, 1
    %s136 = sor.u32 %s4, %s135
    %s137 = sand.u32 %s136, 85
    %s138 = sshrl.u32 %s137, 1
    %s139 = sor.u32 %s137, %s138
    %s140 = sand.u32 51, %s139
    %s141 = sshrl.u32 %s140, 2
    %s142 = sor.u32 %s140, %s141
    %s143 = sand.u32 15, %s142
    %v144 = vld [vmem:[%s134] sm:%s143]
    %v145 = vunpack.c.l.bf16 %v144
    %v146 = vunpack.c.h.bf16 %v144
    %s147 = scalar_lea.vmem [#allocation1], 328
    %148 = vst [vmem:[%s147] sm:%s4] %v145
    %s149 = smul.addr 1, 40
    %s150 = scalar_lea.vmem %s0, %s149
    %s151 = sshrl.u32 %s4, 1
    %s152 = sor.u32 %s4, %s151
    %s153 = sand.u32 %s152, 85
    %s154 = sshrl.u32 %s153, 1
    %s155 = sor.u32 %s153, %s154
    %s156 = sand.u32 51, %s155
    %s157 = sshrl.u32 %s156, 2
    %s158 = sor.u32 %s156, %s157
    %s159 = sand.u32 15, %s158
    %v160 = vld [vmem:[%s150] sm:%s159]
    %v161 = vunpack.c.l.bf16 %v160
    %v162 = vunpack.c.h.bf16 %v160
    %s163 = scalar_lea.vmem [#allocation1], 320
    %164 = vst [vmem:[%s163] sm:%s4] %v161
    %s165 = smul.addr 1, 39
    %s166 = scalar_lea.vmem %s0, %s165
    %s167 = sshrl.u32 %s4, 1
    %s168 = sor.u32 %s4, %s167
    %s169 = sand.u32 %s168, 85
    %s170 = sshrl.u32 %s169, 1
    %s171 = sor.u32 %s169, %s170
    %s172 = sand.u32 51, %s171
    %s173 = sshrl.u32 %s172, 2
    %s174 = sor.u32 %s172, %s173
    %s175 = sand.u32 15, %s174
    %v176 = vld [vmem:[%s166] sm:%s175]
    %v177 = vunpack.c.l.bf16 %v176
    %v178 = vunpack.c.h.bf16 %v176
    %s179 = scalar_lea.vmem [#allocation1], 312
    %180 = vst [vmem:[%s179] sm:%s4] %v177
    %s181 = smul.addr 1, 38
    %s182 = scalar_lea.vmem %s0, %s181
    %s183 = sshrl.u32 %s4, 1
    %s184 = sor.u32 %s4, %s183
    %s185 = sand.u32 %s184, 85
    %s186 = sshrl.u32 %s185, 1
    %s187 = sor.u32 %s185, %s186
    %s188 = sand.u32 51, %s187
    %s189 = sshrl.u32 %s188, 2
    %s190 = sor.u32 %s188, %s189
    %s191 = sand.u32 15, %s190
    %v192 = vld [vmem:[%s182] sm:%s191]
    %v193 = vunpack.c.l.bf16 %v192
    %v194 = vunpack.c.h.bf16 %v192
    %s195 = scalar_lea.vmem [#allocation1], 304
    %196 = vst [vmem:[%s195] sm:%s4] %v193
    %s197 = smul.addr 1, 37
    %s198 = scalar_lea.vmem %s0, %s197
    %s199 = sshrl.u32 %s4, 1
    %s200 = sor.u32 %s4, %s199
    %s201 = sand.u32 %s200, 85
    %s202 = sshrl.u32 %s201, 1
    %s203 = sor.u32 %s201, %s202
    %s204 = sand.u32 51, %s203
    %s205 = sshrl.u32 %s204, 2
    %s206 = sor.u32 %s204, %s205
    %s207 = sand.u32 15, %s206
    %v208 = vld [vmem:[%s198] sm:%s207]
    %v209 = vunpack.c.l.bf16 %v208
    %v210 = vunpack.c.h.bf16 %v208
    %s211 = scalar_lea.vmem [#allocation1], 296
    %212 = vst [vmem:[%s211] sm:%s4] %v209
    %s213 = smul.addr 1, 36
    %s214 = scalar_lea.vmem %s0, %s213
    %s215 = sshrl.u32 %s4, 1
    %s216 = sor.u32 %s4, %s215
    %s217 = sand.u32 %s216, 85
    %s218 = sshrl.u32 %s217, 1
    %s219 = sor.u32 %s217, %s218
    %s220 = sand.u32 51, %s219
    %s221 = sshrl.u32 %s220, 2
    %s222 = sor.u32 %s220, %s221
    %s223 = sand.u32 15, %s222
    %v224 = vld [vmem:[%s214] sm:%s223]
    %v225 = vunpack.c.l.bf16 %v224
    %v226 = vunpack.c.h.bf16 %v224
    %s227 = scalar_lea.vmem [#allocation1], 288
    %228 = vst [vmem:[%s227] sm:%s4] %v225
    %s229 = smul.addr 1, 35
    %s230 = scalar_lea.vmem %s0, %s229
    %s231 = sshrl.u32 %s4, 1
    %s232 = sor.u32 %s4, %s231
    %s233 = sand.u32 %s232, 85
    %s234 = sshrl.u32 %s233, 1
    %s235 = sor.u32 %s233, %s234
    %s236 = sand.u32 51, %s235
    %s237 = sshrl.u32 %s236, 2
    %s238 = sor.u32 %s236, %s237
    %s239 = sand.u32 15, %s238
    %v240 = vld [vmem:[%s230] sm:%s239]
    %v241 = vunpack.c.l.bf16 %v240
    %v242 = vunpack.c.h.bf16 %v240
    %s243 = scalar_lea.vmem [#allocation1], 280
    %244 = vst [vmem:[%s243] sm:%s4] %v241
    %s245 = smul.addr 1, 34
    %s246 = scalar_lea.vmem %s0, %s245
    %s247 = sshrl.u32 %s4, 1
    %s248 = sor.u32 %s4, %s247
    %s249 = sand.u32 %s248, 85
    %s250 = sshrl.u32 %s249, 1
    %s251 = sor.u32 %s249, %s250
    %s252 = sand.u32 51, %s251
    %s253 = sshrl.u32 %s252, 2
    %s254 = sor.u32 %s252, %s253
    %s255 = sand.u32 15, %s254
    %v256 = vld [vmem:[%s246] sm:%s255]
    %v257 = vunpack.c.l.bf16 %v256
    %v258 = vunpack.c.h.bf16 %v256
    %s259 = scalar_lea.vmem [#allocation1], 272
    %260 = vst [vmem:[%s259] sm:%s4] %v257
    %s261 = smul.addr 1, 33
    %s262 = scalar_lea.vmem %s0, %s261
    %s263 = sshrl.u32 %s4, 1
    %s264 = sor.u32 %s4, %s263
    %s265 = sand.u32 %s264, 85
    %s266 = sshrl.u32 %s265, 1
    %s267 = sor.u32 %s265, %s266
    %s268 = sand.u32 51, %s267
    %s269 = sshrl.u32 %s268, 2
    %s270 = sor.u32 %s268, %s269
    %s271 = sand.u32 15, %s270
    %v272 = vld [vmem:[%s262] sm:%s271]
    %v273 = vunpack.c.l.bf16 %v272
    %v274 = vunpack.c.h.bf16 %v272
    %s275 = scalar_lea.vmem [#allocation1], 264
    %276 = vst [vmem:[%s275] sm:%s4] %v273
    %s277 = smul.addr 1, 32
    %s278 = scalar_lea.vmem %s0, %s277
    %s279 = sshrl.u32 %s4, 1
    %s280 = sor.u32 %s4, %s279
    %s281 = sand.u32 %s280, 85
    %s282 = sshrl.u32 %s281, 1
    %s283 = sor.u32 %s281, %s282
    %s284 = sand.u32 51, %s283
    %s285 = sshrl.u32 %s284, 2
    %s286 = sor.u32 %s284, %s285
    %s287 = sand.u32 15, %s286
    %v288 = vld [vmem:[%s278] sm:%s287]
    %v289 = vunpack.c.l.bf16 %v288
    %v290 = vunpack.c.h.bf16 %v288
    %s291 = scalar_lea.vmem [#allocation1], 256
    %292 = vst [vmem:[%s291] sm:%s4] %v289
    %s293 = smul.addr 1, 31
    %s294 = scalar_lea.vmem %s0, %s293
    %s295 = sshrl.u32 %s4, 1
    %s296 = sor.u32 %s4, %s295
    %s297 = sand.u32 %s296, 85
    %s298 = sshrl.u32 %s297, 1
    %s299 = sor.u32 %s297, %s298
    %s300 = sand.u32 51, %s299
    %s301 = sshrl.u32 %s300, 2
    %s302 = sor.u32 %s300, %s301
    %s303 = sand.u32 15, %s302
    %v304 = vld [vmem:[%s294] sm:%s303]
    %v305 = vunpack.c.l.bf16 %v304
    %v306 = vunpack.c.h.bf16 %v304
    %s307 = scalar_lea.vmem [#allocation1], 248
    %308 = vst [vmem:[%s307] sm:%s4] %v305
    %s309 = smul.addr 1, 30
    %s310 = scalar_lea.vmem %s0, %s309
    %s311 = sshrl.u32 %s4, 1
    %s312 = sor.u32 %s4, %s311
    %s313 = sand.u32 %s312, 85
    %s314 = sshrl.u32 %s313, 1
    %s315 = sor.u32 %s313, %s314
    %s316 = sand.u32 51, %s315
    %s317 = sshrl.u32 %s316, 2
    %s318 = sor.u32 %s316, %s317
    %s319 = sand.u32 15, %s318
    %v320 = vld [vmem:[%s310] sm:%s319]
    %v321 = vunpack.c.l.bf16 %v320
    %v322 = vunpack.c.h.bf16 %v320
    %s323 = scalar_lea.vmem [#allocation1], 240
    %324 = vst [vmem:[%s323] sm:%s4] %v321
    %s325 = smul.addr 1, 29
    %s326 = scalar_lea.vmem %s0, %s325
    %s327 = sshrl.u32 %s4, 1
    %s328 = sor.u32 %s4, %s327
    %s329 = sand.u32 %s328, 85
    %s330 = sshrl.u32 %s329, 1
    %s331 = sor.u32 %s329, %s330
    %s332 = sand.u32 51, %s331
    %s333 = sshrl.u32 %s332, 2
    %s334 = sor.u32 %s332, %s333
    %s335 = sand.u32 15, %s334
    %v336 = vld [vmem:[%s326] sm:%s335]
    %v337 = vunpack.c.l.bf16 %v336
    %v338 = vunpack.c.h.bf16 %v336
    %s339 = scalar_lea.vmem [#allocation1], 232
    %340 = vst [vmem:[%s339] sm:%s4] %v337
    %s341 = smul.addr 1, 28
    %s342 = scalar_lea.vmem %s0, %s341
    %s343 = sshrl.u32 %s4, 1
    %s344 = sor.u32 %s4, %s343
    %s345 = sand.u32 %s344, 85
    %s346 = sshrl.u32 %s345, 1
    %s347 = sor.u32 %s345, %s346
    %s348 = sand.u32 51, %s347
    %s349 = sshrl.u32 %s348, 2
    %s350 = sor.u32 %s348, %s349
    %s351 = sand.u32 15, %s350
    %v352 = vld [vmem:[%s342] sm:%s351]
    %v353 = vunpack.c.l.bf16 %v352
    %v354 = vunpack.c.h.bf16 %v352
    %s355 = scalar_lea.vmem [#allocation1], 224
    %356 = vst [vmem:[%s355] sm:%s4] %v353
    %s357 = smul.addr 1, 27
    %s358 = scalar_lea.vmem %s0, %s357
    %s359 = sshrl.u32 %s4, 1
    %s360 = sor.u32 %s4, %s359
    %s361 = sand.u32 %s360, 85
    %s362 = sshrl.u32 %s361, 1
    %s363 = sor.u32 %s361, %s362
    %s364 = sand.u32 51, %s363
    %s365 = sshrl.u32 %s364, 2
    %s366 = sor.u32 %s364, %s365
    %s367 = sand.u32 15, %s366
    %v368 = vld [vmem:[%s358] sm:%s367]
    %v369 = vunpack.c.l.bf16 %v368
    %v370 = vunpack.c.h.bf16 %v368
    %s371 = scalar_lea.vmem [#allocation1], 216
    %372 = vst [vmem:[%s371] sm:%s4] %v369
    %s373 = smul.addr 1, 26
    %s374 = scalar_lea.vmem %s0, %s373
    %s375 = sshrl.u32 %s4, 1
    %s376 = sor.u32 %s4, %s375
    %s377 = sand.u32 %s376, 85
    %s378 = sshrl.u32 %s377, 1
    %s379 = sor.u32 %s377, %s378
    %s380 = sand.u32 51, %s379
    %s381 = sshrl.u32 %s380, 2
    %s382 = sor.u32 %s380, %s381
    %s383 = sand.u32 15, %s382
    %v384 = vld [vmem:[%s374] sm:%s383]
    %v385 = vunpack.c.l.bf16 %v384
    %v386 = vunpack.c.h.bf16 %v384
    %s387 = scalar_lea.vmem [#allocation1], 208
    %388 = vst [vmem:[%s387] sm:%s4] %v385
    %s389 = smul.addr 1, 25
    %s390 = scalar_lea.vmem %s0, %s389
    %s391 = sshrl.u32 %s4, 1
    %s392 = sor.u32 %s4, %s391
    %s393 = sand.u32 %s392, 85
    %s394 = sshrl.u32 %s393, 1
    %s395 = sor.u32 %s393, %s394
    %s396 = sand.u32 51, %s395
    %s397 = sshrl.u32 %s396, 2
    %s398 = sor.u32 %s396, %s397
    %s399 = sand.u32 15, %s398
    %v400 = vld [vmem:[%s390] sm:%s399]
    %v401 = vunpack.c.l.bf16 %v400
    %v402 = vunpack.c.h.bf16 %v400
    %s403 = scalar_lea.vmem [#allocation1], 200
    %404 = vst [vmem:[%s403] sm:%s4] %v401
    %s405 = smul.addr 1, 24
    %s406 = scalar_lea.vmem %s0, %s405
    %s407 = sshrl.u32 %s4, 1
    %s408 = sor.u32 %s4, %s407
    %s409 = sand.u32 %s408, 85
    %s410 = sshrl.u32 %s409, 1
    %s411 = sor.u32 %s409, %s410
    %s412 = sand.u32 51, %s411
    %s413 = sshrl.u32 %s412, 2
    %s414 = sor.u32 %s412, %s413
    %s415 = sand.u32 15, %s414
    %v416 = vld [vmem:[%s406] sm:%s415]
    %v417 = vunpack.c.l.bf16 %v416
    %v418 = vunpack.c.h.bf16 %v416
    %s419 = scalar_lea.vmem [#allocation1], 192
    %420 = vst [vmem:[%s419] sm:%s4] %v417
    %s421 = smul.addr 1, 23
    %s422 = scalar_lea.vmem %s0, %s421
    %s423 = sshrl.u32 %s4, 1
    %s424 = sor.u32 %s4, %s423
    %s425 = sand.u32 %s424, 85
    %s426 = sshrl.u32 %s425, 1
    %s427 = sor.u32 %s425, %s426
    %s428 = sand.u32 51, %s427
    %s429 = sshrl.u32 %s428, 2
    %s430 = sor.u32 %s428, %s429
    %s431 = sand.u32 15, %s430
    %v432 = vld [vmem:[%s422] sm:%s431]
    %v433 = vunpack.c.l.bf16 %v432
    %v434 = vunpack.c.h.bf16 %v432
    %s435 = scalar_lea.vmem [#allocation1], 184
    %436 = vst [vmem:[%s435] sm:%s4] %v433
    %s437 = smul.addr 1, 22
    %s438 = scalar_lea.vmem %s0, %s437
    %s439 = sshrl.u32 %s4, 1
    %s440 = sor.u32 %s4, %s439
    %s441 = sand.u32 %s440, 85
    %s442 = sshrl.u32 %s441, 1
    %s443 = sor.u32 %s441, %s442
    %s444 = sand.u32 51, %s443
    %s445 = sshrl.u32 %s444, 2
    %s446 = sor.u32 %s444, %s445
    %s447 = sand.u32 15, %s446
    %v448 = vld [vmem:[%s438] sm:%s447]
    %v449 = vunpack.c.l.bf16 %v448
    %v450 = vunpack.c.h.bf16 %v448
    %s451 = scalar_lea.vmem [#allocation1], 176
    %452 = vst [vmem:[%s451] sm:%s4] %v449
    %s453 = smul.addr 1, 21
    %s454 = scalar_lea.vmem %s0, %s453
    %s455 = sshrl.u32 %s4, 1
    %s456 = sor.u32 %s4, %s455
    %s457 = sand.u32 %s456, 85
    %s458 = sshrl.u32 %s457, 1
    %s459 = sor.u32 %s457, %s458
    %s460 = sand.u32 51, %s459
    %s461 = sshrl.u32 %s460, 2
    %s462 = sor.u32 %s460, %s461
    %s463 = sand.u32 15, %s462
    %v464 = vld [vmem:[%s454] sm:%s463]
    %v465 = vunpack.c.l.bf16 %v464
    %v466 = vunpack.c.h.bf16 %v464
    %s467 = scalar_lea.vmem [#allocation1], 168
    %468 = vst [vmem:[%s467] sm:%s4] %v465
    %s469 = smul.addr 1, 20
    %s470 = scalar_lea.vmem %s0, %s469
    %s471 = sshrl.u32 %s4, 1
    %s472 = sor.u32 %s4, %s471
    %s473 = sand.u32 %s472, 85
    %s474 = sshrl.u32 %s473, 1
    %s475 = sor.u32 %s473, %s474
    %s476 = sand.u32 51, %s475
    %s477 = sshrl.u32 %s476, 2
    %s478 = sor.u32 %s476, %s477
    %s479 = sand.u32 15, %s478
    %v480 = vld [vmem:[%s470] sm:%s479]
    %v481 = vunpack.c.l.bf16 %v480
    %v482 = vunpack.c.h.bf16 %v480
    %s483 = scalar_lea.vmem [#allocation1], 160
    %484 = vst [vmem:[%s483] sm:%s4] %v481
    %s485 = smul.addr 1, 19
    %s486 = scalar_lea.vmem %s0, %s485
    %s487 = sshrl.u32 %s4, 1
    %s488 = sor.u32 %s4, %s487
    %s489 = sand.u32 %s488, 85
    %s490 = sshrl.u32 %s489, 1
    %s491 = sor.u32 %s489, %s490
    %s492 = sand.u32 51, %s491
    %s493 = sshrl.u32 %s492, 2
    %s494 = sor.u32 %s492, %s493
    %s495 = sand.u32 15, %s494
    %v496 = vld [vmem:[%s486] sm:%s495]
    %v497 = vunpack.c.l.bf16 %v496
    %v498 = vunpack.c.h.bf16 %v496
    %s499 = scalar_lea.vmem [#allocation1], 152
    %500 = vst [vmem:[%s499] sm:%s4] %v497
    %s501 = smul.addr 1, 18
    %s502 = scalar_lea.vmem %s0, %s501
    %s503 = sshrl.u32 %s4, 1
    %s504 = sor.u32 %s4, %s503
    %s505 = sand.u32 %s504, 85
    %s506 = sshrl.u32 %s505, 1
    %s507 = sor.u32 %s505, %s506
    %s508 = sand.u32 51, %s507
    %s509 = sshrl.u32 %s508, 2
    %s510 = sor.u32 %s508, %s509
    %s511 = sand.u32 15, %s510
    %v512 = vld [vmem:[%s502] sm:%s511]
    %v513 = vunpack.c.l.bf16 %v512
    %v514 = vunpack.c.h.bf16 %v512
    %s515 = scalar_lea.vmem [#allocation1], 144
    %516 = vst [vmem:[%s515] sm:%s4] %v513
    %s517 = smul.addr 1, 17
    %s518 = scalar_lea.vmem %s0, %s517
    %s519 = sshrl.u32 %s4, 1
    %s520 = sor.u32 %s4, %s519
    %s521 = sand.u32 %s520, 85
    %s522 = sshrl.u32 %s521, 1
    %s523 = sor.u32 %s521, %s522
    %s524 = sand.u32 51, %s523
    %s525 = sshrl.u32 %s524, 2
    %s526 = sor.u32 %s524, %s525
    %s527 = sand.u32 15, %s526
    %v528 = vld [vmem:[%s518] sm:%s527]
    %v529 = vunpack.c.l.bf16 %v528
    %v530 = vunpack.c.h.bf16 %v528
    %s531 = scalar_lea.vmem [#allocation1], 136
    %532 = vst [vmem:[%s531] sm:%s4] %v529
    %s533 = smul.addr 1, 16
    %s534 = scalar_lea.vmem %s0, %s533
    %s535 = sshrl.u32 %s4, 1
    %s536 = sor.u32 %s4, %s535
    %s537 = sand.u32 %s536, 85
    %s538 = sshrl.u32 %s537, 1
    %s539 = sor.u32 %s537, %s538
    %s540 = sand.u32 51, %s539
    %s541 = sshrl.u32 %s540, 2
    %s542 = sor.u32 %s540, %s541
    %s543 = sand.u32 15, %s542
    %v544 = vld [vmem:[%s534] sm:%s543]
    %v545 = vunpack.c.l.bf16 %v544
    %v546 = vunpack.c.h.bf16 %v544
    %s547 = scalar_lea.vmem [#allocation1], 128
    %548 = vst [vmem:[%s547] sm:%s4] %v545
    %s549 = smul.addr 1, 15
    %s550 = scalar_lea.vmem %s0, %s549
    %s551 = sshrl.u32 %s4, 1
    %s552 = sor.u32 %s4, %s551
    %s553 = sand.u32 %s552, 85
    %s554 = sshrl.u32 %s553, 1
    %s555 = sor.u32 %s553, %s554
    %s556 = sand.u32 51, %s555
    %s557 = sshrl.u32 %s556, 2
    %s558 = sor.u32 %s556, %s557
    %s559 = sand.u32 15, %s558
    %v560 = vld [vmem:[%s550] sm:%s559]
    %v561 = vunpack.c.l.bf16 %v560
    %v562 = vunpack.c.h.bf16 %v560
    %s563 = scalar_lea.vmem [#allocation1], 120
    %564 = vst [vmem:[%s563] sm:%s4] %v561
    %s565 = smul.addr 1, 14
    %s566 = scalar_lea.vmem %s0, %s565
    %s567 = sshrl.u32 %s4, 1
    %s568 = sor.u32 %s4, %s567
    %s569 = sand.u32 %s568, 85
    %s570 = sshrl.u32 %s569, 1
    %s571 = sor.u32 %s569, %s570
    %s572 = sand.u32 51, %s571
    %s573 = sshrl.u32 %s572, 2
    %s574 = sor.u32 %s572, %s573
    %s575 = sand.u32 15, %s574
    %v576 = vld [vmem:[%s566] sm:%s575]
    %v577 = vunpack.c.l.bf16 %v576
    %v578 = vunpack.c.h.bf16 %v576
    %s579 = scalar_lea.vmem [#allocation1], 112
    %580 = vst [vmem:[%s579] sm:%s4] %v577
    %s581 = smul.addr 1, 13
    %s582 = scalar_lea.vmem %s0, %s581
    %s583 = sshrl.u32 %s4, 1
    %s584 = sor.u32 %s4, %s583
    %s585 = sand.u32 %s584, 85
    %s586 = sshrl.u32 %s585, 1
    %s587 = sor.u32 %s585, %s586
    %s588 = sand.u32 51, %s587
    %s589 = sshrl.u32 %s588, 2
    %s590 = sor.u32 %s588, %s589
    %s591 = sand.u32 15, %s590
    %v592 = vld [vmem:[%s582] sm:%s591]
    %v593 = vunpack.c.l.bf16 %v592
    %v594 = vunpack.c.h.bf16 %v592
    %s595 = scalar_lea.vmem [#allocation1], 104
    %596 = vst [vmem:[%s595] sm:%s4] %v593
    %s597 = smul.addr 1, 12
    %s598 = scalar_lea.vmem %s0, %s597
    %s599 = sshrl.u32 %s4, 1
    %s600 = sor.u32 %s4, %s599
    %s601 = sand.u32 %s600, 85
    %s602 = sshrl.u32 %s601, 1
    %s603 = sor.u32 %s601, %s602
    %s604 = sand.u32 51, %s603
    %s605 = sshrl.u32 %s604, 2
    %s606 = sor.u32 %s604, %s605
    %s607 = sand.u32 15, %s606
    %v608 = vld [vmem:[%s598] sm:%s607]
    %v609 = vunpack.c.l.bf16 %v608
    %v610 = vunpack.c.h.bf16 %v608
    %s611 = scalar_lea.vmem [#allocation1], 96
    %612 = vst [vmem:[%s611] sm:%s4] %v609
    %s613 = smul.addr 1, 11
    %s614 = scalar_lea.vmem %s0, %s613
    %s615 = sshrl.u32 %s4, 1
    %s616 = sor.u32 %s4, %s615
    %s617 = sand.u32 %s616, 85
    %s618 = sshrl.u32 %s617, 1
    %s619 = sor.u32 %s617, %s618
    %s620 = sand.u32 51, %s619
    %s621 = sshrl.u32 %s620, 2
    %s622 = sor.u32 %s620, %s621
    %s623 = sand.u32 15, %s622
    %v624 = vld [vmem:[%s614] sm:%s623]
    %v625 = vunpack.c.l.bf16 %v624
    %v626 = vunpack.c.h.bf16 %v624
    %s627 = scalar_lea.vmem [#allocation1], 88
    %628 = vst [vmem:[%s627] sm:%s4] %v625
    %s629 = smul.addr 1, 10
    %s630 = scalar_lea.vmem %s0, %s629
    %s631 = sshrl.u32 %s4, 1
    %s632 = sor.u32 %s4, %s631
    %s633 = sand.u32 %s632, 85
    %s634 = sshrl.u32 %s633, 1
    %s635 = sor.u32 %s633, %s634
    %s636 = sand.u32 51, %s635
    %s637 = sshrl.u32 %s636, 2
    %s638 = sor.u32 %s636, %s637
    %s639 = sand.u32 15, %s638
    %v640 = vld [vmem:[%s630] sm:%s639]
    %v641 = vunpack.c.l.bf16 %v640
    %v642 = vunpack.c.h.bf16 %v640
    %s643 = scalar_lea.vmem [#allocation1], 80
    %644 = vst [vmem:[%s643] sm:%s4] %v641
    %s645 = smul.addr 1, 9
    %s646 = scalar_lea.vmem %s0, %s645
    %s647 = sshrl.u32 %s4, 1
    %s648 = sor.u32 %s4, %s647
    %s649 = sand.u32 %s648, 85
    %s650 = sshrl.u32 %s649, 1
    %s651 = sor.u32 %s649, %s650
    %s652 = sand.u32 51, %s651
    %s653 = sshrl.u32 %s652, 2
    %s654 = sor.u32 %s652, %s653
    %s655 = sand.u32 15, %s654
    %v656 = vld [vmem:[%s646] sm:%s655]
    %v657 = vunpack.c.l.bf16 %v656
    %v658 = vunpack.c.h.bf16 %v656
    %s659 = scalar_lea.vmem [#allocation1], 72
    %660 = vst [vmem:[%s659] sm:%s4] %v657
    %s661 = smul.addr 1, 8
    %s662 = scalar_lea.vmem %s0, %s661
    %s663 = sshrl.u32 %s4, 1
    %s664 = sor.u32 %s4, %s663
    %s665 = sand.u32 %s664, 85
    %s666 = sshrl.u32 %s665, 1
    %s667 = sor.u32 %s665, %s666
    %s668 = sand.u32 51, %s667
    %s669 = sshrl.u32 %s668, 2
    %s670 = sor.u32 %s668, %s669
    %s671 = sand.u32 15, %s670
    %v672 = vld [vmem:[%s662] sm:%s671]
    %v673 = vunpack.c.l.bf16 %v672
    %v674 = vunpack.c.h.bf16 %v672
    %s675 = scalar_lea.vmem [#allocation1], 64
    %676 = vst [vmem:[%s675] sm:%s4] %v673
    %s677 = smul.addr 1, 7
    %s678 = scalar_lea.vmem %s0, %s677
    %s679 = sshrl.u32 %s4, 1
    %s680 = sor.u32 %s4, %s679
    %s681 = sand.u32 %s680, 85
    %s682 = sshrl.u32 %s681, 1
    %s683 = sor.u32 %s681, %s682
    %s684 = sand.u32 51, %s683
    %s685 = sshrl.u32 %s684, 2
    %s686 = sor.u32 %s684, %s685
    %s687 = sand.u32 15, %s686
    %v688 = vld [vmem:[%s678] sm:%s687]
    %v689 = vunpack.c.l.bf16 %v688
    %v690 = vunpack.c.h.bf16 %v688
    %s691 = scalar_lea.vmem [#allocation1], 56
    %692 = vst [vmem:[%s691] sm:%s4] %v689
    %s693 = smul.addr 1, 6
    %s694 = scalar_lea.vmem %s0, %s693
    %s695 = sshrl.u32 %s4, 1
    %s696 = sor.u32 %s4, %s695
    %s697 = sand.u32 %s696, 85
    %s698 = sshrl.u32 %s697, 1
    %s699 = sor.u32 %s697, %s698
    %s700 = sand.u32 51, %s699
    %s701 = sshrl.u32 %s700, 2
    %s702 = sor.u32 %s700, %s701
    %s703 = sand.u32 15, %s702
    %v704 = vld [vmem:[%s694] sm:%s703]
    %v705 = vunpack.c.l.bf16 %v704
    %v706 = vunpack.c.h.bf16 %v704
    %s707 = scalar_lea.vmem [#allocation1], 48
    %708 = vst [vmem:[%s707] sm:%s4] %v705
    %s709 = smul.addr 1, 5
    %s710 = scalar_lea.vmem %s0, %s709
    %s711 = sshrl.u32 %s4, 1
    %s712 = sor.u32 %s4, %s711
    %s713 = sand.u32 %s712, 85
    %s714 = sshrl.u32 %s713, 1
    %s715 = sor.u32 %s713, %s714
    %s716 = sand.u32 51, %s715
    %s717 = sshrl.u32 %s716, 2
    %s718 = sor.u32 %s716, %s717
    %s719 = sand.u32 15, %s718
    %v720 = vld [vmem:[%s710] sm:%s719]
    %v721 = vunpack.c.l.bf16 %v720
    %v722 = vunpack.c.h.bf16 %v720
    %s723 = scalar_lea.vmem [#allocation1], 40
    %724 = vst [vmem:[%s723] sm:%s4] %v721
    %s725 = smul.addr 1, 4
    %s726 = scalar_lea.vmem %s0, %s725
    %s727 = sshrl.u32 %s4, 1
    %s728 = sor.u32 %s4, %s727
    %s729 = sand.u32 %s728, 85
    %s730 = sshrl.u32 %s729, 1
    %s731 = sor.u32 %s729, %s730
    %s732 = sand.u32 51, %s731
    %s733 = sshrl.u32 %s732, 2
    %s734 = sor.u32 %s732, %s733
    %s735 = sand.u32 15, %s734
    %v736 = vld [vmem:[%s726] sm:%s735]
    %v737 = vunpack.c.l.bf16 %v736
    %v738 = vunpack.c.h.bf16 %v736
    %s739 = scalar_lea.vmem [#allocation1], 32
    %740 = vst [vmem:[%s739] sm:%s4] %v737
    %s741 = smul.addr 1, 3
    %s742 = scalar_lea.vmem %s0, %s741
    %s743 = sshrl.u32 %s4, 1
    %s744 = sor.u32 %s4, %s743
    %s745 = sand.u32 %s744, 85
    %s746 = sshrl.u32 %s745, 1
    %s747 = sor.u32 %s745, %s746
    %s748 = sand.u32 51, %s747
    %s749 = sshrl.u32 %s748, 2
    %s750 = sor.u32 %s748, %s749
    %s751 = sand.u32 15, %s750
    %v752 = vld [vmem:[%s742] sm:%s751]
    %v753 = vunpack.c.l.bf16 %v752
    %v754 = vunpack.c.h.bf16 %v752
    %s755 = scalar_lea.vmem [#allocation1], 24
    %756 = vst [vmem:[%s755] sm:%s4] %v753
    %s757 = smul.addr 1, 2
    %s758 = scalar_lea.vmem %s0, %s757
    %s759 = sshrl.u32 %s4, 1
    %s760 = sor.u32 %s4, %s759
    %s761 = sand.u32 %s760, 85
    %s762 = sshrl.u32 %s761, 1
    %s763 = sor.u32 %s761, %s762
    %s764 = sand.u32 51, %s763
    %s765 = sshrl.u32 %s764, 2
    %s766 = sor.u32 %s764, %s765
    %s767 = sand.u32 15, %s766
    %v768 = vld [vmem:[%s758] sm:%s767]
    %v769 = vunpack.c.l.bf16 %v768
    %v770 = vunpack.c.h.bf16 %v768
    %s771 = scalar_lea.vmem [#allocation1], 16
    %772 = vst [vmem:[%s771] sm:%s4] %v769
    %s773 = scalar_lea.vmem %s0, 1
    %s774 = sshrl.u32 %s4, 1
    %s775 = sor.u32 %s4, %s774
    %s776 = sand.u32 %s775, 85
    %s777 = sshrl.u32 %s776, 1
    %s778 = sor.u32 %s776, %s777
    %s779 = sand.u32 51, %s778
    %s780 = sshrl.u32 %s779, 2
    %s781 = sor.u32 %s779, %s780
    %s782 = sand.u32 15, %s781
    %v783 = vld [vmem:[%s773] sm:%s782]
    %v784 = vunpack.c.l.bf16 %v783
    %v785 = vunpack.c.h.bf16 %v783
    %s786 = scalar_lea.vmem [#allocation1], 8
    %787 = vst [vmem:[%s786] sm:%s4] %v784
    %s788 = sshrl.u32 %s4, 1
    %s789 = sor.u32 %s4, %s788
    %s790 = sand.u32 %s789, 85
    %s791 = sshrl.u32 %s790, 1
    %s792 = sor.u32 %s790, %s791
    %s793 = sand.u32 51, %s792
    %s794 = sshrl.u32 %s793, 2
    %s795 = sor.u32 %s793, %s794
    %s796 = sand.u32 15, %s795
    %v797 = vld [vmem:[%s0] sm:%s796]
    %v798 = vunpack.c.l.bf16 %v797
    %v799 = vunpack.c.h.bf16 %v797
    %800 = vst [vmem:[#allocation1] sm:%s4] %v798
    %s801 = scalar_lea.vmem [#allocation1], 8
    %s802 = smov 3
    %v803 = vld [vmem:[%s801] ss:$16 sm:%s802]
    %s804 = scalar_lea.vmem [#allocation1], 8
    %s805 = smov 12
    %v806 = vld [vmem:[%s804] ss:$16 sm:%s805]
    %vm807 = vcmask 1043458
    %v808 = vsel %vm807, %v806, %v803
    %s809 = scalar_lea.vmem [#allocation1], 8
    %s810 = smov 48
    %v811 = vld [vmem:[%s809] ss:$16 sm:%s810]
    %vm812 = vcmask 1045508
    %v813 = vsel %vm812, %v811, %v808
    %s814 = scalar_lea.vmem [#allocation1], 8
    %s815 = smov 192
    %v816 = vld [vmem:[%s814] ss:$16 sm:%s815]
    %vm817 = vcmask 1047558
    %v818 = vsel %vm817, %v816, %v813
    %vm819 = vcmask 556032
    %s820 = scalar_lea.vmem [#allocation0], 8
    %821 = vst.msk [vmem:[%s820] sm:$0xff] %vm819, %v818
    %s822 = scalar_lea.vmem [#allocation1], 136
    %s823 = smov 3
    %v824 = vld [vmem:[%s822] ss:$16 sm:%s823]
    %s825 = scalar_lea.vmem [#allocation1], 136
    %s826 = smov 12
    %v827 = vld [vmem:[%s825] ss:$16 sm:%s826]
    %vm828 = vcmask 1043458
    %v829 = vsel %vm828, %v827, %v824
    %s830 = scalar_lea.vmem [#allocation1], 136
    %s831 = smov 48
    %v832 = vld [vmem:[%s830] ss:$16 sm:%s831]
    %vm833 = vcmask 1045508
    %v834 = vsel %vm833, %v832, %v829
    %s835 = scalar_lea.vmem [#allocation1], 136
    %s836 = smov 192
    %v837 = vld [vmem:[%s835] ss:$16 sm:%s836]
    %vm838 = vcmask 1047558
    %v839 = vsel %vm838, %v837, %v834
    %vm840 = vcmask 556032
    %s841 = scalar_lea.vmem [#allocation0], 40
    %842 = vst.msk [vmem:[%s841] sm:$0xff] %vm840, %v839
    %s843 = scalar_lea.vmem [#allocation1], 264
    %s844 = smov 3
    %v845 = vld [vmem:[%s843] ss:$16 sm:%s844]
    %s846 = scalar_lea.vmem [#allocation1], 264
    %s847 = smov 12
    %v848 = vld [vmem:[%s846] ss:$16 sm:%s847]
    %vm849 = vcmask 1043458
    %v850 = vsel %vm849, %v848, %v845
    %s851 = scalar_lea.vmem [#allocation1], 264
    %s852 = smov 48
    %v853 = vld [vmem:[%s851] ss:$16 sm:%s852]
    %vm854 = vcmask 1045508
    %v855 = vsel %vm854, %v853, %v850
    %s856 = scalar_lea.vmem [#allocation1], 264
    %s857 = smov 192
    %v858 = vld [vmem:[%s856] ss:$16 sm:%s857]
    %vm859 = vcmask 1047558
    %v860 = vsel %vm859, %v858, %v855
    %vm861 = vcmask 556032
    %s862 = scalar_lea.vmem [#allocation0], 72
    %863 = vst.msk [vmem:[%s862] sm:$0xff] %vm861, %v860
    %s864 = scalar_lea.vmem [#allocation1], 392
    %v865 = vld [vmem:[%s864] sm:$0x1]
    %vm866 = vcmask 556032
    %s867 = scalar_lea.vmem [#allocation0], 104
    %868 = vst.msk [vmem:[%s867] sm:$0x1] %vm866, %v865
    %s869 = smov 3
    %v870 = vld [vmem:[#allocation1] ss:$16 sm:%s869]
    %s871 = smov 12
    %v872 = vld [vmem:[#allocation1] ss:$16 sm:%s871]
    %vm873 = vcmask 1043458
    %v874 = vsel %vm873, %v872, %v870
    %s875 = smov 48
    %v876 = vld [vmem:[#allocation1] ss:$16 sm:%s875]
    %vm877 = vcmask 1045508
    %v878 = vsel %vm877, %v876, %v874
    %s879 = smov 192
    %v880 = vld [vmem:[#allocation1] ss:$16 sm:%s879]
    %vm881 = vcmask 1047558
    %v882 = vsel %vm881, %v880, %v878
    %883 = vst [vmem:[#allocation0] sm:$0xff] %v882
    %s884 = scalar_lea.vmem [#allocation1], 128
    %s885 = smov 3
    %v886 = vld [vmem:[%s884] ss:$16 sm:%s885]
    %s887 = scalar_lea.vmem [#allocation1], 128
    %s888 = smov 12
    %v889 = vld [vmem:[%s887] ss:$16 sm:%s888]
    %vm890 = vcmask 1043458
    %v891 = vsel %vm890, %v889, %v886
    %s892 = scalar_lea.vmem [#allocation1], 128
    %s893 = smov 48
    %v894 = vld [vmem:[%s892] ss:$16 sm:%s893]
    %vm895 = vcmask 1045508
    %v896 = vsel %vm895, %v894, %v891
    %s897 = scalar_lea.vmem [#allocation1], 128
    %s898 = smov 192
    %v899 = vld [vmem:[%s897] ss:$16 sm:%s898]
    %vm900 = vcmask 1047558
    %v901 = vsel %vm900, %v899, %v896
    %s902 = scalar_lea.vmem [#allocation0], 32
    %903 = vst [vmem:[%s902] sm:$0xff] %v901
    %s904 = scalar_lea.vmem [#allocation1], 256
    %s905 = smov 3
    %v906 = vld [vmem:[%s904] ss:$16 sm:%s905]
    %s907 = scalar_lea.vmem [#allocation1], 256
    %s908 = smov 12
    %v909 = vld [vmem:[%s907] ss:$16 sm:%s908]
    %vm910 = vcmask 1043458
    %v911 = vsel %vm910, %v909, %v906
    %s912 = scalar_lea.vmem [#allocation1], 256
    %s913 = smov 48
    %v914 = vld [vmem:[%s912] ss:$16 sm:%s913]
    %vm915 = vcmask 1045508
    %v916 = vsel %vm915, %v914, %v911
    %s917 = scalar_lea.vmem [#allocation1], 256
    %s918 = smov 192
    %v919 = vld [vmem:[%s917] ss:$16 sm:%s918]
    %vm920 = vcmask 1047558
    %v921 = vsel %vm920, %v919, %v916
    %s922 = scalar_lea.vmem [#allocation0], 64
    %923 = vst [vmem:[%s922] sm:$0xff] %v921
    %s924 = scalar_lea.vmem [#allocation1], 384
    %v925 = vld [vmem:[%s924] sm:$0x1]
    %s926 = scalar_lea.vmem [#allocation0], 96
    %927 = vst [vmem:[%s926] sm:$0x1] %v925
    %s928 = scalar_lea.vmem [#allocation1], 9
    %s929 = smov 3
    %v930 = vld [vmem:[%s928] ss:$16 sm:%s929]
    %s931 = scalar_lea.vmem [#allocation1], 9
    %s932 = smov 12
    %v933 = vld [vmem:[%s931] ss:$16 sm:%s932]
    %vm934 = vcmask 1043458
    %v935 = vsel %vm934, %v933, %v930
    %s936 = scalar_lea.vmem [#allocation1], 9
    %s937 = smov 48
    %v938 = vld [vmem:[%s936] ss:$16 sm:%s937]
    %vm939 = vcmask 1045508
    %v940 = vsel %vm939, %v938, %v935
    %s941 = scalar_lea.vmem [#allocation1], 9
    %s942 = smov 192
    %v943 = vld [vmem:[%s941] ss:$16 sm:%s942]
    %vm944 = vcmask 1047558
    %v945 = vsel %vm944, %v943, %v940
    %s946 = scalar_lea.vmem [#allocation1], 1
    %s947 = smov 3
    %v948 = vld [vmem:[%s946] ss:$16 sm:%s947]
    %s949 = scalar_lea.vmem [#allocation1], 1
    %s950 = smov 12
    %v951 = vld [vmem:[%s949] ss:$16 sm:%s950]
    %vm952 = vcmask 1043458
    %v953 = vsel %vm952, %v951, %v948
    %s954 = scalar_lea.vmem [#allocation1], 1
    %s955 = smov 48
    %v956 = vld [vmem:[%s954] ss:$16 sm:%s955]
    %vm957 = vcmask 1045508
    %v958 = vsel %vm957, %v956, %v953
    %s959 = scalar_lea.vmem [#allocation1], 1
    %s960 = smov 192
    %v961 = vld [vmem:[%s959] ss:$16 sm:%s960]
    %vm962 = vcmask 1047558
    %v963 = vsel %vm962, %v961, %v958
    %vm964 = vcmask 490496
    %v965 = vsel %vm964, %v963, %v945
    %966 = vrot.lane.b32.xlu0 %v965, 68
    %v967 = vpop.permute.xlu0 %966
    %vm968 = vcmask 64512
    %s969 = scalar_lea.vmem [#allocation0], 24
    %970 = vst.msk [vmem:[%s969] sm:$0xff] %vm968, %v967
    %vm971 = vcmask 1048096
    %s972 = scalar_lea.vmem [#allocation0], 8
    %973 = vst.msk [vmem:[%s972] sm:$0xff] %vm971, %v967
    %s974 = scalar_lea.vmem [#allocation1], 137
    %s975 = smov 3
    %v976 = vld [vmem:[%s974] ss:$16 sm:%s975]
    %s977 = scalar_lea.vmem [#allocation1], 137
    %s978 = smov 12
    %v979 = vld [vmem:[%s977] ss:$16 sm:%s978]
    %vm980 = vcmask 1043458
    %v981 = vsel %vm980, %v979, %v976
    %s982 = scalar_lea.vmem [#allocation1], 137
    %s983 = smov 48
    %v984 = vld [vmem:[%s982] ss:$16 sm:%s983]
    %vm985 = vcmask 1045508
    %v986 = vsel %vm985, %v984, %v981
    %s987 = scalar_lea.vmem [#allocation1], 137
    %s988 = smov 192
    %v989 = vld [vmem:[%s987] ss:$16 sm:%s988]
    %vm990 = vcmask 1047558
    %v991 = vsel %vm990, %v989, %v986
    %s992 = scalar_lea.vmem [#allocation1], 129
    %s993 = smov 3
    %v994 = vld [vmem:[%s992] ss:$16 sm:%s993]
    %s995 = scalar_lea.vmem [#allocation1], 129
    %s996 = smov 12
    %v997 = vld [vmem:[%s995] ss:$16 sm:%s996]
    %vm998 = vcmask 1043458
    %v999 = vsel %vm998, %v997, %v994
    %s1000 = scalar_lea.vmem [#allocation1], 129
    %s1001 = smov 48
    %v1002 = vld [vmem:[%s1000] ss:$16 sm:%s1001]
    %vm1003 = vcmask 1045508
    %v1004 = vsel %vm1003, %v1002, %v999
    %s1005 = scalar_lea.vmem [#allocation1], 129
    %s1006 = smov 192
    %v1007 = vld [vmem:[%s1005] ss:$16 sm:%s1006]
    %vm1008 = vcmask 1047558
    %v1009 = vsel %vm1008, %v1007, %v1004
    %vm1010 = vcmask 490496
    %v1011 = vsel %vm1010, %v1009, %v991
    %1012 = vrot.lane.b32.xlu0 %v1011, 68
    %v1013 = vpop.permute.xlu0 %1012
    %vm1014 = vcmask 64512
    %s1015 = scalar_lea.vmem [#allocation0], 56
    %1016 = vst.msk [vmem:[%s1015] sm:$0xff] %vm1014, %v1013
    %vm1017 = vcmask 1048096
    %s1018 = scalar_lea.vmem [#allocation0], 40
    %1019 = vst.msk [vmem:[%s1018] sm:$0xff] %vm1017, %v1013
    %s1020 = scalar_lea.vmem [#allocation1], 265
    %s1021 = smov 3
    %v1022 = vld [vmem:[%s1020] ss:$16 sm:%s1021]
    %s1023 = scalar_lea.vmem [#allocation1], 265
    %s1024 = smov 12
    %v1025 = vld [vmem:[%s1023] ss:$16 sm:%s1024]
    %vm1026 = vcmask 1043458
    %v1027 = vsel %vm1026, %v1025, %v1022
    %s1028 = scalar_lea.vmem [#allocation1], 265
    %s1029 = smov 48
    %v1030 = vld [vmem:[%s1028] ss:$16 sm:%s1029]
    %vm1031 = vcmask 1045508
    %v1032 = vsel %vm1031, %v1030, %v1027
    %s1033 = scalar_lea.vmem [#allocation1], 265
    %s1034 = smov 192
    %v1035 = vld [vmem:[%s1033] ss:$16 sm:%s1034]
    %vm1036 = vcmask 1047558
    %v1037 = vsel %vm1036, %v1035, %v1032
    %s1038 = scalar_lea.vmem [#allocation1], 257
    %s1039 = smov 3
    %v1040 = vld [vmem:[%s1038] ss:$16 sm:%s1039]
    %s1041 = scalar_lea.vmem [#allocation1], 257
    %s1042 = smov 12
    %v1043 = vld [vmem:[%s1041] ss:$16 sm:%s1042]
    %vm1044 = vcmask 1043458
    %v1045 = vsel %vm1044, %v1043, %v1040
    %s1046 = scalar_lea.vmem [#allocation1], 257
    %s1047 = smov 48
    %v1048 = vld [vmem:[%s1046] ss:$16 sm:%s1047]
    %vm1049 = vcmask 1045508
    %v1050 = vsel %vm1049, %v1048, %v1045
    %s1051 = scalar_lea.vmem [#allocation1], 257
    %s1052 = smov 192
    %v1053 = vld [vmem:[%s1051] ss:$16 sm:%s1052]
    %vm1054 = vcmask 1047558
    %v1055 = vsel %vm1054, %v1053, %v1050
    %vm1056 = vcmask 490496
    %v1057 = vsel %vm1056, %v1055, %v1037
    %1058 = vrot.lane.b32.xlu0 %v1057, 68
    %v1059 = vpop.permute.xlu0 %1058
    %vm1060 = vcmask 64512
    %s1061 = scalar_lea.vmem [#allocation0], 88
    %1062 = vst.msk [vmem:[%s1061] sm:$0xff] %vm1060, %v1059
    %vm1063 = vcmask 1048096
    %s1064 = scalar_lea.vmem [#allocation0], 72
    %1065 = vst.msk [vmem:[%s1064] sm:$0xff] %vm1063, %v1059
    %s1066 = scalar_lea.vmem [#allocation1], 393
    %v1067 = vld [vmem:[%s1066] sm:$0x1]
    %s1068 = scalar_lea.vmem [#allocation1], 385
    %s1069 = smov 3
    %v1070 = vld [vmem:[%s1068] ss:$-376 sm:%s1069]
    %s1071 = scalar_lea.vmem [#allocation1], 4294967289
    %s1072 = smov 12
    %v1073 = vld [vmem:[%s1071] ss:$16 sm:%s1072]
    %vm1074 = vcmask 1043458
    %v1075 = vsel %vm1074, %v1073, %v1070
    %s1076 = scalar_lea.vmem [#allocation1], 4294967289
    %s1077 = smov 48
    %v1078 = vld [vmem:[%s1076] ss:$16 sm:%s1077]
    %vm1079 = vcmask 1045508
    %v1080 = vsel %vm1079, %v1078, %v1075
    %s1081 = scalar_lea.vmem [#allocation1], 4294967289
    %s1082 = smov 192
    %v1083 = vld [vmem:[%s1081] ss:$16 sm:%s1082]
    %vm1084 = vcmask 1047558
    %v1085 = vsel %vm1084, %v1083, %v1080
    %vm1086 = vcmask 490496
    %v1087 = vsel %vm1086, %v1085, %v1067
    %1088 = vrot.lane.b32.xlu0 %v1087, 68
    %v1089 = vpop.permute.xlu0 %1088
    %vm1090 = vcmask 64512
    %s1091 = scalar_lea.vmem [#allocation0], 120
    %1092 = vst.msk [vmem:[%s1091] sm:$0x1] %vm1090, %v1089
    %vm1093 = vcmask 1048096
    %s1094 = scalar_lea.vmem [#allocation0], 104
    %1095 = vst.msk [vmem:[%s1094] ss:$-88 sm:$0x3] %vm1093, %v1089
    %s1096 = scalar_lea.vmem [#allocation0], 15
    %1097 = vst.msk [vmem:[%s1096] sm:$0xfc] %vm1093, %v1089
    %s1098 = scalar_lea.vmem [#allocation1], 1
    %s1099 = smov 3
    %v1100 = vld [vmem:[%s1098] ss:$16 sm:%s1099]
    %s1101 = scalar_lea.vmem [#allocation1], 1
    %s1102 = smov 12
    %v1103 = vld [vmem:[%s1101] ss:$16 sm:%s1102]
    %vm1104 = vcmask 1043458
    %v1105 = vsel %vm1104, %v1103, %v1100
    %s1106 = scalar_lea.vmem [#allocation1], 1
    %s1107 = smov 48
    %v1108 = vld [vmem:[%s1106] ss:$16 sm:%s1107]
    %vm1109 = vcmask 1045508
    %v1110 = vsel %vm1109, %v1108, %v1105
    %s1111 = scalar_lea.vmem [#allocation1], 1
    %s1112 = smov 192
    %v1113 = vld [vmem:[%s1111] ss:$16 sm:%s1112]
    %vm1114 = vcmask 1047558
    %v1115 = vsel %vm1114, %v1113, %v1110
    %s1116 = scalar_lea.vmem [#allocation1], 137
    %s1117 = smov 3
    %v1118 = vld [vmem:[%s1116] ss:$16 sm:%s1117]
    %s1119 = scalar_lea.vmem [#allocation1], 137
    %s1120 = smov 12
    %v1121 = vld [vmem:[%s1119] ss:$16 sm:%s1120]
    %vm1122 = vcmask 1043458
    %v1123 = vsel %vm1122, %v1121, %v1118
    %s1124 = scalar_lea.vmem [#allocation1], 137
    %s1125 = smov 48
    %v1126 = vld [vmem:[%s1124] ss:$16 sm:%s1125]
    %vm1127 = vcmask 1045508
    %v1128 = vsel %vm1127, %v1126, %v1123
    %s1129 = scalar_lea.vmem [#allocation1], 905
    %s1130 = smov 192
    %v1131 = vld [vmem:[%s1129] ss:$-112 sm:%s1130]
    %vm1132 = vcmask 1047558
    %v1133 = vsel %vm1132, %v1131, %v1128
    %vm1134 = vcmask 490496
    %v1135 = vsel %vm1134, %v1133, %v1115
    %1136 = vrot.lane.b32.xlu0 %v1135, 68
    %v1137 = vpop.permute.xlu0 %1136
    %vm1138 = vcmask 556032
    %s1139 = scalar_lea.vmem [#allocation0], 16
    %1140 = vst.msk [vmem:[%s1139] sm:$0xff] %vm1138, %v1137
    %vm1141 = vcmask 1048096
    %s1142 = scalar_lea.vmem [#allocation0], 48
    %1143 = vst.msk [vmem:[%s1142] sm:$0x7f] %vm1141, %v1137
    %s1144 = scalar_lea.vmem [#allocation0], 16
    %1145 = vst.msk [vmem:[%s1144] sm:$0x80] %vm1141, %v1137
    %s1146 = scalar_lea.vmem [#allocation1], 129
    %s1147 = smov 3
    %v1148 = vld [vmem:[%s1146] ss:$16 sm:%s1147]
    %s1149 = scalar_lea.vmem [#allocation1], 129
    %s1150 = smov 12
    %v1151 = vld [vmem:[%s1149] ss:$16 sm:%s1150]
    %vm1152 = vcmask 1043458
    %v1153 = vsel %vm1152, %v1151, %v1148
    %s1154 = scalar_lea.vmem [#allocation1], 129
    %s1155 = smov 48
    %v1156 = vld [vmem:[%s1154] ss:$16 sm:%s1155]
    %vm1157 = vcmask 1045508
    %v1158 = vsel %vm1157, %v1156, %v1153
    %s1159 = scalar_lea.vmem [#allocation1], 129
    %s1160 = smov 192
    %v1161 = vld [vmem:[%s1159] ss:$16 sm:%s1160]
    %vm1162 = vcmask 1047558
    %v1163 = vsel %vm1162, %v1161, %v1158
    %s1164 = scalar_lea.vmem [#allocation1], 265
    %s1165 = smov 3
    %v1166 = vld [vmem:[%s1164] ss:$16 sm:%s1165]
    %s1167 = scalar_lea.vmem [#allocation1], 265
    %s1168 = smov 12
    %v1169 = vld [vmem:[%s1167] ss:$16 sm:%s1168]
    %vm1170 = vcmask 1043458
    %v1171 = vsel %vm1170, %v1169, %v1166
    %s1172 = scalar_lea.vmem [#allocation1], 265
    %s1173 = smov 48
    %v1174 = vld [vmem:[%s1172] ss:$16 sm:%s1173]
    %vm1175 = vcmask 1045508
    %v1176 = vsel %vm1175, %v1174, %v1171
    %s1177 = scalar_lea.vmem [#allocation1], 1033
    %s1178 = smov 192
    %v1179 = vld [vmem:[%s1177] ss:$-112 sm:%s1178]
    %vm1180 = vcmask 1047558
    %v1181 = vsel %vm1180, %v1179, %v1176
    %vm1182 = vcmask 490496
    %v1183 = vsel %vm1182, %v1181, %v1163
    %1184 = vrot.lane.b32.xlu0 %v1183, 68
    %v1185 = vpop.permute.xlu0 %1184
    %vm1186 = vcmask 556032
    %s1187 = scalar_lea.vmem [#allocation0], 48
    %1188 = vst.msk [vmem:[%s1187] sm:$0xff] %vm1186, %v1185
    %vm1189 = vcmask 1048096
    %s1190 = scalar_lea.vmem [#allocation0], 80
    %1191 = vst.msk [vmem:[%s1190] sm:$0x7f] %vm1189, %v1185
    %s1192 = scalar_lea.vmem [#allocation0], 48
    %1193 = vst.msk [vmem:[%s1192] sm:$0x80] %vm1189, %v1185
    %s1194 = scalar_lea.vmem [#allocation1], 257
    %s1195 = smov 3
    %v1196 = vld [vmem:[%s1194] ss:$16 sm:%s1195]
    %s1197 = scalar_lea.vmem [#allocation1], 257
    %s1198 = smov 12
    %v1199 = vld [vmem:[%s1197] ss:$16 sm:%s1198]
    %vm1200 = vcmask 1043458
    %v1201 = vsel %vm1200, %v1199, %v1196
    %s1202 = scalar_lea.vmem [#allocation1], 257
    %s1203 = smov 48
    %v1204 = vld [vmem:[%s1202] ss:$16 sm:%s1203]
    %vm1205 = vcmask 1045508
    %v1206 = vsel %vm1205, %v1204, %v1201
    %s1207 = scalar_lea.vmem [#allocation1], 257
    %s1208 = smov 192
    %v1209 = vld [vmem:[%s1207] ss:$16 sm:%s1208]
    %vm1210 = vcmask 1047558
    %v1211 = vsel %vm1210, %v1209, %v1206
    %s1212 = scalar_lea.vmem [#allocation1], 393
    %s1213 = smov 3
    %v1214 = vld [vmem:[%s1212] ss:$-16 sm:%s1213]
    %vm1215 = vcmask 490496
    %v1216 = vsel %vm1215, %v1214, %v1211
    %1217 = vrot.lane.b32.xlu0 %v1216, 68
    %v1218 = vpop.permute.xlu0 %1217
    %vm1219 = vcmask 556032
    %s1220 = scalar_lea.vmem [#allocation0], 80
    %1221 = vst.msk [vmem:[%s1220] sm:$0xff] %vm1219, %v1218
    %vm1222 = vcmask 1048096
    %s1223 = scalar_lea.vmem [#allocation0], 112
    %1224 = vst.msk [vmem:[%s1223] ss:$-25 sm:$0x3] %vm1222, %v1218
    %s1225 = scalar_lea.vmem [#allocation1], 385
    %v1226 = vld [vmem:[%s1225] sm:$0x1]
    %1227 = vrot.lane.b32.xlu0 %v1226, 68
    %v1228 = vpop.permute.xlu0 %1227
    %vm1229 = vcmask 556032
    %s1230 = scalar_lea.vmem [#allocation0], 112
    %1231 = vst.msk [vmem:[%s1230] sm:$0x1] %vm1229, %v1228
    %s1233 = smul.u32 4, 2
    %s1234 = sshllo.u32 0, %s1233
    %s1235 = sshrl.u32 %s1233, 1
    %v1236 = vld [vmem:[#allocation0] sm:%s1234]
    %v1237 = vpack.c.bf16 0.0, %v1236
    %s1238 = sshllo.u32 0, %s1235
    %1239 = vst [vmem:[%s1] sm:%s1238] %v1237
    %s1240 = scalar_lea.vmem [#allocation0], 8
    %v1241 = vld [vmem:[%s1240] sm:%s1234]
    %v1242 = vpack.c.bf16 0.0, %v1241
    %s1243 = sshllo.u32 0, %s1235
    %s1244 = scalar_lea.vmem %s1, 4
    %1245 = vst [vmem:[%s1244] sm:%s1243] %v1242
    %s1246 = scalar_lea.vmem [#allocation0], 16
    %v1247 = vld [vmem:[%s1246] sm:%s1234]
    %v1248 = vpack.c.bf16 0.0, %v1247
    %s1249 = sshllo.u32 0, %s1235
    %s1250 = smul.addr 4, 2
    %s1251 = scalar_lea.vmem %s1, %s1250
    %1252 = vst [vmem:[%s1251] sm:%s1249] %v1248
    %s1253 = scalar_lea.vmem [#allocation0], 24
    %v1254 = vld [vmem:[%s1253] sm:%s1234]
    %v1255 = vpack.c.bf16 0.0, %v1254
    %s1256 = sshllo.u32 0, %s1235
    %s1257 = smul.addr 4, 3
    %s1258 = scalar_lea.vmem %s1, %s1257
    %1259 = vst [vmem:[%s1258] sm:%s1256] %v1255
    %s1260 = scalar_lea.vmem [#allocation0], 32
    %v1261 = vld [vmem:[%s1260] sm:%s1234]
    %v1262 = vpack.c.bf16 0.0, %v1261
    %s1263 = sshllo.u32 0, %s1235
    %s1264 = smul.addr 4, 4
    %s1265 = scalar_lea.vmem %s1, %s1264
    %1266 = vst [vmem:[%s1265] sm:%s1263] %v1262
    %s1267 = scalar_lea.vmem [#allocation0], 40
    %v1268 = vld [vmem:[%s1267] sm:%s1234]
    %v1269 = vpack.c.bf16 0.0, %v1268
    %s1270 = sshllo.u32 0, %s1235
    %s1271 = smul.addr 4, 5
    %s1272 = scalar_lea.vmem %s1, %s1271
    %1273 = vst [vmem:[%s1272] sm:%s1270] %v1269
    %s1274 = scalar_lea.vmem [#allocation0], 48
    %v1275 = vld [vmem:[%s1274] sm:%s1234]
    %v1276 = vpack.c.bf16 0.0, %v1275
    %s1277 = sshllo.u32 0, %s1235
    %s1278 = smul.addr 4, 6
    %s1279 = scalar_lea.vmem %s1, %s1278
    %1280 = vst [vmem:[%s1279] sm:%s1277] %v1276
    %s1281 = scalar_lea.vmem [#allocation0], 56
    %v1282 = vld [vmem:[%s1281] sm:%s1234]
    %v1283 = vpack.c.bf16 0.0, %v1282
    %s1284 = sshllo.u32 0, %s1235
    %s1285 = smul.addr 4, 7
    %s1286 = scalar_lea.vmem %s1, %s1285
    %1287 = vst [vmem:[%s1286] sm:%s1284] %v1283
    %s1288 = scalar_lea.vmem [#allocation0], 64
    %v1289 = vld [vmem:[%s1288] sm:%s1234]
    %v1290 = vpack.c.bf16 0.0, %v1289
    %s1291 = sshllo.u32 0, %s1235
    %s1292 = smul.addr 4, 8
    %s1293 = scalar_lea.vmem %s1, %s1292
    %1294 = vst [vmem:[%s1293] sm:%s1291] %v1290
    %s1295 = scalar_lea.vmem [#allocation0], 72
    %v1296 = vld [vmem:[%s1295] sm:%s1234]
    %v1297 = vpack.c.bf16 0.0, %v1296
    %s1298 = sshllo.u32 0, %s1235
    %s1299 = smul.addr 4, 9
    %s1300 = scalar_lea.vmem %s1, %s1299
    %1301 = vst [vmem:[%s1300] sm:%s1298] %v1297
    %s1302 = scalar_lea.vmem [#allocation0], 80
    %v1303 = vld [vmem:[%s1302] sm:%s1234]
    %v1304 = vpack.c.bf16 0.0, %v1303
    %s1305 = sshllo.u32 0, %s1235
    %s1306 = smul.addr 4, 10
    %s1307 = scalar_lea.vmem %s1, %s1306
    %1308 = vst [vmem:[%s1307] sm:%s1305] %v1304
    %s1309 = scalar_lea.vmem [#allocation0], 88
    %v1310 = vld [vmem:[%s1309] sm:%s1234]
    %v1311 = vpack.c.bf16 0.0, %v1310
    %s1312 = sshllo.u32 0, %s1235
    %s1313 = smul.addr 4, 11
    %s1314 = scalar_lea.vmem %s1, %s1313
    %1315 = vst [vmem:[%s1314] sm:%s1312] %v1311
    %s1316 = scalar_lea.vmem [#allocation0], 96
    %v1317 = vld [vmem:[%s1316] sm:%s1234]
    %v1318 = vpack.c.bf16 0.0, %v1317
    %s1319 = sshllo.u32 0, %s1235
    %s1320 = smul.addr 4, 12
    %s1321 = scalar_lea.vmem %s1, %s1320
    %1322 = vst [vmem:[%s1321] sm:%s1319] %v1318
    %s1323 = scalar_lea.vmem [#allocation0], 104
    %v1324 = vld [vmem:[%s1323] sm:%s1234]
    %v1325 = vpack.c.bf16 0.0, %v1324
    %s1326 = sshllo.u32 0, %s1235
    %s1327 = smul.addr 4, 13
    %s1328 = scalar_lea.vmem %s1, %s1327
    %1329 = vst [vmem:[%s1328] sm:%s1326] %v1325
    %s1330 = scalar_lea.vmem [#allocation0], 112
    %v1331 = vld [vmem:[%s1330] sm:%s1234]
    %v1332 = vpack.c.bf16 0.0, %v1331
    %s1333 = sshllo.u32 0, %s1235
    %s1334 = smul.addr 4, 14
    %s1335 = scalar_lea.vmem %s1, %s1334
    %1336 = vst [vmem:[%s1335] sm:%s1333] %v1332
    %s1337 = scalar_lea.vmem [#allocation0], 120
    %v1338 = vld [vmem:[%s1337] sm:%s1234]
    %v1339 = vpack.c.bf16 0.0, %v1338
    %s1340 = sshllo.u32 0, %s1235
    %s1341 = smul.addr 4, 15
    %s1342 = scalar_lea.vmem %s1, %s1341
    %1343 = vst [vmem:[%s1342] sm:%s1340] %v1339

// kernel: cnn_forward.1
$region0: #{cnn_forward.1}
  #allocation0 [shape = 'u32[]', space=smem, size = 0x4, offset = 0x4, fixed_abs, tag = 'smem constant byte address 0x4 - core index']
  #allocation1 [shape = 'u32[144,128]{1,0:T(1,128)}', space=vmem, size = 0x12000, scoped, tag = 'internal scratch']
  #allocation2 [shape = 'f32[2,784]{1,0:T(2,128)}', space=vmem, size = 0x1c00, scoped, tag = 'scratch operand']
  %s0 = inlined_call_operand.vmem [shape: bf16[25,1568], index: 0, kind: input, shape index: {}]
  %s1 = inlined_call_operand.vmem [shape: bf16[6,25], index: 1, kind: input, shape index: {}]
  %s2 = inlined_call_operand.vmem [shape: f32[6,1], index: 2, kind: input, shape index: {}]
  %s3 = inlined_call_operand.vmem [shape: bf16[784,196], index: 3, kind: input, shape index: {}]
  %s4 = inlined_call_operand.vmem [shape: bf16[25,392], index: 4, kind: input, shape index: {}]
  %s5 = inlined_call_operand.vmem [shape: bf16[25,16,6], index: 5, kind: input, shape index: {}]
  %s6 = inlined_call_operand.vmem [shape: f32[16,1], index: 6, kind: input, shape index: {}]
  %s7 = inlined_call_operand.vmem [shape: bf16[196,49], index: 7, kind: input, shape index: {}]
  %s8 = inlined_call_operand.vmem [shape: bf16[784,120], index: 8, kind: input, shape index: {}]
  %s9 = inlined_call_operand.vmem [shape: f32[1,120], index: 9, kind: input, shape index: {}]
  %s10 = inlined_call_operand.vmem [shape: bf16[120,84], index: 10, kind: input, shape index: {}]
  %s11 = inlined_call_operand.vmem [shape: f32[1,84], index: 11, kind: input, shape index: {}]
  %s12 = inlined_call_operand.vmem [shape: bf16[84,10], index: 12, kind: input, shape index: {}]
  %s13 = inlined_call_operand.vmem [shape: f32[1,10], index: 13, kind: input, shape index: {}]
  %s14 = inlined_call_operand.hbm [shape: f32[2,10], index: 14, kind: output, shape index: {}]
  %s15 = sld [smem:[#allocation0]]
  $region66: #{cnn_forward.1} parent=0
    _
  %s17 = ssub.s32 1, %s15
  %s18 = scalar_select 0, %s17, %s15
  $region1: #{cnn_forward.1} parent=0
    #allocation3 [shape = 'u8[1024]{0}', space=vmem, size = 0x400, scoped, tag = 'output window, operand 0, single buffered']
    #allocation4 [shape = 's32[1]{0}', space=sflag, size = 0x4, scoped, tag = 'scoped memory for cnn_forward.1']
    %19 = vsyncpa [#allocation4], 0
    // Predicated region
    $region2: #{cnn_forward.1} parent=1 // pred_check
      _
    $region3: #{cnn_forward.1} parent=1 // pred_check_branch
      %21 = sbr.rel (0) target = $region5
    $region4: #{cnn_forward.1} parent=1 // pred_region
      _
    $region5: #{cnn_forward.1} parent=1 // pred_fallthru
      _
    // Predicated region
    $region6: #{cnn_forward.1} parent=1 // pred_check
      _
    $region7: #{cnn_forward.1} parent=1 // pred_check_branch
      %23 = sbr.rel (0) target = $region9
    $region8: #{cnn_forward.1} parent=1 // pred_region
      _
    $region9: #{cnn_forward.1} parent=1 // pred_fallthru
      _
    // Predicated region
    $region10: #{cnn_forward.1} parent=1 // pred_check
      _
    $region11: #{cnn_forward.1} parent=1 // pred_check_branch
      %25 = sbr.rel (0) target = $region13
    $region12: #{cnn_forward.1} parent=1 // pred_region
      _
    $region13: #{cnn_forward.1} parent=1 // pred_fallthru
      _
    // Predicated region
    $region14: #{cnn_forward.1} parent=1 // pred_check
      _
    $region15: #{cnn_forward.1} parent=1 // pred_check_branch
      %27 = sbr.rel (0) target = $region17
    $region16: #{cnn_forward.1} parent=1 // pred_region
      _
    $region17: #{cnn_forward.1} parent=1 // pred_fallthru
      _
    // Predicated region
    $region18: #{cnn_forward.1} parent=1 // pred_check
      _
    $region19: #{cnn_forward.1} parent=1 // pred_check_branch
      %29 = sbr.rel (0) target = $region21
    $region20: #{cnn_forward.1} parent=1 // pred_region
      _
    $region21: #{cnn_forward.1} parent=1 // pred_fallthru
      _
    // Predicated region
    $region22: #{cnn_forward.1} parent=1 // pred_check
      _
    $region23: #{cnn_forward.1} parent=1 // pred_check_branch
      %31 = sbr.rel (0) target = $region25
    $region24: #{cnn_forward.1} parent=1 // pred_region
      _
    $region25: #{cnn_forward.1} parent=1 // pred_fallthru
      _
    // Predicated region
    $region26: #{cnn_forward.1} parent=1 // pred_check
      _
    $region27: #{cnn_forward.1} parent=1 // pred_check_branch
      %33 = sbr.rel (0) target = $region29
    $region28: #{cnn_forward.1} parent=1 // pred_region
      _
    $region29: #{cnn_forward.1} parent=1 // pred_fallthru
      _
    // Predicated region
    $region30: #{cnn_forward.1} parent=1 // pred_check
      _
    $region31: #{cnn_forward.1} parent=1 // pred_check_branch
      %35 = sbr.rel (0) target = $region33
    $region32: #{cnn_forward.1} parent=1 // pred_region
      _
    $region33: #{cnn_forward.1} parent=1 // pred_fallthru
      _
    // Predicated region
    $region34: #{cnn_forward.1} parent=1 // pred_check
      _
    $region35: #{cnn_forward.1} parent=1 // pred_check_branch
      %37 = sbr.rel (0) target = $region37
    $region36: #{cnn_forward.1} parent=1 // pred_region
      _
    $region37: #{cnn_forward.1} parent=1 // pred_fallthru
      _
    // Predicated region
    $region38: #{cnn_forward.1} parent=1 // pred_check
      _
    $region39: #{cnn_forward.1} parent=1 // pred_check_branch
      %39 = sbr.rel (0) target = $region41
    $region40: #{cnn_forward.1} parent=1 // pred_region
      _
    $region41: #{cnn_forward.1} parent=1 // pred_fallthru
      _
    // Predicated region
    $region42: #{cnn_forward.1} parent=1 // pred_check
      _
    $region43: #{cnn_forward.1} parent=1 // pred_check_branch
      %41 = sbr.rel (0) target = $region45
    $region44: #{cnn_forward.1} parent=1 // pred_region
      _
    $region45: #{cnn_forward.1} parent=1 // pred_fallthru
      _
    // Predicated region
    $region46: #{cnn_forward.1} parent=1 // pred_check
      _
    $region47: #{cnn_forward.1} parent=1 // pred_check_branch
      %43 = sbr.rel (0) target = $region49
    $region48: #{cnn_forward.1} parent=1 // pred_region
      _
    $region49: #{cnn_forward.1} parent=1 // pred_fallthru
      _
    // Predicated region
    $region50: #{cnn_forward.1} parent=1 // pred_check
      _
    $region51: #{cnn_forward.1} parent=1 // pred_check_branch
      %45 = sbr.rel (0) target = $region53
    $region52: #{cnn_forward.1} parent=1 // pred_region
      _
    $region53: #{cnn_forward.1} parent=1 // pred_fallthru
      _
    // Predicated region
    $region54: #{cnn_forward.1} parent=1 // pred_check
      _
    $region55: #{cnn_forward.1} parent=1 // pred_check_branch
      %47 = sbr.rel (0) target = $region57
    $region56: #{cnn_forward.1} parent=1 // pred_region
      _
    $region57: #{cnn_forward.1} parent=1 // pred_fallthru
      _
    %v49 = vld [vmem:[%s1] sm:$0x7]
    %v50 = vld [vmem:[%s0] sm:$0xff]
    %v51 = vld [vmem:[%s0 + $0x8] sm:$0xff]
    %v52 = vld [vmem:[%s0 + $0x10] sm:$0xff]
    %v53 = vld [vmem:[%s0 + $0x18] sm:$0xff]
    %v54 = vld [vmem:[%s0 + $0x20] sm:$0xff]
    %v55 = vld [vmem:[%s0 + $0x28] sm:$0xff]
    %v56 = vld [vmem:[%s0 + $0x30] sm:$0xf]
    %v57 = vld [vmem:[%s0 + $0x34] sm:$0xff]
    %v58 = vld [vmem:[%s0 + $0x3c] sm:$0xff]
    %v59 = vld [vmem:[%s0 + $0x44] sm:$0xff]
    %v60 = vld [vmem:[%s0 + $0x4c] sm:$0xff]
    %v61 = vld [vmem:[%s0 + $0x54] sm:$0xff]
    %v62 = vld [vmem:[%s0 + $0x5c] sm:$0xff]
    %v63 = vld [vmem:[%s0 + $0x64] sm:$0xf]
    %v64 = vld [vmem:[%s0 + $0x68] sm:$0xff]
    %v65 = vld [vmem:[%s0 + $0x70] sm:$0xff]
    %v66 = vld [vmem:[%s0 + $0x78] sm:$0xff]
    %v67 = vld [vmem:[%s0 + $0x80] sm:$0xff]
    %v68 = vld [vmem:[%s0 + $0x88] sm:$0xff]
    %v69 = vld [vmem:[%s0 + $0x90] sm:$0xff]
    %v70 = vld [vmem:[%s0 + $0x98] sm:$0xf]
    %v71 = vld [vmem:[%s0 + $0x9c] sm:$0x11]
    %v72 = vld [vmem:[%s0 + $0xa4] sm:$0x11]
    %v73 = vld [vmem:[%s0 + $0xac] sm:$0x11]
    %v74 = vld [vmem:[%s0 + $0xb4] sm:$0x11]
    %v75 = vld [vmem:[%s0 + $0xbc] sm:$0x11]
    %v76 = vld [vmem:[%s0 + $0xc4] sm:$0x11]
    %v77 = vld [vmem:[%s0 + $0xcc] sm:$0x1]
    %v78 = vld [vmem:[%s2] sm:$0x3f]
    %80 = vset.pattern.permute.xlu0 0
    %81 = vperm.xlu0 %80, %v78
    %v82 = vpop.permute.xlu0 %81
    %v112 = vunpack.c.l.b16 %v50
    %v113 = vunpack.c.h.b16 %v50
    %v114 = vunpack.c.l.b16 %v51
    %v115 = vunpack.c.h.b16 %v51
    %v116 = vunpack.c.l.b16 %v52
    %v117 = vunpack.c.h.b16 %v52
    %v118 = vunpack.c.l.b16 %v53
    %v119 = vunpack.c.h.b16 %v53
    %v120 = vunpack.c.l.b16 %v54
    %v121 = vunpack.c.h.b16 %v54
    %v122 = vunpack.c.l.b16 %v55
    %v123 = vunpack.c.h.b16 %v55
    %v124 = vunpack.c.l.b16 %v56
    %v125 = vunpack.c.l.b16 %v57
    %v126 = vunpack.c.h.b16 %v57
    %v127 = vunpack.c.l.b16 %v58
    %v128 = vunpack.c.h.b16 %v58
    %v129 = vunpack.c.l.b16 %v59
    %v130 = vunpack.c.h.b16 %v59
    %v131 = vunpack.c.l.b16 %v60
    %v132 = vunpack.c.h.b16 %v60
    %v133 = vunpack.c.l.b16 %v61
    %v134 = vunpack.c.h.b16 %v61
    %v135 = vunpack.c.l.b16 %v62
    %v136 = vunpack.c.h.b16 %v62
    %v137 = vunpack.c.l.b16 %v63
    %v138 = vunpack.c.l.b16 %v64
    %v139 = vunpack.c.h.b16 %v64
    %v140 = vunpack.c.l.b16 %v65
    %v141 = vunpack.c.h.b16 %v65
    %v142 = vunpack.c.l.b16 %v66
    %v143 = vunpack.c.h.b16 %v66
    %v144 = vunpack.c.l.b16 %v67
    %v145 = vunpack.c.h.b16 %v67
    %v146 = vunpack.c.l.b16 %v68
    %v147 = vunpack.c.h.b16 %v68
    %v148 = vunpack.c.l.b16 %v69
    %v149 = vunpack.c.h.b16 %v69
    %v150 = vunpack.c.l.b16 %v70
    %v151 = vunpack.c.l.b16 %v71
    %v152 = vunpack.c.h.b16 %v71
    %v153 = vunpack.c.l.b16 %v72
    %v154 = vunpack.c.h.b16 %v72
    %v155 = vunpack.c.l.b16 %v73
    %v156 = vunpack.c.h.b16 %v73
    %v157 = vunpack.c.l.b16 %v74
    %v158 = vunpack.c.h.b16 %v74
    %v159 = vunpack.c.l.b16 %v75
    %v160 = vunpack.c.h.b16 %v75
    %v161 = vunpack.c.l.b16 %v76
    %v162 = vunpack.c.h.b16 %v76
    %v163 = vunpack.c.l.b16 %v77
    %v164 = vpack.c.b16 %v125, %v112
    %v165 = vpack.c.b16 %v126, %v113
    %v166 = vpack.c.b16 %v127, %v114
    %v167 = vpack.c.b16 %v128, %v115
    %v168 = vpack.c.b16 %v129, %v116
    %v169 = vpack.c.b16 %v130, %v117
    %v170 = vpack.c.b16 %v131, %v118
    %v171 = vpack.c.b16 %v132, %v119
    %v172 = vpack.c.b16 %v133, %v120
    %v173 = vpack.c.b16 %v134, %v121
    %v174 = vpack.c.b16 %v135, %v122
    %v175 = vpack.c.b16 %v136, %v123
    %v176 = vpack.c.b16 %v137, %v124
    %v177 = vpack.c.b16 %v151, %v138
    %v178 = vpack.c.b16 %v152, %v139
    %v179 = vpack.c.b16 %v153, %v140
    %v180 = vpack.c.b16 %v154, %v141
    %v181 = vpack.c.b16 %v155, %v142
    %v182 = vpack.c.b16 %v156, %v143
    %v183 = vpack.c.b16 %v157, %v144
    %v184 = vpack.c.b16 %v158, %v145
    %v185 = vpack.c.b16 %v159, %v146
    %v186 = vpack.c.b16 %v160, %v147
    %v187 = vpack.c.b16 %v161, %v148
    %v188 = vpack.c.b16 %v162, %v149
    %v189 = vpack.c.b16 %v163, %v150
    %vm203 = vcmask 203776
    %v205 = vsel %vm203, %v49, 0
    %vm207 = vcmask 1043456
    %vm208 = vcmask 1044480
    %v209 = vsel %vm207, 4294967295, 65535
    %v210 = vsel %vm208, %v209, 0
    %v212 = vand.u32 %v177, %v210
    %v215 = vand.u32 %v178, %v210
    %v218 = vand.u32 %v179, %v210
    %v221 = vand.u32 %v180, %v210
    %v224 = vand.u32 %v181, %v210
    %v227 = vand.u32 %v182, %v210
    %v230 = vand.u32 %v183, %v210
    %v233 = vand.u32 %v184, %v210
    %v236 = vand.u32 %v185, %v210
    %v239 = vand.u32 %v186, %v210
    %v242 = vand.u32 %v187, %v210
    %v245 = vand.u32 %v188, %v210
    %v248 = vand.u32 %v189, %v210
    %250 = vmatprep.subr.bf16.mxu0 %v165
    %251 = vmatpush1.bf16.msra.mxu0 %v164
    %252 = vmatprep.subr.bf16.mxu0 %v215
    %253 = vmatpush1.bf16.msra.mxu0 %v212
    %254 = vmatprep.subr.bf16.mxu0 0
    %255 = vmatpush1.bf16.msra.mxu0 0
    %256 = vmatprep.subr.bf16.mxu0 0
    %257 = vmatpush1.bf16.msra.mxu0 0
    %258 = vmatprep.subr.bf16.mxu0 0
    %259 = vmatpush1.bf16.msra.mxu0 0
    %260 = vmatprep.subr.bf16.mxu0 0
    %261 = vmatpush1.bf16.msra.mxu0 0
    %262 = vmatprep.subr.bf16.mxu0 0
    %263 = vmatpush1.bf16.msra.mxu0 0
    %264 = vmatprep.subr.bf16.mxu0 0
    %265 = vmatpush1.bf16.msra.mxu0 0
    %266 = vmatprep.subr.bf16.mxu0 0
    %267 = vmatpush1.bf16.msra.mxu0 0
    %268 = vmatprep.subr.bf16.mxu0 0
    %269 = vmatpush1.bf16.msra.mxu0 0
    %270 = vmatprep.subr.bf16.mxu0 0
    %271 = vmatpush1.bf16.msra.mxu0 0
    %272 = vmatprep.subr.bf16.mxu0 0
    %273 = vmatpush1.bf16.msra.mxu0 0
    %274 = vmatprep.subr.bf16.mxu0 0
    %275 = vmatpush1.bf16.msra.mxu0 0
    %276 = vmatprep.subr.bf16.mxu0 0
    %277 = vmatpush1.bf16.msra.mxu0 0
    %278 = vmatprep.subr.bf16.mxu0 0
    %279 = vmatpush1.bf16.msra.mxu0 0
    %280 = vmatprep.subr.bf16.mxu0 0
    %281 = vmatpush1.bf16.msra.mxu0 0
    %282 = vmatprep.mubr.bf16.mxu0 0
    %283 = vmatmul.mubr.bf16.gmra.mrb[0].mxu0 %v205
    %v284 = vpop.f32.mrb[0].mxu0
    %v285 = vadd.f32 %v82, %v284
    %v286 = vpop.f32.mrb[0].mxu0
    %v287 = vadd.f32 %v82, %v286
    %v288 = vpop.f32.mrb[0].mxu0
    %v289 = vpop.f32.mrb[0].mxu0
    %290 = vdwg.mxu0
    %291 = vmatprep.subr.bf16.mxu0 %v167
    %292 = vmatpush1.bf16.msra.mxu0 %v166
    %293 = vmatprep.subr.bf16.mxu0 %v221
    %294 = vmatpush1.bf16.msra.mxu0 %v218
    %295 = vmatprep.subr.bf16.mxu0 0
    %296 = vmatpush1.bf16.msra.mxu0 0
    %297 = vmatprep.subr.bf16.mxu0 0
    %298 = vmatpush1.bf16.msra.mxu0 0
    %299 = vmatprep.subr.bf16.mxu0 0
    %300 = vmatpush1.bf16.msra.mxu0 0
    %301 = vmatprep.subr.bf16.mxu0 0
    %302 = vmatpush1.bf16.msra.mxu0 0
    %303 = vmatprep.subr.bf16.mxu0 0
    %304 = vmatpush1.bf16.msra.mxu0 0
    %305 = vmatprep.subr.bf16.mxu0 0
    %306 = vmatpush1.bf16.msra.mxu0 0
    %307 = vmatprep.subr.bf16.mxu0 0
    %308 = vmatpush1.bf16.msra.mxu0 0
    %309 = vmatprep.subr.bf16.mxu0 0
    %310 = vmatpush1.bf16.msra.mxu0 0
    %311 = vmatprep.subr.bf16.mxu0 0
    %312 = vmatpush1.bf16.msra.mxu0 0
    %313 = vmatprep.subr.bf16.mxu0 0
    %314 = vmatpush1.bf16.msra.mxu0 0
    %315 = vmatprep.subr.bf16.mxu0 0
    %316 = vmatpush1.bf16.msra.mxu0 0
    %317 = vmatprep.subr.bf16.mxu0 0
    %318 = vmatpush1.bf16.msra.mxu0 0
    %319 = vmatprep.subr.bf16.mxu0 0
    %320 = vmatpush1.bf16.msra.mxu0 0
    %321 = vmatprep.subr.bf16.mxu0 0
    %322 = vmatpush1.bf16.msra.mxu0 0
    %323 = vmatprep.mubr.bf16.mxu0 0
    %324 = vmatmul.mubr.bf16.gmra.mrb[0].mxu0 %v205
    %v325 = vpop.f32.mrb[0].mxu0
    %v326 = vadd.f32 %v82, %v325
    %v327 = vpop.f32.mrb[0].mxu0
    %v328 = vadd.f32 %v82, %v327
    %v329 = vpop.f32.mrb[0].mxu0
    %v330 = vpop.f32.mrb[0].mxu0
    %331 = vdwg.mxu0
    %332 = vmatprep.subr.bf16.mxu0 %v169
    %333 = vmatpush1.bf16.msra.mxu0 %v168
    %334 = vmatprep.subr.bf16.mxu0 %v227
    %335 = vmatpush1.bf16.msra.mxu0 %v224
    %336 = vmatprep.subr.bf16.mxu0 0
    %337 = vmatpush1.bf16.msra.mxu0 0
    %338 = vmatprep.subr.bf16.mxu0 0
    %339 = vmatpush1.bf16.msra.mxu0 0
    %340 = vmatprep.subr.bf16.mxu0 0
    %341 = vmatpush1.bf16.msra.mxu0 0
    %342 = vmatprep.subr.bf16.mxu0 0
    %343 = vmatpush1.bf16.msra.mxu0 0
    %344 = vmatprep.subr.bf16.mxu0 0
    %345 = vmatpush1.bf16.msra.mxu0 0
    %346 = vmatprep.subr.bf16.mxu0 0
    %347 = vmatpush1.bf16.msra.mxu0 0
    %348 = vmatprep.subr.bf16.mxu0 0
    %349 = vmatpush1.bf16.msra.mxu0 0
    %350 = vmatprep.subr.bf16.mxu0 0
    %351 = vmatpush1.bf16.msra.mxu0 0
    %352 = vmatprep.subr.bf16.mxu0 0
    %353 = vmatpush1.bf16.msra.mxu0 0
    %354 = vmatprep.subr.bf16.mxu0 0
    %355 = vmatpush1.bf16.msra.mxu0 0
    %356 = vmatprep.subr.bf16.mxu0 0
    %357 = vmatpush1.bf16.msra.mxu0 0
    %358 = vmatprep.subr.bf16.mxu0 0
    %359 = vmatpush1.bf16.msra.mxu0 0
    %360 = vmatprep.subr.bf16.mxu0 0
    %361 = vmatpush1.bf16.msra.mxu0 0
    %362 = vmatprep.subr.bf16.mxu0 0
    %363 = vmatpush1.bf16.msra.mxu0 0
    %364 = vmatprep.mubr.bf16.mxu0 0
    %365 = vmatmul.mubr.bf16.gmra.mrb[0].mxu0 %v205
    %v366 = vpop.f32.mrb[0].mxu0
    %v367 = vadd.f32 %v82, %v366
    %v368 = vpop.f32.mrb[0].mxu0
    %v369 = vadd.f32 %v82, %v368
    %v370 = vpop.f32.mrb[0].mxu0
    %v371 = vpop.f32.mrb[0].mxu0
    %372 = vdwg.mxu0
    %373 = vmatprep.subr.bf16.mxu0 %v171
    %374 = vmatpush1.bf16.msra.mxu0 %v170
    %375 = vmatprep.subr.bf16.mxu0 %v233
    %376 = vmatpush1.bf16.msra.mxu0 %v230
    %377 = vmatprep.subr.bf16.mxu0 0
    %378 = vmatpush1.bf16.msra.mxu0 0
    %379 = vmatprep.subr.bf16.mxu0 0
    %380 = vmatpush1.bf16.msra.mxu0 0
    %381 = vmatprep.subr.bf16.mxu0 0
    %382 = vmatpush1.bf16.msra.mxu0 0
    %383 = vmatprep.subr.bf16.mxu0 0
    %384 = vmatpush1.bf16.msra.mxu0 0
    %385 = vmatprep.subr.bf16.mxu0 0
    %386 = vmatpush1.bf16.msra.mxu0 0
    %387 = vmatprep.subr.bf16.mxu0 0
    %388 = vmatpush1.bf16.msra.mxu0 0
    %389 = vmatprep.subr.bf16.mxu0 0
    %390 = vmatpush1.bf16.msra.mxu0 0
    %391 = vmatprep.subr.bf16.mxu0 0
    %392 = vmatpush1.bf16.msra.mxu0 0
    %393 = vmatprep.subr.bf16.mxu0 0
    %394 = vmatpush1.bf16.msra.mxu0 0
    %395 = vmatprep.subr.bf16.mxu0 0
    %396 = vmatpush1.bf16.msra.mxu0 0
    %397 = vmatprep.subr.bf16.mxu0 0
    %398 = vmatpush1.bf16.msra.mxu0 0
    %399 = vmatprep.subr.bf16.mxu0 0
    %400 = vmatpush1.bf16.msra.mxu0 0
    %401 = vmatprep.subr.bf16.mxu0 0
    %402 = vmatpush1.bf16.msra.mxu0 0
    %403 = vmatprep.subr.bf16.mxu0 0
    %404 = vmatpush1.bf16.msra.mxu0 0
    %405 = vmatprep.mubr.bf16.mxu0 0
    %406 = vmatmul.mubr.bf16.gmra.mrb[0].mxu0 %v205
    %v407 = vpop.f32.mrb[0].mxu0
    %v408 = vadd.f32 %v82, %v407
    %v409 = vpop.f32.mrb[0].mxu0
    %v410 = vadd.f32 %v82, %v409
    %v411 = vpop.f32.mrb[0].mxu0
    %v412 = vpop.f32.mrb[0].mxu0
    %413 = vdwg.mxu0
    %414 = vmatprep.subr.bf16.mxu0 %v173
    %415 = vmatpush1.bf16.msra.mxu0 %v172
    %416 = vmatprep.subr.bf16.mxu0 %v239
    %417 = vmatpush1.bf16.msra.mxu0 %v236
    %418 = vmatprep.subr.bf16.mxu0 0
    %419 = vmatpush1.bf16.msra.mxu0 0
    %420 = vmatprep.subr.bf16.mxu0 0
    %421 = vmatpush1.bf16.msra.mxu0 0
    %422 = vmatprep.subr.bf16.mxu0 0
    %423 = vmatpush1.bf16.msra.mxu0 0
    %424 = vmatprep.subr.bf16.mxu0 0
    %425 = vmatpush1.bf16.msra.mxu0 0
    %426 = vmatprep.subr.bf16.mxu0 0
    %427 = vmatpush1.bf16.msra.mxu0 0
    %428 = vmatprep.subr.bf16.mxu0 0
    %429 = vmatpush1.bf16.msra.mxu0 0
    %430 = vmatprep.subr.bf16.mxu0 0
    %431 = vmatpush1.bf16.msra.mxu0 0
    %432 = vmatprep.subr.bf16.mxu0 0
    %433 = vmatpush1.bf16.msra.mxu0 0
    %434 = vmatprep.subr.bf16.mxu0 0
    %435 = vmatpush1.bf16.msra.mxu0 0
    %436 = vmatprep.subr.bf16.mxu0 0
    %437 = vmatpush1.bf16.msra.mxu0 0
    %438 = vmatprep.subr.bf16.mxu0 0
    %439 = vmatpush1.bf16.msra.mxu0 0
    %440 = vmatprep.subr.bf16.mxu0 0
    %441 = vmatpush1.bf16.msra.mxu0 0
    %442 = vmatprep.subr.bf16.mxu0 0
    %443 = vmatpush1.bf16.msra.mxu0 0
    %444 = vmatprep.subr.bf16.mxu0 0
    %445 = vmatpush1.bf16.msra.mxu0 0
    %446 = vmatprep.mubr.bf16.mxu0 0
    %447 = vmatmul.mubr.bf16.gmra.mrb[0].mxu0 %v205
    %v448 = vpop.f32.mrb[0].mxu0
    %v449 = vadd.f32 %v82, %v448
    %v450 = vpop.f32.mrb[0].mxu0
    %v451 = vadd.f32 %v82, %v450
    %v452 = vpop.f32.mrb[0].mxu0
    %v453 = vpop.f32.mrb[0].mxu0
    %454 = vdwg.mxu0
    %455 = vmatprep.subr.bf16.mxu0 %v175
    %456 = vmatpush1.bf16.msra.mxu0 %v174
    %457 = vmatprep.subr.bf16.mxu0 %v245
    %458 = vmatpush1.bf16.msra.mxu0 %v242
    %459 = vmatprep.subr.bf16.mxu0 0
    %460 = vmatpush1.bf16.msra.mxu0 0
    %461 = vmatprep.subr.bf16.mxu0 0
    %462 = vmatpush1.bf16.msra.mxu0 0
    %463 = vmatprep.subr.bf16.mxu0 0
    %464 = vmatpush1.bf16.msra.mxu0 0
    %465 = vmatprep.subr.bf16.mxu0 0
    %466 = vmatpush1.bf16.msra.mxu0 0
    %467 = vmatprep.subr.bf16.mxu0 0
    %468 = vmatpush1.bf16.msra.mxu0 0
    %469 = vmatprep.subr.bf16.mxu0 0
    %470 = vmatpush1.bf16.msra.mxu0 0
    %471 = vmatprep.subr.bf16.mxu0 0
    %472 = vmatpush1.bf16.msra.mxu0 0
    %473 = vmatprep.subr.bf16.mxu0 0
    %474 = vmatpush1.bf16.msra.mxu0 0
    %475 = vmatprep.subr.bf16.mxu0 0
    %476 = vmatpush1.bf16.msra.mxu0 0
    %477 = vmatprep.subr.bf16.mxu0 0
    %478 = vmatpush1.bf16.msra.mxu0 0
    %479 = vmatprep.subr.bf16.mxu0 0
    %480 = vmatpush1.bf16.msra.mxu0 0
    %481 = vmatprep.subr.bf16.mxu0 0
    %482 = vmatpush1.bf16.msra.mxu0 0
    %483 = vmatprep.subr.bf16.mxu0 0
    %484 = vmatpush1.bf16.msra.mxu0 0
    %485 = vmatprep.subr.bf16.mxu0 0
    %486 = vmatpush1.bf16.msra.mxu0 0
    %487 = vmatprep.mubr.bf16.mxu0 0
    %488 = vmatmul.mubr.bf16.gmra.mrb[0].mxu0 %v205
    %v489 = vpop.f32.mrb[0].mxu0
    %v490 = vadd.f32 %v82, %v489
    %v491 = vpop.f32.mrb[0].mxu0
    %v492 = vadd.f32 %v82, %v491
    %v493 = vpop.f32.mrb[0].mxu0
    %v494 = vpop.f32.mrb[0].mxu0
    %495 = vdwg.mxu0
    %496 = vmatprep.subr.bf16.mxu0 0
    %497 = vmatpush1.bf16.msra.mxu0 %v176
    %498 = vmatprep.subr.bf16.mxu0 0
    %499 = vmatpush1.bf16.msra.mxu0 %v248
    %500 = vmatprep.subr.bf16.mxu0 0
    %501 = vmatpush1.bf16.msra.mxu0 0
    %502 = vmatprep.subr.bf16.mxu0 0
    %503 = vmatpush1.bf16.msra.mxu0 0
    %504 = vmatprep.subr.bf16.mxu0 0
    %505 = vmatpush1.bf16.msra.mxu0 0
    %506 = vmatprep.subr.bf16.mxu0 0
    %507 = vmatpush1.bf16.msra.mxu0 0
    %508 = vmatprep.subr.bf16.mxu0 0
    %509 = vmatpush1.bf16.msra.mxu0 0
    %510 = vmatprep.subr.bf16.mxu0 0
    %511 = vmatpush1.bf16.msra.mxu0 0
    %512 = vmatprep.subr.bf16.mxu0 0
    %513 = vmatpush1.bf16.msra.mxu0 0
    %514 = vmatprep.subr.bf16.mxu0 0
    %515 = vmatpush1.bf16.msra.mxu0 0
    %516 = vmatprep.subr.bf16.mxu0 0
    %517 = vmatpush1.bf16.msra.mxu0 0
    %518 = vmatprep.subr.bf16.mxu0 0
    %519 = vmatpush1.bf16.msra.mxu0 0
    %520 = vmatprep.subr.bf16.mxu0 0
    %521 = vmatpush1.bf16.msra.mxu0 0
    %522 = vmatprep.subr.bf16.mxu0 0
    %523 = vmatpush1.bf16.msra.mxu0 0
    %524 = vmatprep.subr.bf16.mxu0 0
    %525 = vmatpush1.bf16.msra.mxu0 0
    %526 = vmatprep.subr.bf16.mxu0 0
    %527 = vmatpush1.bf16.msra.mxu0 0
    %528 = vmatprep.mubr.bf16.mxu0 0
    %529 = vmatmul.mubr.bf16.gmra.mrb[0].mxu0 %v205
    %v530 = vpop.f32.mrb[0].mxu0
    %v531 = vadd.f32 %v82, %v530
    %v532 = vpop.f32.mrb[0].mxu0
    %v533 = vpop.f32.mrb[0].mxu0
    %v534 = vpop.f32.mrb[0].mxu0
    %535 = vdwg.mxu0
    %v536 = vmax.f32 %v285, 0.0
    %v537 = vmax.f32 %v287, 0.0
    %v538 = vmax.f32 %v326, 0.0
    %v539 = vmax.f32 %v328, 0.0
    %v540 = vmax.f32 %v367, 0.0
    %v541 = vmax.f32 %v369, 0.0
    %v542 = vmax.f32 %v408, 0.0
    %v543 = vmax.f32 %v410, 0.0
    %v544 = vmax.f32 %v449, 0.0
    %v545 = vmax.f32 %v451, 0.0
    %v546 = vmax.f32 %v490, 0.0
    %v547 = vmax.f32 %v492, 0.0
    %v548 = vmax.f32 %v531, 0.0
    %562 = vrot.lane.b32.xlu0 %v536, 127
    %v563 = vpop.permute.xlu0 %562
    %564 = vrot.lane.b32.xlu0 %v537, 127
    %v565 = vpop.permute.xlu0 %564
    %566 = vrot.lane.b32.xlu0 %v538, 127
    %v567 = vpop.permute.xlu0 %566
    %568 = vrot.lane.b32.xlu0 %v539, 127
    %v569 = vpop.permute.xlu0 %568
    %570 = vrot.lane.b32.xlu0 %v540, 127
    %v571 = vpop.permute.xlu0 %570
    %572 = vrot.lane.b32.xlu0 %v541, 127
    %v573 = vpop.permute.xlu0 %572
    %574 = vrot.lane.b32.xlu0 %v542, 127
    %v575 = vpop.permute.xlu0 %574
    %576 = vrot.lane.b32.xlu0 %v543, 127
    %v577 = vpop.permute.xlu0 %576
    %578 = vrot.lane.b32.xlu0 %v544, 127
    %v579 = vpop.permute.xlu0 %578
    %580 = vrot.lane.b32.xlu0 %v545, 127
    %v581 = vpop.permute.xlu0 %580
    %582 = vrot.lane.b32.xlu0 %v546, 127
    %v583 = vpop.permute.xlu0 %582
    %584 = vrot.lane.b32.xlu0 %v547, 127
    %v585 = vpop.permute.xlu0 %584
    %586 = vrot.lane.b32.xlu0 %v548, 127
    %v587 = vpop.permute.xlu0 %586
    %vm588 = vcmask 1039360
    %v589 = vsel %vm588, %v563, %v565
    %v590 = vsel %vm588, %v565, %v567
    %v591 = vsel %vm588, %v567, %v569
    %v592 = vsel %vm588, %v569, %v571
    %v593 = vsel %vm588, %v571, %v573
    %v594 = vsel %vm588, %v573, %v575
    %v595 = vsel %vm588, %v575, %v577
    %v596 = vsel %vm588, %v577, %v579
    %v597 = vsel %vm588, %v579, %v581
    %v598 = vsel %vm588, %v581, %v583
    %v599 = vsel %vm588, %v583, %v585
    %v600 = vsel %vm588, %v585, %v587
    %614 = vrot.lane.b32.xlu0 %v536, 31
    %v615 = vpop.permute.xlu0 %614
    %vm617 = vcmask 252928
    %v618 = vsel %vm617, %v587, %v615
    %v619 = vmax.f32 %v536, %v589
    %v620 = vmax.f32 %v537, %v590
    %v621 = vmax.f32 %v538, %v591
    %v622 = vmax.f32 %v539, %v592
    %v623 = vmax.f32 %v540, %v593
    %v624 = vmax.f32 %v541, %v594
    %v625 = vmax.f32 %v542, %v595
    %v626 = vmax.f32 %v543, %v596
    %v627 = vmax.f32 %v544, %v597
    %v628 = vmax.f32 %v545, %v598
    %v629 = vmax.f32 %v546, %v599
    %v630 = vmax.f32 %v547, %v600
    %v631 = vmax.f32 %v548, %v618
    %632 = vrot.lane.b32.xlu0 %v536, 100
    %v633 = vpop.permute.xlu0 %632
    %634 = vrot.lane.b32.xlu0 %v537, 100
    %v635 = vpop.permute.xlu0 %634
    %636 = vrot.lane.b32.xlu0 %v538, 100
    %v637 = vpop.permute.xlu0 %636
    %638 = vrot.lane.b32.xlu0 %v539, 100
    %v639 = vpop.permute.xlu0 %638
    %640 = vrot.lane.b32.xlu0 %v540, 100
    %v641 = vpop.permute.xlu0 %640
    %642 = vrot.lane.b32.xlu0 %v541, 100
    %v643 = vpop.permute.xlu0 %642
    %644 = vrot.lane.b32.xlu0 %v542, 100
    %v645 = vpop.permute.xlu0 %644
    %646 = vrot.lane.b32.xlu0 %v543, 100
    %v647 = vpop.permute.xlu0 %646
    %648 = vrot.lane.b32.xlu0 %v544, 100
    %v649 = vpop.permute.xlu0 %648
    %650 = vrot.lane.b32.xlu0 %v545, 100
    %v651 = vpop.permute.xlu0 %650
    %652 = vrot.lane.b32.xlu0 %v546, 100
    %v653 = vpop.permute.xlu0 %652
    %654 = vrot.lane.b32.xlu0 %v547, 100
    %v655 = vpop.permute.xlu0 %654
    %656 = vrot.lane.b32.xlu0 %v548, 100
    %v657 = vpop.permute.xlu0 %656
    %vm658 = vcmask 818176
    %v659 = vsel %vm658, %v633, %v635
    %v660 = vsel %vm658, %v635, %v637
    %v661 = vsel %vm658, %v637, %v639
    %v662 = vsel %vm658, %v639, %v641
    %v663 = vsel %vm658, %v641, %v643
    %v664 = vsel %vm658, %v643, %v645
    %v665 = vsel %vm658, %v645, %v647
    %v666 = vsel %vm658, %v647, %v649
    %v667 = vsel %vm658, %v649, %v651
    %v668 = vsel %vm658, %v651, %v653
    %v669 = vsel %vm658, %v653, %v655
    %v670 = vsel %vm658, %v655, %v657
    %684 = vrot.lane.b32.xlu0 %v536, 4
    %v685 = vpop.permute.xlu0 %684
    %vm687 = vcmask 31744
    %v688 = vsel %vm687, %v657, %v685
    %689 = vrot.lane.b32.xlu0 %v536, 99
    %v690 = vpop.permute.xlu0 %689
    %691 = vrot.lane.b32.xlu0 %v537, 99
    %v692 = vpop.permute.xlu0 %691
    %693 = vrot.lane.b32.xlu0 %v538, 99
    %v694 = vpop.permute.xlu0 %693
    %695 = vrot.lane.b32.xlu0 %v539, 99
    %v696 = vpop.permute.xlu0 %695
    %697 = vrot.lane.b32.xlu0 %v540, 99
    %v698 = vpop.permute.xlu0 %697
    %699 = vrot.lane.b32.xlu0 %v541, 99
    %v700 = vpop.permute.xlu0 %699
    %701 = vrot.lane.b32.xlu0 %v542, 99
    %v702 = vpop.permute.xlu0 %701
    %703 = vrot.lane.b32.xlu0 %v543, 99
    %v704 = vpop.permute.xlu0 %703
    %705 = vrot.lane.b32.xlu0 %v544, 99
    %v706 = vpop.permute.xlu0 %705
    %707 = vrot.lane.b32.xlu0 %v545, 99
    %v708 = vpop.permute.xlu0 %707
    %709 = vrot.lane.b32.xlu0 %v546, 99
    %v710 = vpop.permute.xlu0 %709
    %711 = vrot.lane.b32.xlu0 %v547, 99
    %v712 = vpop.permute.xlu0 %711
    %713 = vrot.lane.b32.xlu0 %v548, 99
    %v714 = vpop.permute.xlu0 %713
    %vm715 = vcmask 809984
    %v716 = vsel %vm715, %v690, %v692
    %v717 = vsel %vm715, %v692, %v694
    %v718 = vsel %vm715, %v694, %v696
    %v719 = vsel %vm715, %v696, %v698
    %v720 = vsel %vm715, %v698, %v700
    %v721 = vsel %vm715, %v700, %v702
    %v722 = vsel %vm715, %v702, %v704
    %v723 = vsel %vm715, %v704, %v706
    %v724 = vsel %vm715, %v706, %v708
    %v725 = vsel %vm715, %v708, %v710
    %v726 = vsel %vm715, %v710, %v712
    %v727 = vsel %vm715, %v712, %v714
    %741 = vrot.lane.b32.xlu0 %v536, 3
    %v742 = vpop.permute.xlu0 %741
    %vm744 = vcmask 23552
    %v745 = vsel %vm744, %v714, %v742
    %v746 = vmax.f32 %v659, %v716
    %v747 = vmax.f32 %v660, %v717
    %v748 = vmax.f32 %v661, %v718
    %v749 = vmax.f32 %v662, %v719
    %v750 = vmax.f32 %v663, %v720
    %v751 = vmax.f32 %v664, %v721
    %v752 = vmax.f32 %v665, %v722
    %v753 = vmax.f32 %v666, %v723
    %v754 = vmax.f32 %v667, %v724
    %v755 = vmax.f32 %v668, %v725
    %v756 = vmax.f32 %v669, %v726
    %v757 = vmax.f32 %v670, %v727
    %v758 = vmax.f32 %v688, %v745
    %v759 = vmax.f32 %v619, %v746
    %v760 = vmax.f32 %v620, %v747
    %v761 = vmax.f32 %v621, %v748
    %v762 = vmax.f32 %v622, %v749
    %v763 = vmax.f32 %v623, %v750
    %v764 = vmax.f32 %v624, %v751
    %v765 = vmax.f32 %v625, %v752
    %v766 = vmax.f32 %v626, %v753
    %v767 = vmax.f32 %v627, %v754
    %v768 = vmax.f32 %v628, %v755
    %v769 = vmax.f32 %v629, %v756
    %v770 = vmax.f32 %v630, %v757
    %v771 = vmax.f32 %v631, %v758
    %v772 = vpack.c.bf16 %v759, %v759
    %v773 = vpack.c.bf16 %v760, %v760
    %v774 = vpack.c.bf16 %v761, %v761
    %v775 = vpack.c.bf16 %v762, %v762
    %v776 = vpack.c.bf16 %v763, %v763
    %v777 = vpack.c.bf16 %v764, %v764
    %v778 = vpack.c.bf16 %v765, %v765
    %v779 = vld [vmem:[%s3] sm:$0xff]
    %v780 = vld [vmem:[%s3 + $0x8] sm:$0xff]
    %v781 = vld [vmem:[%s3 + $0x10] sm:$0xff]
    %v782 = vld [vmem:[%s3 + $0x18] sm:$0xff]
    %v783 = vld [vmem:[%s3 + $0x20] sm:$0xff]
    %v784 = vld [vmem:[%s3 + $0x28] sm:$0xff]
    %v785 = vld [vmem:[%s3 + $0x30] sm:$0xff]
    %v786 = vld [vmem:[%s3 + $0x38] sm:$0xff]
    %v787 = vld [vmem:[%s3 + $0x40] sm:$0xff]
    %v788 = vld [vmem:[%s3 + $0x48] sm:$0xff]
    %v789 = vld [vmem:[%s3 + $0x50] sm:$0xff]
    %v790 = vld [vmem:[%s3 + $0x58] sm:$0xff]
    %v791 = vld [vmem:[%s3 + $0x60] sm:$0xff]
    %v792 = vld [vmem:[%s3 + $0x68] sm:$0xff]
    %v793 = vld [vmem:[%s3 + $0x70] sm:$0xff]
    %v794 = vld [vmem:[%s3 + $0x78] sm:$0xff]
    %v795 = vld [vmem:[%s3 + $0x80] sm:$0xff]
    %v796 = vld [vmem:[%s3 + $0x88] sm:$0xff]
    %v797 = vld [vmem:[%s3 + $0x90] sm:$0xff]
    %v798 = vld [vmem:[%s3 + $0x98] sm:$0xff]
    %v799 = vld [vmem:[%s3 + $0xa0] sm:$0xff]
    %v800 = vld [vmem:[%s3 + $0xa8] sm:$0xff]
    %v801 = vld [vmem:[%s3 + $0xb0] sm:$0xff]
    %v802 = vld [vmem:[%s3 + $0xb8] sm:$0xff]
    %v803 = vld [vmem:[%s3 + $0xc0] sm:$0xff]
    %v804 = vld [vmem:[%s3 + $0xc8] sm:$0xff]
    %v805 = vld [vmem:[%s3 + $0xd0] sm:$0xff]
    %v806 = vld [vmem:[%s3 + $0xd8] sm:$0xff]
    %v807 = vld [vmem:[%s3 + $0xe0] sm:$0xff]
    %v808 = vld [vmem:[%s3 + $0xe8] sm:$0xff]
    %v809 = vld [vmem:[%s3 + $0xf0] sm:$0xff]
    %v810 = vld [vmem:[%s3 + $0xf8] sm:$0xff]
    %v811 = vld [vmem:[%s3 + $0x100] sm:$0xff]
    %v812 = vld [vmem:[%s3 + $0x108] sm:$0xff]
    %v813 = vld [vmem:[%s3 + $0x110] sm:$0xff]
    %v814 = vld [vmem:[%s3 + $0x118] sm:$0xff]
    %v815 = vld [vmem:[%s3 + $0x120] sm:$0xff]
    %v816 = vld [vmem:[%s3 + $0x128] sm:$0xff]
    %v817 = vld [vmem:[%s3 + $0x130] sm:$0xff]
    %v818 = vld [vmem:[%s3 + $0x138] sm:$0xff]
    %v819 = vld [vmem:[%s3 + $0x140] sm:$0xff]
    %v820 = vld [vmem:[%s3 + $0x148] sm:$0xff]
    %v821 = vld [vmem:[%s3 + $0x150] sm:$0xff]
    %v822 = vld [vmem:[%s3 + $0x158] sm:$0xff]
    %v823 = vld [vmem:[%s3 + $0x160] sm:$0xff]
    %v824 = vld [vmem:[%s3 + $0x168] sm:$0xff]
    %v825 = vld [vmem:[%s3 + $0x170] sm:$0xff]
    %v826 = vld [vmem:[%s3 + $0x178] sm:$0xff]
    %v827 = vld [vmem:[%s3 + $0x180] sm:$0xff]
    %v828 = vld [vmem:[%s3 + $0x188] sm:$0xff]
    %v829 = vld [vmem:[%s3 + $0x190] sm:$0xff]
    %v830 = vld [vmem:[%s3 + $0x198] sm:$0xff]
    %v831 = vld [vmem:[%s3 + $0x1a0] sm:$0xff]
    %v832 = vld [vmem:[%s3 + $0x1a8] sm:$0xff]
    %v833 = vld [vmem:[%s3 + $0x1b0] sm:$0xff]
    %v834 = vld [vmem:[%s3 + $0x1b8] sm:$0xff]
    %v835 = vld [vmem:[%s3 + $0x1c0] sm:$0xff]
    %v836 = vld [vmem:[%s3 + $0x1c8] sm:$0xff]
    %v837 = vld [vmem:[%s3 + $0x1d0] sm:$0xff]
    %v838 = vld [vmem:[%s3 + $0x1d8] sm:$0xff]
    %v839 = vld [vmem:[%s3 + $0x1e0] sm:$0xff]
    %v840 = vld [vmem:[%s3 + $0x1e8] sm:$0xff]
    %v841 = vld [vmem:[%s3 + $0x1f0] sm:$0xff]
    %v842 = vld [vmem:[%s3 + $0x1f8] sm:$0xff]
    %v843 = vld [vmem:[%s3 + $0x200] sm:$0xff]
    %v844 = vld [vmem:[%s3 + $0x208] sm:$0xff]
    %v845 = vld [vmem:[%s3 + $0x210] sm:$0xff]
    %v846 = vld [vmem:[%s3 + $0x218] sm:$0xff]
    %v847 = vld [vmem:[%s3 + $0x220] sm:$0xff]
    %v848 = vld [vmem:[%s3 + $0x228] sm:$0xff]
    %v849 = vld [vmem:[%s3 + $0x230] sm:$0xff]
    %v850 = vld [vmem:[%s3 + $0x238] sm:$0xff]
    %v851 = vld [vmem:[%s3 + $0x240] sm:$0xff]
    %v852 = vld [vmem:[%s3 + $0x248] sm:$0xff]
    %v853 = vld [vmem:[%s3 + $0x250] sm:$0xff]
    %v854 = vld [vmem:[%s3 + $0x258] sm:$0xff]
    %v855 = vld [vmem:[%s3 + $0x260] sm:$0xff]
    %v856 = vld [vmem:[%s3 + $0x268] sm:$0xff]
    %v857 = vld [vmem:[%s3 + $0x270] sm:$0xff]
    %v858 = vld [vmem:[%s3 + $0x278] sm:$0xff]
    %v859 = vld [vmem:[%s3 + $0x280] sm:$0xff]
    %v860 = vld [vmem:[%s3 + $0x288] sm:$0xff]
    %v861 = vld [vmem:[%s3 + $0x290] sm:$0xff]
    %v862 = vld [vmem:[%s3 + $0x298] sm:$0xff]
    %v863 = vld [vmem:[%s3 + $0x2a0] sm:$0xff]
    %v864 = vld [vmem:[%s3 + $0x2a8] sm:$0xff]
    %v865 = vld [vmem:[%s3 + $0x2b0] sm:$0xff]
    %v866 = vld [vmem:[%s3 + $0x2b8] sm:$0xff]
    %v867 = vld [vmem:[%s3 + $0x2c0] sm:$0xff]
    %v868 = vld [vmem:[%s3 + $0x2c8] sm:$0xff]
    %v869 = vld [vmem:[%s3 + $0x2d0] sm:$0xff]
    %v870 = vld [vmem:[%s3 + $0x2d8] sm:$0xff]
    %v871 = vld [vmem:[%s3 + $0x2e0] sm:$0xff]
    %v872 = vld [vmem:[%s3 + $0x2e8] sm:$0xff]
    %v873 = vld [vmem:[%s3 + $0x2f0] sm:$0xff]
    %v874 = vld [vmem:[%s3 + $0x2f8] sm:$0xff]
    %v875 = vld [vmem:[%s3 + $0x300] sm:$0xff]
    %v876 = vld [vmem:[%s3 + $0x308] sm:$0xff]
    %v975 = vunpack.c.l.b16 %v779
    %v976 = vunpack.c.h.b16 %v779
    %v977 = vunpack.c.l.b16 %v780
    %v978 = vunpack.c.h.b16 %v780
    %v979 = vunpack.c.l.b16 %v781
    %v980 = vunpack.c.h.b16 %v781
    %v981 = vunpack.c.l.b16 %v782
    %v982 = vunpack.c.h.b16 %v782
    %v983 = vunpack.c.l.b16 %v783
    %v984 = vunpack.c.h.b16 %v783
    %v985 = vunpack.c.l.b16 %v784
    %v986 = vunpack.c.h.b16 %v784
    %v987 = vunpack.c.l.b16 %v785
    %v988 = vunpack.c.h.b16 %v785
    %v989 = vunpack.c.l.b16 %v786
    %v990 = vunpack.c.h.b16 %v786
    %v991 = vunpack.c.l.b16 %v787
    %v992 = vunpack.c.h.b16 %v787
    %v993 = vunpack.c.l.b16 %v788
    %v994 = vunpack.c.h.b16 %v788
    %v995 = vunpack.c.l.b16 %v789
    %v996 = vunpack.c.h.b16 %v789
    %v997 = vunpack.c.l.b16 %v790
    %v998 = vunpack.c.h.b16 %v790
    %v999 = vunpack.c.l.b16 %v791
    %v1000 = vunpack.c.h.b16 %v791
    %v1001 = vunpack.c.l.b16 %v792
    %v1002 = vunpack.c.h.b16 %v792
    %v1003 = vunpack.c.l.b16 %v793
    %v1004 = vunpack.c.h.b16 %v793
    %v1005 = vunpack.c.l.b16 %v794
    %v1006 = vunpack.c.h.b16 %v794
    %v1007 = vunpack.c.l.b16 %v795
    %v1008 = vunpack.c.h.b16 %v795
    %v1009 = vunpack.c.l.b16 %v796
    %v1010 = vunpack.c.h.b16 %v796
    %v1011 = vunpack.c.l.b16 %v797
    %v1012 = vunpack.c.h.b16 %v797
    %v1013 = vunpack.c.l.b16 %v798
    %v1014 = vunpack.c.h.b16 %v798
    %v1015 = vunpack.c.l.b16 %v799
    %v1016 = vunpack.c.h.b16 %v799
    %v1017 = vunpack.c.l.b16 %v800
    %v1018 = vunpack.c.h.b16 %v800
    %v1019 = vunpack.c.l.b16 %v801
    %v1020 = vunpack.c.h.b16 %v801
    %v1021 = vunpack.c.l.b16 %v802
    %v1022 = vunpack.c.h.b16 %v802
    %v1023 = vunpack.c.l.b16 %v803
    %v1024 = vunpack.c.h.b16 %v803
    %v1025 = vunpack.c.l.b16 %v804
    %v1026 = vunpack.c.h.b16 %v804
    %v1027 = vunpack.c.l.b16 %v805
    %v1028 = vunpack.c.h.b16 %v805
    %v1029 = vunpack.c.l.b16 %v806
    %v1030 = vunpack.c.h.b16 %v806
    %v1031 = vunpack.c.l.b16 %v807
    %v1032 = vunpack.c.h.b16 %v807
    %v1033 = vunpack.c.l.b16 %v808
    %v1034 = vunpack.c.h.b16 %v808
    %v1035 = vunpack.c.l.b16 %v809
    %v1036 = vunpack.c.h.b16 %v809
    %v1037 = vunpack.c.l.b16 %v810
    %v1038 = vunpack.c.h.b16 %v810
    %v1039 = vunpack.c.l.b16 %v811
    %v1040 = vunpack.c.h.b16 %v811
    %v1041 = vunpack.c.l.b16 %v812
    %v1042 = vunpack.c.h.b16 %v812
    %v1043 = vunpack.c.l.b16 %v813
    %v1044 = vunpack.c.h.b16 %v813
    %v1045 = vunpack.c.l.b16 %v814
    %v1046 = vunpack.c.h.b16 %v814
    %v1047 = vunpack.c.l.b16 %v815
    %v1048 = vunpack.c.h.b16 %v815
    %v1049 = vunpack.c.l.b16 %v816
    %v1050 = vunpack.c.h.b16 %v816
    %v1051 = vunpack.c.l.b16 %v817
    %v1052 = vunpack.c.h.b16 %v817
    %v1053 = vunpack.c.l.b16 %v818
    %v1054 = vunpack.c.h.b16 %v818
    %v1055 = vunpack.c.l.b16 %v819
    %v1056 = vunpack.c.h.b16 %v819
    %v1057 = vunpack.c.l.b16 %v820
    %v1058 = vunpack.c.h.b16 %v820
    %v1059 = vunpack.c.l.b16 %v821
    %v1060 = vunpack.c.h.b16 %v821
    %v1061 = vunpack.c.l.b16 %v822
    %v1062 = vunpack.c.h.b16 %v822
    %v1063 = vunpack.c.l.b16 %v823
    %v1064 = vunpack.c.h.b16 %v823
    %v1065 = vunpack.c.l.b16 %v824
    %v1066 = vunpack.c.h.b16 %v824
    %v1067 = vunpack.c.l.b16 %v825
    %v1068 = vunpack.c.h.b16 %v825
    %v1069 = vunpack.c.l.b16 %v826
    %v1070 = vunpack.c.h.b16 %v826
    %v1071 = vunpack.c.l.b16 %v827
    %v1072 = vunpack.c.h.b16 %v827
    %v1073 = vunpack.c.l.b16 %v828
    %v1074 = vunpack.c.h.b16 %v828
    %v1075 = vunpack.c.l.b16 %v829
    %v1076 = vunpack.c.h.b16 %v829
    %v1077 = vunpack.c.l.b16 %v830
    %v1078 = vunpack.c.h.b16 %v830
    %v1079 = vunpack.c.l.b16 %v831
    %v1080 = vunpack.c.h.b16 %v831
    %v1081 = vunpack.c.l.b16 %v832
    %v1082 = vunpack.c.h.b16 %v832
    %v1083 = vunpack.c.l.b16 %v833
    %v1084 = vunpack.c.h.b16 %v833
    %v1085 = vunpack.c.l.b16 %v834
    %v1086 = vunpack.c.h.b16 %v834
    %v1087 = vunpack.c.l.b16 %v835
    %v1088 = vunpack.c.h.b16 %v835
    %v1089 = vunpack.c.l.b16 %v836
    %v1090 = vunpack.c.h.b16 %v836
    %v1091 = vunpack.c.l.b16 %v837
    %v1092 = vunpack.c.h.b16 %v837
    %v1093 = vunpack.c.l.b16 %v838
    %v1094 = vunpack.c.h.b16 %v838
    %v1095 = vunpack.c.l.b16 %v839
    %v1096 = vunpack.c.h.b16 %v839
    %v1097 = vunpack.c.l.b16 %v840
    %v1098 = vunpack.c.h.b16 %v840
    %v1099 = vunpack.c.l.b16 %v841
    %v1100 = vunpack.c.h.b16 %v841
    %v1101 = vunpack.c.l.b16 %v842
    %v1102 = vunpack.c.h.b16 %v842
    %v1103 = vunpack.c.l.b16 %v843
    %v1104 = vunpack.c.h.b16 %v843
    %v1105 = vunpack.c.l.b16 %v844
    %v1106 = vunpack.c.h.b16 %v844
    %v1107 = vunpack.c.l.b16 %v845
    %v1108 = vunpack.c.h.b16 %v845
    %v1109 = vunpack.c.l.b16 %v846
    %v1110 = vunpack.c.h.b16 %v846
    %v1111 = vunpack.c.l.b16 %v847
    %v1112 = vunpack.c.h.b16 %v847
    %v1113 = vunpack.c.l.b16 %v848
    %v1114 = vunpack.c.h.b16 %v848
    %v1115 = vunpack.c.l.b16 %v849
    %v1116 = vunpack.c.h.b16 %v849
    %v1117 = vunpack.c.l.b16 %v850
    %v1118 = vunpack.c.h.b16 %v850
    %v1119 = vunpack.c.l.b16 %v851
    %v1120 = vunpack.c.h.b16 %v851
    %v1121 = vunpack.c.l.b16 %v852
    %v1122 = vunpack.c.h.b16 %v852
    %v1123 = vunpack.c.l.b16 %v853
    %v1124 = vunpack.c.h.b16 %v853
    %v1125 = vunpack.c.l.b16 %v854
    %v1126 = vunpack.c.h.b16 %v854
    %v1127 = vunpack.c.l.b16 %v855
    %v1128 = vunpack.c.h.b16 %v855
    %v1129 = vunpack.c.l.b16 %v856
    %v1130 = vunpack.c.h.b16 %v856
    %v1131 = vunpack.c.l.b16 %v857
    %v1132 = vunpack.c.h.b16 %v857
    %v1133 = vunpack.c.l.b16 %v858
    %v1134 = vunpack.c.h.b16 %v858
    %v1135 = vunpack.c.l.b16 %v859
    %v1136 = vunpack.c.h.b16 %v859
    %v1137 = vunpack.c.l.b16 %v860
    %v1138 = vunpack.c.h.b16 %v860
    %v1139 = vunpack.c.l.b16 %v861
    %v1140 = vunpack.c.h.b16 %v861
    %v1141 = vunpack.c.l.b16 %v862
    %v1142 = vunpack.c.h.b16 %v862
    %v1143 = vunpack.c.l.b16 %v863
    %v1144 = vunpack.c.h.b16 %v863
    %v1145 = vunpack.c.l.b16 %v864
    %v1146 = vunpack.c.h.b16 %v864
    %v1147 = vunpack.c.l.b16 %v865
    %v1148 = vunpack.c.h.b16 %v865
    %v1149 = vunpack.c.l.b16 %v866
    %v1150 = vunpack.c.h.b16 %v866
    %v1151 = vunpack.c.l.b16 %v867
    %v1152 = vunpack.c.h.b16 %v867
    %v1153 = vunpack.c.l.b16 %v868
    %v1154 = vunpack.c.h.b16 %v868
    %v1155 = vunpack.c.l.b16 %v869
    %v1156 = vunpack.c.h.b16 %v869
    %v1157 = vunpack.c.l.b16 %v870
    %v1158 = vunpack.c.h.b16 %v870
    %v1159 = vunpack.c.l.b16 %v871
    %v1160 = vunpack.c.h.b16 %v871
    %v1161 = vunpack.c.l.b16 %v872
    %v1162 = vunpack.c.h.b16 %v872
    %v1163 = vunpack.c.l.b16 %v873
    %v1164 = vunpack.c.h.b16 %v873
    %v1165 = vunpack.c.l.b16 %v874
    %v1166 = vunpack.c.h.b16 %v874
    %v1167 = vunpack.c.l.b16 %v875
    %v1168 = vunpack.c.h.b16 %v875
    %v1169 = vunpack.c.l.b16 %v876
    %v1170 = vunpack.c.h.b16 %v876
    %v1171 = vpack.c.b16 %v977, %v975
    %v1172 = vpack.c.b16 %v978, %v976
    %v1173 = vpack.c.b16 %v981, %v979
    %v1174 = vpack.c.b16 %v982, %v980
    %v1175 = vpack.c.b16 %v985, %v983
    %v1176 = vpack.c.b16 %v986, %v984
    %v1177 = vpack.c.b16 %v989, %v987
    %v1178 = vpack.c.b16 %v990, %v988
    %v1179 = vpack.c.b16 %v993, %v991
    %v1180 = vpack.c.b16 %v994, %v992
    %v1181 = vpack.c.b16 %v997, %v995
    %v1182 = vpack.c.b16 %v998, %v996
    %v1183 = vpack.c.b16 %v1001, %v999
    %v1184 = vpack.c.b16 %v1002, %v1000
    %v1185 = vpack.c.b16 %v1005, %v1003
    %v1186 = vpack.c.b16 %v1006, %v1004
    %v1187 = vpack.c.b16 %v1009, %v1007
    %v1188 = vpack.c.b16 %v1010, %v1008
    %v1189 = vpack.c.b16 %v1013, %v1011
    %v1190 = vpack.c.b16 %v1014, %v1012
    %v1191 = vpack.c.b16 %v1017, %v1015
    %v1192 = vpack.c.b16 %v1018, %v1016
    %v1193 = vpack.c.b16 %v1021, %v1019
    %v1194 = vpack.c.b16 %v1022, %v1020
    %v1195 = vpack.c.b16 %v1025, %v1023
    %v1196 = vpack.c.b16 %v1026, %v1024
    %v1197 = vpack.c.b16 %v1029, %v1027
    %v1198 = vpack.c.b16 %v1030, %v1028
    %v1199 = vpack.c.b16 %v1033, %v1031
    %v1200 = vpack.c.b16 %v1034, %v1032
    %v1201 = vpack.c.b16 %v1037, %v1035
    %v1202 = vpack.c.b16 %v1038, %v1036
    %v1203 = vpack.c.b16 %v1041, %v1039
    %v1204 = vpack.c.b16 %v1042, %v1040
    %v1205 = vpack.c.b16 %v1045, %v1043
    %v1206 = vpack.c.b16 %v1046, %v1044
    %v1207 = vpack.c.b16 %v1049, %v1047
    %v1208 = vpack.c.b16 %v1050, %v1048
    %v1209 = vpack.c.b16 %v1053, %v1051
    %v1210 = vpack.c.b16 %v1054, %v1052
    %v1211 = vpack.c.b16 %v1057, %v1055
    %v1212 = vpack.c.b16 %v1058, %v1056
    %v1213 = vpack.c.b16 %v1061, %v1059
    %v1214 = vpack.c.b16 %v1062, %v1060
    %v1215 = vpack.c.b16 %v1065, %v1063
    %v1216 = vpack.c.b16 %v1066, %v1064
    %v1217 = vpack.c.b16 %v1069, %v1067
    %v1218 = vpack.c.b16 %v1070, %v1068
    %v1219 = vpack.c.b16 %v1073, %v1071
    %v1220 = vpack.c.b16 %v1074, %v1072
    %v1221 = vpack.c.b16 %v1077, %v1075
    %v1222 = vpack.c.b16 %v1078, %v1076
    %v1223 = vpack.c.b16 %v1081, %v1079
    %v1224 = vpack.c.b16 %v1082, %v1080
    %v1225 = vpack.c.b16 %v1085, %v1083
    %v1226 = vpack.c.b16 %v1086, %v1084
    %v1227 = vpack.c.b16 %v1089, %v1087
    %v1228 = vpack.c.b16 %v1090, %v1088
    %v1229 = vpack.c.b16 %v1093, %v1091
    %v1230 = vpack.c.b16 %v1094, %v1092
    %v1231 = vpack.c.b16 %v1097, %v1095
    %v1232 = vpack.c.b16 %v1098, %v1096
    %v1233 = vpack.c.b16 %v1101, %v1099
    %v1234 = vpack.c.b16 %v1102, %v1100
    %v1235 = vpack.c.b16 %v1105, %v1103
    %v1236 = vpack.c.b16 %v1106, %v1104
    %v1237 = vpack.c.b16 %v1109, %v1107
    %v1238 = vpack.c.b16 %v1110, %v1108
    %v1239 = vpack.c.b16 %v1113, %v1111
    %v1240 = vpack.c.b16 %v1114, %v1112
    %v1241 = vpack.c.b16 %v1117, %v1115
    %v1242 = vpack.c.b16 %v1118, %v1116
    %v1243 = vpack.c.b16 %v1121, %v1119
    %v1244 = vpack.c.b16 %v1122, %v1120
    %v1245 = vpack.c.b16 %v1125, %v1123
    %v1246 = vpack.c.b16 %v1126, %v1124
    %v1247 = vpack.c.b16 %v1129, %v1127
    %v1248 = vpack.c.b16 %v1130, %v1128
    %v1249 = vpack.c.b16 %v1133, %v1131
    %v1250 = vpack.c.b16 %v1134, %v1132
    %v1251 = vpack.c.b16 %v1137, %v1135
    %v1252 = vpack.c.b16 %v1138, %v1136
    %v1253 = vpack.c.b16 %v1141, %v1139
    %v1254 = vpack.c.b16 %v1142, %v1140
    %v1255 = vpack.c.b16 %v1145, %v1143
    %v1256 = vpack.c.b16 %v1146, %v1144
    %v1257 = vpack.c.b16 %v1149, %v1147
    %v1258 = vpack.c.b16 %v1150, %v1148
    %v1259 = vpack.c.b16 %v1153, %v1151
    %v1260 = vpack.c.b16 %v1154, %v1152
    %v1261 = vpack.c.b16 %v1157, %v1155
    %v1262 = vpack.c.b16 %v1158, %v1156
    %v1263 = vpack.c.b16 %v1161, %v1159
    %v1264 = vpack.c.b16 %v1162, %v1160
    %v1265 = vpack.c.b16 %v1165, %v1163
    %v1266 = vpack.c.b16 %v1166, %v1164
    %v1267 = vpack.c.b16 %v1169, %v1167
    %v1268 = vpack.c.b16 %v1170, %v1168
    %vm1367 = vcmask 130048
    %v1369 = vsel %vm1367, %v778, 0
    %1371 = vmatprep.subr.bf16.mxu0 %v1172
    %1372 = vmatpush1.bf16.msra.mxu0 %v1171
    %1373 = vmatprep.subr.bf16.mxu0 %v1174
    %1374 = vmatpush1.bf16.msra.mxu0 %v1173
    %1375 = vmatprep.subr.bf16.mxu0 %v1176
    %1376 = vmatpush1.bf16.msra.mxu0 %v1175
    %1377 = vmatprep.subr.bf16.mxu0 %v1178
    %1378 = vmatpush1.bf16.msra.mxu0 %v1177
    %1379 = vmatprep.subr.bf16.mxu0 %v1180
    %1380 = vmatpush1.bf16.msra.mxu0 %v1179
    %1381 = vmatprep.subr.bf16.mxu0 %v1182
    %1382 = vmatpush1.bf16.msra.mxu0 %v1181
    %1383 = vmatprep.subr.bf16.mxu0 %v1184
    %1384 = vmatpush1.bf16.msra.mxu0 %v1183
    %1385 = vmatprep.subr.bf16.mxu0 %v1186
    %1386 = vmatpush1.bf16.msra.mxu0 %v1185
    %1387 = vmatprep.subr.bf16.mxu0 %v1188
    %1388 = vmatpush1.bf16.msra.mxu0 %v1187
    %1389 = vmatprep.subr.bf16.mxu0 %v1190
    %1390 = vmatpush1.bf16.msra.mxu0 %v1189
    %1391 = vmatprep.subr.bf16.mxu0 %v1192
    %1392 = vmatpush1.bf16.msra.mxu0 %v1191
    %1393 = vmatprep.subr.bf16.mxu0 %v1194
    %1394 = vmatpush1.bf16.msra.mxu0 %v1193
    %1395 = vmatprep.subr.bf16.mxu0 %v1196
    %1396 = vmatpush1.bf16.msra.mxu0 %v1195
    %1397 = vmatprep.subr.bf16.mxu0 %v1198
    %1398 = vmatpush1.bf16.msra.mxu0 %v1197
    %1399 = vmatprep.subr.bf16.mxu0 %v1200
    %1400 = vmatpush1.bf16.msra.mxu0 %v1199
    %1401 = vmatprep.subr.bf16.mxu0 %v1202
    %1402 = vmatpush1.bf16.msra.mxu0 %v1201
    %1403 = vmatprep.mubr.bf16.mxu0 %v773
    %1404 = vmatmul.mubr.bf16.gmra.mrb[0].mxu0 %v772
    %v1405 = vpop.f32.mrb[0].mxu0
    %v1406 = vadd.f32 0.0, %v1405
    %v1407 = vpop.f32.mrb[0].mxu0
    %v1408 = vadd.f32 0.0, %v1407
    %v1409 = vpop.f32.mrb[0].mxu0
    %v1410 = vpop.f32.mrb[0].mxu0
    %1411 = vdwg.mxu0
    %1412 = vmatprep.subr.bf16.mxu0 %v1204
    %1413 = vmatpush1.bf16.msra.mxu0 %v1203
    %1414 = vmatprep.subr.bf16.mxu0 %v1206
    %1415 = vmatpush1.bf16.msra.mxu0 %v1205
    %1416 = vmatprep.subr.bf16.mxu0 %v1208
    %1417 = vmatpush1.bf16.msra.mxu0 %v1207
    %1418 = vmatprep.subr.bf16.mxu0 %v1210
    %1419 = vmatpush1.bf16.msra.mxu0 %v1209
    %1420 = vmatprep.subr.bf16.mxu0 %v1212
    %1421 = vmatpush1.bf16.msra.mxu0 %v1211
    %1422 = vmatprep.subr.bf16.mxu0 %v1214
    %1423 = vmatpush1.bf16.msra.mxu0 %v1213
    %1424 = vmatprep.subr.bf16.mxu0 %v1216
    %1425 = vmatpush1.bf16.msra.mxu0 %v1215
    %1426 = vmatprep.subr.bf16.mxu0 %v1218
    %1427 = vmatpush1.bf16.msra.mxu0 %v1217
    %1428 = vmatprep.subr.bf16.mxu0 %v1220
    %1429 = vmatpush1.bf16.msra.mxu0 %v1219
    %1430 = vmatprep.subr.bf16.mxu0 %v1222
    %1431 = vmatpush1.bf16.msra.mxu0 %v1221
    %1432 = vmatprep.subr.bf16.mxu0 %v1224
    %1433 = vmatpush1.bf16.msra.mxu0 %v1223
    %1434 = vmatprep.subr.bf16.mxu0 %v1226
    %1435 = vmatpush1.bf16.msra.mxu0 %v1225
    %1436 = vmatprep.subr.bf16.mxu0 %v1228
    %1437 = vmatpush1.bf16.msra.mxu0 %v1227
    %1438 = vmatprep.subr.bf16.mxu0 %v1230
    %1439 = vmatpush1.bf16.msra.mxu0 %v1229
    %1440 = vmatprep.subr.bf16.mxu0 %v1232
    %1441 = vmatpush1.bf16.msra.mxu0 %v1231
    %1442 = vmatprep.subr.bf16.mxu0 %v1234
    %1443 = vmatpush1.bf16.msra.mxu0 %v1233
    %1444 = vmatprep.mubr.bf16.mxu0 %v775
    %1445 = vmatmul.mubr.bf16.gmra.mrb[0].mxu0 %v774
    %v1446 = vpop.f32.mrb[0].mxu0
    %v1447 = vadd.f32 %v1406, %v1446
    %v1448 = vpop.f32.mrb[0].mxu0
    %v1449 = vadd.f32 %v1408, %v1448
    %v1450 = vpop.f32.mrb[0].mxu0
    %v1451 = vpop.f32.mrb[0].mxu0
    %1452 = vdwg.mxu0
    %1453 = vmatprep.subr.bf16.mxu0 %v1236
    %1454 = vmatpush1.bf16.msra.mxu0 %v1235
    %1455 = vmatprep.subr.bf16.mxu0 %v1238
    %1456 = vmatpush1.bf16.msra.mxu0 %v1237
    %1457 = vmatprep.subr.bf16.mxu0 %v1240
    %1458 = vmatpush1.bf16.msra.mxu0 %v1239
    %1459 = vmatprep.subr.bf16.mxu0 %v1242
    %1460 = vmatpush1.bf16.msra.mxu0 %v1241
    %1461 = vmatprep.subr.bf16.mxu0 %v1244
    %1462 = vmatpush1.bf16.msra.mxu0 %v1243
    %1463 = vmatprep.subr.bf16.mxu0 %v1246
    %1464 = vmatpush1.bf16.msra.mxu0 %v1245
    %1465 = vmatprep.subr.bf16.mxu0 %v1248
    %1466 = vmatpush1.bf16.msra.mxu0 %v1247
    %1467 = vmatprep.subr.bf16.mxu0 %v1250
    %1468 = vmatpush1.bf16.msra.mxu0 %v1249
    %1469 = vmatprep.subr.bf16.mxu0 %v1252
    %1470 = vmatpush1.bf16.msra.mxu0 %v1251
    %1471 = vmatprep.subr.bf16.mxu0 %v1254
    %1472 = vmatpush1.bf16.msra.mxu0 %v1253
    %1473 = vmatprep.subr.bf16.mxu0 %v1256
    %1474 = vmatpush1.bf16.msra.mxu0 %v1255
    %1475 = vmatprep.subr.bf16.mxu0 %v1258
    %1476 = vmatpush1.bf16.msra.mxu0 %v1257
    %1477 = vmatprep.subr.bf16.mxu0 %v1260
    %1478 = vmatpush1.bf16.msra.mxu0 %v1259
    %1479 = vmatprep.subr.bf16.mxu0 %v1262
    %1480 = vmatpush1.bf16.msra.mxu0 %v1261
    %1481 = vmatprep.subr.bf16.mxu0 %v1264
    %1482 = vmatpush1.bf16.msra.mxu0 %v1263
    %1483 = vmatprep.subr.bf16.mxu0 %v1266
    %1484 = vmatpush1.bf16.msra.mxu0 %v1265
    %1485 = vmatprep.mubr.bf16.mxu0 %v777
    %1486 = vmatmul.mubr.bf16.gmra.mrb[0].mxu0 %v776
    %v1487 = vpop.f32.mrb[0].mxu0
    %v1488 = vadd.f32 %v1447, %v1487
    %v1489 = vpop.f32.mrb[0].mxu0
    %v1490 = vadd.f32 %v1449, %v1489
    %v1491 = vpop.f32.mrb[0].mxu0
    %v1492 = vpop.f32.mrb[0].mxu0
    %1493 = vdwg.mxu0
    %1494 = vmatprep.subr.bf16.mxu0 %v1268
    %1495 = vmatpush1.bf16.msra.mxu0 %v1267
    %1496 = vmatprep.subr.bf16.mxu0 0
    %1497 = vmatpush1.bf16.msra.mxu0 0
    %1498 = vmatprep.subr.bf16.mxu0 0
    %1499 = vmatpush1.bf16.msra.mxu0 0
    %1500 = vmatprep.subr.bf16.mxu0 0
    %1501 = vmatpush1.bf16.msra.mxu0 0
    %1502 = vmatprep.subr.bf16.mxu0 0
    %1503 = vmatpush1.bf16.msra.mxu0 0
    %1504 = vmatprep.subr.bf16.mxu0 0
    %1505 = vmatpush1.bf16.msra.mxu0 0
    %1506 = vmatprep.subr.bf16.mxu0 0
    %1507 = vmatpush1.bf16.msra.mxu0 0
    %1508 = vmatprep.subr.bf16.mxu0 0
    %1509 = vmatpush1.bf16.msra.mxu0 0
    %1510 = vmatprep.subr.bf16.mxu0 0
    %1511 = vmatpush1.bf16.msra.mxu0 0
    %1512 = vmatprep.subr.bf16.mxu0 0
    %1513 = vmatpush1.bf16.msra.mxu0 0
    %1514 = vmatprep.subr.bf16.mxu0 0
    %1515 = vmatpush1.bf16.msra.mxu0 0
    %1516 = vmatprep.subr.bf16.mxu0 0
    %1517 = vmatpush1.bf16.msra.mxu0 0
    %1518 = vmatprep.subr.bf16.mxu0 0
    %1519 = vmatpush1.bf16.msra.mxu0 0
    %1520 = vmatprep.subr.bf16.mxu0 0
    %1521 = vmatpush1.bf16.msra.mxu0 0
    %1522 = vmatprep.subr.bf16.mxu0 0
    %1523 = vmatpush1.bf16.msra.mxu0 0
    %1524 = vmatprep.subr.bf16.mxu0 0
    %1525 = vmatpush1.bf16.msra.mxu0 0
    %1526 = vmatprep.mubr.bf16.mxu0 0
    %1527 = vmatmul.mubr.bf16.gmra.mrb[0].mxu0 %v1369
    %v1528 = vpop.f32.mrb[0].mxu0
    %v1529 = vadd.f32 %v1488, %v1528
    %v1530 = vpop.f32.mrb[0].mxu0
    %v1531 = vadd.f32 %v1490, %v1530
    %v1532 = vpop.f32.mrb[0].mxu0
    %v1533 = vpop.f32.mrb[0].mxu0
    %1534 = vdwg.mxu0
    %v1535 = vpack.c.bf16 %v766, %v766
    %v1536 = vpack.c.bf16 %v767, %v767
    %v1537 = vpack.c.bf16 %v768, %v768
    %v1538 = vpack.c.bf16 %v769, %v769
    %v1539 = vpack.c.bf16 %v770, %v770
    %v1540 = vpack.c.bf16 %v771, %v771
    %1548 = vrot.lane.b32.xlu0 %v778, 112
    %v1549 = vpop.permute.xlu0 %1548
    %1550 = vrot.lane.b32.xlu0 %v1535, 112
    %v1551 = vpop.permute.xlu0 %1550
    %1552 = vrot.lane.b32.xlu0 %v1536, 112
    %v1553 = vpop.permute.xlu0 %1552
    %1554 = vrot.lane.b32.xlu0 %v1537, 112
    %v1555 = vpop.permute.xlu0 %1554
    %1556 = vrot.lane.b32.xlu0 %v1538, 112
    %v1557 = vpop.permute.xlu0 %1556
    %1558 = vrot.lane.b32.xlu0 %v1539, 112
    %v1559 = vpop.permute.xlu0 %1558
    %1560 = vrot.lane.b32.xlu0 %v1540, 112
    %v1561 = vpop.permute.xlu0 %1560
    %vm1562 = vcmask 916480
    %v1563 = vsel %vm1562, %v1549, %v1551
    %v1564 = vsel %vm1562, %v1551, %v1553
    %v1565 = vsel %vm1562, %v1553, %v1555
    %v1566 = vsel %vm1562, %v1555, %v1557
    %v1567 = vsel %vm1562, %v1557, %v1559
    %v1568 = vsel %vm1562, %v1559, %v1561
    %v1576 = vsel %vm1367, %v1561, 0
    %1578 = vmatprep.subr.bf16.mxu0 %v1172
    %1579 = vmatpush1.bf16.msra.mxu0 %v1171
    %1580 = vmatprep.subr.bf16.mxu0 %v1174
    %1581 = vmatpush1.bf16.msra.mxu0 %v1173
    %1582 = vmatprep.subr.bf16.mxu0 %v1176
    %1583 = vmatpush1.bf16.msra.mxu0 %v1175
    %1584 = vmatprep.subr.bf16.mxu0 %v1178
    %1585 = vmatpush1.bf16.msra.mxu0 %v1177
    %1586 = vmatprep.subr.bf16.mxu0 %v1180
    %1587 = vmatpush1.bf16.msra.mxu0 %v1179
    %1588 = vmatprep.subr.bf16.mxu0 %v1182
    %1589 = vmatpush1.bf16.msra.mxu0 %v1181
    %1590 = vmatprep.subr.bf16.mxu0 %v1184
    %1591 = vmatpush1.bf16.msra.mxu0 %v1183
    %1592 = vmatprep.subr.bf16.mxu0 %v1186
    %1593 = vmatpush1.bf16.msra.mxu0 %v1185
    %1594 = vmatprep.subr.bf16.mxu0 %v1188
    %1595 = vmatpush1.bf16.msra.mxu0 %v1187
    %1596 = vmatprep.subr.bf16.mxu0 %v1190
    %1597 = vmatpush1.bf16.msra.mxu0 %v1189
    %1598 = vmatprep.subr.bf16.mxu0 %v1192
    %1599 = vmatpush1.bf16.msra.mxu0 %v1191
    %1600 = vmatprep.subr.bf16.mxu0 %v1194
    %1601 = vmatpush1.bf16.msra.mxu0 %v1193
    %1602 = vmatprep.subr.bf16.mxu0 %v1196
    %1603 = vmatpush1.bf16.msra.mxu0 %v1195
    %1604 = vmatprep.subr.bf16.mxu0 %v1198
    %1605 = vmatpush1.bf16.msra.mxu0 %v1197
    %1606 = vmatprep.subr.bf16.mxu0 %v1200
    %1607 = vmatpush1.bf16.msra.mxu0 %v1199
    %1608 = vmatprep.subr.bf16.mxu0 %v1202
    %1609 = vmatpush1.bf16.msra.mxu0 %v1201
    %1610 = vmatprep.mubr.bf16.mxu0 %v1564
    %1611 = vmatmul.mubr.bf16.gmra.mrb[0].mxu0 %v1563
    %v1612 = vpop.f32.mrb[0].mxu0
    %v1613 = vadd.f32 0.0, %v1612
    %v1614 = vpop.f32.mrb[0].mxu0
    %v1615 = vadd.f32 0.0, %v1614
    %v1616 = vpop.f32.mrb[0].mxu0
    %v1617 = vpop.f32.mrb[0].mxu0
    %1618 = vdwg.mxu0
    %1619 = vmatprep.subr.bf16.mxu0 %v1204
    %1620 = vmatpush1.bf16.msra.mxu0 %v1203
    %1621 = vmatprep.subr.bf16.mxu0 %v1206
    %1622 = vmatpush1.bf16.msra.mxu0 %v1205
    %1623 = vmatprep.subr.bf16.mxu0 %v1208
    %1624 = vmatpush1.bf16.msra.mxu0 %v1207
    %1625 = vmatprep.subr.bf16.mxu0 %v1210
    %1626 = vmatpush1.bf16.msra.mxu0 %v1209
    %1627 = vmatprep.subr.bf16.mxu0 %v1212
    %1628 = vmatpush1.bf16.msra.mxu0 %v1211
    %1629 = vmatprep.subr.bf16.mxu0 %v1214
    %1630 = vmatpush1.bf16.msra.mxu0 %v1213
    %1631 = vmatprep.subr.bf16.mxu0 %v1216
    %1632 = vmatpush1.bf16.msra.mxu0 %v1215
    %1633 = vmatprep.subr.bf16.mxu0 %v1218
    %1634 = vmatpush1.bf16.msra.mxu0 %v1217
    %1635 = vmatprep.subr.bf16.mxu0 %v1220
    %1636 = vmatpush1.bf16.msra.mxu0 %v1219
    %1637 = vmatprep.subr.bf16.mxu0 %v1222
    %1638 = vmatpush1.bf16.msra.mxu0 %v1221
    %1639 = vmatprep.subr.bf16.mxu0 %v1224
    %1640 = vmatpush1.bf16.msra.mxu0 %v1223
    %1641 = vmatprep.subr.bf16.mxu0 %v1226
    %1642 = vmatpush1.bf16.msra.mxu0 %v1225
    %1643 = vmatprep.subr.bf16.mxu0 %v1228
    %1644 = vmatpush1.bf16.msra.mxu0 %v1227
    %1645 = vmatprep.subr.bf16.mxu0 %v1230
    %1646 = vmatpush1.bf16.msra.mxu0 %v1229
    %1647 = vmatprep.subr.bf16.mxu0 %v1232
    %1648 = vmatpush1.bf16.msra.mxu0 %v1231
    %1649 = vmatprep.subr.bf16.mxu0 %v1234
    %1650 = vmatpush1.bf16.msra.mxu0 %v1233
    %1651 = vmatprep.mubr.bf16.mxu0 %v1566
    %1652 = vmatmul.mubr.bf16.gmra.mrb[0].mxu0 %v1565
    %v1653 = vpop.f32.mrb[0].mxu0
    %v1654 = vadd.f32 %v1613, %v1653
    %v1655 = vpop.f32.mrb[0].mxu0
    %v1656 = vadd.f32 %v1615, %v1655
    %v1657 = vpop.f32.mrb[0].mxu0
    %v1658 = vpop.f32.mrb[0].mxu0
    %1659 = vdwg.mxu0
    %1660 = vmatprep.subr.bf16.mxu0 %v1236
    %1661 = vmatpush1.bf16.msra.mxu0 %v1235
    %1662 = vmatprep.subr.bf16.mxu0 %v1238
    %1663 = vmatpush1.bf16.msra.mxu0 %v1237
    %1664 = vmatprep.subr.bf16.mxu0 %v1240
    %1665 = vmatpush1.bf16.msra.mxu0 %v1239
    %1666 = vmatprep.subr.bf16.mxu0 %v1242
    %1667 = vmatpush1.bf16.msra.mxu0 %v1241
    %1668 = vmatprep.subr.bf16.mxu0 %v1244
    %1669 = vmatpush1.bf16.msra.mxu0 %v1243
    %1670 = vmatprep.subr.bf16.mxu0 %v1246
    %1671 = vmatpush1.bf16.msra.mxu0 %v1245
    %1672 = vmatprep.subr.bf16.mxu0 %v1248
    %1673 = vmatpush1.bf16.msra.mxu0 %v1247
    %1674 = vmatprep.subr.bf16.mxu0 %v1250
    %1675 = vmatpush1.bf16.msra.mxu0 %v1249
    %1676 = vmatprep.subr.bf16.mxu0 %v1252
    %1677 = vmatpush1.bf16.msra.mxu0 %v1251
    %1678 = vmatprep.subr.bf16.mxu0 %v1254
    %1679 = vmatpush1.bf16.msra.mxu0 %v1253
    %1680 = vmatprep.subr.bf16.mxu0 %v1256
    %1681 = vmatpush1.bf16.msra.mxu0 %v1255
    %1682 = vmatprep.subr.bf16.mxu0 %v1258
    %1683 = vmatpush1.bf16.msra.mxu0 %v1257
    %1684 = vmatprep.subr.bf16.mxu0 %v1260
    %1685 = vmatpush1.bf16.msra.mxu0 %v1259
    %1686 = vmatprep.subr.bf16.mxu0 %v1262
    %1687 = vmatpush1.bf16.msra.mxu0 %v1261
    %1688 = vmatprep.subr.bf16.mxu0 %v1264
    %1689 = vmatpush1.bf16.msra.mxu0 %v1263
    %1690 = vmatprep.subr.bf16.mxu0 %v1266
    %1691 = vmatpush1.bf16.msra.mxu0 %v1265
    %1692 = vmatprep.mubr.bf16.mxu0 %v1568
    %1693 = vmatmul.mubr.bf16.gmra.mrb[0].mxu0 %v1567
    %v1694 = vpop.f32.mrb[0].mxu0
    %v1695 = vadd.f32 %v1654, %v1694
    %v1696 = vpop.f32.mrb[0].mxu0
    %v1697 = vadd.f32 %v1656, %v1696
    %v1698 = vpop.f32.mrb[0].mxu0
    %v1699 = vpop.f32.mrb[0].mxu0
    %1700 = vdwg.mxu0
    %1701 = vmatprep.subr.bf16.mxu0 %v1268
    %1702 = vmatpush1.bf16.msra.mxu0 %v1267
    %1703 = vmatprep.subr.bf16.mxu0 0
    %1704 = vmatpush1.bf16.msra.mxu0 0
    %1705 = vmatprep.subr.bf16.mxu0 0
    %1706 = vmatpush1.bf16.msra.mxu0 0
    %1707 = vmatprep.subr.bf16.mxu0 0
    %1708 = vmatpush1.bf16.msra.mxu0 0
    %1709 = vmatprep.subr.bf16.mxu0 0
    %1710 = vmatpush1.bf16.msra.mxu0 0
    %1711 = vmatprep.subr.bf16.mxu0 0
    %1712 = vmatpush1.bf16.msra.mxu0 0
    %1713 = vmatprep.subr.bf16.mxu0 0
    %1714 = vmatpush1.bf16.msra.mxu0 0
    %1715 = vmatprep.subr.bf16.mxu0 0
    %1716 = vmatpush1.bf16.msra.mxu0 0
    %1717 = vmatprep.subr.bf16.mxu0 0
    %1718 = vmatpush1.bf16.msra.mxu0 0
    %1719 = vmatprep.subr.bf16.mxu0 0
    %1720 = vmatpush1.bf16.msra.mxu0 0
    %1721 = vmatprep.subr.bf16.mxu0 0
    %1722 = vmatpush1.bf16.msra.mxu0 0
    %1723 = vmatprep.subr.bf16.mxu0 0
    %1724 = vmatpush1.bf16.msra.mxu0 0
    %1725 = vmatprep.subr.bf16.mxu0 0
    %1726 = vmatpush1.bf16.msra.mxu0 0
    %1727 = vmatprep.subr.bf16.mxu0 0
    %1728 = vmatpush1.bf16.msra.mxu0 0
    %1729 = vmatprep.subr.bf16.mxu0 0
    %1730 = vmatpush1.bf16.msra.mxu0 0
    %1731 = vmatprep.subr.bf16.mxu0 0
    %1732 = vmatpush1.bf16.msra.mxu0 0
    %1733 = vmatprep.mubr.bf16.mxu0 0
    %1734 = vmatmul.mubr.bf16.gmra.mrb[0].mxu0 %v1576
    %v1735 = vpop.f32.mrb[0].mxu0
    %v1736 = vadd.f32 %v1695, %v1735
    %v1737 = vpop.f32.mrb[0].mxu0
    %v1738 = vadd.f32 %v1697, %v1737
    %v1739 = vpop.f32.mrb[0].mxu0
    %v1740 = vpop.f32.mrb[0].mxu0
    %1741 = vdwg.mxu0
    %1744 = vrot.lane.b32.xlu0 %v1736, 68
    %v1745 = vpop.permute.xlu0 %1744
    %1746 = vrot.lane.b32.xlu0 %v1738, 68
    %v1747 = vpop.permute.xlu0 %1746
    %vm1748 = vcmask 556032
    %v1749 = vsel %vm1748, %v1745, %v1747
    %v1753 = vsel %vm1748, %v1531, %v1745
    %v1754 = vpack.c.bf16 %v1529, %v1529
    %v1755 = vpack.c.bf16 %v1753, %v1753
    %v1756 = vpack.c.bf16 %v1749, %v1749
    %v1757 = vpack.c.bf16 %v1747, %v1747
    %1760 = vrot.lane.b32.xlu0 %v1756, 22
    %v1761 = vpop.permute.xlu0 %1760
    %1762 = vrot.lane.b32.xlu0 %v1757, 22
    %v1763 = vpop.permute.xlu0 %1762
    %vm1764 = vcmask 179200
    %v1765 = vsel %vm1764, %v1761, %v1763
    %1768 = vrot.lane.b32.xlu0 %v1754, 30
    %v1769 = vpop.permute.xlu0 %1768
    %1770 = vrot.lane.b32.xlu0 %v1755, 30
    %v1771 = vpop.permute.xlu0 %1770
    %1772 = vrot.lane.b32.xlu0 %v1756, 30
    %v1773 = vpop.permute.xlu0 %1772
    %vm1774 = vcmask 244736
    %v1775 = vsel %vm1774, %v1769, %v1771
    %v1776 = vsel %vm1774, %v1771, %v1773
    %vm1780 = vcmask 244736
    %v1783 = vsel %vm1780, %v1765, %v1769
    %v1785 = vld [vmem:[%s4] sm:$0x11]
    %v1786 = vld [vmem:[%s4 + $0x8] sm:$0x11]
    %v1789 = vunpack.c.l.b16 %v1785
    %v1790 = vunpack.c.h.b16 %v1785
    %v1791 = vunpack.c.l.b16 %v1786
    %v1792 = vunpack.c.h.b16 %v1786
    %v1793 = vpack.c.b16 %v1789, %v1789
    %v1794 = vpack.c.b16 %v1790, %v1790
    %v1795 = vpack.c.b16 %v1791, %v1791
    %v1796 = vpack.c.b16 %v1792, %v1792
    %v1798 = vpack.i.b16 %v1793, %v1793
    %v1800 = vlaneseq
    %v1801 = vshrl.u32 %v1800, 7
    %v1802 = vsub.s32 0, %v1801
    %v1803 = vrot.slane %v1798, %v1802
    %v1805 = vpack.i.b16 %v1794, %v1794
    %v1807 = vlaneseq
    %v1808 = vshrl.u32 %v1807, 7
    %v1809 = vsub.s32 0, %v1808
    %v1810 = vrot.slane %v1805, %v1809
    %v1812 = vpack.i.b16 %v1795, %v1795
    %v1814 = vlaneseq
    %v1815 = vshrl.u32 %v1814, 7
    %v1816 = vsub.s32 0, %v1815
    %v1817 = vrot.slane %v1812, %v1816
    %v1819 = vpack.i.b16 %v1796, %v1796
    %v1821 = vlaneseq
    %v1822 = vshrl.u32 %v1821, 7
    %v1823 = vsub.s32 0, %v1822
    %v1824 = vrot.slane %v1819, %v1823
    %v1825 = vmul.bf16 %v1783, %v1803
    %v1826 = vmul.bf16 %v1775, %v1810
    %v1827 = vmul.bf16 %v1776, %v1817
    %v1828 = vmul.bf16 %v1773, %v1824
    %v1829 = vld [vmem:[%s5] sm:$0xf]
    %v1830 = vld [vmem:[%s5 + $0x4] sm:$0xf]
    %1831 = vrot.lane.b32.xlu0 %v1756, 21
    %v1832 = vpop.permute.xlu0 %1831
    %1833 = vrot.lane.b32.xlu0 %v1757, 21
    %v1834 = vpop.permute.xlu0 %1833
    %vm1835 = vcmask 171008
    %v1836 = vsel %vm1835, %v1832, %v1834
    %1837 = vrot.lane.b32.xlu0 %v1754, 29
    %v1838 = vpop.permute.xlu0 %1837
    %1839 = vrot.lane.b32.xlu0 %v1755, 29
    %v1840 = vpop.permute.xlu0 %1839
    %1841 = vrot.lane.b32.xlu0 %v1756, 29
    %v1842 = vpop.permute.xlu0 %1841
    %vm1843 = vcmask 236544
    %v1844 = vsel %vm1843, %v1838, %v1840
    %v1845 = vsel %vm1843, %v1840, %v1842
    %vm1849 = vcmask 236544
    %v1852 = vsel %vm1849, %v1836, %v1838
    %v1854 = vshrl.u32 %v1793, 16
    %v1855 = vpack.i.b16 %v1854, %v1854
    %v1857 = vlaneseq
    %v1858 = vshrl.u32 %v1857, 7
    %v1859 = vsub.s32 0, %v1858
    %v1860 = vrot.slane %v1855, %v1859
    %v1861 = vshrl.u32 %v1794, 16
    %v1862 = vpack.i.b16 %v1861, %v1861
    %v1864 = vlaneseq
    %v1865 = vshrl.u32 %v1864, 7
    %v1866 = vsub.s32 0, %v1865
    %v1867 = vrot.slane %v1862, %v1866
    %v1868 = vshrl.u32 %v1795, 16
    %v1869 = vpack.i.b16 %v1868, %v1868
    %v1871 = vlaneseq
    %v1872 = vshrl.u32 %v1871, 7
    %v1873 = vsub.s32 0, %v1872
    %v1874 = vrot.slane %v1869, %v1873
    %v1875 = vshrl.u32 %v1796, 16
    %v1876 = vpack.i.b16 %v1875, %v1875
    %v1878 = vlaneseq
    %v1879 = vshrl.u32 %v1878, 7
    %v1880 = vsub.s32 0, %v1879
    %v1881 = vrot.slane %v1876, %v1880
    %v1882 = vmul.bf16 %v1852, %v1860
    %v1883 = vmul.bf16 %v1844, %v1867
    %v1884 = vmul.bf16 %v1845, %v1874
    %v1885 = vmul.bf16 %v1842, %v1881
    %s1886 = scalar_lea.vmem %s5, 8
    %v1887 = vld [vmem:[%s1886] sm:$0xf]
    %v1888 = vld [vmem:[%s1886 + $0x4] sm:$0xf]
    %v1891 = vunpack.c.l.b16 %v1887
    %v1892 = vunpack.c.l.b16 %v1888
    %v1893 = vpack.c.b16 %v1892, %v1891
    %vm1894 = vcmask 48128
    %v1896 = vsel %vm1894, %v1893, 0
    %vm1898 = vcmask 1042432
    %v1900 = vsel %vm1898, %v1882, 0
    %v1903 = vsel %vm1898, %v1883, 0
    %v1906 = vsel %vm1898, %v1884, 0
    %v1909 = vsel %vm1898, %v1885, 0
    %1911 = vmatprep.subr.bf16.mxu0 %v1903
    %1912 = vmatpush1.bf16.msra.mxu0 %v1900
    %1913 = vmatprep.subr.bf16.mxu0 0
    %1914 = vmatpush1.bf16.msra.mxu0 0
    %1915 = vmatprep.subr.bf16.mxu0 0
    %1916 = vmatpush1.bf16.msra.mxu0 0
    %1917 = vmatprep.subr.bf16.mxu0 0
    %1918 = vmatpush1.bf16.msra.mxu0 0
    %1919 = vmatprep.subr.bf16.mxu0 0
    %1920 = vmatpush1.bf16.msra.mxu0 0
    %1921 = vmatprep.subr.bf16.mxu0 0
    %1922 = vmatpush1.bf16.msra.mxu0 0
    %1923 = vmatprep.subr.bf16.mxu0 0
    %1924 = vmatpush1.bf16.msra.mxu0 0
    %1925 = vmatprep.subr.bf16.mxu0 0
    %1926 = vmatpush1.bf16.msra.mxu0 0
    %1927 = vmatprep.subr.bf16.mxu0 0
    %1928 = vmatpush1.bf16.msra.mxu0 0
    %1929 = vmatprep.subr.bf16.mxu0 0
    %1930 = vmatpush1.bf16.msra.mxu0 0
    %1931 = vmatprep.subr.bf16.mxu0 0
    %1932 = vmatpush1.bf16.msra.mxu0 0
    %1933 = vmatprep.subr.bf16.mxu0 0
    %1934 = vmatpush1.bf16.msra.mxu0 0
    %1935 = vmatprep.subr.bf16.mxu0 0
    %1936 = vmatpush1.bf16.msra.mxu0 0
    %1937 = vmatprep.subr.bf16.mxu0 0
    %1938 = vmatpush1.bf16.msra.mxu0 0
    %1939 = vmatprep.subr.bf16.mxu0 0
    %1940 = vmatpush1.bf16.msra.mxu0 0
    %1941 = vmatprep.subr.bf16.mxu0 0
    %1942 = vmatpush1.bf16.msra.mxu0 0
    %1943 = vmatprep.mubr.bf16.mxu0 0
    %1944 = vmatmul.mubr.bf16.gmra.mrb[0].mxu0 %v1896
    %v1945 = vpop.f32.mrb[0].mxu0
    %v1946 = vadd.f32 0.0, %v1945
    %v1947 = vpop.f32.mrb[0].mxu0
    %v1948 = vadd.f32 0.0, %v1947
    %v1949 = vpop.f32.mrb[0].mxu0
    %v1950 = vadd.f32 0.0, %v1949
    %v1951 = vpop.f32.mrb[0].mxu0
    %v1952 = vadd.f32 0.0, %v1951
    %1953 = vdwg.mxu0
    %1954 = vmatprep.subr.bf16.mxu0 %v1909
    %1955 = vmatpush1.bf16.msra.mxu0 %v1906
    %1956 = vmatprep.subr.bf16.mxu0 0
    %1957 = vmatpush1.bf16.msra.mxu0 0
    %1958 = vmatprep.subr.bf16.mxu0 0
    %1959 = vmatpush1.bf16.msra.mxu0 0
    %1960 = vmatprep.subr.bf16.mxu0 0
    %1961 = vmatpush1.bf16.msra.mxu0 0
    %1962 = vmatprep.subr.bf16.mxu0 0
    %1963 = vmatpush1.bf16.msra.mxu0 0
    %1964 = vmatprep.subr.bf16.mxu0 0
    %1965 = vmatpush1.bf16.msra.mxu0 0
    %1966 = vmatprep.subr.bf16.mxu0 0
    %1967 = vmatpush1.bf16.msra.mxu0 0
    %1968 = vmatprep.subr.bf16.mxu0 0
    %1969 = vmatpush1.bf16.msra.mxu0 0
    %1970 = vmatprep.subr.bf16.mxu0 0
    %1971 = vmatpush1.bf16.msra.mxu0 0
    %1972 = vmatprep.subr.bf16.mxu0 0
    %1973 = vmatpush1.bf16.msra.mxu0 0
    %1974 = vmatprep.subr.bf16.mxu0 0
    %1975 = vmatpush1.bf16.msra.mxu0 0
    %1976 = vmatprep.subr.bf16.mxu0 0
    %1977 = vmatpush1.bf16.msra.mxu0 0
    %1978 = vmatprep.subr.bf16.mxu0 0
    %1979 = vmatpush1.bf16.msra.mxu0 0
    %1980 = vmatprep.subr.bf16.mxu0 0
    %1981 = vmatpush1.bf16.msra.mxu0 0
    %1982 = vmatprep.subr.bf16.mxu0 0
    %1983 = vmatpush1.bf16.msra.mxu0 0
    %1984 = vmatprep.subr.bf16.mxu0 0
    %1985 = vmatpush1.bf16.msra.mxu0 0
    %1986 = vmatprep.mubr.bf16.mxu0 0
    %1987 = vmatmul.mubr.bf16.gmra.mrb[0].mxu0 %v1896
    %v1988 = vpop.f32.mrb[0].mxu0
    %v1989 = vadd.f32 0.0, %v1988
    %v1990 = vpop.f32.mrb[0].mxu0
    %v1991 = vadd.f32 0.0, %v1990
    %v1992 = vpop.f32.mrb[0].mxu0
    %v1993 = vadd.f32 0.0, %v1992
    %v1994 = vpop.f32.mrb[0].mxu0
    %v1995 = vadd.f32 0.0, %v1994
    %1996 = vdwg.mxu0
    %v1999 = vunpack.c.l.b16 %v1829
    %v2000 = vunpack.c.l.b16 %v1830
    %v2001 = vpack.c.b16 %v2000, %v1999
    %v2003 = vsel %vm1894, %v2001, 0
    %v2006 = vsel %vm1898, %v1825, 0
    %v2009 = vsel %vm1898, %v1826, 0
    %v2012 = vsel %vm1898, %v1827, 0
    %v2015 = vsel %vm1898, %v1828, 0
    %2017 = vmatprep.subr.bf16.mxu0 %v2009
    %2018 = vmatpush1.bf16.msra.mxu0 %v2006
    %2019 = vmatprep.subr.bf16.mxu0 0
    %2020 = vmatpush1.bf16.msra.mxu0 0
    %2021 = vmatprep.subr.bf16.mxu0 0
    %2022 = vmatpush1.bf16.msra.mxu0 0
    %2023 = vmatprep.subr.bf16.mxu0 0
    %2024 = vmatpush1.bf16.msra.mxu0 0
    %2025 = vmatprep.subr.bf16.mxu0 0
    %2026 = vmatpush1.bf16.msra.mxu0 0
    %2027 = vmatprep.subr.bf16.mxu0 0
    %2028 = vmatpush1.bf16.msra.mxu0 0
    %2029 = vmatprep.subr.bf16.mxu0 0
    %2030 = vmatpush1.bf16.msra.mxu0 0
    %2031 = vmatprep.subr.bf16.mxu0 0
    %2032 = vmatpush1.bf16.msra.mxu0 0
    %2033 = vmatprep.subr.bf16.mxu0 0
    %2034 = vmatpush1.bf16.msra.mxu0 0
    %2035 = vmatprep.subr.bf16.mxu0 0
    %2036 = vmatpush1.bf16.msra.mxu0 0
    %2037 = vmatprep.subr.bf16.mxu0 0
    %2038 = vmatpush1.bf16.msra.mxu0 0
    %2039 = vmatprep.subr.bf16.mxu0 0
    %2040 = vmatpush1.bf16.msra.mxu0 0
    %2041 = vmatprep.subr.bf16.mxu0 0
    %2042 = vmatpush1.bf16.msra.mxu0 0
    %2043 = vmatprep.subr.bf16.mxu0 0
    %2044 = vmatpush1.bf16.msra.mxu0 0
    %2045 = vmatprep.subr.bf16.mxu0 0
    %2046 = vmatpush1.bf16.msra.mxu0 0
    %2047 = vmatprep.subr.bf16.mxu0 0
    %2048 = vmatpush1.bf16.msra.mxu0 0
    %2049 = vmatprep.mubr.bf16.mxu0 0
    %2050 = vmatmul.mubr.bf16.gmra.mrb[0].mxu0 %v2003
    %v2051 = vpop.f32.mrb[0].mxu0
    %v2052 = vadd.f32 %v1946, %v2051
    %v2053 = vpop.f32.mrb[0].mxu0
    %v2054 = vadd.f32 %v1948, %v2053
    %v2055 = vpop.f32.mrb[0].mxu0
    %v2056 = vadd.f32 %v1950, %v2055
    %v2057 = vpop.f32.mrb[0].mxu0
    %v2058 = vadd.f32 %v1952, %v2057
    %2059 = vdwg.mxu0
    %2060 = vmatprep.subr.bf16.mxu0 %v2015
    %2061 = vmatpush1.bf16.msra.mxu0 %v2012
    %2062 = vmatprep.subr.bf16.mxu0 0
    %2063 = vmatpush1.bf16.msra.mxu0 0
    %2064 = vmatprep.subr.bf16.mxu0 0
    %2065 = vmatpush1.bf16.msra.mxu0 0
    %2066 = vmatprep.subr.bf16.mxu0 0
    %2067 = vmatpush1.bf16.msra.mxu0 0
    %2068 = vmatprep.subr.bf16.mxu0 0
    %2069 = vmatpush1.bf16.msra.mxu0 0
    %2070 = vmatprep.subr.bf16.mxu0 0
    %2071 = vmatpush1.bf16.msra.mxu0 0
    %2072 = vmatprep.subr.bf16.mxu0 0
    %2073 = vmatpush1.bf16.msra.mxu0 0
    %2074 = vmatprep.subr.bf16.mxu0 0
    %2075 = vmatpush1.bf16.msra.mxu0 0
    %2076 = vmatprep.subr.bf16.mxu0 0
    %2077 = vmatpush1.bf16.msra.mxu0 0
    %2078 = vmatprep.subr.bf16.mxu0 0
    %2079 = vmatpush1.bf16.msra.mxu0 0
    %2080 = vmatprep.subr.bf16.mxu0 0
    %2081 = vmatpush1.bf16.msra.mxu0 0
    %2082 = vmatprep.subr.bf16.mxu0 0
    %2083 = vmatpush1.bf16.msra.mxu0 0
    %2084 = vmatprep.subr.bf16.mxu0 0
    %2085 = vmatpush1.bf16.msra.mxu0 0
    %2086 = vmatprep.subr.bf16.mxu0 0
    %2087 = vmatpush1.bf16.msra.mxu0 0
    %2088 = vmatprep.subr.bf16.mxu0 0
    %2089 = vmatpush1.bf16.msra.mxu0 0
    %2090 = vmatprep.subr.bf16.mxu0 0
    %2091 = vmatpush1.bf16.msra.mxu0 0
    %2092 = vmatprep.mubr.bf16.mxu0 0
    %2093 = vmatmul.mubr.bf16.gmra.mrb[0].mxu0 %v2003
    %v2094 = vpop.f32.mrb[0].mxu0
    %v2095 = vadd.f32 %v1989, %v2094
    %v2096 = vpop.f32.mrb[0].mxu0
    %v2097 = vadd.f32 %v1991, %v2096
    %v2098 = vpop.f32.mrb[0].mxu0
    %v2099 = vadd.f32 %v1993, %v2098
    %v2100 = vpop.f32.mrb[0].mxu0
    %v2101 = vadd.f32 %v1995, %v2100
    %2102 = vdwg.mxu0
    %2103 = vrot.lane.b32.xlu0 %v1756, 20
    %v2104 = vpop.permute.xlu0 %2103
    %2105 = vrot.lane.b32.xlu0 %v1757, 20
    %v2106 = vpop.permute.xlu0 %2105
    %vm2107 = vcmask 162816
    %v2108 = vsel %vm2107, %v2104, %v2106
    %2109 = vrot.lane.b32.xlu0 %v1754, 28
    %v2110 = vpop.permute.xlu0 %2109
    %2111 = vrot.lane.b32.xlu0 %v1755, 28
    %v2112 = vpop.permute.xlu0 %2111
    %2113 = vrot.lane.b32.xlu0 %v1756, 28
    %v2114 = vpop.permute.xlu0 %2113
    %vm2115 = vcmask 228352
    %v2116 = vsel %vm2115, %v2110, %v2112
    %v2117 = vsel %vm2115, %v2112, %v2114
    %vm2121 = vcmask 228352
    %v2124 = vsel %vm2121, %v2108, %v2110
    %v2126 = vld [vmem:[%s4] sm:$0x22]
    %v2127 = vld [vmem:[%s4 + $0x8] sm:$0x22]
    %v2130 = vunpack.c.l.b16 %v2126
    %v2131 = vunpack.c.h.b16 %v2126
    %v2132 = vunpack.c.l.b16 %v2127
    %v2133 = vunpack.c.h.b16 %v2127
    %v2134 = vpack.c.b16 %v2130, %v2130
    %v2135 = vpack.c.b16 %v2131, %v2131
    %v2136 = vpack.c.b16 %v2132, %v2132
    %v2137 = vpack.c.b16 %v2133, %v2133
    %v2139 = vpack.i.b16 %v2134, %v2134
    %v2141 = vlaneseq
    %v2142 = vshrl.u32 %v2141, 7
    %v2143 = vsub.s32 1, %v2142
    %v2144 = vrot.slane %v2139, %v2143
    %v2146 = vpack.i.b16 %v2135, %v2135
    %v2148 = vlaneseq
    %v2149 = vshrl.u32 %v2148, 7
    %v2150 = vsub.s32 1, %v2149
    %v2151 = vrot.slane %v2146, %v2150
    %v2153 = vpack.i.b16 %v2136, %v2136
    %v2155 = vlaneseq
    %v2156 = vshrl.u32 %v2155, 7
    %v2157 = vsub.s32 1, %v2156
    %v2158 = vrot.slane %v2153, %v2157
    %v2160 = vpack.i.b16 %v2137, %v2137
    %v2162 = vlaneseq
    %v2163 = vshrl.u32 %v2162, 7
    %v2164 = vsub.s32 1, %v2163
    %v2165 = vrot.slane %v2160, %v2164
    %v2166 = vmul.bf16 %v2124, %v2144
    %v2167 = vmul.bf16 %v2116, %v2151
    %v2168 = vmul.bf16 %v2117, %v2158
    %v2169 = vmul.bf16 %v2114, %v2165
    %s2170 = scalar_lea.vmem %s5, 16
    %v2171 = vld [vmem:[%s2170] sm:$0xf]
    %v2172 = vld [vmem:[%s2170 + $0x4] sm:$0xf]
    %v2175 = vunpack.c.l.b16 %v2171
    %v2176 = vunpack.c.l.b16 %v2172
    %v2177 = vpack.c.b16 %v2176, %v2175
    %v2179 = vsel %vm1894, %v2177, 0
    %v2182 = vsel %vm1898, %v2166, 0
    %v2185 = vsel %vm1898, %v2167, 0
    %v2188 = vsel %vm1898, %v2168, 0
    %v2191 = vsel %vm1898, %v2169, 0
    %2193 = vmatprep.subr.bf16.mxu0 %v2185
    %2194 = vmatpush1.bf16.msra.mxu0 %v2182
    %2195 = vmatprep.subr.bf16.mxu0 0
    %2196 = vmatpush1.bf16.msra.mxu0 0
    %2197 = vmatprep.subr.bf16.mxu0 0
    %2198 = vmatpush1.bf16.msra.mxu0 0
    %2199 = vmatprep.subr.bf16.mxu0 0
    %2200 = vmatpush1.bf16.msra.mxu0 0
    %2201 = vmatprep.subr.bf16.mxu0 0
    %2202 = vmatpush1.bf16.msra.mxu0 0
    %2203 = vmatprep.subr.bf16.mxu0 0
    %2204 = vmatpush1.bf16.msra.mxu0 0
    %2205 = vmatprep.subr.bf16.mxu0 0
    %2206 = vmatpush1.bf16.msra.mxu0 0
    %2207 = vmatprep.subr.bf16.mxu0 0
    %2208 = vmatpush1.bf16.msra.mxu0 0
    %2209 = vmatprep.subr.bf16.mxu0 0
    %2210 = vmatpush1.bf16.msra.mxu0 0
    %2211 = vmatprep.subr.bf16.mxu0 0
    %2212 = vmatpush1.bf16.msra.mxu0 0
    %2213 = vmatprep.subr.bf16.mxu0 0
    %2214 = vmatpush1.bf16.msra.mxu0 0
    %2215 = vmatprep.subr.bf16.mxu0 0
    %2216 = vmatpush1.bf16.msra.mxu0 0
    %2217 = vmatprep.subr.bf16.mxu0 0
    %2218 = vmatpush1.bf16.msra.mxu0 0
    %2219 = vmatprep.subr.bf16.mxu0 0
    %2220 = vmatpush1.bf16.msra.mxu0 0
    %2221 = vmatprep.subr.bf16.mxu0 0
    %2222 = vmatpush1.bf16.msra.mxu0 0
    %2223 = vmatprep.subr.bf16.mxu0 0
    %2224 = vmatpush1.bf16.msra.mxu0 0
    %2225 = vmatprep.mubr.bf16.mxu0 0
    %2226 = vmatmul.mubr.bf16.gmra.mrb[0].mxu0 %v2179
    %v2227 = vpop.f32.mrb[0].mxu0
    %v2228 = vadd.f32 0.0, %v2227
    %v2229 = vpop.f32.mrb[0].mxu0
    %v2230 = vadd.f32 0.0, %v2229
    %v2231 = vpop.f32.mrb[0].mxu0
    %v2232 = vadd.f32 0.0, %v2231
    %v2233 = vpop.f32.mrb[0].mxu0
    %v2234 = vadd.f32 0.0, %v2233
    %2235 = vdwg.mxu0
    %2236 = vmatprep.subr.bf16.mxu0 %v2191
    %2237 = vmatpush1.bf16.msra.mxu0 %v2188
    %2238 = vmatprep.subr.bf16.mxu0 0
    %2239 = vmatpush1.bf16.msra.mxu0 0
    %2240 = vmatprep.subr.bf16.mxu0 0
    %2241 = vmatpush1.bf16.msra.mxu0 0
    %2242 = vmatprep.subr.bf16.mxu0 0
    %2243 = vmatpush1.bf16.msra.mxu0 0
    %2244 = vmatprep.subr.bf16.mxu0 0
    %2245 = vmatpush1.bf16.msra.mxu0 0
    %2246 = vmatprep.subr.bf16.mxu0 0
    %2247 = vmatpush1.bf16.msra.mxu0 0
    %2248 = vmatprep.subr.bf16.mxu0 0
    %2249 = vmatpush1.bf16.msra.mxu0 0
    %2250 = vmatprep.subr.bf16.mxu0 0
    %2251 = vmatpush1.bf16.msra.mxu0 0
    %2252 = vmatprep.subr.bf16.mxu0 0
    %2253 = vmatpush1.bf16.msra.mxu0 0
    %2254 = vmatprep.subr.bf16.mxu0 0
    %2255 = vmatpush1.bf16.msra.mxu0 0
    %2256 = vmatprep.subr.bf16.mxu0 0
    %2257 = vmatpush1.bf16.msra.mxu0 0
    %2258 = vmatprep.subr.bf16.mxu0 0
    %2259 = vmatpush1.bf16.msra.mxu0 0
    %2260 = vmatprep.subr.bf16.mxu0 0
    %2261 = vmatpush1.bf16.msra.mxu0 0
    %2262 = vmatprep.subr.bf16.mxu0 0
    %2263 = vmatpush1.bf16.msra.mxu0 0
    %2264 = vmatprep.subr.bf16.mxu0 0
    %2265 = vmatpush1.bf16.msra.mxu0 0
    %2266 = vmatprep.subr.bf16.mxu0 0
    %2267 = vmatpush1.bf16.msra.mxu0 0
    %2268 = vmatprep.mubr.bf16.mxu0 0
    %2269 = vmatmul.mubr.bf16.gmra.mrb[0].mxu0 %v2179
    %v2270 = vpop.f32.mrb[0].mxu0
    %v2271 = vadd.f32 0.0, %v2270
    %v2272 = vpop.f32.mrb[0].mxu0
    %v2273 = vadd.f32 0.0, %v2272
    %v2274 = vpop.f32.mrb[0].mxu0
    %v2275 = vadd.f32 0.0, %v2274
    %v2276 = vpop.f32.mrb[0].mxu0
    %v2277 = vadd.f32 0.0, %v2276
    %2278 = vdwg.mxu0
    %v2279 = vadd.f32 %v2052, %v2228
    %v2280 = vadd.f32 %v2054, %v2230
    %v2281 = vadd.f32 %v2095, %v2271
    %v2282 = vadd.f32 %v2097, %v2273
    %v2283 = vadd.f32 %v2056, %v2232
    %v2284 = vadd.f32 %v2058, %v2234
    %v2285 = vadd.f32 %v2099, %v2275
    %v2286 = vadd.f32 %v2101, %v2277
    %2287 = vrot.lane.b32.xlu0 %v1756, 19
    %v2288 = vpop.permute.xlu0 %2287
    %2289 = vrot.lane.b32.xlu0 %v1757, 19
    %v2290 = vpop.permute.xlu0 %2289
    %vm2291 = vcmask 154624
    %v2292 = vsel %vm2291, %v2288, %v2290
    %2293 = vrot.lane.b32.xlu0 %v1754, 27
    %v2294 = vpop.permute.xlu0 %2293
    %2295 = vrot.lane.b32.xlu0 %v1755, 27
    %v2296 = vpop.permute.xlu0 %2295
    %2297 = vrot.lane.b32.xlu0 %v1756, 27
    %v2298 = vpop.permute.xlu0 %2297
    %vm2299 = vcmask 220160
    %v2300 = vsel %vm2299, %v2294, %v2296
    %v2301 = vsel %vm2299, %v2296, %v2298
    %vm2305 = vcmask 220160
    %v2308 = vsel %vm2305, %v2292, %v2294
    %v2310 = vshrl.u32 %v2134, 16
    %v2311 = vpack.i.b16 %v2310, %v2310
    %v2313 = vlaneseq
    %v2314 = vshrl.u32 %v2313, 7
    %v2315 = vsub.s32 1, %v2314
    %v2316 = vrot.slane %v2311, %v2315
    %v2317 = vshrl.u32 %v2135, 16
    %v2318 = vpack.i.b16 %v2317, %v2317
    %v2320 = vlaneseq
    %v2321 = vshrl.u32 %v2320, 7
    %v2322 = vsub.s32 1, %v2321
    %v2323 = vrot.slane %v2318, %v2322
    %v2324 = vshrl.u32 %v2136, 16
    %v2325 = vpack.i.b16 %v2324, %v2324
    %v2327 = vlaneseq
    %v2328 = vshrl.u32 %v2327, 7
    %v2329 = vsub.s32 1, %v2328
    %v2330 = vrot.slane %v2325, %v2329
    %v2331 = vshrl.u32 %v2137, 16
    %v2332 = vpack.i.b16 %v2331, %v2331
    %v2334 = vlaneseq
    %v2335 = vshrl.u32 %v2334, 7
    %v2336 = vsub.s32 1, %v2335
    %v2337 = vrot.slane %v2332, %v2336
    %v2338 = vmul.bf16 %v2308, %v2316
    %v2339 = vmul.bf16 %v2300, %v2323
    %v2340 = vmul.bf16 %v2301, %v2330
    %v2341 = vmul.bf16 %v2298, %v2337
    %s2342 = scalar_lea.vmem %s5, 24
    %v2343 = vld [vmem:[%s2342] sm:$0xf]
    %v2344 = vld [vmem:[%s2342 + $0x4] sm:$0xf]
    %v2347 = vunpack.c.l.b16 %v2343
    %v2348 = vunpack.c.l.b16 %v2344
    %v2349 = vpack.c.b16 %v2348, %v2347
    %v2351 = vsel %vm1894, %v2349, 0
    %v2354 = vsel %vm1898, %v2338, 0
    %v2357 = vsel %vm1898, %v2339, 0
    %v2360 = vsel %vm1898, %v2340, 0
    %v2363 = vsel %vm1898, %v2341, 0
    %2365 = vmatprep.subr.bf16.mxu0 %v2357
    %2366 = vmatpush1.bf16.msra.mxu0 %v2354
    %2367 = vmatprep.subr.bf16.mxu0 0
    %2368 = vmatpush1.bf16.msra.mxu0 0
    %2369 = vmatprep.subr.bf16.mxu0 0
    %2370 = vmatpush1.bf16.msra.mxu0 0
    %2371 = vmatprep.subr.bf16.mxu0 0
    %2372 = vmatpush1.bf16.msra.mxu0 0
    %2373 = vmatprep.subr.bf16.mxu0 0
    %2374 = vmatpush1.bf16.msra.mxu0 0
    %2375 = vmatprep.subr.bf16.mxu0 0
    %2376 = vmatpush1.bf16.msra.mxu0 0
    %2377 = vmatprep.subr.bf16.mxu0 0
    %2378 = vmatpush1.bf16.msra.mxu0 0
    %2379 = vmatprep.subr.bf16.mxu0 0
    %2380 = vmatpush1.bf16.msra.mxu0 0
    %2381 = vmatprep.subr.bf16.mxu0 0
    %2382 = vmatpush1.bf16.msra.mxu0 0
    %2383 = vmatprep.subr.bf16.mxu0 0
    %2384 = vmatpush1.bf16.msra.mxu0 0
    %2385 = vmatprep.subr.bf16.mxu0 0
    %2386 = vmatpush1.bf16.msra.mxu0 0
    %2387 = vmatprep.subr.bf16.mxu0 0
    %2388 = vmatpush1.bf16.msra.mxu0 0
    %2389 = vmatprep.subr.bf16.mxu0 0
    %2390 = vmatpush1.bf16.msra.mxu0 0
    %2391 = vmatprep.subr.bf16.mxu0 0
    %2392 = vmatpush1.bf16.msra.mxu0 0
    %2393 = vmatprep.subr.bf16.mxu0 0
    %2394 = vmatpush1.bf16.msra.mxu0 0
    %2395 = vmatprep.subr.bf16.mxu0 0
    %2396 = vmatpush1.bf16.msra.mxu0 0
    %2397 = vmatprep.mubr.bf16.mxu0 0
    %2398 = vmatmul.mubr.bf16.gmra.mrb[0].mxu0 %v2351
    %v2399 = vpop.f32.mrb[0].mxu0
    %v2400 = vadd.f32 0.0, %v2399
    %v2401 = vpop.f32.mrb[0].mxu0
    %v2402 = vadd.f32 0.0, %v2401
    %v2403 = vpop.f32.mrb[0].mxu0
    %v2404 = vadd.f32 0.0, %v2403
    %v2405 = vpop.f32.mrb[0].mxu0
    %v2406 = vadd.f32 0.0, %v2405
    %2407 = vdwg.mxu0
    %2408 = vmatprep.subr.bf16.mxu0 %v2363
    %2409 = vmatpush1.bf16.msra.mxu0 %v2360
    %2410 = vmatprep.subr.bf16.mxu0 0
    %2411 = vmatpush1.bf16.msra.mxu0 0
    %2412 = vmatprep.subr.bf16.mxu0 0
    %2413 = vmatpush1.bf16.msra.mxu0 0
    %2414 = vmatprep.subr.bf16.mxu0 0
    %2415 = vmatpush1.bf16.msra.mxu0 0
    %2416 = vmatprep.subr.bf16.mxu0 0
    %2417 = vmatpush1.bf16.msra.mxu0 0
    %2418 = vmatprep.subr.bf16.mxu0 0
    %2419 = vmatpush1.bf16.msra.mxu0 0
    %2420 = vmatprep.subr.bf16.mxu0 0
    %2421 = vmatpush1.bf16.msra.mxu0 0
    %2422 = vmatprep.subr.bf16.mxu0 0
    %2423 = vmatpush1.bf16.msra.mxu0 0
    %2424 = vmatprep.subr.bf16.mxu0 0
    %2425 = vmatpush1.bf16.msra.mxu0 0
    %2426 = vmatprep.subr.bf16.mxu0 0
    %2427 = vmatpush1.bf16.msra.mxu0 0
    %2428 = vmatprep.subr.bf16.mxu0 0
    %2429 = vmatpush1.bf16.msra.mxu0 0
    %2430 = vmatprep.subr.bf16.mxu0 0
    %2431 = vmatpush1.bf16.msra.mxu0 0
    %2432 = vmatprep.subr.bf16.mxu0 0
    %2433 = vmatpush1.bf16.msra.mxu0 0
    %2434 = vmatprep.subr.bf16.mxu0 0
    %2435 = vmatpush1.bf16.msra.mxu0 0
    %2436 = vmatprep.subr.bf16.mxu0 0
    %2437 = vmatpush1.bf16.msra.mxu0 0
    %2438 = vmatprep.subr.bf16.mxu0 0
    %2439 = vmatpush1.bf16.msra.mxu0 0
    %2440 = vmatprep.mubr.bf16.mxu0 0
    %2441 = vmatmul.mubr.bf16.gmra.mrb[0].mxu0 %v2351
    %v2442 = vpop.f32.mrb[0].mxu0
    %v2443 = vadd.f32 0.0, %v2442
    %v2444 = vpop.f32.mrb[0].mxu0
    %v2445 = vadd.f32 0.0, %v2444
    %v2446 = vpop.f32.mrb[0].mxu0
    %v2447 = vadd.f32 0.0, %v2446
    %v2448 = vpop.f32.mrb[0].mxu0
    %v2449 = vadd.f32 0.0, %v2448
    %2450 = vdwg.mxu0
    %v2451 = vadd.f32 %v2279, %v2400
    %v2452 = vadd.f32 %v2280, %v2402
    %v2453 = vadd.f32 %v2281, %v2443
    %v2454 = vadd.f32 %v2282, %v2445
    %v2455 = vadd.f32 %v2283, %v2404
    %v2456 = vadd.f32 %v2284, %v2406
    %v2457 = vadd.f32 %v2285, %v2447
    %v2458 = vadd.f32 %v2286, %v2449
    %2459 = vrot.lane.b32.xlu0 %v1756, 18
    %v2460 = vpop.permute.xlu0 %2459
    %2461 = vrot.lane.b32.xlu0 %v1757, 18
    %v2462 = vpop.permute.xlu0 %2461
    %vm2463 = vcmask 146432
    %v2464 = vsel %vm2463, %v2460, %v2462
    %2465 = vrot.lane.b32.xlu0 %v1754, 26
    %v2466 = vpop.permute.xlu0 %2465
    %2467 = vrot.lane.b32.xlu0 %v1755, 26
    %v2468 = vpop.permute.xlu0 %2467
    %2469 = vrot.lane.b32.xlu0 %v1756, 26
    %v2470 = vpop.permute.xlu0 %2469
    %vm2471 = vcmask 211968
    %v2472 = vsel %vm2471, %v2466, %v2468
    %v2473 = vsel %vm2471, %v2468, %v2470
    %vm2477 = vcmask 211968
    %v2480 = vsel %vm2477, %v2464, %v2466
    %v2482 = vld [vmem:[%s4] sm:$0x44]
    %v2483 = vld [vmem:[%s4 + $0x8] sm:$0x44]
    %v2486 = vunpack.c.l.b16 %v2482
    %v2487 = vunpack.c.h.b16 %v2482
    %v2488 = vunpack.c.l.b16 %v2483
    %v2489 = vunpack.c.h.b16 %v2483
    %v2490 = vpack.c.b16 %v2486, %v2486
    %v2491 = vpack.c.b16 %v2487, %v2487
    %v2492 = vpack.c.b16 %v2488, %v2488
    %v2493 = vpack.c.b16 %v2489, %v2489
    %v2495 = vpack.i.b16 %v2490, %v2490
    %v2497 = vlaneseq
    %v2498 = vshrl.u32 %v2497, 7
    %v2499 = vsub.s32 2, %v2498
    %v2500 = vrot.slane %v2495, %v2499
    %v2502 = vpack.i.b16 %v2491, %v2491
    %v2504 = vlaneseq
    %v2505 = vshrl.u32 %v2504, 7
    %v2506 = vsub.s32 2, %v2505
    %v2507 = vrot.slane %v2502, %v2506
    %v2509 = vpack.i.b16 %v2492, %v2492
    %v2511 = vlaneseq
    %v2512 = vshrl.u32 %v2511, 7
    %v2513 = vsub.s32 2, %v2512
    %v2514 = vrot.slane %v2509, %v2513
    %v2516 = vpack.i.b16 %v2493, %v2493
    %v2518 = vlaneseq
    %v2519 = vshrl.u32 %v2518, 7
    %v2520 = vsub.s32 2, %v2519
    %v2521 = vrot.slane %v2516, %v2520
    %v2522 = vmul.bf16 %v2480, %v2500
    %v2523 = vmul.bf16 %v2472, %v2507
    %v2524 = vmul.bf16 %v2473, %v2514
    %v2525 = vmul.bf16 %v2470, %v2521
    %s2526 = scalar_lea.vmem %s5, 32
    %v2527 = vld [vmem:[%s2526] sm:$0xf]
    %v2528 = vld [vmem:[%s2526 + $0x4] sm:$0xf]
    %v2531 = vunpack.c.l.b16 %v2527
    %v2532 = vunpack.c.l.b16 %v2528
    %v2533 = vpack.c.b16 %v2532, %v2531
    %v2535 = vsel %vm1894, %v2533, 0
    %v2538 = vsel %vm1898, %v2522, 0
    %v2541 = vsel %vm1898, %v2523, 0
    %v2544 = vsel %vm1898, %v2524, 0
    %v2547 = vsel %vm1898, %v2525, 0
    %2549 = vmatprep.subr.bf16.mxu0 %v2541
    %2550 = vmatpush1.bf16.msra.mxu0 %v2538
    %2551 = vmatprep.subr.bf16.mxu0 0
    %2552 = vmatpush1.bf16.msra.mxu0 0
    %2553 = vmatprep.subr.bf16.mxu0 0
    %2554 = vmatpush1.bf16.msra.mxu0 0
    %2555 = vmatprep.subr.bf16.mxu0 0
    %2556 = vmatpush1.bf16.msra.mxu0 0
    %2557 = vmatprep.subr.bf16.mxu0 0
    %2558 = vmatpush1.bf16.msra.mxu0 0
    %2559 = vmatprep.subr.bf16.mxu0 0
    %2560 = vmatpush1.bf16.msra.mxu0 0
    %2561 = vmatprep.subr.bf16.mxu0 0
    %2562 = vmatpush1.bf16.msra.mxu0 0
    %2563 = vmatprep.subr.bf16.mxu0 0
    %2564 = vmatpush1.bf16.msra.mxu0 0
    %2565 = vmatprep.subr.bf16.mxu0 0
    %2566 = vmatpush1.bf16.msra.mxu0 0
    %2567 = vmatprep.subr.bf16.mxu0 0
    %2568 = vmatpush1.bf16.msra.mxu0 0
    %2569 = vmatprep.subr.bf16.mxu0 0
    %2570 = vmatpush1.bf16.msra.mxu0 0
    %2571 = vmatprep.subr.bf16.mxu0 0
    %2572 = vmatpush1.bf16.msra.mxu0 0
    %2573 = vmatprep.subr.bf16.mxu0 0
    %2574 = vmatpush1.bf16.msra.mxu0 0
    %2575 = vmatprep.subr.bf16.mxu0 0
    %2576 = vmatpush1.bf16.msra.mxu0 0
    %2577 = vmatprep.subr.bf16.mxu0 0
    %2578 = vmatpush1.bf16.msra.mxu0 0
    %2579 = vmatprep.subr.bf16.mxu0 0
    %2580 = vmatpush1.bf16.msra.mxu0 0
    %2581 = vmatprep.mubr.bf16.mxu0 0
    %2582 = vmatmul.mubr.bf16.gmra.mrb[0].mxu0 %v2535
    %v2583 = vpop.f32.mrb[0].mxu0
    %v2584 = vadd.f32 0.0, %v2583
    %v2585 = vpop.f32.mrb[0].mxu0
    %v2586 = vadd.f32 0.0, %v2585
    %v2587 = vpop.f32.mrb[0].mxu0
    %v2588 = vadd.f32 0.0, %v2587
    %v2589 = vpop.f32.mrb[0].mxu0
    %v2590 = vadd.f32 0.0, %v2589
    %2591 = vdwg.mxu0
    %2592 = vmatprep.subr.bf16.mxu0 %v2547
    %2593 = vmatpush1.bf16.msra.mxu0 %v2544
    %2594 = vmatprep.subr.bf16.mxu0 0
    %2595 = vmatpush1.bf16.msra.mxu0 0
    %2596 = vmatprep.subr.bf16.mxu0 0
    %2597 = vmatpush1.bf16.msra.mxu0 0
    %2598 = vmatprep.subr.bf16.mxu0 0
    %2599 = vmatpush1.bf16.msra.mxu0 0
    %2600 = vmatprep.subr.bf16.mxu0 0
    %2601 = vmatpush1.bf16.msra.mxu0 0
    %2602 = vmatprep.subr.bf16.mxu0 0
    %2603 = vmatpush1.bf16.msra.mxu0 0
    %2604 = vmatprep.subr.bf16.mxu0 0
    %2605 = vmatpush1.bf16.msra.mxu0 0
    %2606 = vmatprep.subr.bf16.mxu0 0
    %2607 = vmatpush1.bf16.msra.mxu0 0
    %2608 = vmatprep.subr.bf16.mxu0 0
    %2609 = vmatpush1.bf16.msra.mxu0 0
    %2610 = vmatprep.subr.bf16.mxu0 0
    %2611 = vmatpush1.bf16.msra.mxu0 0
    %2612 = vmatprep.subr.bf16.mxu0 0
    %2613 = vmatpush1.bf16.msra.mxu0 0
    %2614 = vmatprep.subr.bf16.mxu0 0
    %2615 = vmatpush1.bf16.msra.mxu0 0
    %2616 = vmatprep.subr.bf16.mxu0 0
    %2617 = vmatpush1.bf16.msra.mxu0 0
    %2618 = vmatprep.subr.bf16.mxu0 0
    %2619 = vmatpush1.bf16.msra.mxu0 0
    %2620 = vmatprep.subr.bf16.mxu0 0
    %2621 = vmatpush1.bf16.msra.mxu0 0
    %2622 = vmatprep.subr.bf16.mxu0 0
    %2623 = vmatpush1.bf16.msra.mxu0 0
    %2624 = vmatprep.mubr.bf16.mxu0 0
    %2625 = vmatmul.mubr.bf16.gmra.mrb[0].mxu0 %v2535
    %v2626 = vpop.f32.mrb[0].mxu0
    %v2627 = vadd.f32 0.0, %v2626
    %v2628 = vpop.f32.mrb[0].mxu0
    %v2629 = vadd.f32 0.0, %v2628
    %v2630 = vpop.f32.mrb[0].mxu0
    %v2631 = vadd.f32 0.0, %v2630
    %v2632 = vpop.f32.mrb[0].mxu0
    %v2633 = vadd.f32 0.0, %v2632
    %2634 = vdwg.mxu0
    %v2635 = vadd.f32 %v2451, %v2584
    %v2636 = vadd.f32 %v2452, %v2586
    %v2637 = vadd.f32 %v2453, %v2627
    %v2638 = vadd.f32 %v2454, %v2629
    %v2639 = vadd.f32 %v2455, %v2588
    %v2640 = vadd.f32 %v2456, %v2590
    %v2641 = vadd.f32 %v2457, %v2631
    %v2642 = vadd.f32 %v2458, %v2633
    %2643 = vrot.lane.b32.xlu0 %v1756, 8
    %v2644 = vpop.permute.xlu0 %2643
    %2645 = vrot.lane.b32.xlu0 %v1757, 8
    %v2646 = vpop.permute.xlu0 %2645
    %vm2647 = vcmask 64512
    %v2648 = vsel %vm2647, %v2644, %v2646
    %2649 = vrot.lane.b32.xlu0 %v1754, 16
    %v2650 = vpop.permute.xlu0 %2649
    %2651 = vrot.lane.b32.xlu0 %v1755, 16
    %v2652 = vpop.permute.xlu0 %2651
    %2653 = vrot.lane.b32.xlu0 %v1756, 16
    %v2654 = vpop.permute.xlu0 %2653
    %vm2655 = vcmask 130048
    %v2656 = vsel %vm2655, %v2650, %v2652
    %v2657 = vsel %vm2655, %v2652, %v2654
    %v2663 = vsel %vm1367, %v2648, %v2650
    %v2665 = vshrl.u32 %v2490, 16
    %v2666 = vpack.i.b16 %v2665, %v2665
    %v2668 = vlaneseq
    %v2669 = vshrl.u32 %v2668, 7
    %v2670 = vsub.s32 2, %v2669
    %v2671 = vrot.slane %v2666, %v2670
    %v2672 = vshrl.u32 %v2491, 16
    %v2673 = vpack.i.b16 %v2672, %v2672
    %v2675 = vlaneseq
    %v2676 = vshrl.u32 %v2675, 7
    %v2677 = vsub.s32 2, %v2676
    %v2678 = vrot.slane %v2673, %v2677
    %v2679 = vshrl.u32 %v2492, 16
    %v2680 = vpack.i.b16 %v2679, %v2679
    %v2682 = vlaneseq
    %v2683 = vshrl.u32 %v2682, 7
    %v2684 = vsub.s32 2, %v2683
    %v2685 = vrot.slane %v2680, %v2684
    %v2686 = vshrl.u32 %v2493, 16
    %v2687 = vpack.i.b16 %v2686, %v2686
    %v2689 = vlaneseq
    %v2690 = vshrl.u32 %v2689, 7
    %v2691 = vsub.s32 2, %v2690
    %v2692 = vrot.slane %v2687, %v2691
    %v2693 = vmul.bf16 %v2663, %v2671
    %v2694 = vmul.bf16 %v2656, %v2678
    %v2695 = vmul.bf16 %v2657, %v2685
    %v2696 = vmul.bf16 %v2654, %v2692
    %s2697 = scalar_lea.vmem %s5, 40
    %v2698 = vld [vmem:[%s2697] sm:$0xf]
    %v2699 = vld [vmem:[%s2697 + $0x4] sm:$0xf]
    %v2702 = vunpack.c.l.b16 %v2698
    %v2703 = vunpack.c.l.b16 %v2699
    %v2704 = vpack.c.b16 %v2703, %v2702
    %v2706 = vsel %vm1894, %v2704, 0
    %v2709 = vsel %vm1898, %v2693, 0
    %v2712 = vsel %vm1898, %v2694, 0
    %v2715 = vsel %vm1898, %v2695, 0
    %v2718 = vsel %vm1898, %v2696, 0
    %2720 = vmatprep.subr.bf16.mxu0 %v2712
    %2721 = vmatpush1.bf16.msra.mxu0 %v2709
    %2722 = vmatprep.subr.bf16.mxu0 0
    %2723 = vmatpush1.bf16.msra.mxu0 0
    %2724 = vmatprep.subr.bf16.mxu0 0
    %2725 = vmatpush1.bf16.msra.mxu0 0
    %2726 = vmatprep.subr.bf16.mxu0 0
    %2727 = vmatpush1.bf16.msra.mxu0 0
    %2728 = vmatprep.subr.bf16.mxu0 0
    %2729 = vmatpush1.bf16.msra.mxu0 0
    %2730 = vmatprep.subr.bf16.mxu0 0
    %2731 = vmatpush1.bf16.msra.mxu0 0
    %2732 = vmatprep.subr.bf16.mxu0 0
    %2733 = vmatpush1.bf16.msra.mxu0 0
    %2734 = vmatprep.subr.bf16.mxu0 0
    %2735 = vmatpush1.bf16.msra.mxu0 0
    %2736 = vmatprep.subr.bf16.mxu0 0
    %2737 = vmatpush1.bf16.msra.mxu0 0
    %2738 = vmatprep.subr.bf16.mxu0 0
    %2739 = vmatpush1.bf16.msra.mxu0 0
    %2740 = vmatprep.subr.bf16.mxu0 0
    %2741 = vmatpush1.bf16.msra.mxu0 0
    %2742 = vmatprep.subr.bf16.mxu0 0
    %2743 = vmatpush1.bf16.msra.mxu0 0
    %2744 = vmatprep.subr.bf16.mxu0 0
    %2745 = vmatpush1.bf16.msra.mxu0 0
    %2746 = vmatprep.subr.bf16.mxu0 0
    %2747 = vmatpush1.bf16.msra.mxu0 0
    %2748 = vmatprep.subr.bf16.mxu0 0
    %2749 = vmatpush1.bf16.msra.mxu0 0
    %2750 = vmatprep.subr.bf16.mxu0 0
    %2751 = vmatpush1.bf16.msra.mxu0 0
    %2752 = vmatprep.mubr.bf16.mxu0 0
    %2753 = vmatmul.mubr.bf16.gmra.mrb[0].mxu0 %v2706
    %v2754 = vpop.f32.mrb[0].mxu0
    %v2755 = vadd.f32 0.0, %v2754
    %v2756 = vpop.f32.mrb[0].mxu0
    %v2757 = vadd.f32 0.0, %v2756
    %v2758 = vpop.f32.mrb[0].mxu0
    %v2759 = vadd.f32 0.0, %v2758
    %v2760 = vpop.f32.mrb[0].mxu0
    %v2761 = vadd.f32 0.0, %v2760
    %2762 = vdwg.mxu0
    %2763 = vmatprep.subr.bf16.mxu0 %v2718
    %2764 = vmatpush1.bf16.msra.mxu0 %v2715
    %2765 = vmatprep.subr.bf16.mxu0 0
    %2766 = vmatpush1.bf16.msra.mxu0 0
    %2767 = vmatprep.subr.bf16.mxu0 0
    %2768 = vmatpush1.bf16.msra.mxu0 0
    %2769 = vmatprep.subr.bf16.mxu0 0
    %2770 = vmatpush1.bf16.msra.mxu0 0
    %2771 = vmatprep.subr.bf16.mxu0 0
    %2772 = vmatpush1.bf16.msra.mxu0 0
    %2773 = vmatprep.subr.bf16.mxu0 0
    %2774 = vmatpush1.bf16.msra.mxu0 0
    %2775 = vmatprep.subr.bf16.mxu0 0
    %2776 = vmatpush1.bf16.msra.mxu0 0
    %2777 = vmatprep.subr.bf16.mxu0 0
    %2778 = vmatpush1.bf16.msra.mxu0 0
    %2779 = vmatprep.subr.bf16.mxu0 0
    %2780 = vmatpush1.bf16.msra.mxu0 0
    %2781 = vmatprep.subr.bf16.mxu0 0
    %2782 = vmatpush1.bf16.msra.mxu0 0
    %2783 = vmatprep.subr.bf16.mxu0 0
    %2784 = vmatpush1.bf16.msra.mxu0 0
    %2785 = vmatprep.subr.bf16.mxu0 0
    %2786 = vmatpush1.bf16.msra.mxu0 0
    %2787 = vmatprep.subr.bf16.mxu0 0
    %2788 = vmatpush1.bf16.msra.mxu0 0
    %2789 = vmatprep.subr.bf16.mxu0 0
    %2790 = vmatpush1.bf16.msra.mxu0 0
    %2791 = vmatprep.subr.bf16.mxu0 0
    %2792 = vmatpush1.bf16.msra.mxu0 0
    %2793 = vmatprep.subr.bf16.mxu0 0
    %2794 = vmatpush1.bf16.msra.mxu0 0
    %2795 = vmatprep.mubr.bf16.mxu0 0
    %2796 = vmatmul.mubr.bf16.gmra.mrb[0].mxu0 %v2706
    %v2797 = vpop.f32.mrb[0].mxu0
    %v2798 = vadd.f32 0.0, %v2797
    %v2799 = vpop.f32.mrb[0].mxu0
    %v2800 = vadd.f32 0.0, %v2799
    %v2801 = vpop.f32.mrb[0].mxu0
    %v2802 = vadd.f32 0.0, %v2801
    %v2803 = vpop.f32.mrb[0].mxu0
    %v2804 = vadd.f32 0.0, %v2803
    %2805 = vdwg.mxu0
    %v2806 = vadd.f32 %v2635, %v2755
    %v2807 = vadd.f32 %v2636, %v2757
    %v2808 = vadd.f32 %v2637, %v2798
    %v2809 = vadd.f32 %v2638, %v2800
    %v2810 = vadd.f32 %v2639, %v2759
    %v2811 = vadd.f32 %v2640, %v2761
    %v2812 = vadd.f32 %v2641, %v2802
    %v2813 = vadd.f32 %v2642, %v2804
    %2814 = vrot.lane.b32.xlu0 %v1756, 7
    %v2815 = vpop.permute.xlu0 %2814
    %2816 = vrot.lane.b32.xlu0 %v1757, 7
    %v2817 = vpop.permute.xlu0 %2816
    %vm2818 = vcmask 56320
    %v2819 = vsel %vm2818, %v2815, %v2817
    %2820 = vrot.lane.b32.xlu0 %v1754, 15
    %v2821 = vpop.permute.xlu0 %2820
    %2822 = vrot.lane.b32.xlu0 %v1755, 15
    %v2823 = vpop.permute.xlu0 %2822
    %2824 = vrot.lane.b32.xlu0 %v1756, 15
    %v2825 = vpop.permute.xlu0 %2824
    %vm2826 = vcmask 121856
    %v2827 = vsel %vm2826, %v2821, %v2823
    %v2828 = vsel %vm2826, %v2823, %v2825
    %vm2832 = vcmask 121856
    %v2835 = vsel %vm2832, %v2819, %v2821
    %v2837 = vld [vmem:[%s4] sm:$0x88]
    %v2838 = vld [vmem:[%s4 + $0x8] sm:$0x88]
    %v2841 = vunpack.c.l.b16 %v2837
    %v2842 = vunpack.c.h.b16 %v2837
    %v2843 = vunpack.c.l.b16 %v2838
    %v2844 = vunpack.c.h.b16 %v2838
    %v2845 = vpack.c.b16 %v2841, %v2841
    %v2846 = vpack.c.b16 %v2842, %v2842
    %v2847 = vpack.c.b16 %v2843, %v2843
    %v2848 = vpack.c.b16 %v2844, %v2844
    %v2850 = vpack.i.b16 %v2845, %v2845
    %v2852 = vlaneseq
    %v2853 = vshrl.u32 %v2852, 7
    %v2854 = vsub.s32 3, %v2853
    %v2855 = vrot.slane %v2850, %v2854
    %v2857 = vpack.i.b16 %v2846, %v2846
    %v2859 = vlaneseq
    %v2860 = vshrl.u32 %v2859, 7
    %v2861 = vsub.s32 3, %v2860
    %v2862 = vrot.slane %v2857, %v2861
    %v2864 = vpack.i.b16 %v2847, %v2847
    %v2866 = vlaneseq
    %v2867 = vshrl.u32 %v2866, 7
    %v2868 = vsub.s32 3, %v2867
    %v2869 = vrot.slane %v2864, %v2868
    %v2871 = vpack.i.b16 %v2848, %v2848
    %v2873 = vlaneseq
    %v2874 = vshrl.u32 %v2873, 7
    %v2875 = vsub.s32 3, %v2874
    %v2876 = vrot.slane %v2871, %v2875
    %v2877 = vmul.bf16 %v2835, %v2855
    %v2878 = vmul.bf16 %v2827, %v2862
    %v2879 = vmul.bf16 %v2828, %v2869
    %v2880 = vmul.bf16 %v2825, %v2876
    %s2881 = scalar_lea.vmem %s5, 48
    %v2882 = vld [vmem:[%s2881] sm:$0xf]
    %v2883 = vld [vmem:[%s2881 + $0x4] sm:$0xf]
    %v2886 = vunpack.c.l.b16 %v2882
    %v2887 = vunpack.c.l.b16 %v2883
    %v2888 = vpack.c.b16 %v2887, %v2886
    %v2890 = vsel %vm1894, %v2888, 0
    %v2893 = vsel %vm1898, %v2877, 0
    %v2896 = vsel %vm1898, %v2878, 0
    %v2899 = vsel %vm1898, %v2879, 0
    %v2902 = vsel %vm1898, %v2880, 0
    %2904 = vmatprep.subr.bf16.mxu0 %v2896
    %2905 = vmatpush1.bf16.msra.mxu0 %v2893
    %2906 = vmatprep.subr.bf16.mxu0 0
    %2907 = vmatpush1.bf16.msra.mxu0 0
    %2908 = vmatprep.subr.bf16.mxu0 0
    %2909 = vmatpush1.bf16.msra.mxu0 0
    %2910 = vmatprep.subr.bf16.mxu0 0
    %2911 = vmatpush1.bf16.msra.mxu0 0
    %2912 = vmatprep.subr.bf16.mxu0 0
    %2913 = vmatpush1.bf16.msra.mxu0 0
    %2914 = vmatprep.subr.bf16.mxu0 0
    %2915 = vmatpush1.bf16.msra.mxu0 0
    %2916 = vmatprep.subr.bf16.mxu0 0
    %2917 = vmatpush1.bf16.msra.mxu0 0
    %2918 = vmatprep.subr.bf16.mxu0 0
    %2919 = vmatpush1.bf16.msra.mxu0 0
    %2920 = vmatprep.subr.bf16.mxu0 0
    %2921 = vmatpush1.bf16.msra.mxu0 0
    %2922 = vmatprep.subr.bf16.mxu0 0
    %2923 = vmatpush1.bf16.msra.mxu0 0
    %2924 = vmatprep.subr.bf16.mxu0 0
    %2925 = vmatpush1.bf16.msra.mxu0 0
    %2926 = vmatprep.subr.bf16.mxu0 0
    %2927 = vmatpush1.bf16.msra.mxu0 0
    %2928 = vmatprep.subr.bf16.mxu0 0
    %2929 = vmatpush1.bf16.msra.mxu0 0
    %2930 = vmatprep.subr.bf16.mxu0 0
    %2931 = vmatpush1.bf16.msra.mxu0 0
    %2932 = vmatprep.subr.bf16.mxu0 0
    %2933 = vmatpush1.bf16.msra.mxu0 0
    %2934 = vmatprep.subr.bf16.mxu0 0
    %2935 = vmatpush1.bf16.msra.mxu0 0
    %2936 = vmatprep.mubr.bf16.mxu0 0
    %2937 = vmatmul.mubr.bf16.gmra.mrb[0].mxu0 %v2890
    %v2938 = vpop.f32.mrb[0].mxu0
    %v2939 = vadd.f32 0.0, %v2938
    %v2940 = vpop.f32.mrb[0].mxu0
    %v2941 = vadd.f32 0.0, %v2940
    %v2942 = vpop.f32.mrb[0].mxu0
    %v2943 = vadd.f32 0.0, %v2942
    %v2944 = vpop.f32.mrb[0].mxu0
    %v2945 = vadd.f32 0.0, %v2944
    %2946 = vdwg.mxu0
    %2947 = vmatprep.subr.bf16.mxu0 %v2902
    %2948 = vmatpush1.bf16.msra.mxu0 %v2899
    %2949 = vmatprep.subr.bf16.mxu0 0
    %2950 = vmatpush1.bf16.msra.mxu0 0
    %2951 = vmatprep.subr.bf16.mxu0 0
    %2952 = vmatpush1.bf16.msra.mxu0 0
    %2953 = vmatprep.subr.bf16.mxu0 0
    %2954 = vmatpush1.bf16.msra.mxu0 0
    %2955 = vmatprep.subr.bf16.mxu0 0
    %2956 = vmatpush1.bf16.msra.mxu0 0
    %2957 = vmatprep.subr.bf16.mxu0 0
    %2958 = vmatpush1.bf16.msra.mxu0 0
    %2959 = vmatprep.subr.bf16.mxu0 0
    %2960 = vmatpush1.bf16.msra.mxu0 0
    %2961 = vmatprep.subr.bf16.mxu0 0
    %2962 = vmatpush1.bf16.msra.mxu0 0
    %2963 = vmatprep.subr.bf16.mxu0 0
    %2964 = vmatpush1.bf16.msra.mxu0 0
    %2965 = vmatprep.subr.bf16.mxu0 0
    %2966 = vmatpush1.bf16.msra.mxu0 0
    %2967 = vmatprep.subr.bf16.mxu0 0
    %2968 = vmatpush1.bf16.msra.mxu0 0
    %2969 = vmatprep.subr.bf16.mxu0 0
    %2970 = vmatpush1.bf16.msra.mxu0 0
    %2971 = vmatprep.subr.bf16.mxu0 0
    %2972 = vmatpush1.bf16.msra.mxu0 0
    %2973 = vmatprep.subr.bf16.mxu0 0
    %2974 = vmatpush1.bf16.msra.mxu0 0
    %2975 = vmatprep.subr.bf16.mxu0 0
    %2976 = vmatpush1.bf16.msra.mxu0 0
    %2977 = vmatprep.subr.bf16.mxu0 0
    %2978 = vmatpush1.bf16.msra.mxu0 0
    %2979 = vmatprep.mubr.bf16.mxu0 0
    %2980 = vmatmul.mubr.bf16.gmra.mrb[0].mxu0 %v2890
    %v2981 = vpop.f32.mrb[0].mxu0
    %v2982 = vadd.f32 0.0, %v2981
    %v2983 = vpop.f32.mrb[0].mxu0
    %v2984 = vadd.f32 0.0, %v2983
    %v2985 = vpop.f32.mrb[0].mxu0
    %v2986 = vadd.f32 0.0, %v2985
    %v2987 = vpop.f32.mrb[0].mxu0
    %v2988 = vadd.f32 0.0, %v2987
    %2989 = vdwg.mxu0
    %v2990 = vadd.f32 %v2806, %v2939
    %v2991 = vadd.f32 %v2807, %v2941
    %v2992 = vadd.f32 %v2808, %v2982
    %v2993 = vadd.f32 %v2809, %v2984
    %v2994 = vadd.f32 %v2810, %v2943
    %v2995 = vadd.f32 %v2811, %v2945
    %v2996 = vadd.f32 %v2812, %v2986
    %v2997 = vadd.f32 %v2813, %v2988
    %2998 = vrot.lane.b32.xlu0 %v1756, 6
    %v2999 = vpop.permute.xlu0 %2998
    %3000 = vrot.lane.b32.xlu0 %v1757, 6
    %v3001 = vpop.permute.xlu0 %3000
    %vm3002 = vcmask 48128
    %v3003 = vsel %vm3002, %v2999, %v3001
    %3004 = vrot.lane.b32.xlu0 %v1754, 14
    %v3005 = vpop.permute.xlu0 %3004
    %3006 = vrot.lane.b32.xlu0 %v1755, 14
    %v3007 = vpop.permute.xlu0 %3006
    %3008 = vrot.lane.b32.xlu0 %v1756, 14
    %v3009 = vpop.permute.xlu0 %3008
    %vm3010 = vcmask 113664
    %v3011 = vsel %vm3010, %v3005, %v3007
    %v3012 = vsel %vm3010, %v3007, %v3009
    %vm3016 = vcmask 113664
    %v3019 = vsel %vm3016, %v3003, %v3005
    %v3021 = vshrl.u32 %v2845, 16
    %v3022 = vpack.i.b16 %v3021, %v3021
    %v3024 = vlaneseq
    %v3025 = vshrl.u32 %v3024, 7
    %v3026 = vsub.s32 3, %v3025
    %v3027 = vrot.slane %v3022, %v3026
    %v3028 = vshrl.u32 %v2846, 16
    %v3029 = vpack.i.b16 %v3028, %v3028
    %v3031 = vlaneseq
    %v3032 = vshrl.u32 %v3031, 7
    %v3033 = vsub.s32 3, %v3032
    %v3034 = vrot.slane %v3029, %v3033
    %v3035 = vshrl.u32 %v2847, 16
    %v3036 = vpack.i.b16 %v3035, %v3035
    %v3038 = vlaneseq
    %v3039 = vshrl.u32 %v3038, 7
    %v3040 = vsub.s32 3, %v3039
    %v3041 = vrot.slane %v3036, %v3040
    %v3042 = vshrl.u32 %v2848, 16
    %v3043 = vpack.i.b16 %v3042, %v3042
    %v3045 = vlaneseq
    %v3046 = vshrl.u32 %v3045, 7
    %v3047 = vsub.s32 3, %v3046
    %v3048 = vrot.slane %v3043, %v3047
    %v3049 = vmul.bf16 %v3019, %v3027
    %v3050 = vmul.bf16 %v3011, %v3034
    %v3051 = vmul.bf16 %v3012, %v3041
    %v3052 = vmul.bf16 %v3009, %v3048
    %s3053 = scalar_lea.vmem %s5, 56
    %v3054 = vld [vmem:[%s3053] sm:$0xf]
    %v3055 = vld [vmem:[%s3053 + $0x4] sm:$0xf]
    %v3058 = vunpack.c.l.b16 %v3054
    %v3059 = vunpack.c.l.b16 %v3055
    %v3060 = vpack.c.b16 %v3059, %v3058
    %v3062 = vsel %vm1894, %v3060, 0
    %v3065 = vsel %vm1898, %v3049, 0
    %v3068 = vsel %vm1898, %v3050, 0
    %v3071 = vsel %vm1898, %v3051, 0
    %v3074 = vsel %vm1898, %v3052, 0
    %3076 = vmatprep.subr.bf16.mxu0 %v3068
    %3077 = vmatpush1.bf16.msra.mxu0 %v3065
    %3078 = vmatprep.subr.bf16.mxu0 0
    %3079 = vmatpush1.bf16.msra.mxu0 0
    %3080 = vmatprep.subr.bf16.mxu0 0
    %3081 = vmatpush1.bf16.msra.mxu0 0
    %3082 = vmatprep.subr.bf16.mxu0 0
    %3083 = vmatpush1.bf16.msra.mxu0 0
    %3084 = vmatprep.subr.bf16.mxu0 0
    %3085 = vmatpush1.bf16.msra.mxu0 0
    %3086 = vmatprep.subr.bf16.mxu0 0
    %3087 = vmatpush1.bf16.msra.mxu0 0
    %3088 = vmatprep.subr.bf16.mxu0 0
    %3089 = vmatpush1.bf16.msra.mxu0 0
    %3090 = vmatprep.subr.bf16.mxu0 0
    %3091 = vmatpush1.bf16.msra.mxu0 0
    %3092 = vmatprep.subr.bf16.mxu0 0
    %3093 = vmatpush1.bf16.msra.mxu0 0
    %3094 = vmatprep.subr.bf16.mxu0 0
    %3095 = vmatpush1.bf16.msra.mxu0 0
    %3096 = vmatprep.subr.bf16.mxu0 0
    %3097 = vmatpush1.bf16.msra.mxu0 0
    %3098 = vmatprep.subr.bf16.mxu0 0
    %3099 = vmatpush1.bf16.msra.mxu0 0
    %3100 = vmatprep.subr.bf16.mxu0 0
    %3101 = vmatpush1.bf16.msra.mxu0 0
    %3102 = vmatprep.subr.bf16.mxu0 0
    %3103 = vmatpush1.bf16.msra.mxu0 0
    %3104 = vmatprep.subr.bf16.mxu0 0
    %3105 = vmatpush1.bf16.msra.mxu0 0
    %3106 = vmatprep.subr.bf16.mxu0 0
    %3107 = vmatpush1.bf16.msra.mxu0 0
    %3108 = vmatprep.mubr.bf16.mxu0 0
    %3109 = vmatmul.mubr.bf16.gmra.mrb[0].mxu0 %v3062
    %v3110 = vpop.f32.mrb[0].mxu0
    %v3111 = vadd.f32 0.0, %v3110
    %v3112 = vpop.f32.mrb[0].mxu0
    %v3113 = vadd.f32 0.0, %v3112
    %v3114 = vpop.f32.mrb[0].mxu0
    %v3115 = vadd.f32 0.0, %v3114
    %v3116 = vpop.f32.mrb[0].mxu0
    %v3117 = vadd.f32 0.0, %v3116
    %3118 = vdwg.mxu0
    %3119 = vmatprep.subr.bf16.mxu0 %v3074
    %3120 = vmatpush1.bf16.msra.mxu0 %v3071
    %3121 = vmatprep.subr.bf16.mxu0 0
    %3122 = vmatpush1.bf16.msra.mxu0 0
    %3123 = vmatprep.subr.bf16.mxu0 0
    %3124 = vmatpush1.bf16.msra.mxu0 0
    %3125 = vmatprep.subr.bf16.mxu0 0
    %3126 = vmatpush1.bf16.msra.mxu0 0
    %3127 = vmatprep.subr.bf16.mxu0 0
    %3128 = vmatpush1.bf16.msra.mxu0 0
    %3129 = vmatprep.subr.bf16.mxu0 0
    %3130 = vmatpush1.bf16.msra.mxu0 0
    %3131 = vmatprep.subr.bf16.mxu0 0
    %3132 = vmatpush1.bf16.msra.mxu0 0
    %3133 = vmatprep.subr.bf16.mxu0 0
    %3134 = vmatpush1.bf16.msra.mxu0 0
    %3135 = vmatprep.subr.bf16.mxu0 0
    %3136 = vmatpush1.bf16.msra.mxu0 0
    %3137 = vmatprep.subr.bf16.mxu0 0
    %3138 = vmatpush1.bf16.msra.mxu0 0
    %3139 = vmatprep.subr.bf16.mxu0 0
    %3140 = vmatpush1.bf16.msra.mxu0 0
    %3141 = vmatprep.subr.bf16.mxu0 0
    %3142 = vmatpush1.bf16.msra.mxu0 0
    %3143 = vmatprep.subr.bf16.mxu0 0
    %3144 = vmatpush1.bf16.msra.mxu0 0
    %3145 = vmatprep.subr.bf16.mxu0 0
    %3146 = vmatpush1.bf16.msra.mxu0 0
    %3147 = vmatprep.subr.bf16.mxu0 0
    %3148 = vmatpush1.bf16.msra.mxu0 0
    %3149 = vmatprep.subr.bf16.mxu0 0
    %3150 = vmatpush1.bf16.msra.mxu0 0
    %3151 = vmatprep.mubr.bf16.mxu0 0
    %3152 = vmatmul.mubr.bf16.gmra.mrb[0].mxu0 %v3062
    %v3153 = vpop.f32.mrb[0].mxu0
    %v3154 = vadd.f32 0.0, %v3153
    %v3155 = vpop.f32.mrb[0].mxu0
    %v3156 = vadd.f32 0.0, %v3155
    %v3157 = vpop.f32.mrb[0].mxu0
    %v3158 = vadd.f32 0.0, %v3157
    %v3159 = vpop.f32.mrb[0].mxu0
    %v3160 = vadd.f32 0.0, %v3159
    %3161 = vdwg.mxu0
    %v3162 = vadd.f32 %v2990, %v3111
    %v3163 = vadd.f32 %v2991, %v3113
    %v3164 = vadd.f32 %v2992, %v3154
    %v3165 = vadd.f32 %v2993, %v3156
    %v3166 = vadd.f32 %v2994, %v3115
    %v3167 = vadd.f32 %v2995, %v3117
    %v3168 = vadd.f32 %v2996, %v3158
    %v3169 = vadd.f32 %v2997, %v3160
    %3170 = vrot.lane.b32.xlu0 %v1756, 5
    %v3171 = vpop.permute.xlu0 %3170
    %3172 = vrot.lane.b32.xlu0 %v1757, 5
    %v3173 = vpop.permute.xlu0 %3172
    %vm3174 = vcmask 39936
    %v3175 = vsel %vm3174, %v3171, %v3173
    %3176 = vrot.lane.b32.xlu0 %v1754, 13
    %v3177 = vpop.permute.xlu0 %3176
    %3178 = vrot.lane.b32.xlu0 %v1755, 13
    %v3179 = vpop.permute.xlu0 %3178
    %3180 = vrot.lane.b32.xlu0 %v1756, 13
    %v3181 = vpop.permute.xlu0 %3180
    %vm3182 = vcmask 105472
    %v3183 = vsel %vm3182, %v3177, %v3179
    %v3184 = vsel %vm3182, %v3179, %v3181
    %vm3188 = vcmask 105472
    %v3191 = vsel %vm3188, %v3175, %v3177
    %v3193 = vld [vmem:[%s4 + $0x10] sm:$0x11]
    %v3194 = vld [vmem:[%s4 + $0x18] sm:$0x11]
    %v3197 = vunpack.c.l.b16 %v3193
    %v3198 = vunpack.c.h.b16 %v3193
    %v3199 = vunpack.c.l.b16 %v3194
    %v3200 = vunpack.c.h.b16 %v3194
    %v3201 = vpack.c.b16 %v3197, %v3197
    %v3202 = vpack.c.b16 %v3198, %v3198
    %v3203 = vpack.c.b16 %v3199, %v3199
    %v3204 = vpack.c.b16 %v3200, %v3200
    %v3206 = vpack.i.b16 %v3201, %v3201
    %v3208 = vlaneseq
    %v3209 = vshrl.u32 %v3208, 7
    %v3210 = vsub.s32 0, %v3209
    %v3211 = vrot.slane %v3206, %v3210
    %v3213 = vpack.i.b16 %v3202, %v3202
    %v3215 = vlaneseq
    %v3216 = vshrl.u32 %v3215, 7
    %v3217 = vsub.s32 0, %v3216
    %v3218 = vrot.slane %v3213, %v3217
    %v3220 = vpack.i.b16 %v3203, %v3203
    %v3222 = vlaneseq
    %v3223 = vshrl.u32 %v3222, 7
    %v3224 = vsub.s32 0, %v3223
    %v3225 = vrot.slane %v3220, %v3224
    %v3227 = vpack.i.b16 %v3204, %v3204
    %v3229 = vlaneseq
    %v3230 = vshrl.u32 %v3229, 7
    %v3231 = vsub.s32 0, %v3230
    %v3232 = vrot.slane %v3227, %v3231
    %v3233 = vmul.bf16 %v3191, %v3211
    %v3234 = vmul.bf16 %v3183, %v3218
    %v3235 = vmul.bf16 %v3184, %v3225
    %v3236 = vmul.bf16 %v3181, %v3232
    %s3237 = scalar_lea.vmem %s5, 64
    %v3238 = vld [vmem:[%s3237] sm:$0xf]
    %v3239 = vld [vmem:[%s3237 + $0x4] sm:$0xf]
    %v3242 = vunpack.c.l.b16 %v3238
    %v3243 = vunpack.c.l.b16 %v3239
    %v3244 = vpack.c.b16 %v3243, %v3242
    %v3246 = vsel %vm1894, %v3244, 0
    %v3249 = vsel %vm1898, %v3233, 0
    %v3252 = vsel %vm1898, %v3234, 0
    %v3255 = vsel %vm1898, %v3235, 0
    %v3258 = vsel %vm1898, %v3236, 0
    %3260 = vmatprep.subr.bf16.mxu0 %v3252
    %3261 = vmatpush1.bf16.msra.mxu0 %v3249
    %3262 = vmatprep.subr.bf16.mxu0 0
    %3263 = vmatpush1.bf16.msra.mxu0 0
    %3264 = vmatprep.subr.bf16.mxu0 0
    %3265 = vmatpush1.bf16.msra.mxu0 0
    %3266 = vmatprep.subr.bf16.mxu0 0
    %3267 = vmatpush1.bf16.msra.mxu0 0
    %3268 = vmatprep.subr.bf16.mxu0 0
    %3269 = vmatpush1.bf16.msra.mxu0 0
    %3270 = vmatprep.subr.bf16.mxu0 0
    %3271 = vmatpush1.bf16.msra.mxu0 0
    %3272 = vmatprep.subr.bf16.mxu0 0
    %3273 = vmatpush1.bf16.msra.mxu0 0
    %3274 = vmatprep.subr.bf16.mxu0 0
    %3275 = vmatpush1.bf16.msra.mxu0 0
    %3276 = vmatprep.subr.bf16.mxu0 0
    %3277 = vmatpush1.bf16.msra.mxu0 0
    %3278 = vmatprep.subr.bf16.mxu0 0
    %3279 = vmatpush1.bf16.msra.mxu0 0
    %3280 = vmatprep.subr.bf16.mxu0 0
    %3281 = vmatpush1.bf16.msra.mxu0 0
    %3282 = vmatprep.subr.bf16.mxu0 0
    %3283 = vmatpush1.bf16.msra.mxu0 0
    %3284 = vmatprep.subr.bf16.mxu0 0
    %3285 = vmatpush1.bf16.msra.mxu0 0
    %3286 = vmatprep.subr.bf16.mxu0 0
    %3287 = vmatpush1.bf16.msra.mxu0 0
    %3288 = vmatprep.subr.bf16.mxu0 0
    %3289 = vmatpush1.bf16.msra.mxu0 0
    %3290 = vmatprep.subr.bf16.mxu0 0
    %3291 = vmatpush1.bf16.msra.mxu0 0
    %3292 = vmatprep.mubr.bf16.mxu0 0
    %3293 = vmatmul.mubr.bf16.gmra.mrb[0].mxu0 %v3246
    %v3294 = vpop.f32.mrb[0].mxu0
    %v3295 = vadd.f32 0.0, %v3294
    %v3296 = vpop.f32.mrb[0].mxu0
    %v3297 = vadd.f32 0.0, %v3296
    %v3298 = vpop.f32.mrb[0].mxu0
    %v3299 = vadd.f32 0.0, %v3298
    %v3300 = vpop.f32.mrb[0].mxu0
    %v3301 = vadd.f32 0.0, %v3300
    %3302 = vdwg.mxu0
    %3303 = vmatprep.subr.bf16.mxu0 %v3258
    %3304 = vmatpush1.bf16.msra.mxu0 %v3255
    %3305 = vmatprep.subr.bf16.mxu0 0
    %3306 = vmatpush1.bf16.msra.mxu0 0
    %3307 = vmatprep.subr.bf16.mxu0 0
    %3308 = vmatpush1.bf16.msra.mxu0 0
    %3309 = vmatprep.subr.bf16.mxu0 0
    %3310 = vmatpush1.bf16.msra.mxu0 0
    %3311 = vmatprep.subr.bf16.mxu0 0
    %3312 = vmatpush1.bf16.msra.mxu0 0
    %3313 = vmatprep.subr.bf16.mxu0 0
    %3314 = vmatpush1.bf16.msra.mxu0 0
    %3315 = vmatprep.subr.bf16.mxu0 0
    %3316 = vmatpush1.bf16.msra.mxu0 0
    %3317 = vmatprep.subr.bf16.mxu0 0
    %3318 = vmatpush1.bf16.msra.mxu0 0
    %3319 = vmatprep.subr.bf16.mxu0 0
    %3320 = vmatpush1.bf16.msra.mxu0 0
    %3321 = vmatprep.subr.bf16.mxu0 0
    %3322 = vmatpush1.bf16.msra.mxu0 0
    %3323 = vmatprep.subr.bf16.mxu0 0
    %3324 = vmatpush1.bf16.msra.mxu0 0
    %3325 = vmatprep.subr.bf16.mxu0 0
    %3326 = vmatpush1.bf16.msra.mxu0 0
    %3327 = vmatprep.subr.bf16.mxu0 0
    %3328 = vmatpush1.bf16.msra.mxu0 0
    %3329 = vmatprep.subr.bf16.mxu0 0
    %3330 = vmatpush1.bf16.msra.mxu0 0
    %3331 = vmatprep.subr.bf16.mxu0 0
    %3332 = vmatpush1.bf16.msra.mxu0 0
    %3333 = vmatprep.subr.bf16.mxu0 0
    %3334 = vmatpush1.bf16.msra.mxu0 0
    %3335 = vmatprep.mubr.bf16.mxu0 0
    %3336 = vmatmul.mubr.bf16.gmra.mrb[0].mxu0 %v3246
    %v3337 = vpop.f32.mrb[0].mxu0
    %v3338 = vadd.f32 0.0, %v3337
    %v3339 = vpop.f32.mrb[0].mxu0
    %v3340 = vadd.f32 0.0, %v3339
    %v3341 = vpop.f32.mrb[0].mxu0
    %v3342 = vadd.f32 0.0, %v3341
    %v3343 = vpop.f32.mrb[0].mxu0
    %v3344 = vadd.f32 0.0, %v3343
    %3345 = vdwg.mxu0
    %v3346 = vadd.f32 %v3162, %v3295
    %v3347 = vadd.f32 %v3163, %v3297
    %v3348 = vadd.f32 %v3164, %v3338
    %v3349 = vadd.f32 %v3165, %v3340
    %v3350 = vadd.f32 %v3166, %v3299
    %v3351 = vadd.f32 %v3167, %v3301
    %v3352 = vadd.f32 %v3168, %v3342
    %v3353 = vadd.f32 %v3169, %v3344
    %3354 = vrot.lane.b32.xlu0 %v1756, 4
    %v3355 = vpop.permute.xlu0 %3354
    %3356 = vrot.lane.b32.xlu0 %v1757, 4
    %v3357 = vpop.permute.xlu0 %3356
    %vm3358 = vcmask 31744
    %v3359 = vsel %vm3358, %v3355, %v3357
    %3360 = vrot.lane.b32.xlu0 %v1754, 12
    %v3361 = vpop.permute.xlu0 %3360
    %3362 = vrot.lane.b32.xlu0 %v1755, 12
    %v3363 = vpop.permute.xlu0 %3362
    %3364 = vrot.lane.b32.xlu0 %v1756, 12
    %v3365 = vpop.permute.xlu0 %3364
    %vm3366 = vcmask 97280
    %v3367 = vsel %vm3366, %v3361, %v3363
    %v3368 = vsel %vm3366, %v3363, %v3365
    %vm3372 = vcmask 97280
    %v3375 = vsel %vm3372, %v3359, %v3361
    %v3377 = vshrl.u32 %v3201, 16
    %v3378 = vpack.i.b16 %v3377, %v3377
    %v3380 = vlaneseq
    %v3381 = vshrl.u32 %v3380, 7
    %v3382 = vsub.s32 0, %v3381
    %v3383 = vrot.slane %v3378, %v3382
    %v3384 = vshrl.u32 %v3202, 16
    %v3385 = vpack.i.b16 %v3384, %v3384
    %v3387 = vlaneseq
    %v3388 = vshrl.u32 %v3387, 7
    %v3389 = vsub.s32 0, %v3388
    %v3390 = vrot.slane %v3385, %v3389
    %v3391 = vshrl.u32 %v3203, 16
    %v3392 = vpack.i.b16 %v3391, %v3391
    %v3394 = vlaneseq
    %v3395 = vshrl.u32 %v3394, 7
    %v3396 = vsub.s32 0, %v3395
    %v3397 = vrot.slane %v3392, %v3396
    %v3398 = vshrl.u32 %v3204, 16
    %v3399 = vpack.i.b16 %v3398, %v3398
    %v3401 = vlaneseq
    %v3402 = vshrl.u32 %v3401, 7
    %v3403 = vsub.s32 0, %v3402
    %v3404 = vrot.slane %v3399, %v3403
    %v3405 = vmul.bf16 %v3375, %v3383
    %v3406 = vmul.bf16 %v3367, %v3390
    %v3407 = vmul.bf16 %v3368, %v3397
    %v3408 = vmul.bf16 %v3365, %v3404
    %s3409 = scalar_lea.vmem %s5, 72
    %v3410 = vld [vmem:[%s3409] sm:$0xf]
    %v3411 = vld [vmem:[%s3409 + $0x4] sm:$0xf]
    %v3414 = vunpack.c.l.b16 %v3410
    %v3415 = vunpack.c.l.b16 %v3411
    %v3416 = vpack.c.b16 %v3415, %v3414
    %v3418 = vsel %vm1894, %v3416, 0
    %v3421 = vsel %vm1898, %v3405, 0
    %v3424 = vsel %vm1898, %v3406, 0
    %v3427 = vsel %vm1898, %v3407, 0
    %v3430 = vsel %vm1898, %v3408, 0
    %3432 = vmatprep.subr.bf16.mxu0 %v3424
    %3433 = vmatpush1.bf16.msra.mxu0 %v3421
    %3434 = vmatprep.subr.bf16.mxu0 0
    %3435 = vmatpush1.bf16.msra.mxu0 0
    %3436 = vmatprep.subr.bf16.mxu0 0
    %3437 = vmatpush1.bf16.msra.mxu0 0
    %3438 = vmatprep.subr.bf16.mxu0 0
    %3439 = vmatpush1.bf16.msra.mxu0 0
    %3440 = vmatprep.subr.bf16.mxu0 0
    %3441 = vmatpush1.bf16.msra.mxu0 0
    %3442 = vmatprep.subr.bf16.mxu0 0
    %3443 = vmatpush1.bf16.msra.mxu0 0
    %3444 = vmatprep.subr.bf16.mxu0 0
    %3445 = vmatpush1.bf16.msra.mxu0 0
    %3446 = vmatprep.subr.bf16.mxu0 0
    %3447 = vmatpush1.bf16.msra.mxu0 0
    %3448 = vmatprep.subr.bf16.mxu0 0
    %3449 = vmatpush1.bf16.msra.mxu0 0
    %3450 = vmatprep.subr.bf16.mxu0 0
    %3451 = vmatpush1.bf16.msra.mxu0 0
    %3452 = vmatprep.subr.bf16.mxu0 0
    %3453 = vmatpush1.bf16.msra.mxu0 0
    %3454 = vmatprep.subr.bf16.mxu0 0
    %3455 = vmatpush1.bf16.msra.mxu0 0
    %3456 = vmatprep.subr.bf16.mxu0 0
    %3457 = vmatpush1.bf16.msra.mxu0 0
    %3458 = vmatprep.subr.bf16.mxu0 0
    %3459 = vmatpush1.bf16.msra.mxu0 0
    %3460 = vmatprep.subr.bf16.mxu0 0
    %3461 = vmatpush1.bf16.msra.mxu0 0
    %3462 = vmatprep.subr.bf16.mxu0 0
    %3463 = vmatpush1.bf16.msra.mxu0 0
    %3464 = vmatprep.mubr.bf16.mxu0 0
    %3465 = vmatmul.mubr.bf16.gmra.mrb[0].mxu0 %v3418
    %v3466 = vpop.f32.mrb[0].mxu0
    %v3467 = vadd.f32 0.0, %v3466
    %v3468 = vpop.f32.mrb[0].mxu0
    %v3469 = vadd.f32 0.0, %v3468
    %v3470 = vpop.f32.mrb[0].mxu0
    %v3471 = vadd.f32 0.0, %v3470
    %v3472 = vpop.f32.mrb[0].mxu0
    %v3473 = vadd.f32 0.0, %v3472
    %3474 = vdwg.mxu0
    %3475 = vmatprep.subr.bf16.mxu0 %v3430
    %3476 = vmatpush1.bf16.msra.mxu0 %v3427
    %3477 = vmatprep.subr.bf16.mxu0 0
    %3478 = vmatpush1.bf16.msra.mxu0 0
    %3479 = vmatprep.subr.bf16.mxu0 0
    %3480 = vmatpush1.bf16.msra.mxu0 0
    %3481 = vmatprep.subr.bf16.mxu0 0
    %3482 = vmatpush1.bf16.msra.mxu0 0
    %3483 = vmatprep.subr.bf16.mxu0 0
    %3484 = vmatpush1.bf16.msra.mxu0 0
    %3485 = vmatprep.subr.bf16.mxu0 0
    %3486 = vmatpush1.bf16.msra.mxu0 0
    %3487 = vmatprep.subr.bf16.mxu0 0
    %3488 = vmatpush1.bf16.msra.mxu0 0
    %3489 = vmatprep.subr.bf16.mxu0 0
    %3490 = vmatpush1.bf16.msra.mxu0 0
    %3491 = vmatprep.subr.bf16.mxu0 0
    %3492 = vmatpush1.bf16.msra.mxu0 0
    %3493 = vmatprep.subr.bf16.mxu0 0
    %3494 = vmatpush1.bf16.msra.mxu0 0
    %3495 = vmatprep.subr.bf16.mxu0 0
    %3496 = vmatpush1.bf16.msra.mxu0 0
    %3497 = vmatprep.subr.bf16.mxu0 0
    %3498 = vmatpush1.bf16.msra.mxu0 0
    %3499 = vmatprep.subr.bf16.mxu0 0
    %3500 = vmatpush1.bf16.msra.mxu0 0
    %3501 = vmatprep.subr.bf16.mxu0 0
    %3502 = vmatpush1.bf16.msra.mxu0 0
    %3503 = vmatprep.subr.bf16.mxu0 0
    %3504 = vmatpush1.bf16.msra.mxu0 0
    %3505 = vmatprep.subr.bf16.mxu0 0
    %3506 = vmatpush1.bf16.msra.mxu0 0
    %3507 = vmatprep.mubr.bf16.mxu0 0
    %3508 = vmatmul.mubr.bf16.gmra.mrb[0].mxu0 %v3418
    %v3509 = vpop.f32.mrb[0].mxu0
    %v3510 = vadd.f32 0.0, %v3509
    %v3511 = vpop.f32.mrb[0].mxu0
    %v3512 = vadd.f32 0.0, %v3511
    %v3513 = vpop.f32.mrb[0].mxu0
    %v3514 = vadd.f32 0.0, %v3513
    %v3515 = vpop.f32.mrb[0].mxu0
    %v3516 = vadd.f32 0.0, %v3515
    %3517 = vdwg.mxu0
    %v3518 = vadd.f32 %v3346, %v3467
    %v3519 = vadd.f32 %v3347, %v3469
    %v3520 = vadd.f32 %v3348, %v3510
    %v3521 = vadd.f32 %v3349, %v3512
    %v3522 = vadd.f32 %v3350, %v3471
    %v3523 = vadd.f32 %v3351, %v3473
    %v3524 = vadd.f32 %v3352, %v3514
    %v3525 = vadd.f32 %v3353, %v3516
    %3526 = vrot.lane.b32.xlu0 %v1757, 122
    %v3527 = vpop.permute.xlu0 %3526
    %3528 = vrot.lane.b32.xlu0 %v1754, 2
    %v3529 = vpop.permute.xlu0 %3528
    %3530 = vrot.lane.b32.xlu0 %v1755, 2
    %v3531 = vpop.permute.xlu0 %3530
    %3532 = vrot.lane.b32.xlu0 %v1756, 2
    %v3533 = vpop.permute.xlu0 %3532
    %3534 = vrot.lane.b32.xlu0 %v1757, 2
    %v3535 = vpop.permute.xlu0 %3534
    %vm3536 = vcmask 15360
    %v3537 = vsel %vm3536, %v3529, %v3531
    %v3538 = vsel %vm3536, %v3531, %v3533
    %v3539 = vsel %vm3536, %v3533, %v3535
    %vm3543 = vcmask 15360
    %v3546 = vsel %vm3543, %v3527, %v3529
    %v3548 = vld [vmem:[%s4 + $0x10] sm:$0x22]
    %v3549 = vld [vmem:[%s4 + $0x18] sm:$0x22]
    %v3552 = vunpack.c.l.b16 %v3548
    %v3553 = vunpack.c.h.b16 %v3548
    %v3554 = vunpack.c.l.b16 %v3549
    %v3555 = vunpack.c.h.b16 %v3549
    %v3556 = vpack.c.b16 %v3552, %v3552
    %v3557 = vpack.c.b16 %v3553, %v3553
    %v3558 = vpack.c.b16 %v3554, %v3554
    %v3559 = vpack.c.b16 %v3555, %v3555
    %v3561 = vpack.i.b16 %v3556, %v3556
    %v3563 = vlaneseq
    %v3564 = vshrl.u32 %v3563, 7
    %v3565 = vsub.s32 1, %v3564
    %v3566 = vrot.slane %v3561, %v3565
    %v3568 = vpack.i.b16 %v3557, %v3557
    %v3570 = vlaneseq
    %v3571 = vshrl.u32 %v3570, 7
    %v3572 = vsub.s32 1, %v3571
    %v3573 = vrot.slane %v3568, %v3572
    %v3575 = vpack.i.b16 %v3558, %v3558
    %v3577 = vlaneseq
    %v3578 = vshrl.u32 %v3577, 7
    %v3579 = vsub.s32 1, %v3578
    %v3580 = vrot.slane %v3575, %v3579
    %v3582 = vpack.i.b16 %v3559, %v3559
    %v3584 = vlaneseq
    %v3585 = vshrl.u32 %v3584, 7
    %v3586 = vsub.s32 1, %v3585
    %v3587 = vrot.slane %v3582, %v3586
    %v3588 = vmul.bf16 %v3546, %v3566
    %v3589 = vmul.bf16 %v3537, %v3573
    %v3590 = vmul.bf16 %v3538, %v3580
    %v3591 = vmul.bf16 %v3539, %v3587
    %s3592 = scalar_lea.vmem %s5, 80
    %v3593 = vld [vmem:[%s3592] sm:$0xf]
    %v3594 = vld [vmem:[%s3592 + $0x4] sm:$0xf]
    %v3597 = vunpack.c.l.b16 %v3593
    %v3598 = vunpack.c.l.b16 %v3594
    %v3599 = vpack.c.b16 %v3598, %v3597
    %v3601 = vsel %vm1894, %v3599, 0
    %v3604 = vsel %vm1898, %v3588, 0
    %v3607 = vsel %vm1898, %v3589, 0
    %v3610 = vsel %vm1898, %v3590, 0
    %v3613 = vsel %vm1898, %v3591, 0
    %3615 = vmatprep.subr.bf16.mxu0 %v3607
    %3616 = vmatpush1.bf16.msra.mxu0 %v3604
    %3617 = vmatprep.subr.bf16.mxu0 0
    %3618 = vmatpush1.bf16.msra.mxu0 0
    %3619 = vmatprep.subr.bf16.mxu0 0
    %3620 = vmatpush1.bf16.msra.mxu0 0
    %3621 = vmatprep.subr.bf16.mxu0 0
    %3622 = vmatpush1.bf16.msra.mxu0 0
    %3623 = vmatprep.subr.bf16.mxu0 0
    %3624 = vmatpush1.bf16.msra.mxu0 0
    %3625 = vmatprep.subr.bf16.mxu0 0
    %3626 = vmatpush1.bf16.msra.mxu0 0
    %3627 = vmatprep.subr.bf16.mxu0 0
    %3628 = vmatpush1.bf16.msra.mxu0 0
    %3629 = vmatprep.subr.bf16.mxu0 0
    %3630 = vmatpush1.bf16.msra.mxu0 0
    %3631 = vmatprep.subr.bf16.mxu0 0
    %3632 = vmatpush1.bf16.msra.mxu0 0
    %3633 = vmatprep.subr.bf16.mxu0 0
    %3634 = vmatpush1.bf16.msra.mxu0 0
    %3635 = vmatprep.subr.bf16.mxu0 0
    %3636 = vmatpush1.bf16.msra.mxu0 0
    %3637 = vmatprep.subr.bf16.mxu0 0
    %3638 = vmatpush1.bf16.msra.mxu0 0
    %3639 = vmatprep.subr.bf16.mxu0 0
    %3640 = vmatpush1.bf16.msra.mxu0 0
    %3641 = vmatprep.subr.bf16.mxu0 0
    %3642 = vmatpush1.bf16.msra.mxu0 0
    %3643 = vmatprep.subr.bf16.mxu0 0
    %3644 = vmatpush1.bf16.msra.mxu0 0
    %3645 = vmatprep.subr.bf16.mxu0 0
    %3646 = vmatpush1.bf16.msra.mxu0 0
    %3647 = vmatprep.mubr.bf16.mxu0 0
    %3648 = vmatmul.mubr.bf16.gmra.mrb[0].mxu0 %v3601
    %v3649 = vpop.f32.mrb[0].mxu0
    %v3650 = vadd.f32 0.0, %v3649
    %v3651 = vpop.f32.mrb[0].mxu0
    %v3652 = vadd.f32 0.0, %v3651
    %v3653 = vpop.f32.mrb[0].mxu0
    %v3654 = vadd.f32 0.0, %v3653
    %v3655 = vpop.f32.mrb[0].mxu0
    %v3656 = vadd.f32 0.0, %v3655
    %3657 = vdwg.mxu0
    %3658 = vmatprep.subr.bf16.mxu0 %v3613
    %3659 = vmatpush1.bf16.msra.mxu0 %v3610
    %3660 = vmatprep.subr.bf16.mxu0 0
    %3661 = vmatpush1.bf16.msra.mxu0 0
    %3662 = vmatprep.subr.bf16.mxu0 0
    %3663 = vmatpush1.bf16.msra.mxu0 0
    %3664 = vmatprep.subr.bf16.mxu0 0
    %3665 = vmatpush1.bf16.msra.mxu0 0
    %3666 = vmatprep.subr.bf16.mxu0 0
    %3667 = vmatpush1.bf16.msra.mxu0 0
    %3668 = vmatprep.subr.bf16.mxu0 0
    %3669 = vmatpush1.bf16.msra.mxu0 0
    %3670 = vmatprep.subr.bf16.mxu0 0
    %3671 = vmatpush1.bf16.msra.mxu0 0
    %3672 = vmatprep.subr.bf16.mxu0 0
    %3673 = vmatpush1.bf16.msra.mxu0 0
    %3674 = vmatprep.subr.bf16.mxu0 0
    %3675 = vmatpush1.bf16.msra.mxu0 0
    %3676 = vmatprep.subr.bf16.mxu0 0
    %3677 = vmatpush1.bf16.msra.mxu0 0
    %3678 = vmatprep.subr.bf16.mxu0 0
    %3679 = vmatpush1.bf16.msra.mxu0 0
    %3680 = vmatprep.subr.bf16.mxu0 0
    %3681 = vmatpush1.bf16.msra.mxu0 0
    %3682 = vmatprep.subr.bf16.mxu0 0
    %3683 = vmatpush1.bf16.msra.mxu0 0
    %3684 = vmatprep.subr.bf16.mxu0 0
    %3685 = vmatpush1.bf16.msra.mxu0 0
    %3686 = vmatprep.subr.bf16.mxu0 0
    %3687 = vmatpush1.bf16.msra.mxu0 0
    %3688 = vmatprep.subr.bf16.mxu0 0
    %3689 = vmatpush1.bf16.msra.mxu0 0
    %3690 = vmatprep.mubr.bf16.mxu0 0
    %3691 = vmatmul.mubr.bf16.gmra.mrb[0].mxu0 %v3601
    %v3692 = vpop.f32.mrb[0].mxu0
    %v3693 = vadd.f32 0.0, %v3692
    %v3694 = vpop.f32.mrb[0].mxu0
    %v3695 = vadd.f32 0.0, %v3694
    %v3696 = vpop.f32.mrb[0].mxu0
    %v3697 = vadd.f32 0.0, %v3696
    %v3698 = vpop.f32.mrb[0].mxu0
    %v3699 = vadd.f32 0.0, %v3698
    %3700 = vdwg.mxu0
    %v3701 = vadd.f32 %v3518, %v3650
    %v3702 = vadd.f32 %v3519, %v3652
    %v3703 = vadd.f32 %v3520, %v3693
    %v3704 = vadd.f32 %v3521, %v3695
    %v3705 = vadd.f32 %v3522, %v3654
    %v3706 = vadd.f32 %v3523, %v3656
    %v3707 = vadd.f32 %v3524, %v3697
    %v3708 = vadd.f32 %v3525, %v3699
    %3709 = vrot.lane.b32.xlu0 %v1757, 121
    %v3710 = vpop.permute.xlu0 %3709
    %3711 = vrot.lane.b32.xlu0 %v1754, 1
    %v3712 = vpop.permute.xlu0 %3711
    %3713 = vrot.lane.b32.xlu0 %v1755, 1
    %v3714 = vpop.permute.xlu0 %3713
    %3715 = vrot.lane.b32.xlu0 %v1756, 1
    %v3716 = vpop.permute.xlu0 %3715
    %3717 = vrot.lane.b32.xlu0 %v1757, 1
    %v3718 = vpop.permute.xlu0 %3717
    %vm3719 = vcmask 7168
    %v3720 = vsel %vm3719, %v3712, %v3714
    %v3721 = vsel %vm3719, %v3714, %v3716
    %v3722 = vsel %vm3719, %v3716, %v3718
    %vm3726 = vcmask 7168
    %v3729 = vsel %vm3726, %v3710, %v3712
    %v3731 = vshrl.u32 %v3556, 16
    %v3732 = vpack.i.b16 %v3731, %v3731
    %v3734 = vlaneseq
    %v3735 = vshrl.u32 %v3734, 7
    %v3736 = vsub.s32 1, %v3735
    %v3737 = vrot.slane %v3732, %v3736
    %v3738 = vshrl.u32 %v3557, 16
    %v3739 = vpack.i.b16 %v3738, %v3738
    %v3741 = vlaneseq
    %v3742 = vshrl.u32 %v3741, 7
    %v3743 = vsub.s32 1, %v3742
    %v3744 = vrot.slane %v3739, %v3743
    %v3745 = vshrl.u32 %v3558, 16
    %v3746 = vpack.i.b16 %v3745, %v3745
    %v3748 = vlaneseq
    %v3749 = vshrl.u32 %v3748, 7
    %v3750 = vsub.s32 1, %v3749
    %v3751 = vrot.slane %v3746, %v3750
    %v3752 = vshrl.u32 %v3559, 16
    %v3753 = vpack.i.b16 %v3752, %v3752
    %v3755 = vlaneseq
    %v3756 = vshrl.u32 %v3755, 7
    %v3757 = vsub.s32 1, %v3756
    %v3758 = vrot.slane %v3753, %v3757
    %v3759 = vmul.bf16 %v3729, %v3737
    %v3760 = vmul.bf16 %v3720, %v3744
    %v3761 = vmul.bf16 %v3721, %v3751
    %v3762 = vmul.bf16 %v3722, %v3758
    %s3763 = scalar_lea.vmem %s5, 88
    %v3764 = vld [vmem:[%s3763] sm:$0xf]
    %v3765 = vld [vmem:[%s3763 + $0x4] sm:$0xf]
    %v3768 = vunpack.c.l.b16 %v3764
    %v3769 = vunpack.c.l.b16 %v3765
    %v3770 = vpack.c.b16 %v3769, %v3768
    %v3772 = vsel %vm1894, %v3770, 0
    %v3775 = vsel %vm1898, %v3759, 0
    %v3778 = vsel %vm1898, %v3760, 0
    %v3781 = vsel %vm1898, %v3761, 0
    %v3784 = vsel %vm1898, %v3762, 0
    %3786 = vmatprep.subr.bf16.mxu0 %v3778
    %3787 = vmatpush1.bf16.msra.mxu0 %v3775
    %3788 = vmatprep.subr.bf16.mxu0 0
    %3789 = vmatpush1.bf16.msra.mxu0 0
    %3790 = vmatprep.subr.bf16.mxu0 0
    %3791 = vmatpush1.bf16.msra.mxu0 0
    %3792 = vmatprep.subr.bf16.mxu0 0
    %3793 = vmatpush1.bf16.msra.mxu0 0
    %3794 = vmatprep.subr.bf16.mxu0 0
    %3795 = vmatpush1.bf16.msra.mxu0 0
    %3796 = vmatprep.subr.bf16.mxu0 0
    %3797 = vmatpush1.bf16.msra.mxu0 0
    %3798 = vmatprep.subr.bf16.mxu0 0
    %3799 = vmatpush1.bf16.msra.mxu0 0
    %3800 = vmatprep.subr.bf16.mxu0 0
    %3801 = vmatpush1.bf16.msra.mxu0 0
    %3802 = vmatprep.subr.bf16.mxu0 0
    %3803 = vmatpush1.bf16.msra.mxu0 0
    %3804 = vmatprep.subr.bf16.mxu0 0
    %3805 = vmatpush1.bf16.msra.mxu0 0
    %3806 = vmatprep.subr.bf16.mxu0 0
    %3807 = vmatpush1.bf16.msra.mxu0 0
    %3808 = vmatprep.subr.bf16.mxu0 0
    %3809 = vmatpush1.bf16.msra.mxu0 0
    %3810 = vmatprep.subr.bf16.mxu0 0
    %3811 = vmatpush1.bf16.msra.mxu0 0
    %3812 = vmatprep.subr.bf16.mxu0 0
    %3813 = vmatpush1.bf16.msra.mxu0 0
    %3814 = vmatprep.subr.bf16.mxu0 0
    %3815 = vmatpush1.bf16.msra.mxu0 0
    %3816 = vmatprep.subr.bf16.mxu0 0
    %3817 = vmatpush1.bf16.msra.mxu0 0
    %3818 = vmatprep.mubr.bf16.mxu0 0
    %3819 = vmatmul.mubr.bf16.gmra.mrb[0].mxu0 %v3772
    %v3820 = vpop.f32.mrb[0].mxu0
    %v3821 = vadd.f32 0.0, %v3820
    %v3822 = vpop.f32.mrb[0].mxu0
    %v3823 = vadd.f32 0.0, %v3822
    %v3824 = vpop.f32.mrb[0].mxu0
    %v3825 = vadd.f32 0.0, %v3824
    %v3826 = vpop.f32.mrb[0].mxu0
    %v3827 = vadd.f32 0.0, %v3826
    %3828 = vdwg.mxu0
    %3829 = vmatprep.subr.bf16.mxu0 %v3784
    %3830 = vmatpush1.bf16.msra.mxu0 %v3781
    %3831 = vmatprep.subr.bf16.mxu0 0
    %3832 = vmatpush1.bf16.msra.mxu0 0
    %3833 = vmatprep.subr.bf16.mxu0 0
    %3834 = vmatpush1.bf16.msra.mxu0 0
    %3835 = vmatprep.subr.bf16.mxu0 0
    %3836 = vmatpush1.bf16.msra.mxu0 0
    %3837 = vmatprep.subr.bf16.mxu0 0
    %3838 = vmatpush1.bf16.msra.mxu0 0
    %3839 = vmatprep.subr.bf16.mxu0 0
    %3840 = vmatpush1.bf16.msra.mxu0 0
    %3841 = vmatprep.subr.bf16.mxu0 0
    %3842 = vmatpush1.bf16.msra.mxu0 0
    %3843 = vmatprep.subr.bf16.mxu0 0
    %3844 = vmatpush1.bf16.msra.mxu0 0
    %3845 = vmatprep.subr.bf16.mxu0 0
    %3846 = vmatpush1.bf16.msra.mxu0 0
    %3847 = vmatprep.subr.bf16.mxu0 0
    %3848 = vmatpush1.bf16.msra.mxu0 0
    %3849 = vmatprep.subr.bf16.mxu0 0
    %3850 = vmatpush1.bf16.msra.mxu0 0
    %3851 = vmatprep.subr.bf16.mxu0 0
    %3852 = vmatpush1.bf16.msra.mxu0 0
    %3853 = vmatprep.subr.bf16.mxu0 0
    %3854 = vmatpush1.bf16.msra.mxu0 0
    %3855 = vmatprep.subr.bf16.mxu0 0
    %3856 = vmatpush1.bf16.msra.mxu0 0
    %3857 = vmatprep.subr.bf16.mxu0 0
    %3858 = vmatpush1.bf16.msra.mxu0 0
    %3859 = vmatprep.subr.bf16.mxu0 0
    %3860 = vmatpush1.bf16.msra.mxu0 0
    %3861 = vmatprep.mubr.bf16.mxu0 0
    %3862 = vmatmul.mubr.bf16.gmra.mrb[0].mxu0 %v3772
    %v3863 = vpop.f32.mrb[0].mxu0
    %v3864 = vadd.f32 0.0, %v3863
    %v3865 = vpop.f32.mrb[0].mxu0
    %v3866 = vadd.f32 0.0, %v3865
    %v3867 = vpop.f32.mrb[0].mxu0
    %v3868 = vadd.f32 0.0, %v3867
    %v3869 = vpop.f32.mrb[0].mxu0
    %v3870 = vadd.f32 0.0, %v3869
    %3871 = vdwg.mxu0
    %v3872 = vadd.f32 %v3701, %v3821
    %v3873 = vadd.f32 %v3702, %v3823
    %v3874 = vadd.f32 %v3703, %v3864
    %v3875 = vadd.f32 %v3704, %v3866
    %v3876 = vadd.f32 %v3705, %v3825
    %v3877 = vadd.f32 %v3706, %v3827
    %v3878 = vadd.f32 %v3707, %v3868
    %v3879 = vadd.f32 %v3708, %v3870
    %v3880 = vld [vmem:[%s4 + $0x10] sm:$0x44]
    %v3881 = vld [vmem:[%s4 + $0x18] sm:$0x44]
    %v3884 = vunpack.c.l.b16 %v3880
    %v3885 = vunpack.c.h.b16 %v3880
    %v3886 = vunpack.c.l.b16 %v3881
    %v3887 = vunpack.c.h.b16 %v3881
    %v3888 = vpack.c.b16 %v3884, %v3884
    %v3889 = vpack.c.b16 %v3885, %v3885
    %v3890 = vpack.c.b16 %v3886, %v3886
    %v3891 = vpack.c.b16 %v3887, %v3887
    %v3893 = vpack.i.b16 %v3888, %v3888
    %v3895 = vlaneseq
    %v3896 = vshrl.u32 %v3895, 7
    %v3897 = vsub.s32 2, %v3896
    %v3898 = vrot.slane %v3893, %v3897
    %v3900 = vpack.i.b16 %v3889, %v3889
    %v3902 = vlaneseq
    %v3903 = vshrl.u32 %v3902, 7
    %v3904 = vsub.s32 2, %v3903
    %v3905 = vrot.slane %v3900, %v3904
    %v3907 = vpack.i.b16 %v3890, %v3890
    %v3909 = vlaneseq
    %v3910 = vshrl.u32 %v3909, 7
    %v3911 = vsub.s32 2, %v3910
    %v3912 = vrot.slane %v3907, %v3911
    %v3914 = vpack.i.b16 %v3891, %v3891
    %v3916 = vlaneseq
    %v3917 = vshrl.u32 %v3916, 7
    %v3918 = vsub.s32 2, %v3917
    %v3919 = vrot.slane %v3914, %v3918
    %v3920 = vmul.bf16 %v1754, %v3898
    %v3921 = vmul.bf16 %v1755, %v3905
    %v3922 = vmul.bf16 %v1756, %v3912
    %v3923 = vmul.bf16 %v1757, %v3919
    %s3924 = scalar_lea.vmem %s5, 96
    %v3925 = vld [vmem:[%s3924] sm:$0xf]
    %v3926 = vld [vmem:[%s3924 + $0x4] sm:$0xf]
    %v3929 = vunpack.c.l.b16 %v3925
    %v3930 = vunpack.c.l.b16 %v3926
    %v3931 = vpack.c.b16 %v3930, %v3929
    %v3933 = vsel %vm1894, %v3931, 0
    %v3936 = vsel %vm1898, %v3920, 0
    %v3939 = vsel %vm1898, %v3921, 0
    %v3942 = vsel %vm1898, %v3922, 0
    %v3945 = vsel %vm1898, %v3923, 0
    %3947 = vmatprep.subr.bf16.mxu0 %v3939
    %3948 = vmatpush1.bf16.msra.mxu0 %v3936
    %3949 = vmatprep.subr.bf16.mxu0 0
    %3950 = vmatpush1.bf16.msra.mxu0 0
    %3951 = vmatprep.subr.bf16.mxu0 0
    %3952 = vmatpush1.bf16.msra.mxu0 0
    %3953 = vmatprep.subr.bf16.mxu0 0
    %3954 = vmatpush1.bf16.msra.mxu0 0
    %3955 = vmatprep.subr.bf16.mxu0 0
    %3956 = vmatpush1.bf16.msra.mxu0 0
    %3957 = vmatprep.subr.bf16.mxu0 0
    %3958 = vmatpush1.bf16.msra.mxu0 0
    %3959 = vmatprep.subr.bf16.mxu0 0
    %3960 = vmatpush1.bf16.msra.mxu0 0
    %3961 = vmatprep.subr.bf16.mxu0 0
    %3962 = vmatpush1.bf16.msra.mxu0 0
    %3963 = vmatprep.subr.bf16.mxu0 0
    %3964 = vmatpush1.bf16.msra.mxu0 0
    %3965 = vmatprep.subr.bf16.mxu0 0
    %3966 = vmatpush1.bf16.msra.mxu0 0
    %3967 = vmatprep.subr.bf16.mxu0 0
    %3968 = vmatpush1.bf16.msra.mxu0 0
    %3969 = vmatprep.subr.bf16.mxu0 0
    %3970 = vmatpush1.bf16.msra.mxu0 0
    %3971 = vmatprep.subr.bf16.mxu0 0
    %3972 = vmatpush1.bf16.msra.mxu0 0
    %3973 = vmatprep.subr.bf16.mxu0 0
    %3974 = vmatpush1.bf16.msra.mxu0 0
    %3975 = vmatprep.subr.bf16.mxu0 0
    %3976 = vmatpush1.bf16.msra.mxu0 0
    %3977 = vmatprep.subr.bf16.mxu0 0
    %3978 = vmatpush1.bf16.msra.mxu0 0
    %3979 = vmatprep.mubr.bf16.mxu0 0
    %3980 = vmatmul.mubr.bf16.gmra.mrb[0].mxu0 %v3933
    %v3981 = vpop.f32.mrb[0].mxu0
    %v3982 = vadd.f32 0.0, %v3981
    %v3983 = vpop.f32.mrb[0].mxu0
    %v3984 = vadd.f32 0.0, %v3983
    %v3985 = vpop.f32.mrb[0].mxu0
    %v3986 = vadd.f32 0.0, %v3985
    %v3987 = vpop.f32.mrb[0].mxu0
    %v3988 = vadd.f32 0.0, %v3987
    %3989 = vdwg.mxu0
    %3990 = vmatprep.subr.bf16.mxu0 %v3945
    %3991 = vmatpush1.bf16.msra.mxu0 %v3942
    %3992 = vmatprep.subr.bf16.mxu0 0
    %3993 = vmatpush1.bf16.msra.mxu0 0
    %3994 = vmatprep.subr.bf16.mxu0 0
    %3995 = vmatpush1.bf16.msra.mxu0 0
    %3996 = vmatprep.subr.bf16.mxu0 0
    %3997 = vmatpush1.bf16.msra.mxu0 0
    %3998 = vmatprep.subr.bf16.mxu0 0
    %3999 = vmatpush1.bf16.msra.mxu0 0
    %4000 = vmatprep.subr.bf16.mxu0 0
    %4001 = vmatpush1.bf16.msra.mxu0 0
    %4002 = vmatprep.subr.bf16.mxu0 0
    %4003 = vmatpush1.bf16.msra.mxu0 0
    %4004 = vmatprep.subr.bf16.mxu0 0
    %4005 = vmatpush1.bf16.msra.mxu0 0
    %4006 = vmatprep.subr.bf16.mxu0 0
    %4007 = vmatpush1.bf16.msra.mxu0 0
    %4008 = vmatprep.subr.bf16.mxu0 0
    %4009 = vmatpush1.bf16.msra.mxu0 0
    %4010 = vmatprep.subr.bf16.mxu0 0
    %4011 = vmatpush1.bf16.msra.mxu0 0
    %4012 = vmatprep.subr.bf16.mxu0 0
    %4013 = vmatpush1.bf16.msra.mxu0 0
    %4014 = vmatprep.subr.bf16.mxu0 0
    %4015 = vmatpush1.bf16.msra.mxu0 0
    %4016 = vmatprep.subr.bf16.mxu0 0
    %4017 = vmatpush1.bf16.msra.mxu0 0
    %4018 = vmatprep.subr.bf16.mxu0 0
    %4019 = vmatpush1.bf16.msra.mxu0 0
    %4020 = vmatprep.subr.bf16.mxu0 0
    %4021 = vmatpush1.bf16.msra.mxu0 0
    %4022 = vmatprep.mubr.bf16.mxu0 0
    %4023 = vmatmul.mubr.bf16.gmra.mrb[0].mxu0 %v3933
    %v4024 = vpop.f32.mrb[0].mxu0
    %v4025 = vadd.f32 0.0, %v4024
    %v4026 = vpop.f32.mrb[0].mxu0
    %v4027 = vadd.f32 0.0, %v4026
    %v4028 = vpop.f32.mrb[0].mxu0
    %v4029 = vadd.f32 0.0, %v4028
    %v4030 = vpop.f32.mrb[0].mxu0
    %v4031 = vadd.f32 0.0, %v4030
    %4032 = vdwg.mxu0
    %v4033 = vadd.f32 %v3872, %v3982
    %v4034 = vadd.f32 %v3873, %v3984
    %v4035 = vadd.f32 %v3874, %v4025
    %v4036 = vadd.f32 %v3875, %v4027
    %v4037 = vadd.f32 %v3876, %v3986
    %v4038 = vadd.f32 %v3877, %v3988
    %v4039 = vadd.f32 %v3878, %v4029
    %v4040 = vadd.f32 %v3879, %v4031
    %4041 = vrot.lane.b32.xlu0 %v1754, 127
    %v4042 = vpop.permute.xlu0 %4041
    %4043 = vrot.lane.b32.xlu0 %v1755, 127
    %v4044 = vpop.permute.xlu0 %4043
    %4045 = vrot.lane.b32.xlu0 %v1756, 127
    %v4046 = vpop.permute.xlu0 %4045
    %4047 = vrot.lane.b32.xlu0 %v1757, 127
    %v4048 = vpop.permute.xlu0 %4047
    %vm4049 = vcmask 1039360
    %v4050 = vsel %vm4049, %v4042, %v4044
    %v4051 = vsel %vm4049, %v4044, %v4046
    %v4052 = vsel %vm4049, %v4046, %v4048
    %4056 = vrot.lane.b32.xlu0 %v1754, 7
    %v4057 = vpop.permute.xlu0 %4056
    %vm4058 = vcmask 56320
    %v4061 = vsel %vm4058, %v4048, %v4057
    %v4063 = vshrl.u32 %v3888, 16
    %v4064 = vpack.i.b16 %v4063, %v4063
    %v4066 = vlaneseq
    %v4067 = vshrl.u32 %v4066, 7
    %v4068 = vsub.s32 2, %v4067
    %v4069 = vrot.slane %v4064, %v4068
    %v4070 = vshrl.u32 %v3889, 16
    %v4071 = vpack.i.b16 %v4070, %v4070
    %v4073 = vlaneseq
    %v4074 = vshrl.u32 %v4073, 7
    %v4075 = vsub.s32 2, %v4074
    %v4076 = vrot.slane %v4071, %v4075
    %v4077 = vshrl.u32 %v3890, 16
    %v4078 = vpack.i.b16 %v4077, %v4077
    %v4080 = vlaneseq
    %v4081 = vshrl.u32 %v4080, 7
    %v4082 = vsub.s32 2, %v4081
    %v4083 = vrot.slane %v4078, %v4082
    %v4084 = vshrl.u32 %v3891, 16
    %v4085 = vpack.i.b16 %v4084, %v4084
    %v4087 = vlaneseq
    %v4088 = vshrl.u32 %v4087, 7
    %v4089 = vsub.s32 2, %v4088
    %v4090 = vrot.slane %v4085, %v4089
    %v4091 = vmul.bf16 %v4050, %v4069
    %v4092 = vmul.bf16 %v4051, %v4076
    %v4093 = vmul.bf16 %v4052, %v4083
    %v4094 = vmul.bf16 %v4061, %v4090
    %s4095 = scalar_lea.vmem %s5, 104
    %v4096 = vld [vmem:[%s4095] sm:$0xf]
    %v4097 = vld [vmem:[%s4095 + $0x4] sm:$0xf]
    %v4100 = vunpack.c.l.b16 %v4096
    %v4101 = vunpack.c.l.b16 %v4097
    %v4102 = vpack.c.b16 %v4101, %v4100
    %v4104 = vsel %vm1894, %v4102, 0
    %v4107 = vsel %vm1898, %v4091, 0
    %v4110 = vsel %vm1898, %v4092, 0
    %v4113 = vsel %vm1898, %v4093, 0
    %v4116 = vsel %vm1898, %v4094, 0
    %4118 = vmatprep.subr.bf16.mxu0 %v4110
    %4119 = vmatpush1.bf16.msra.mxu0 %v4107
    %4120 = vmatprep.subr.bf16.mxu0 0
    %4121 = vmatpush1.bf16.msra.mxu0 0
    %4122 = vmatprep.subr.bf16.mxu0 0
    %4123 = vmatpush1.bf16.msra.mxu0 0
    %4124 = vmatprep.subr.bf16.mxu0 0
    %4125 = vmatpush1.bf16.msra.mxu0 0
    %4126 = vmatprep.subr.bf16.mxu0 0
    %4127 = vmatpush1.bf16.msra.mxu0 0
    %4128 = vmatprep.subr.bf16.mxu0 0
    %4129 = vmatpush1.bf16.msra.mxu0 0
    %4130 = vmatprep.subr.bf16.mxu0 0
    %4131 = vmatpush1.bf16.msra.mxu0 0
    %4132 = vmatprep.subr.bf16.mxu0 0
    %4133 = vmatpush1.bf16.msra.mxu0 0
    %4134 = vmatprep.subr.bf16.mxu0 0
    %4135 = vmatpush1.bf16.msra.mxu0 0
    %4136 = vmatprep.subr.bf16.mxu0 0
    %4137 = vmatpush1.bf16.msra.mxu0 0
    %4138 = vmatprep.subr.bf16.mxu0 0
    %4139 = vmatpush1.bf16.msra.mxu0 0
    %4140 = vmatprep.subr.bf16.mxu0 0
    %4141 = vmatpush1.bf16.msra.mxu0 0
    %4142 = vmatprep.subr.bf16.mxu0 0
    %4143 = vmatpush1.bf16.msra.mxu0 0
    %4144 = vmatprep.subr.bf16.mxu0 0
    %4145 = vmatpush1.bf16.msra.mxu0 0
    %4146 = vmatprep.subr.bf16.mxu0 0
    %4147 = vmatpush1.bf16.msra.mxu0 0
    %4148 = vmatprep.subr.bf16.mxu0 0
    %4149 = vmatpush1.bf16.msra.mxu0 0
    %4150 = vmatprep.mubr.bf16.mxu0 0
    %4151 = vmatmul.mubr.bf16.gmra.mrb[0].mxu0 %v4104
    %v4152 = vpop.f32.mrb[0].mxu0
    %v4153 = vadd.f32 0.0, %v4152
    %v4154 = vpop.f32.mrb[0].mxu0
    %v4155 = vadd.f32 0.0, %v4154
    %v4156 = vpop.f32.mrb[0].mxu0
    %v4157 = vadd.f32 0.0, %v4156
    %v4158 = vpop.f32.mrb[0].mxu0
    %v4159 = vadd.f32 0.0, %v4158
    %4160 = vdwg.mxu0
    %4161 = vmatprep.subr.bf16.mxu0 %v4116
    %4162 = vmatpush1.bf16.msra.mxu0 %v4113
    %4163 = vmatprep.subr.bf16.mxu0 0
    %4164 = vmatpush1.bf16.msra.mxu0 0
    %4165 = vmatprep.subr.bf16.mxu0 0
    %4166 = vmatpush1.bf16.msra.mxu0 0
    %4167 = vmatprep.subr.bf16.mxu0 0
    %4168 = vmatpush1.bf16.msra.mxu0 0
    %4169 = vmatprep.subr.bf16.mxu0 0
    %4170 = vmatpush1.bf16.msra.mxu0 0
    %4171 = vmatprep.subr.bf16.mxu0 0
    %4172 = vmatpush1.bf16.msra.mxu0 0
    %4173 = vmatprep.subr.bf16.mxu0 0
    %4174 = vmatpush1.bf16.msra.mxu0 0
    %4175 = vmatprep.subr.bf16.mxu0 0
    %4176 = vmatpush1.bf16.msra.mxu0 0
    %4177 = vmatprep.subr.bf16.mxu0 0
    %4178 = vmatpush1.bf16.msra.mxu0 0
    %4179 = vmatprep.subr.bf16.mxu0 0
    %4180 = vmatpush1.bf16.msra.mxu0 0
    %4181 = vmatprep.subr.bf16.mxu0 0
    %4182 = vmatpush1.bf16.msra.mxu0 0
    %4183 = vmatprep.subr.bf16.mxu0 0
    %4184 = vmatpush1.bf16.msra.mxu0 0
    %4185 = vmatprep.subr.bf16.mxu0 0
    %4186 = vmatpush1.bf16.msra.mxu0 0
    %4187 = vmatprep.subr.bf16.mxu0 0
    %4188 = vmatpush1.bf16.msra.mxu0 0
    %4189 = vmatprep.subr.bf16.mxu0 0
    %4190 = vmatpush1.bf16.msra.mxu0 0
    %4191 = vmatprep.subr.bf16.mxu0 0
    %4192 = vmatpush1.bf16.msra.mxu0 0
    %4193 = vmatprep.mubr.bf16.mxu0 0
    %4194 = vmatmul.mubr.bf16.gmra.mrb[0].mxu0 %v4104
    %v4195 = vpop.f32.mrb[0].mxu0
    %v4196 = vadd.f32 0.0, %v4195
    %v4197 = vpop.f32.mrb[0].mxu0
    %v4198 = vadd.f32 0.0, %v4197
    %v4199 = vpop.f32.mrb[0].mxu0
    %v4200 = vadd.f32 0.0, %v4199
    %v4201 = vpop.f32.mrb[0].mxu0
    %v4202 = vadd.f32 0.0, %v4201
    %4203 = vdwg.mxu0
    %v4204 = vadd.f32 %v4033, %v4153
    %v4205 = vadd.f32 %v4034, %v4155
    %v4206 = vadd.f32 %v4035, %v4196
    %v4207 = vadd.f32 %v4036, %v4198
    %v4208 = vadd.f32 %v4037, %v4157
    %v4209 = vadd.f32 %v4038, %v4159
    %v4210 = vadd.f32 %v4039, %v4200
    %v4211 = vadd.f32 %v4040, %v4202
    %4212 = vrot.lane.b32.xlu0 %v1754, 126
    %v4213 = vpop.permute.xlu0 %4212
    %4214 = vrot.lane.b32.xlu0 %v1755, 126
    %v4215 = vpop.permute.xlu0 %4214
    %4216 = vrot.lane.b32.xlu0 %v1756, 126
    %v4217 = vpop.permute.xlu0 %4216
    %4218 = vrot.lane.b32.xlu0 %v1757, 126
    %v4219 = vpop.permute.xlu0 %4218
    %vm4220 = vcmask 1031168
    %v4221 = vsel %vm4220, %v4213, %v4215
    %v4222 = vsel %vm4220, %v4215, %v4217
    %v4223 = vsel %vm4220, %v4217, %v4219
    %4227 = vrot.lane.b32.xlu0 %v1754, 6
    %v4228 = vpop.permute.xlu0 %4227
    %v4231 = vsel %vm1894, %v4219, %v4228
    %v4233 = vld [vmem:[%s4 + $0x10] sm:$0x88]
    %v4234 = vld [vmem:[%s4 + $0x18] sm:$0x88]
    %v4237 = vunpack.c.l.b16 %v4233
    %v4238 = vunpack.c.h.b16 %v4233
    %v4239 = vunpack.c.l.b16 %v4234
    %v4240 = vunpack.c.h.b16 %v4234
    %v4241 = vpack.c.b16 %v4237, %v4237
    %v4242 = vpack.c.b16 %v4238, %v4238
    %v4243 = vpack.c.b16 %v4239, %v4239
    %v4244 = vpack.c.b16 %v4240, %v4240
    %v4246 = vpack.i.b16 %v4241, %v4241
    %v4248 = vlaneseq
    %v4249 = vshrl.u32 %v4248, 7
    %v4250 = vsub.s32 3, %v4249
    %v4251 = vrot.slane %v4246, %v4250
    %v4253 = vpack.i.b16 %v4242, %v4242
    %v4255 = vlaneseq
    %v4256 = vshrl.u32 %v4255, 7
    %v4257 = vsub.s32 3, %v4256
    %v4258 = vrot.slane %v4253, %v4257
    %v4260 = vpack.i.b16 %v4243, %v4243
    %v4262 = vlaneseq
    %v4263 = vshrl.u32 %v4262, 7
    %v4264 = vsub.s32 3, %v4263
    %v4265 = vrot.slane %v4260, %v4264
    %v4267 = vpack.i.b16 %v4244, %v4244
    %v4269 = vlaneseq
    %v4270 = vshrl.u32 %v4269, 7
    %v4271 = vsub.s32 3, %v4270
    %v4272 = vrot.slane %v4267, %v4271
    %v4273 = vmul.bf16 %v4221, %v4251
    %v4274 = vmul.bf16 %v4222, %v4258
    %v4275 = vmul.bf16 %v4223, %v4265
    %v4276 = vmul.bf16 %v4231, %v4272
    %s4277 = scalar_lea.vmem %s5, 112
    %v4278 = vld [vmem:[%s4277] sm:$0xf]
    %v4279 = vld [vmem:[%s4277 + $0x4] sm:$0xf]
    %v4282 = vunpack.c.l.b16 %v4278
    %v4283 = vunpack.c.l.b16 %v4279
    %v4284 = vpack.c.b16 %v4283, %v4282
    %v4286 = vsel %vm1894, %v4284, 0
    %v4289 = vsel %vm1898, %v4273, 0
    %v4292 = vsel %vm1898, %v4274, 0
    %v4295 = vsel %vm1898, %v4275, 0
    %v4298 = vsel %vm1898, %v4276, 0
    %4300 = vmatprep.subr.bf16.mxu0 %v4292
    %4301 = vmatpush1.bf16.msra.mxu0 %v4289
    %4302 = vmatprep.subr.bf16.mxu0 0
    %4303 = vmatpush1.bf16.msra.mxu0 0
    %4304 = vmatprep.subr.bf16.mxu0 0
    %4305 = vmatpush1.bf16.msra.mxu0 0
    %4306 = vmatprep.subr.bf16.mxu0 0
    %4307 = vmatpush1.bf16.msra.mxu0 0
    %4308 = vmatprep.subr.bf16.mxu0 0
    %4309 = vmatpush1.bf16.msra.mxu0 0
    %4310 = vmatprep.subr.bf16.mxu0 0
    %4311 = vmatpush1.bf16.msra.mxu0 0
    %4312 = vmatprep.subr.bf16.mxu0 0
    %4313 = vmatpush1.bf16.msra.mxu0 0
    %4314 = vmatprep.subr.bf16.mxu0 0
    %4315 = vmatpush1.bf16.msra.mxu0 0
    %4316 = vmatprep.subr.bf16.mxu0 0
    %4317 = vmatpush1.bf16.msra.mxu0 0
    %4318 = vmatprep.subr.bf16.mxu0 0
    %4319 = vmatpush1.bf16.msra.mxu0 0
    %4320 = vmatprep.subr.bf16.mxu0 0
    %4321 = vmatpush1.bf16.msra.mxu0 0
    %4322 = vmatprep.subr.bf16.mxu0 0
    %4323 = vmatpush1.bf16.msra.mxu0 0
    %4324 = vmatprep.subr.bf16.mxu0 0
    %4325 = vmatpush1.bf16.msra.mxu0 0
    %4326 = vmatprep.subr.bf16.mxu0 0
    %4327 = vmatpush1.bf16.msra.mxu0 0
    %4328 = vmatprep.subr.bf16.mxu0 0
    %4329 = vmatpush1.bf16.msra.mxu0 0
    %4330 = vmatprep.subr.bf16.mxu0 0
    %4331 = vmatpush1.bf16.msra.mxu0 0
    %4332 = vmatprep.mubr.bf16.mxu0 0
    %4333 = vmatmul.mubr.bf16.gmra.mrb[0].mxu0 %v4286
    %v4334 = vpop.f32.mrb[0].mxu0
    %v4335 = vadd.f32 0.0, %v4334
    %v4336 = vpop.f32.mrb[0].mxu0
    %v4337 = vadd.f32 0.0, %v4336
    %v4338 = vpop.f32.mrb[0].mxu0
    %v4339 = vadd.f32 0.0, %v4338
    %v4340 = vpop.f32.mrb[0].mxu0
    %v4341 = vadd.f32 0.0, %v4340
    %4342 = vdwg.mxu0
    %4343 = vmatprep.subr.bf16.mxu0 %v4298
    %4344 = vmatpush1.bf16.msra.mxu0 %v4295
    %4345 = vmatprep.subr.bf16.mxu0 0
    %4346 = vmatpush1.bf16.msra.mxu0 0
    %4347 = vmatprep.subr.bf16.mxu0 0
    %4348 = vmatpush1.bf16.msra.mxu0 0
    %4349 = vmatprep.subr.bf16.mxu0 0
    %4350 = vmatpush1.bf16.msra.mxu0 0
    %4351 = vmatprep.subr.bf16.mxu0 0
    %4352 = vmatpush1.bf16.msra.mxu0 0
    %4353 = vmatprep.subr.bf16.mxu0 0
    %4354 = vmatpush1.bf16.msra.mxu0 0
    %4355 = vmatprep.subr.bf16.mxu0 0
    %4356 = vmatpush1.bf16.msra.mxu0 0
    %4357 = vmatprep.subr.bf16.mxu0 0
    %4358 = vmatpush1.bf16.msra.mxu0 0
    %4359 = vmatprep.subr.bf16.mxu0 0
    %4360 = vmatpush1.bf16.msra.mxu0 0
    %4361 = vmatprep.subr.bf16.mxu0 0
    %4362 = vmatpush1.bf16.msra.mxu0 0
    %4363 = vmatprep.subr.bf16.mxu0 0
    %4364 = vmatpush1.bf16.msra.mxu0 0
    %4365 = vmatprep.subr.bf16.mxu0 0
    %4366 = vmatpush1.bf16.msra.mxu0 0
    %4367 = vmatprep.subr.bf16.mxu0 0
    %4368 = vmatpush1.bf16.msra.mxu0 0
    %4369 = vmatprep.subr.bf16.mxu0 0
    %4370 = vmatpush1.bf16.msra.mxu0 0
    %4371 = vmatprep.subr.bf16.mxu0 0
    %4372 = vmatpush1.bf16.msra.mxu0 0
    %4373 = vmatprep.subr.bf16.mxu0 0
    %4374 = vmatpush1.bf16.msra.mxu0 0
    %4375 = vmatprep.mubr.bf16.mxu0 0
    %4376 = vmatmul.mubr.bf16.gmra.mrb[0].mxu0 %v4286
    %v4377 = vpop.f32.mrb[0].mxu0
    %v4378 = vadd.f32 0.0, %v4377
    %v4379 = vpop.f32.mrb[0].mxu0
    %v4380 = vadd.f32 0.0, %v4379
    %v4381 = vpop.f32.mrb[0].mxu0
    %v4382 = vadd.f32 0.0, %v4381
    %v4383 = vpop.f32.mrb[0].mxu0
    %v4384 = vadd.f32 0.0, %v4383
    %4385 = vdwg.mxu0
    %v4386 = vadd.f32 %v4204, %v4335
    %v4387 = vadd.f32 %v4205, %v4337
    %v4388 = vadd.f32 %v4206, %v4378
    %v4389 = vadd.f32 %v4207, %v4380
    %v4390 = vadd.f32 %v4208, %v4339
    %v4391 = vadd.f32 %v4209, %v4341
    %v4392 = vadd.f32 %v4210, %v4382
    %v4393 = vadd.f32 %v4211, %v4384
    %4394 = vrot.lane.b32.xlu0 %v1754, 116
    %v4395 = vpop.permute.xlu0 %4394
    %4396 = vrot.lane.b32.xlu0 %v1755, 116
    %v4397 = vpop.permute.xlu0 %4396
    %4398 = vrot.lane.b32.xlu0 %v1756, 116
    %v4399 = vpop.permute.xlu0 %4398
    %4400 = vrot.lane.b32.xlu0 %v1757, 116
    %v4401 = vpop.permute.xlu0 %4400
    %vm4402 = vcmask 949248
    %v4403 = vsel %vm4402, %v4395, %v4397
    %v4404 = vsel %vm4402, %v4397, %v4399
    %v4405 = vsel %vm4402, %v4399, %v4401
    %4408 = vrot.lane.b32.xlu0 %v1754, 124
    %v4409 = vpop.permute.xlu0 %4408
    %vm4411 = vcmask 1014784
    %v4414 = vsel %vm4411, %v4405, %v4409
    %v4416 = vshrl.u32 %v4241, 16
    %v4417 = vpack.i.b16 %v4416, %v4416
    %v4419 = vlaneseq
    %v4420 = vshrl.u32 %v4419, 7
    %v4421 = vsub.s32 3, %v4420
    %v4422 = vrot.slane %v4417, %v4421
    %v4423 = vshrl.u32 %v4242, 16
    %v4424 = vpack.i.b16 %v4423, %v4423
    %v4426 = vlaneseq
    %v4427 = vshrl.u32 %v4426, 7
    %v4428 = vsub.s32 3, %v4427
    %v4429 = vrot.slane %v4424, %v4428
    %v4430 = vshrl.u32 %v4243, 16
    %v4431 = vpack.i.b16 %v4430, %v4430
    %v4433 = vlaneseq
    %v4434 = vshrl.u32 %v4433, 7
    %v4435 = vsub.s32 3, %v4434
    %v4436 = vrot.slane %v4431, %v4435
    %v4437 = vshrl.u32 %v4244, 16
    %v4438 = vpack.i.b16 %v4437, %v4437
    %v4440 = vlaneseq
    %v4441 = vshrl.u32 %v4440, 7
    %v4442 = vsub.s32 3, %v4441
    %v4443 = vrot.slane %v4438, %v4442
    %v4444 = vmul.bf16 %v4403, %v4422
    %v4445 = vmul.bf16 %v4404, %v4429
    %v4446 = vmul.bf16 %v4414, %v4436
    %v4447 = vmul.bf16 %v4409, %v4443
    %s4448 = scalar_lea.vmem %s5, 120
    %v4449 = vld [vmem:[%s4448] sm:$0xf]
    %v4450 = vld [vmem:[%s4448 + $0x4] sm:$0xf]
    %v4453 = vunpack.c.l.b16 %v4449
    %v4454 = vunpack.c.l.b16 %v4450
    %v4455 = vpack.c.b16 %v4454, %v4453
    %v4457 = vsel %vm1894, %v4455, 0
    %v4460 = vsel %vm1898, %v4444, 0
    %v4463 = vsel %vm1898, %v4445, 0
    %v4466 = vsel %vm1898, %v4446, 0
    %v4469 = vsel %vm1898, %v4447, 0
    %4471 = vmatprep.subr.bf16.mxu0 %v4463
    %4472 = vmatpush1.bf16.msra.mxu0 %v4460
    %4473 = vmatprep.subr.bf16.mxu0 0
    %4474 = vmatpush1.bf16.msra.mxu0 0
    %4475 = vmatprep.subr.bf16.mxu0 0
    %4476 = vmatpush1.bf16.msra.mxu0 0
    %4477 = vmatprep.subr.bf16.mxu0 0
    %4478 = vmatpush1.bf16.msra.mxu0 0
    %4479 = vmatprep.subr.bf16.mxu0 0
    %4480 = vmatpush1.bf16.msra.mxu0 0
    %4481 = vmatprep.subr.bf16.mxu0 0
    %4482 = vmatpush1.bf16.msra.mxu0 0
    %4483 = vmatprep.subr.bf16.mxu0 0
    %4484 = vmatpush1.bf16.msra.mxu0 0
    %4485 = vmatprep.subr.bf16.mxu0 0
    %4486 = vmatpush1.bf16.msra.mxu0 0
    %4487 = vmatprep.subr.bf16.mxu0 0
    %4488 = vmatpush1.bf16.msra.mxu0 0
    %4489 = vmatprep.subr.bf16.mxu0 0
    %4490 = vmatpush1.bf16.msra.mxu0 0
    %4491 = vmatprep.subr.bf16.mxu0 0
    %4492 = vmatpush1.bf16.msra.mxu0 0
    %4493 = vmatprep.subr.bf16.mxu0 0
    %4494 = vmatpush1.bf16.msra.mxu0 0
    %4495 = vmatprep.subr.bf16.mxu0 0
    %4496 = vmatpush1.bf16.msra.mxu0 0
    %4497 = vmatprep.subr.bf16.mxu0 0
    %4498 = vmatpush1.bf16.msra.mxu0 0
    %4499 = vmatprep.subr.bf16.mxu0 0
    %4500 = vmatpush1.bf16.msra.mxu0 0
    %4501 = vmatprep.subr.bf16.mxu0 0
    %4502 = vmatpush1.bf16.msra.mxu0 0
    %4503 = vmatprep.mubr.bf16.mxu0 0
    %4504 = vmatmul.mubr.bf16.gmra.mrb[0].mxu0 %v4457
    %v4505 = vpop.f32.mrb[0].mxu0
    %v4506 = vadd.f32 0.0, %v4505
    %v4507 = vpop.f32.mrb[0].mxu0
    %v4508 = vadd.f32 0.0, %v4507
    %v4509 = vpop.f32.mrb[0].mxu0
    %v4510 = vadd.f32 0.0, %v4509
    %v4511 = vpop.f32.mrb[0].mxu0
    %v4512 = vadd.f32 0.0, %v4511
    %4513 = vdwg.mxu0
    %4514 = vmatprep.subr.bf16.mxu0 %v4469
    %4515 = vmatpush1.bf16.msra.mxu0 %v4466
    %4516 = vmatprep.subr.bf16.mxu0 0
    %4517 = vmatpush1.bf16.msra.mxu0 0
    %4518 = vmatprep.subr.bf16.mxu0 0
    %4519 = vmatpush1.bf16.msra.mxu0 0
    %4520 = vmatprep.subr.bf16.mxu0 0
    %4521 = vmatpush1.bf16.msra.mxu0 0
    %4522 = vmatprep.subr.bf16.mxu0 0
    %4523 = vmatpush1.bf16.msra.mxu0 0
    %4524 = vmatprep.subr.bf16.mxu0 0
    %4525 = vmatpush1.bf16.msra.mxu0 0
    %4526 = vmatprep.subr.bf16.mxu0 0
    %4527 = vmatpush1.bf16.msra.mxu0 0
    %4528 = vmatprep.subr.bf16.mxu0 0
    %4529 = vmatpush1.bf16.msra.mxu0 0
    %4530 = vmatprep.subr.bf16.mxu0 0
    %4531 = vmatpush1.bf16.msra.mxu0 0
    %4532 = vmatprep.subr.bf16.mxu0 0
    %4533 = vmatpush1.bf16.msra.mxu0 0
    %4534 = vmatprep.subr.bf16.mxu0 0
    %4535 = vmatpush1.bf16.msra.mxu0 0
    %4536 = vmatprep.subr.bf16.mxu0 0
    %4537 = vmatpush1.bf16.msra.mxu0 0
    %4538 = vmatprep.subr.bf16.mxu0 0
    %4539 = vmatpush1.bf16.msra.mxu0 0
    %4540 = vmatprep.subr.bf16.mxu0 0
    %4541 = vmatpush1.bf16.msra.mxu0 0
    %4542 = vmatprep.subr.bf16.mxu0 0
    %4543 = vmatpush1.bf16.msra.mxu0 0
    %4544 = vmatprep.subr.bf16.mxu0 0
    %4545 = vmatpush1.bf16.msra.mxu0 0
    %4546 = vmatprep.mubr.bf16.mxu0 0
    %4547 = vmatmul.mubr.bf16.gmra.mrb[0].mxu0 %v4457
    %v4548 = vpop.f32.mrb[0].mxu0
    %v4549 = vadd.f32 0.0, %v4548
    %v4550 = vpop.f32.mrb[0].mxu0
    %v4551 = vadd.f32 0.0, %v4550
    %v4552 = vpop.f32.mrb[0].mxu0
    %v4553 = vadd.f32 0.0, %v4552
    %v4554 = vpop.f32.mrb[0].mxu0
    %v4555 = vadd.f32 0.0, %v4554
    %4556 = vdwg.mxu0
    %v4557 = vadd.f32 %v4386, %v4506
    %v4558 = vadd.f32 %v4387, %v4508
    %v4559 = vadd.f32 %v4388, %v4549
    %v4560 = vadd.f32 %v4389, %v4551
    %v4561 = vadd.f32 %v4390, %v4510
    %v4562 = vadd.f32 %v4391, %v4512
    %v4563 = vadd.f32 %v4392, %v4553
    %v4564 = vadd.f32 %v4393, %v4555
    %4565 = vrot.lane.b32.xlu0 %v1754, 115
    %v4566 = vpop.permute.xlu0 %4565
    %4567 = vrot.lane.b32.xlu0 %v1755, 115
    %v4568 = vpop.permute.xlu0 %4567
    %4569 = vrot.lane.b32.xlu0 %v1756, 115
    %v4570 = vpop.permute.xlu0 %4569
    %4571 = vrot.lane.b32.xlu0 %v1757, 115
    %v4572 = vpop.permute.xlu0 %4571
    %vm4573 = vcmask 941056
    %v4574 = vsel %vm4573, %v4566, %v4568
    %v4575 = vsel %vm4573, %v4568, %v4570
    %v4576 = vsel %vm4573, %v4570, %v4572
    %4579 = vrot.lane.b32.xlu0 %v1754, 123
    %v4580 = vpop.permute.xlu0 %4579
    %vm4582 = vcmask 1006592
    %v4585 = vsel %vm4582, %v4576, %v4580
    %v4587 = vld [vmem:[%s4 + $0x20] sm:$0x11]
    %v4588 = vld [vmem:[%s4 + $0x28] sm:$0x11]
    %v4591 = vunpack.c.l.b16 %v4587
    %v4592 = vunpack.c.h.b16 %v4587
    %v4593 = vunpack.c.l.b16 %v4588
    %v4594 = vunpack.c.h.b16 %v4588
    %v4595 = vpack.c.b16 %v4591, %v4591
    %v4596 = vpack.c.b16 %v4592, %v4592
    %v4597 = vpack.c.b16 %v4593, %v4593
    %v4598 = vpack.c.b16 %v4594, %v4594
    %v4600 = vpack.i.b16 %v4595, %v4595
    %v4602 = vlaneseq
    %v4603 = vshrl.u32 %v4602, 7
    %v4604 = vsub.s32 0, %v4603
    %v4605 = vrot.slane %v4600, %v4604
    %v4607 = vpack.i.b16 %v4596, %v4596
    %v4609 = vlaneseq
    %v4610 = vshrl.u32 %v4609, 7
    %v4611 = vsub.s32 0, %v4610
    %v4612 = vrot.slane %v4607, %v4611
    %v4614 = vpack.i.b16 %v4597, %v4597
    %v4616 = vlaneseq
    %v4617 = vshrl.u32 %v4616, 7
    %v4618 = vsub.s32 0, %v4617
    %v4619 = vrot.slane %v4614, %v4618
    %v4621 = vpack.i.b16 %v4598, %v4598
    %v4623 = vlaneseq
    %v4624 = vshrl.u32 %v4623, 7
    %v4625 = vsub.s32 0, %v4624
    %v4626 = vrot.slane %v4621, %v4625
    %v4627 = vmul.bf16 %v4574, %v4605
    %v4628 = vmul.bf16 %v4575, %v4612
    %v4629 = vmul.bf16 %v4585, %v4619
    %v4630 = vmul.bf16 %v4580, %v4626
    %s4631 = scalar_lea.vmem %s5, 128
    %v4632 = vld [vmem:[%s4631] sm:$0xf]
    %v4633 = vld [vmem:[%s4631 + $0x4] sm:$0xf]
    %v4636 = vunpack.c.l.b16 %v4632
    %v4637 = vunpack.c.l.b16 %v4633
    %v4638 = vpack.c.b16 %v4637, %v4636
    %v4640 = vsel %vm1894, %v4638, 0
    %v4643 = vsel %vm1898, %v4627, 0
    %v4646 = vsel %vm1898, %v4628, 0
    %v4649 = vsel %vm1898, %v4629, 0
    %v4652 = vsel %vm1898, %v4630, 0
    %4654 = vmatprep.subr.bf16.mxu0 %v4646
    %4655 = vmatpush1.bf16.msra.mxu0 %v4643
    %4656 = vmatprep.subr.bf16.mxu0 0
    %4657 = vmatpush1.bf16.msra.mxu0 0
    %4658 = vmatprep.subr.bf16.mxu0 0
    %4659 = vmatpush1.bf16.msra.mxu0 0
    %4660 = vmatprep.subr.bf16.mxu0 0
    %4661 = vmatpush1.bf16.msra.mxu0 0
    %4662 = vmatprep.subr.bf16.mxu0 0
    %4663 = vmatpush1.bf16.msra.mxu0 0
    %4664 = vmatprep.subr.bf16.mxu0 0
    %4665 = vmatpush1.bf16.msra.mxu0 0
    %4666 = vmatprep.subr.bf16.mxu0 0
    %4667 = vmatpush1.bf16.msra.mxu0 0
    %4668 = vmatprep.subr.bf16.mxu0 0
    %4669 = vmatpush1.bf16.msra.mxu0 0
    %4670 = vmatprep.subr.bf16.mxu0 0
    %4671 = vmatpush1.bf16.msra.mxu0 0
    %4672 = vmatprep.subr.bf16.mxu0 0
    %4673 = vmatpush1.bf16.msra.mxu0 0
    %4674 = vmatprep.subr.bf16.mxu0 0
    %4675 = vmatpush1.bf16.msra.mxu0 0
    %4676 = vmatprep.subr.bf16.mxu0 0
    %4677 = vmatpush1.bf16.msra.mxu0 0
    %4678 = vmatprep.subr.bf16.mxu0 0
    %4679 = vmatpush1.bf16.msra.mxu0 0
    %4680 = vmatprep.subr.bf16.mxu0 0
    %4681 = vmatpush1.bf16.msra.mxu0 0
    %4682 = vmatprep.subr.bf16.mxu0 0
    %4683 = vmatpush1.bf16.msra.mxu0 0
    %4684 = vmatprep.subr.bf16.mxu0 0
    %4685 = vmatpush1.bf16.msra.mxu0 0
    %4686 = vmatprep.mubr.bf16.mxu0 0
    %4687 = vmatmul.mubr.bf16.gmra.mrb[0].mxu0 %v4640
    %v4688 = vpop.f32.mrb[0].mxu0
    %v4689 = vadd.f32 0.0, %v4688
    %v4690 = vpop.f32.mrb[0].mxu0
    %v4691 = vadd.f32 0.0, %v4690
    %v4692 = vpop.f32.mrb[0].mxu0
    %v4693 = vadd.f32 0.0, %v4692
    %v4694 = vpop.f32.mrb[0].mxu0
    %v4695 = vadd.f32 0.0, %v4694
    %4696 = vdwg.mxu0
    %4697 = vmatprep.subr.bf16.mxu0 %v4652
    %4698 = vmatpush1.bf16.msra.mxu0 %v4649
    %4699 = vmatprep.subr.bf16.mxu0 0
    %4700 = vmatpush1.bf16.msra.mxu0 0
    %4701 = vmatprep.subr.bf16.mxu0 0
    %4702 = vmatpush1.bf16.msra.mxu0 0
    %4703 = vmatprep.subr.bf16.mxu0 0
    %4704 = vmatpush1.bf16.msra.mxu0 0
    %4705 = vmatprep.subr.bf16.mxu0 0
    %4706 = vmatpush1.bf16.msra.mxu0 0
    %4707 = vmatprep.subr.bf16.mxu0 0
    %4708 = vmatpush1.bf16.msra.mxu0 0
    %4709 = vmatprep.subr.bf16.mxu0 0
    %4710 = vmatpush1.bf16.msra.mxu0 0
    %4711 = vmatprep.subr.bf16.mxu0 0
    %4712 = vmatpush1.bf16.msra.mxu0 0
    %4713 = vmatprep.subr.bf16.mxu0 0
    %4714 = vmatpush1.bf16.msra.mxu0 0
    %4715 = vmatprep.subr.bf16.mxu0 0
    %4716 = vmatpush1.bf16.msra.mxu0 0
    %4717 = vmatprep.subr.bf16.mxu0 0
    %4718 = vmatpush1.bf16.msra.mxu0 0
    %4719 = vmatprep.subr.bf16.mxu0 0
    %4720 = vmatpush1.bf16.msra.mxu0 0
    %4721 = vmatprep.subr.bf16.mxu0 0
    %4722 = vmatpush1.bf16.msra.mxu0 0
    %4723 = vmatprep.subr.bf16.mxu0 0
    %4724 = vmatpush1.bf16.msra.mxu0 0
    %4725 = vmatprep.subr.bf16.mxu0 0
    %4726 = vmatpush1.bf16.msra.mxu0 0
    %4727 = vmatprep.subr.bf16.mxu0 0
    %4728 = vmatpush1.bf16.msra.mxu0 0
    %4729 = vmatprep.mubr.bf16.mxu0 0
    %4730 = vmatmul.mubr.bf16.gmra.mrb[0].mxu0 %v4640
    %v4731 = vpop.f32.mrb[0].mxu0
    %v4732 = vadd.f32 0.0, %v4731
    %v4733 = vpop.f32.mrb[0].mxu0
    %v4734 = vadd.f32 0.0, %v4733
    %v4735 = vpop.f32.mrb[0].mxu0
    %v4736 = vadd.f32 0.0, %v4735
    %v4737 = vpop.f32.mrb[0].mxu0
    %v4738 = vadd.f32 0.0, %v4737
    %4739 = vdwg.mxu0
    %v4740 = vadd.f32 %v4557, %v4689
    %v4741 = vadd.f32 %v4558, %v4691
    %v4742 = vadd.f32 %v4559, %v4732
    %v4743 = vadd.f32 %v4560, %v4734
    %v4744 = vadd.f32 %v4561, %v4693
    %v4745 = vadd.f32 %v4562, %v4695
    %v4746 = vadd.f32 %v4563, %v4736
    %v4747 = vadd.f32 %v4564, %v4738
    %4748 = vrot.lane.b32.xlu0 %v1754, 114
    %v4749 = vpop.permute.xlu0 %4748
    %4750 = vrot.lane.b32.xlu0 %v1755, 114
    %v4751 = vpop.permute.xlu0 %4750
    %4752 = vrot.lane.b32.xlu0 %v1756, 114
    %v4753 = vpop.permute.xlu0 %4752
    %4754 = vrot.lane.b32.xlu0 %v1757, 114
    %v4755 = vpop.permute.xlu0 %4754
    %vm4756 = vcmask 932864
    %v4757 = vsel %vm4756, %v4749, %v4751
    %v4758 = vsel %vm4756, %v4751, %v4753
    %v4759 = vsel %vm4756, %v4753, %v4755
    %4762 = vrot.lane.b32.xlu0 %v1754, 122
    %v4763 = vpop.permute.xlu0 %4762
    %vm4765 = vcmask 998400
    %v4768 = vsel %vm4765, %v4759, %v4763
    %v4770 = vshrl.u32 %v4595, 16
    %v4771 = vpack.i.b16 %v4770, %v4770
    %v4773 = vlaneseq
    %v4774 = vshrl.u32 %v4773, 7
    %v4775 = vsub.s32 0, %v4774
    %v4776 = vrot.slane %v4771, %v4775
    %v4777 = vshrl.u32 %v4596, 16
    %v4778 = vpack.i.b16 %v4777, %v4777
    %v4780 = vlaneseq
    %v4781 = vshrl.u32 %v4780, 7
    %v4782 = vsub.s32 0, %v4781
    %v4783 = vrot.slane %v4778, %v4782
    %v4784 = vshrl.u32 %v4597, 16
    %v4785 = vpack.i.b16 %v4784, %v4784
    %v4787 = vlaneseq
    %v4788 = vshrl.u32 %v4787, 7
    %v4789 = vsub.s32 0, %v4788
    %v4790 = vrot.slane %v4785, %v4789
    %v4791 = vshrl.u32 %v4598, 16
    %v4792 = vpack.i.b16 %v4791, %v4791
    %v4794 = vlaneseq
    %v4795 = vshrl.u32 %v4794, 7
    %v4796 = vsub.s32 0, %v4795
    %v4797 = vrot.slane %v4792, %v4796
    %v4798 = vmul.bf16 %v4757, %v4776
    %v4799 = vmul.bf16 %v4758, %v4783
    %v4800 = vmul.bf16 %v4768, %v4790
    %v4801 = vmul.bf16 %v4763, %v4797
    %s4802 = scalar_lea.vmem %s5, 136
    %v4803 = vld [vmem:[%s4802] sm:$0xf]
    %v4804 = vld [vmem:[%s4802 + $0x4] sm:$0xf]
    %v4807 = vunpack.c.l.b16 %v4803
    %v4808 = vunpack.c.l.b16 %v4804
    %v4809 = vpack.c.b16 %v4808, %v4807
    %v4811 = vsel %vm1894, %v4809, 0
    %v4814 = vsel %vm1898, %v4798, 0
    %v4817 = vsel %vm1898, %v4799, 0
    %v4820 = vsel %vm1898, %v4800, 0
    %v4823 = vsel %vm1898, %v4801, 0
    %4825 = vmatprep.subr.bf16.mxu0 %v4817
    %4826 = vmatpush1.bf16.msra.mxu0 %v4814
    %4827 = vmatprep.subr.bf16.mxu0 0
    %4828 = vmatpush1.bf16.msra.mxu0 0
    %4829 = vmatprep.subr.bf16.mxu0 0
    %4830 = vmatpush1.bf16.msra.mxu0 0
    %4831 = vmatprep.subr.bf16.mxu0 0
    %4832 = vmatpush1.bf16.msra.mxu0 0
    %4833 = vmatprep.subr.bf16.mxu0 0
    %4834 = vmatpush1.bf16.msra.mxu0 0
    %4835 = vmatprep.subr.bf16.mxu0 0
    %4836 = vmatpush1.bf16.msra.mxu0 0
    %4837 = vmatprep.subr.bf16.mxu0 0
    %4838 = vmatpush1.bf16.msra.mxu0 0
    %4839 = vmatprep.subr.bf16.mxu0 0
    %4840 = vmatpush1.bf16.msra.mxu0 0
    %4841 = vmatprep.subr.bf16.mxu0 0
    %4842 = vmatpush1.bf16.msra.mxu0 0
    %4843 = vmatprep.subr.bf16.mxu0 0
    %4844 = vmatpush1.bf16.msra.mxu0 0
    %4845 = vmatprep.subr.bf16.mxu0 0
    %4846 = vmatpush1.bf16.msra.mxu0 0
    %4847 = vmatprep.subr.bf16.mxu0 0
    %4848 = vmatpush1.bf16.msra.mxu0 0
    %4849 = vmatprep.subr.bf16.mxu0 0
    %4850 = vmatpush1.bf16.msra.mxu0 0
    %4851 = vmatprep.subr.bf16.mxu0 0
    %4852 = vmatpush1.bf16.msra.mxu0 0
    %4853 = vmatprep.subr.bf16.mxu0 0
    %4854 = vmatpush1.bf16.msra.mxu0 0
    %4855 = vmatprep.subr.bf16.mxu0 0
    %4856 = vmatpush1.bf16.msra.mxu0 0
    %4857 = vmatprep.mubr.bf16.mxu0 0
    %4858 = vmatmul.mubr.bf16.gmra.mrb[0].mxu0 %v4811
    %v4859 = vpop.f32.mrb[0].mxu0
    %v4860 = vadd.f32 0.0, %v4859
    %v4861 = vpop.f32.mrb[0].mxu0
    %v4862 = vadd.f32 0.0, %v4861
    %v4863 = vpop.f32.mrb[0].mxu0
    %v4864 = vadd.f32 0.0, %v4863
    %v4865 = vpop.f32.mrb[0].mxu0
    %v4866 = vadd.f32 0.0, %v4865
    %4867 = vdwg.mxu0
    %4868 = vmatprep.subr.bf16.mxu0 %v4823
    %4869 = vmatpush1.bf16.msra.mxu0 %v4820
    %4870 = vmatprep.subr.bf16.mxu0 0
    %4871 = vmatpush1.bf16.msra.mxu0 0
    %4872 = vmatprep.subr.bf16.mxu0 0
    %4873 = vmatpush1.bf16.msra.mxu0 0
    %4874 = vmatprep.subr.bf16.mxu0 0
    %4875 = vmatpush1.bf16.msra.mxu0 0
    %4876 = vmatprep.subr.bf16.mxu0 0
    %4877 = vmatpush1.bf16.msra.mxu0 0
    %4878 = vmatprep.subr.bf16.mxu0 0
    %4879 = vmatpush1.bf16.msra.mxu0 0
    %4880 = vmatprep.subr.bf16.mxu0 0
    %4881 = vmatpush1.bf16.msra.mxu0 0
    %4882 = vmatprep.subr.bf16.mxu0 0
    %4883 = vmatpush1.bf16.msra.mxu0 0
    %4884 = vmatprep.subr.bf16.mxu0 0
    %4885 = vmatpush1.bf16.msra.mxu0 0
    %4886 = vmatprep.subr.bf16.mxu0 0
    %4887 = vmatpush1.bf16.msra.mxu0 0
    %4888 = vmatprep.subr.bf16.mxu0 0
    %4889 = vmatpush1.bf16.msra.mxu0 0
    %4890 = vmatprep.subr.bf16.mxu0 0
    %4891 = vmatpush1.bf16.msra.mxu0 0
    %4892 = vmatprep.subr.bf16.mxu0 0
    %4893 = vmatpush1.bf16.msra.mxu0 0
    %4894 = vmatprep.subr.bf16.mxu0 0
    %4895 = vmatpush1.bf16.msra.mxu0 0
    %4896 = vmatprep.subr.bf16.mxu0 0
    %4897 = vmatpush1.bf16.msra.mxu0 0
    %4898 = vmatprep.subr.bf16.mxu0 0
    %4899 = vmatpush1.bf16.msra.mxu0 0
    %4900 = vmatprep.mubr.bf16.mxu0 0
    %4901 = vmatmul.mubr.bf16.gmra.mrb[0].mxu0 %v4811
    %v4902 = vpop.f32.mrb[0].mxu0
    %v4903 = vadd.f32 0.0, %v4902
    %v4904 = vpop.f32.mrb[0].mxu0
    %v4905 = vadd.f32 0.0, %v4904
    %v4906 = vpop.f32.mrb[0].mxu0
    %v4907 = vadd.f32 0.0, %v4906
    %v4908 = vpop.f32.mrb[0].mxu0
    %v4909 = vadd.f32 0.0, %v4908
    %4910 = vdwg.mxu0
    %v4911 = vadd.f32 %v4740, %v4860
    %v4912 = vadd.f32 %v4741, %v4862
    %v4913 = vadd.f32 %v4742, %v4903
    %v4914 = vadd.f32 %v4743, %v4905
    %v4915 = vadd.f32 %v4744, %v4864
    %v4916 = vadd.f32 %v4745, %v4866
    %v4917 = vadd.f32 %v4746, %v4907
    %v4918 = vadd.f32 %v4747, %v4909
    %4919 = vrot.lane.b32.xlu0 %v1754, 113
    %v4920 = vpop.permute.xlu0 %4919
    %4921 = vrot.lane.b32.xlu0 %v1755, 113
    %v4922 = vpop.permute.xlu0 %4921
    %4923 = vrot.lane.b32.xlu0 %v1756, 113
    %v4924 = vpop.permute.xlu0 %4923
    %4925 = vrot.lane.b32.xlu0 %v1757, 113
    %v4926 = vpop.permute.xlu0 %4925
    %vm4927 = vcmask 924672
    %v4928 = vsel %vm4927, %v4920, %v4922
    %v4929 = vsel %vm4927, %v4922, %v4924
    %v4930 = vsel %vm4927, %v4924, %v4926
    %4933 = vrot.lane.b32.xlu0 %v1754, 121
    %v4934 = vpop.permute.xlu0 %4933
    %vm4936 = vcmask 990208
    %v4939 = vsel %vm4936, %v4930, %v4934
    %v4941 = vld [vmem:[%s4 + $0x20] sm:$0x22]
    %v4942 = vld [vmem:[%s4 + $0x28] sm:$0x22]
    %v4945 = vunpack.c.l.b16 %v4941
    %v4946 = vunpack.c.h.b16 %v4941
    %v4947 = vunpack.c.l.b16 %v4942
    %v4948 = vunpack.c.h.b16 %v4942
    %v4949 = vpack.c.b16 %v4945, %v4945
    %v4950 = vpack.c.b16 %v4946, %v4946
    %v4951 = vpack.c.b16 %v4947, %v4947
    %v4952 = vpack.c.b16 %v4948, %v4948
    %v4954 = vpack.i.b16 %v4949, %v4949
    %v4956 = vlaneseq
    %v4957 = vshrl.u32 %v4956, 7
    %v4958 = vsub.s32 1, %v4957
    %v4959 = vrot.slane %v4954, %v4958
    %v4961 = vpack.i.b16 %v4950, %v4950
    %v4963 = vlaneseq
    %v4964 = vshrl.u32 %v4963, 7
    %v4965 = vsub.s32 1, %v4964
    %v4966 = vrot.slane %v4961, %v4965
    %v4968 = vpack.i.b16 %v4951, %v4951
    %v4970 = vlaneseq
    %v4971 = vshrl.u32 %v4970, 7
    %v4972 = vsub.s32 1, %v4971
    %v4973 = vrot.slane %v4968, %v4972
    %v4975 = vpack.i.b16 %v4952, %v4952
    %v4977 = vlaneseq
    %v4978 = vshrl.u32 %v4977, 7
    %v4979 = vsub.s32 1, %v4978
    %v4980 = vrot.slane %v4975, %v4979
    %v4981 = vmul.bf16 %v4928, %v4959
    %v4982 = vmul.bf16 %v4929, %v4966
    %v4983 = vmul.bf16 %v4939, %v4973
    %v4984 = vmul.bf16 %v4934, %v4980
    %s4985 = scalar_lea.vmem %s5, 144
    %v4986 = vld [vmem:[%s4985] sm:$0xf]
    %v4987 = vld [vmem:[%s4985 + $0x4] sm:$0xf]
    %v4990 = vunpack.c.l.b16 %v4986
    %v4991 = vunpack.c.l.b16 %v4987
    %v4992 = vpack.c.b16 %v4991, %v4990
    %v4994 = vsel %vm1894, %v4992, 0
    %v4997 = vsel %vm1898, %v4981, 0
    %v5000 = vsel %vm1898, %v4982, 0
    %v5003 = vsel %vm1898, %v4983, 0
    %v5006 = vsel %vm1898, %v4984, 0
    %5008 = vmatprep.subr.bf16.mxu0 %v5000
    %5009 = vmatpush1.bf16.msra.mxu0 %v4997
    %5010 = vmatprep.subr.bf16.mxu0 0
    %5011 = vmatpush1.bf16.msra.mxu0 0
    %5012 = vmatprep.subr.bf16.mxu0 0
    %5013 = vmatpush1.bf16.msra.mxu0 0
    %5014 = vmatprep.subr.bf16.mxu0 0
    %5015 = vmatpush1.bf16.msra.mxu0 0
    %5016 = vmatprep.subr.bf16.mxu0 0
    %5017 = vmatpush1.bf16.msra.mxu0 0
    %5018 = vmatprep.subr.bf16.mxu0 0
    %5019 = vmatpush1.bf16.msra.mxu0 0
    %5020 = vmatprep.subr.bf16.mxu0 0
    %5021 = vmatpush1.bf16.msra.mxu0 0
    %5022 = vmatprep.subr.bf16.mxu0 0
    %5023 = vmatpush1.bf16.msra.mxu0 0
    %5024 = vmatprep.subr.bf16.mxu0 0
    %5025 = vmatpush1.bf16.msra.mxu0 0
    %5026 = vmatprep.subr.bf16.mxu0 0
    %5027 = vmatpush1.bf16.msra.mxu0 0
    %5028 = vmatprep.subr.bf16.mxu0 0
    %5029 = vmatpush1.bf16.msra.mxu0 0
    %5030 = vmatprep.subr.bf16.mxu0 0
    %5031 = vmatpush1.bf16.msra.mxu0 0
    %5032 = vmatprep.subr.bf16.mxu0 0
    %5033 = vmatpush1.bf16.msra.mxu0 0
    %5034 = vmatprep.subr.bf16.mxu0 0
    %5035 = vmatpush1.bf16.msra.mxu0 0
    %5036 = vmatprep.subr.bf16.mxu0 0
    %5037 = vmatpush1.bf16.msra.mxu0 0
    %5038 = vmatprep.subr.bf16.mxu0 0
    %5039 = vmatpush1.bf16.msra.mxu0 0
    %5040 = vmatprep.mubr.bf16.mxu0 0
    %5041 = vmatmul.mubr.bf16.gmra.mrb[0].mxu0 %v4994
    %v5042 = vpop.f32.mrb[0].mxu0
    %v5043 = vadd.f32 0.0, %v5042
    %v5044 = vpop.f32.mrb[0].mxu0
    %v5045 = vadd.f32 0.0, %v5044
    %v5046 = vpop.f32.mrb[0].mxu0
    %v5047 = vadd.f32 0.0, %v5046
    %v5048 = vpop.f32.mrb[0].mxu0
    %v5049 = vadd.f32 0.0, %v5048
    %5050 = vdwg.mxu0
    %5051 = vmatprep.subr.bf16.mxu0 %v5006
    %5052 = vmatpush1.bf16.msra.mxu0 %v5003
    %5053 = vmatprep.subr.bf16.mxu0 0
    %5054 = vmatpush1.bf16.msra.mxu0 0
    %5055 = vmatprep.subr.bf16.mxu0 0
    %5056 = vmatpush1.bf16.msra.mxu0 0
    %5057 = vmatprep.subr.bf16.mxu0 0
    %5058 = vmatpush1.bf16.msra.mxu0 0
    %5059 = vmatprep.subr.bf16.mxu0 0
    %5060 = vmatpush1.bf16.msra.mxu0 0
    %5061 = vmatprep.subr.bf16.mxu0 0
    %5062 = vmatpush1.bf16.msra.mxu0 0
    %5063 = vmatprep.subr.bf16.mxu0 0
    %5064 = vmatpush1.bf16.msra.mxu0 0
    %5065 = vmatprep.subr.bf16.mxu0 0
    %5066 = vmatpush1.bf16.msra.mxu0 0
    %5067 = vmatprep.subr.bf16.mxu0 0
    %5068 = vmatpush1.bf16.msra.mxu0 0
    %5069 = vmatprep.subr.bf16.mxu0 0
    %5070 = vmatpush1.bf16.msra.mxu0 0
    %5071 = vmatprep.subr.bf16.mxu0 0
    %5072 = vmatpush1.bf16.msra.mxu0 0
    %5073 = vmatprep.subr.bf16.mxu0 0
    %5074 = vmatpush1.bf16.msra.mxu0 0
    %5075 = vmatprep.subr.bf16.mxu0 0
    %5076 = vmatpush1.bf16.msra.mxu0 0
    %5077 = vmatprep.subr.bf16.mxu0 0
    %5078 = vmatpush1.bf16.msra.mxu0 0
    %5079 = vmatprep.subr.bf16.mxu0 0
    %5080 = vmatpush1.bf16.msra.mxu0 0
    %5081 = vmatprep.subr.bf16.mxu0 0
    %5082 = vmatpush1.bf16.msra.mxu0 0
    %5083 = vmatprep.mubr.bf16.mxu0 0
    %5084 = vmatmul.mubr.bf16.gmra.mrb[0].mxu0 %v4994
    %v5085 = vpop.f32.mrb[0].mxu0
    %v5086 = vadd.f32 0.0, %v5085
    %v5087 = vpop.f32.mrb[0].mxu0
    %v5088 = vadd.f32 0.0, %v5087
    %v5089 = vpop.f32.mrb[0].mxu0
    %v5090 = vadd.f32 0.0, %v5089
    %v5091 = vpop.f32.mrb[0].mxu0
    %v5092 = vadd.f32 0.0, %v5091
    %5093 = vdwg.mxu0
    %v5094 = vadd.f32 %v4911, %v5043
    %v5095 = vadd.f32 %v4912, %v5045
    %v5096 = vadd.f32 %v4913, %v5086
    %v5097 = vadd.f32 %v4914, %v5088
    %v5098 = vadd.f32 %v4915, %v5047
    %v5099 = vadd.f32 %v4916, %v5049
    %v5100 = vadd.f32 %v4917, %v5090
    %v5101 = vadd.f32 %v4918, %v5092
    %5102 = vrot.lane.b32.xlu0 %v1754, 112
    %v5103 = vpop.permute.xlu0 %5102
    %5104 = vrot.lane.b32.xlu0 %v1755, 112
    %v5105 = vpop.permute.xlu0 %5104
    %5106 = vrot.lane.b32.xlu0 %v1756, 112
    %v5107 = vpop.permute.xlu0 %5106
    %5108 = vrot.lane.b32.xlu0 %v1757, 112
    %v5109 = vpop.permute.xlu0 %5108
    %v5110 = vsel %vm1562, %v5103, %v5105
    %v5111 = vsel %vm1562, %v5105, %v5107
    %v5112 = vsel %vm1562, %v5107, %v5109
    %5115 = vrot.lane.b32.xlu0 %v1754, 120
    %v5116 = vpop.permute.xlu0 %5115
    %vm5118 = vcmask 982016
    %v5121 = vsel %vm5118, %v5112, %v5116
    %v5123 = vshrl.u32 %v4949, 16
    %v5124 = vpack.i.b16 %v5123, %v5123
    %v5126 = vlaneseq
    %v5127 = vshrl.u32 %v5126, 7
    %v5128 = vsub.s32 1, %v5127
    %v5129 = vrot.slane %v5124, %v5128
    %v5130 = vshrl.u32 %v4950, 16
    %v5131 = vpack.i.b16 %v5130, %v5130
    %v5133 = vlaneseq
    %v5134 = vshrl.u32 %v5133, 7
    %v5135 = vsub.s32 1, %v5134
    %v5136 = vrot.slane %v5131, %v5135
    %v5137 = vshrl.u32 %v4951, 16
    %v5138 = vpack.i.b16 %v5137, %v5137
    %v5140 = vlaneseq
    %v5141 = vshrl.u32 %v5140, 7
    %v5142 = vsub.s32 1, %v5141
    %v5143 = vrot.slane %v5138, %v5142
    %v5144 = vshrl.u32 %v4952, 16
    %v5145 = vpack.i.b16 %v5144, %v5144
    %v5147 = vlaneseq
    %v5148 = vshrl.u32 %v5147, 7
    %v5149 = vsub.s32 1, %v5148
    %v5150 = vrot.slane %v5145, %v5149
    %v5151 = vmul.bf16 %v5110, %v5129
    %v5152 = vmul.bf16 %v5111, %v5136
    %v5153 = vmul.bf16 %v5121, %v5143
    %v5154 = vmul.bf16 %v5116, %v5150
    %s5155 = scalar_lea.vmem %s5, 152
    %v5156 = vld [vmem:[%s5155] sm:$0xf]
    %v5157 = vld [vmem:[%s5155 + $0x4] sm:$0xf]
    %v5160 = vunpack.c.l.b16 %v5156
    %v5161 = vunpack.c.l.b16 %v5157
    %v5162 = vpack.c.b16 %v5161, %v5160
    %v5164 = vsel %vm1894, %v5162, 0
    %v5167 = vsel %vm1898, %v5151, 0
    %v5170 = vsel %vm1898, %v5152, 0
    %v5173 = vsel %vm1898, %v5153, 0
    %v5176 = vsel %vm1898, %v5154, 0
    %5178 = vmatprep.subr.bf16.mxu0 %v5170
    %5179 = vmatpush1.bf16.msra.mxu0 %v5167
    %5180 = vmatprep.subr.bf16.mxu0 0
    %5181 = vmatpush1.bf16.msra.mxu0 0
    %5182 = vmatprep.subr.bf16.mxu0 0
    %5183 = vmatpush1.bf16.msra.mxu0 0
    %5184 = vmatprep.subr.bf16.mxu0 0
    %5185 = vmatpush1.bf16.msra.mxu0 0
    %5186 = vmatprep.subr.bf16.mxu0 0
    %5187 = vmatpush1.bf16.msra.mxu0 0
    %5188 = vmatprep.subr.bf16.mxu0 0
    %5189 = vmatpush1.bf16.msra.mxu0 0
    %5190 = vmatprep.subr.bf16.mxu0 0
    %5191 = vmatpush1.bf16.msra.mxu0 0
    %5192 = vmatprep.subr.bf16.mxu0 0
    %5193 = vmatpush1.bf16.msra.mxu0 0
    %5194 = vmatprep.subr.bf16.mxu0 0
    %5195 = vmatpush1.bf16.msra.mxu0 0
    %5196 = vmatprep.subr.bf16.mxu0 0
    %5197 = vmatpush1.bf16.msra.mxu0 0
    %5198 = vmatprep.subr.bf16.mxu0 0
    %5199 = vmatpush1.bf16.msra.mxu0 0
    %5200 = vmatprep.subr.bf16.mxu0 0
    %5201 = vmatpush1.bf16.msra.mxu0 0
    %5202 = vmatprep.subr.bf16.mxu0 0
    %5203 = vmatpush1.bf16.msra.mxu0 0
    %5204 = vmatprep.subr.bf16.mxu0 0
    %5205 = vmatpush1.bf16.msra.mxu0 0
    %5206 = vmatprep.subr.bf16.mxu0 0
    %5207 = vmatpush1.bf16.msra.mxu0 0
    %5208 = vmatprep.subr.bf16.mxu0 0
    %5209 = vmatpush1.bf16.msra.mxu0 0
    %5210 = vmatprep.mubr.bf16.mxu0 0
    %5211 = vmatmul.mubr.bf16.gmra.mrb[0].mxu0 %v5164
    %v5212 = vpop.f32.mrb[0].mxu0
    %v5213 = vadd.f32 0.0, %v5212
    %v5214 = vpop.f32.mrb[0].mxu0
    %v5215 = vadd.f32 0.0, %v5214
    %v5216 = vpop.f32.mrb[0].mxu0
    %v5217 = vadd.f32 0.0, %v5216
    %v5218 = vpop.f32.mrb[0].mxu0
    %v5219 = vadd.f32 0.0, %v5218
    %5220 = vdwg.mxu0
    %5221 = vmatprep.subr.bf16.mxu0 %v5176
    %5222 = vmatpush1.bf16.msra.mxu0 %v5173
    %5223 = vmatprep.subr.bf16.mxu0 0
    %5224 = vmatpush1.bf16.msra.mxu0 0
    %5225 = vmatprep.subr.bf16.mxu0 0
    %5226 = vmatpush1.bf16.msra.mxu0 0
    %5227 = vmatprep.subr.bf16.mxu0 0
    %5228 = vmatpush1.bf16.msra.mxu0 0
    %5229 = vmatprep.subr.bf16.mxu0 0
    %5230 = vmatpush1.bf16.msra.mxu0 0
    %5231 = vmatprep.subr.bf16.mxu0 0
    %5232 = vmatpush1.bf16.msra.mxu0 0
    %5233 = vmatprep.subr.bf16.mxu0 0
    %5234 = vmatpush1.bf16.msra.mxu0 0
    %5235 = vmatprep.subr.bf16.mxu0 0
    %5236 = vmatpush1.bf16.msra.mxu0 0
    %5237 = vmatprep.subr.bf16.mxu0 0
    %5238 = vmatpush1.bf16.msra.mxu0 0
    %5239 = vmatprep.subr.bf16.mxu0 0
    %5240 = vmatpush1.bf16.msra.mxu0 0
    %5241 = vmatprep.subr.bf16.mxu0 0
    %5242 = vmatpush1.bf16.msra.mxu0 0
    %5243 = vmatprep.subr.bf16.mxu0 0
    %5244 = vmatpush1.bf16.msra.mxu0 0
    %5245 = vmatprep.subr.bf16.mxu0 0
    %5246 = vmatpush1.bf16.msra.mxu0 0
    %5247 = vmatprep.subr.bf16.mxu0 0
    %5248 = vmatpush1.bf16.msra.mxu0 0
    %5249 = vmatprep.subr.bf16.mxu0 0
    %5250 = vmatpush1.bf16.msra.mxu0 0
    %5251 = vmatprep.subr.bf16.mxu0 0
    %5252 = vmatpush1.bf16.msra.mxu0 0
    %5253 = vmatprep.mubr.bf16.mxu0 0
    %5254 = vmatmul.mubr.bf16.gmra.mrb[0].mxu0 %v5164
    %v5255 = vpop.f32.mrb[0].mxu0
    %v5256 = vadd.f32 0.0, %v5255
    %v5257 = vpop.f32.mrb[0].mxu0
    %v5258 = vadd.f32 0.0, %v5257
    %v5259 = vpop.f32.mrb[0].mxu0
    %v5260 = vadd.f32 0.0, %v5259
    %v5261 = vpop.f32.mrb[0].mxu0
    %v5262 = vadd.f32 0.0, %v5261
    %5263 = vdwg.mxu0
    %v5264 = vadd.f32 %v5094, %v5213
    %v5265 = vadd.f32 %v5095, %v5215
    %v5266 = vadd.f32 %v5096, %v5256
    %v5267 = vadd.f32 %v5097, %v5258
    %v5268 = vadd.f32 %v5098, %v5217
    %v5269 = vadd.f32 %v5099, %v5219
    %v5270 = vadd.f32 %v5100, %v5260
    %v5271 = vadd.f32 %v5101, %v5262
    %5272 = vrot.lane.b32.xlu0 %v1754, 102
    %v5273 = vpop.permute.xlu0 %5272
    %5274 = vrot.lane.b32.xlu0 %v1755, 102
    %v5275 = vpop.permute.xlu0 %5274
    %5276 = vrot.lane.b32.xlu0 %v1756, 102
    %v5277 = vpop.permute.xlu0 %5276
    %5278 = vrot.lane.b32.xlu0 %v1757, 102
    %v5279 = vpop.permute.xlu0 %5278
    %vm5280 = vcmask 834560
    %v5281 = vsel %vm5280, %v5273, %v5275
    %v5282 = vsel %vm5280, %v5275, %v5277
    %v5283 = vsel %vm5280, %v5277, %v5279
    %5286 = vrot.lane.b32.xlu0 %v1754, 110
    %v5287 = vpop.permute.xlu0 %5286
    %vm5289 = vcmask 900096
    %v5292 = vsel %vm5289, %v5283, %v5287
    %v5294 = vld [vmem:[%s4 + $0x20] sm:$0x44]
    %v5295 = vld [vmem:[%s4 + $0x28] sm:$0x44]
    %v5298 = vunpack.c.l.b16 %v5294
    %v5299 = vunpack.c.h.b16 %v5294
    %v5300 = vunpack.c.l.b16 %v5295
    %v5301 = vunpack.c.h.b16 %v5295
    %v5302 = vpack.c.b16 %v5298, %v5298
    %v5303 = vpack.c.b16 %v5299, %v5299
    %v5304 = vpack.c.b16 %v5300, %v5300
    %v5305 = vpack.c.b16 %v5301, %v5301
    %v5307 = vpack.i.b16 %v5302, %v5302
    %v5309 = vlaneseq
    %v5310 = vshrl.u32 %v5309, 7
    %v5311 = vsub.s32 2, %v5310
    %v5312 = vrot.slane %v5307, %v5311
    %v5314 = vpack.i.b16 %v5303, %v5303
    %v5316 = vlaneseq
    %v5317 = vshrl.u32 %v5316, 7
    %v5318 = vsub.s32 2, %v5317
    %v5319 = vrot.slane %v5314, %v5318
    %v5321 = vpack.i.b16 %v5304, %v5304
    %v5323 = vlaneseq
    %v5324 = vshrl.u32 %v5323, 7
    %v5325 = vsub.s32 2, %v5324
    %v5326 = vrot.slane %v5321, %v5325
    %v5328 = vpack.i.b16 %v5305, %v5305
    %v5330 = vlaneseq
    %v5331 = vshrl.u32 %v5330, 7
    %v5332 = vsub.s32 2, %v5331
    %v5333 = vrot.slane %v5328, %v5332
    %v5334 = vmul.bf16 %v5281, %v5312
    %v5335 = vmul.bf16 %v5282, %v5319
    %v5336 = vmul.bf16 %v5292, %v5326
    %v5337 = vmul.bf16 %v5287, %v5333
    %s5338 = scalar_lea.vmem %s5, 160
    %v5339 = vld [vmem:[%s5338] sm:$0xf]
    %v5340 = vld [vmem:[%s5338 + $0x4] sm:$0xf]
    %v5343 = vunpack.c.l.b16 %v5339
    %v5344 = vunpack.c.l.b16 %v5340
    %v5345 = vpack.c.b16 %v5344, %v5343
    %v5347 = vsel %vm1894, %v5345, 0
    %v5350 = vsel %vm1898, %v5334, 0
    %v5353 = vsel %vm1898, %v5335, 0
    %v5356 = vsel %vm1898, %v5336, 0
    %v5359 = vsel %vm1898, %v5337, 0
    %5361 = vmatprep.subr.bf16.mxu0 %v5353
    %5362 = vmatpush1.bf16.msra.mxu0 %v5350
    %5363 = vmatprep.subr.bf16.mxu0 0
    %5364 = vmatpush1.bf16.msra.mxu0 0
    %5365 = vmatprep.subr.bf16.mxu0 0
    %5366 = vmatpush1.bf16.msra.mxu0 0
    %5367 = vmatprep.subr.bf16.mxu0 0
    %5368 = vmatpush1.bf16.msra.mxu0 0
    %5369 = vmatprep.subr.bf16.mxu0 0
    %5370 = vmatpush1.bf16.msra.mxu0 0
    %5371 = vmatprep.subr.bf16.mxu0 0
    %5372 = vmatpush1.bf16.msra.mxu0 0
    %5373 = vmatprep.subr.bf16.mxu0 0
    %5374 = vmatpush1.bf16.msra.mxu0 0
    %5375 = vmatprep.subr.bf16.mxu0 0
    %5376 = vmatpush1.bf16.msra.mxu0 0
    %5377 = vmatprep.subr.bf16.mxu0 0
    %5378 = vmatpush1.bf16.msra.mxu0 0
    %5379 = vmatprep.subr.bf16.mxu0 0
    %5380 = vmatpush1.bf16.msra.mxu0 0
    %5381 = vmatprep.subr.bf16.mxu0 0
    %5382 = vmatpush1.bf16.msra.mxu0 0
    %5383 = vmatprep.subr.bf16.mxu0 0
    %5384 = vmatpush1.bf16.msra.mxu0 0
    %5385 = vmatprep.subr.bf16.mxu0 0
    %5386 = vmatpush1.bf16.msra.mxu0 0
    %5387 = vmatprep.subr.bf16.mxu0 0
    %5388 = vmatpush1.bf16.msra.mxu0 0
    %5389 = vmatprep.subr.bf16.mxu0 0
    %5390 = vmatpush1.bf16.msra.mxu0 0
    %5391 = vmatprep.subr.bf16.mxu0 0
    %5392 = vmatpush1.bf16.msra.mxu0 0
    %5393 = vmatprep.mubr.bf16.mxu0 0
    %5394 = vmatmul.mubr.bf16.gmra.mrb[0].mxu0 %v5347
    %v5395 = vpop.f32.mrb[0].mxu0
    %v5396 = vadd.f32 0.0, %v5395
    %v5397 = vpop.f32.mrb[0].mxu0
    %v5398 = vadd.f32 0.0, %v5397
    %v5399 = vpop.f32.mrb[0].mxu0
    %v5400 = vadd.f32 0.0, %v5399
    %v5401 = vpop.f32.mrb[0].mxu0
    %v5402 = vadd.f32 0.0, %v5401
    %5403 = vdwg.mxu0
    %5404 = vmatprep.subr.bf16.mxu0 %v5359
    %5405 = vmatpush1.bf16.msra.mxu0 %v5356
    %5406 = vmatprep.subr.bf16.mxu0 0
    %5407 = vmatpush1.bf16.msra.mxu0 0
    %5408 = vmatprep.subr.bf16.mxu0 0
    %5409 = vmatpush1.bf16.msra.mxu0 0
    %5410 = vmatprep.subr.bf16.mxu0 0
    %5411 = vmatpush1.bf16.msra.mxu0 0
    %5412 = vmatprep.subr.bf16.mxu0 0
    %5413 = vmatpush1.bf16.msra.mxu0 0
    %5414 = vmatprep.subr.bf16.mxu0 0
    %5415 = vmatpush1.bf16.msra.mxu0 0
    %5416 = vmatprep.subr.bf16.mxu0 0
    %5417 = vmatpush1.bf16.msra.mxu0 0
    %5418 = vmatprep.subr.bf16.mxu0 0
    %5419 = vmatpush1.bf16.msra.mxu0 0
    %5420 = vmatprep.subr.bf16.mxu0 0
    %5421 = vmatpush1.bf16.msra.mxu0 0
    %5422 = vmatprep.subr.bf16.mxu0 0
    %5423 = vmatpush1.bf16.msra.mxu0 0
    %5424 = vmatprep.subr.bf16.mxu0 0
    %5425 = vmatpush1.bf16.msra.mxu0 0
    %5426 = vmatprep.subr.bf16.mxu0 0
    %5427 = vmatpush1.bf16.msra.mxu0 0
    %5428 = vmatprep.subr.bf16.mxu0 0
    %5429 = vmatpush1.bf16.msra.mxu0 0
    %5430 = vmatprep.subr.bf16.mxu0 0
    %5431 = vmatpush1.bf16.msra.mxu0 0
    %5432 = vmatprep.subr.bf16.mxu0 0
    %5433 = vmatpush1.bf16.msra.mxu0 0
    %5434 = vmatprep.subr.bf16.mxu0 0
    %5435 = vmatpush1.bf16.msra.mxu0 0
    %5436 = vmatprep.mubr.bf16.mxu0 0
    %5437 = vmatmul.mubr.bf16.gmra.mrb[0].mxu0 %v5347
    %v5438 = vpop.f32.mrb[0].mxu0
    %v5439 = vadd.f32 0.0, %v5438
    %v5440 = vpop.f32.mrb[0].mxu0
    %v5441 = vadd.f32 0.0, %v5440
    %v5442 = vpop.f32.mrb[0].mxu0
    %v5443 = vadd.f32 0.0, %v5442
    %v5444 = vpop.f32.mrb[0].mxu0
    %v5445 = vadd.f32 0.0, %v5444
    %5446 = vdwg.mxu0
    %v5447 = vadd.f32 %v5264, %v5396
    %v5448 = vadd.f32 %v5265, %v5398
    %v5449 = vadd.f32 %v5266, %v5439
    %v5450 = vadd.f32 %v5267, %v5441
    %v5451 = vadd.f32 %v5268, %v5400
    %v5452 = vadd.f32 %v5269, %v5402
    %v5453 = vadd.f32 %v5270, %v5443
    %v5454 = vadd.f32 %v5271, %v5445
    %5455 = vrot.lane.b32.xlu0 %v1754, 101
    %v5456 = vpop.permute.xlu0 %5455
    %5457 = vrot.lane.b32.xlu0 %v1755, 101
    %v5458 = vpop.permute.xlu0 %5457
    %5459 = vrot.lane.b32.xlu0 %v1756, 101
    %v5460 = vpop.permute.xlu0 %5459
    %5461 = vrot.lane.b32.xlu0 %v1757, 101
    %v5462 = vpop.permute.xlu0 %5461
    %vm5463 = vcmask 826368
    %v5464 = vsel %vm5463, %v5456, %v5458
    %v5465 = vsel %vm5463, %v5458, %v5460
    %v5466 = vsel %vm5463, %v5460, %v5462
    %5469 = vrot.lane.b32.xlu0 %v1754, 109
    %v5470 = vpop.permute.xlu0 %5469
    %vm5472 = vcmask 891904
    %v5475 = vsel %vm5472, %v5466, %v5470
    %v5477 = vshrl.u32 %v5302, 16
    %v5478 = vpack.i.b16 %v5477, %v5477
    %v5480 = vlaneseq
    %v5481 = vshrl.u32 %v5480, 7
    %v5482 = vsub.s32 2, %v5481
    %v5483 = vrot.slane %v5478, %v5482
    %v5484 = vshrl.u32 %v5303, 16
    %v5485 = vpack.i.b16 %v5484, %v5484
    %v5487 = vlaneseq
    %v5488 = vshrl.u32 %v5487, 7
    %v5489 = vsub.s32 2, %v5488
    %v5490 = vrot.slane %v5485, %v5489
    %v5491 = vshrl.u32 %v5304, 16
    %v5492 = vpack.i.b16 %v5491, %v5491
    %v5494 = vlaneseq
    %v5495 = vshrl.u32 %v5494, 7
    %v5496 = vsub.s32 2, %v5495
    %v5497 = vrot.slane %v5492, %v5496
    %v5498 = vshrl.u32 %v5305, 16
    %v5499 = vpack.i.b16 %v5498, %v5498
    %v5501 = vlaneseq
    %v5502 = vshrl.u32 %v5501, 7
    %v5503 = vsub.s32 2, %v5502
    %v5504 = vrot.slane %v5499, %v5503
    %v5505 = vmul.bf16 %v5464, %v5483
    %v5506 = vmul.bf16 %v5465, %v5490
    %v5507 = vmul.bf16 %v5475, %v5497
    %v5508 = vmul.bf16 %v5470, %v5504
    %s5509 = scalar_lea.vmem %s5, 168
    %v5510 = vld [vmem:[%s5509] sm:$0xf]
    %v5511 = vld [vmem:[%s5509 + $0x4] sm:$0xf]
    %v5514 = vunpack.c.l.b16 %v5510
    %v5515 = vunpack.c.l.b16 %v5511
    %v5516 = vpack.c.b16 %v5515, %v5514
    %v5518 = vsel %vm1894, %v5516, 0
    %v5521 = vsel %vm1898, %v5505, 0
    %v5524 = vsel %vm1898, %v5506, 0
    %v5527 = vsel %vm1898, %v5507, 0
    %v5530 = vsel %vm1898, %v5508, 0
    %5532 = vmatprep.subr.bf16.mxu0 %v5524
    %5533 = vmatpush1.bf16.msra.mxu0 %v5521
    %5534 = vmatprep.subr.bf16.mxu0 0
    %5535 = vmatpush1.bf16.msra.mxu0 0
    %5536 = vmatprep.subr.bf16.mxu0 0
    %5537 = vmatpush1.bf16.msra.mxu0 0
    %5538 = vmatprep.subr.bf16.mxu0 0
    %5539 = vmatpush1.bf16.msra.mxu0 0
    %5540 = vmatprep.subr.bf16.mxu0 0
    %5541 = vmatpush1.bf16.msra.mxu0 0
    %5542 = vmatprep.subr.bf16.mxu0 0
    %5543 = vmatpush1.bf16.msra.mxu0 0
    %5544 = vmatprep.subr.bf16.mxu0 0
    %5545 = vmatpush1.bf16.msra.mxu0 0
    %5546 = vmatprep.subr.bf16.mxu0 0
    %5547 = vmatpush1.bf16.msra.mxu0 0
    %5548 = vmatprep.subr.bf16.mxu0 0
    %5549 = vmatpush1.bf16.msra.mxu0 0
    %5550 = vmatprep.subr.bf16.mxu0 0
    %5551 = vmatpush1.bf16.msra.mxu0 0
    %5552 = vmatprep.subr.bf16.mxu0 0
    %5553 = vmatpush1.bf16.msra.mxu0 0
    %5554 = vmatprep.subr.bf16.mxu0 0
    %5555 = vmatpush1.bf16.msra.mxu0 0
    %5556 = vmatprep.subr.bf16.mxu0 0
    %5557 = vmatpush1.bf16.msra.mxu0 0
    %5558 = vmatprep.subr.bf16.mxu0 0
    %5559 = vmatpush1.bf16.msra.mxu0 0
    %5560 = vmatprep.subr.bf16.mxu0 0
    %5561 = vmatpush1.bf16.msra.mxu0 0
    %5562 = vmatprep.subr.bf16.mxu0 0
    %5563 = vmatpush1.bf16.msra.mxu0 0
    %5564 = vmatprep.mubr.bf16.mxu0 0
    %5565 = vmatmul.mubr.bf16.gmra.mrb[0].mxu0 %v5518
    %v5566 = vpop.f32.mrb[0].mxu0
    %v5567 = vadd.f32 0.0, %v5566
    %v5568 = vpop.f32.mrb[0].mxu0
    %v5569 = vadd.f32 0.0, %v5568
    %v5570 = vpop.f32.mrb[0].mxu0
    %v5571 = vadd.f32 0.0, %v5570
    %v5572 = vpop.f32.mrb[0].mxu0
    %v5573 = vadd.f32 0.0, %v5572
    %5574 = vdwg.mxu0
    %5575 = vmatprep.subr.bf16.mxu0 %v5530
    %5576 = vmatpush1.bf16.msra.mxu0 %v5527
    %5577 = vmatprep.subr.bf16.mxu0 0
    %5578 = vmatpush1.bf16.msra.mxu0 0
    %5579 = vmatprep.subr.bf16.mxu0 0
    %5580 = vmatpush1.bf16.msra.mxu0 0
    %5581 = vmatprep.subr.bf16.mxu0 0
    %5582 = vmatpush1.bf16.msra.mxu0 0
    %5583 = vmatprep.subr.bf16.mxu0 0
    %5584 = vmatpush1.bf16.msra.mxu0 0
    %5585 = vmatprep.subr.bf16.mxu0 0
    %5586 = vmatpush1.bf16.msra.mxu0 0
    %5587 = vmatprep.subr.bf16.mxu0 0
    %5588 = vmatpush1.bf16.msra.mxu0 0
    %5589 = vmatprep.subr.bf16.mxu0 0
    %5590 = vmatpush1.bf16.msra.mxu0 0
    %5591 = vmatprep.subr.bf16.mxu0 0
    %5592 = vmatpush1.bf16.msra.mxu0 0
    %5593 = vmatprep.subr.bf16.mxu0 0
    %5594 = vmatpush1.bf16.msra.mxu0 0
    %5595 = vmatprep.subr.bf16.mxu0 0
    %5596 = vmatpush1.bf16.msra.mxu0 0
    %5597 = vmatprep.subr.bf16.mxu0 0
    %5598 = vmatpush1.bf16.msra.mxu0 0
    %5599 = vmatprep.subr.bf16.mxu0 0
    %5600 = vmatpush1.bf16.msra.mxu0 0
    %5601 = vmatprep.subr.bf16.mxu0 0
    %5602 = vmatpush1.bf16.msra.mxu0 0
    %5603 = vmatprep.subr.bf16.mxu0 0
    %5604 = vmatpush1.bf16.msra.mxu0 0
    %5605 = vmatprep.subr.bf16.mxu0 0
    %5606 = vmatpush1.bf16.msra.mxu0 0
    %5607 = vmatprep.mubr.bf16.mxu0 0
    %5608 = vmatmul.mubr.bf16.gmra.mrb[0].mxu0 %v5518
    %v5609 = vpop.f32.mrb[0].mxu0
    %v5610 = vadd.f32 0.0, %v5609
    %v5611 = vpop.f32.mrb[0].mxu0
    %v5612 = vadd.f32 0.0, %v5611
    %v5613 = vpop.f32.mrb[0].mxu0
    %v5614 = vadd.f32 0.0, %v5613
    %v5615 = vpop.f32.mrb[0].mxu0
    %v5616 = vadd.f32 0.0, %v5615
    %5617 = vdwg.mxu0
    %v5618 = vadd.f32 %v5447, %v5567
    %v5619 = vadd.f32 %v5448, %v5569
    %v5620 = vadd.f32 %v5449, %v5610
    %v5621 = vadd.f32 %v5450, %v5612
    %v5622 = vadd.f32 %v5451, %v5571
    %v5623 = vadd.f32 %v5452, %v5573
    %v5624 = vadd.f32 %v5453, %v5614
    %v5625 = vadd.f32 %v5454, %v5616
    %5626 = vrot.lane.b32.xlu0 %v1754, 100
    %v5627 = vpop.permute.xlu0 %5626
    %5628 = vrot.lane.b32.xlu0 %v1755, 100
    %v5629 = vpop.permute.xlu0 %5628
    %5630 = vrot.lane.b32.xlu0 %v1756, 100
    %v5631 = vpop.permute.xlu0 %5630
    %5632 = vrot.lane.b32.xlu0 %v1757, 100
    %v5633 = vpop.permute.xlu0 %5632
    %vm5634 = vcmask 818176
    %v5635 = vsel %vm5634, %v5627, %v5629
    %v5636 = vsel %vm5634, %v5629, %v5631
    %v5637 = vsel %vm5634, %v5631, %v5633
    %5640 = vrot.lane.b32.xlu0 %v1754, 108
    %v5641 = vpop.permute.xlu0 %5640
    %vm5643 = vcmask 883712
    %v5646 = vsel %vm5643, %v5637, %v5641
    %v5648 = vld [vmem:[%s4 + $0x20] sm:$0x88]
    %v5649 = vld [vmem:[%s4 + $0x28] sm:$0x88]
    %v5652 = vunpack.c.l.b16 %v5648
    %v5653 = vunpack.c.h.b16 %v5648
    %v5654 = vunpack.c.l.b16 %v5649
    %v5655 = vunpack.c.h.b16 %v5649
    %v5656 = vpack.c.b16 %v5652, %v5652
    %v5657 = vpack.c.b16 %v5653, %v5653
    %v5658 = vpack.c.b16 %v5654, %v5654
    %v5659 = vpack.c.b16 %v5655, %v5655
    %v5661 = vpack.i.b16 %v5656, %v5656
    %v5663 = vlaneseq
    %v5664 = vshrl.u32 %v5663, 7
    %v5665 = vsub.s32 3, %v5664
    %v5666 = vrot.slane %v5661, %v5665
    %v5668 = vpack.i.b16 %v5657, %v5657
    %v5670 = vlaneseq
    %v5671 = vshrl.u32 %v5670, 7
    %v5672 = vsub.s32 3, %v5671
    %v5673 = vrot.slane %v5668, %v5672
    %v5675 = vpack.i.b16 %v5658, %v5658
    %v5677 = vlaneseq
    %v5678 = vshrl.u32 %v5677, 7
    %v5679 = vsub.s32 3, %v5678
    %v5680 = vrot.slane %v5675, %v5679
    %v5682 = vpack.i.b16 %v5659, %v5659
    %v5684 = vlaneseq
    %v5685 = vshrl.u32 %v5684, 7
    %v5686 = vsub.s32 3, %v5685
    %v5687 = vrot.slane %v5682, %v5686
    %v5688 = vmul.bf16 %v5635, %v5666
    %v5689 = vmul.bf16 %v5636, %v5673
    %v5690 = vmul.bf16 %v5646, %v5680
    %v5691 = vmul.bf16 %v5641, %v5687
    %s5692 = scalar_lea.vmem %s5, 176
    %v5693 = vld [vmem:[%s5692] sm:$0xf]
    %v5694 = vld [vmem:[%s5692 + $0x4] sm:$0xf]
    %v5697 = vunpack.c.l.b16 %v5693
    %v5698 = vunpack.c.l.b16 %v5694
    %v5699 = vpack.c.b16 %v5698, %v5697
    %v5701 = vsel %vm1894, %v5699, 0
    %v5704 = vsel %vm1898, %v5688, 0
    %v5707 = vsel %vm1898, %v5689, 0
    %v5710 = vsel %vm1898, %v5690, 0
    %v5713 = vsel %vm1898, %v5691, 0
    %5715 = vmatprep.subr.bf16.mxu0 %v5707
    %5716 = vmatpush1.bf16.msra.mxu0 %v5704
    %5717 = vmatprep.subr.bf16.mxu0 0
    %5718 = vmatpush1.bf16.msra.mxu0 0
    %5719 = vmatprep.subr.bf16.mxu0 0
    %5720 = vmatpush1.bf16.msra.mxu0 0
    %5721 = vmatprep.subr.bf16.mxu0 0
    %5722 = vmatpush1.bf16.msra.mxu0 0
    %5723 = vmatprep.subr.bf16.mxu0 0
    %5724 = vmatpush1.bf16.msra.mxu0 0
    %5725 = vmatprep.subr.bf16.mxu0 0
    %5726 = vmatpush1.bf16.msra.mxu0 0
    %5727 = vmatprep.subr.bf16.mxu0 0
    %5728 = vmatpush1.bf16.msra.mxu0 0
    %5729 = vmatprep.subr.bf16.mxu0 0
    %5730 = vmatpush1.bf16.msra.mxu0 0
    %5731 = vmatprep.subr.bf16.mxu0 0
    %5732 = vmatpush1.bf16.msra.mxu0 0
    %5733 = vmatprep.subr.bf16.mxu0 0
    %5734 = vmatpush1.bf16.msra.mxu0 0
    %5735 = vmatprep.subr.bf16.mxu0 0
    %5736 = vmatpush1.bf16.msra.mxu0 0
    %5737 = vmatprep.subr.bf16.mxu0 0
    %5738 = vmatpush1.bf16.msra.mxu0 0
    %5739 = vmatprep.subr.bf16.mxu0 0
    %5740 = vmatpush1.bf16.msra.mxu0 0
    %5741 = vmatprep.subr.bf16.mxu0 0
    %5742 = vmatpush1.bf16.msra.mxu0 0
    %5743 = vmatprep.subr.bf16.mxu0 0
    %5744 = vmatpush1.bf16.msra.mxu0 0
    %5745 = vmatprep.subr.bf16.mxu0 0
    %5746 = vmatpush1.bf16.msra.mxu0 0
    %5747 = vmatprep.mubr.bf16.mxu0 0
    %5748 = vmatmul.mubr.bf16.gmra.mrb[0].mxu0 %v5701
    %v5749 = vpop.f32.mrb[0].mxu0
    %v5750 = vadd.f32 0.0, %v5749
    %v5751 = vpop.f32.mrb[0].mxu0
    %v5752 = vadd.f32 0.0, %v5751
    %v5753 = vpop.f32.mrb[0].mxu0
    %v5754 = vadd.f32 0.0, %v5753
    %v5755 = vpop.f32.mrb[0].mxu0
    %v5756 = vadd.f32 0.0, %v5755
    %5757 = vdwg.mxu0
    %5758 = vmatprep.subr.bf16.mxu0 %v5713
    %5759 = vmatpush1.bf16.msra.mxu0 %v5710
    %5760 = vmatprep.subr.bf16.mxu0 0
    %5761 = vmatpush1.bf16.msra.mxu0 0
    %5762 = vmatprep.subr.bf16.mxu0 0
    %5763 = vmatpush1.bf16.msra.mxu0 0
    %5764 = vmatprep.subr.bf16.mxu0 0
    %5765 = vmatpush1.bf16.msra.mxu0 0
    %5766 = vmatprep.subr.bf16.mxu0 0
    %5767 = vmatpush1.bf16.msra.mxu0 0
    %5768 = vmatprep.subr.bf16.mxu0 0
    %5769 = vmatpush1.bf16.msra.mxu0 0
    %5770 = vmatprep.subr.bf16.mxu0 0
    %5771 = vmatpush1.bf16.msra.mxu0 0
    %5772 = vmatprep.subr.bf16.mxu0 0
    %5773 = vmatpush1.bf16.msra.mxu0 0
    %5774 = vmatprep.subr.bf16.mxu0 0
    %5775 = vmatpush1.bf16.msra.mxu0 0
    %5776 = vmatprep.subr.bf16.mxu0 0
    %5777 = vmatpush1.bf16.msra.mxu0 0
    %5778 = vmatprep.subr.bf16.mxu0 0
    %5779 = vmatpush1.bf16.msra.mxu0 0
    %5780 = vmatprep.subr.bf16.mxu0 0
    %5781 = vmatpush1.bf16.msra.mxu0 0
    %5782 = vmatprep.subr.bf16.mxu0 0
    %5783 = vmatpush1.bf16.msra.mxu0 0
    %5784 = vmatprep.subr.bf16.mxu0 0
    %5785 = vmatpush1.bf16.msra.mxu0 0
    %5786 = vmatprep.subr.bf16.mxu0 0
    %5787 = vmatpush1.bf16.msra.mxu0 0
    %5788 = vmatprep.subr.bf16.mxu0 0
    %5789 = vmatpush1.bf16.msra.mxu0 0
    %5790 = vmatprep.mubr.bf16.mxu0 0
    %5791 = vmatmul.mubr.bf16.gmra.mrb[0].mxu0 %v5701
    %v5792 = vpop.f32.mrb[0].mxu0
    %v5793 = vadd.f32 0.0, %v5792
    %v5794 = vpop.f32.mrb[0].mxu0
    %v5795 = vadd.f32 0.0, %v5794
    %v5796 = vpop.f32.mrb[0].mxu0
    %v5797 = vadd.f32 0.0, %v5796
    %v5798 = vpop.f32.mrb[0].mxu0
    %v5799 = vadd.f32 0.0, %v5798
    %5800 = vdwg.mxu0
    %v5801 = vadd.f32 %v5618, %v5750
    %v5802 = vadd.f32 %v5619, %v5752
    %v5803 = vadd.f32 %v5620, %v5793
    %v5804 = vadd.f32 %v5621, %v5795
    %v5805 = vadd.f32 %v5622, %v5754
    %v5806 = vadd.f32 %v5623, %v5756
    %v5807 = vadd.f32 %v5624, %v5797
    %v5808 = vadd.f32 %v5625, %v5799
    %5809 = vrot.lane.b32.xlu0 %v1754, 99
    %v5810 = vpop.permute.xlu0 %5809
    %5811 = vrot.lane.b32.xlu0 %v1755, 99
    %v5812 = vpop.permute.xlu0 %5811
    %5813 = vrot.lane.b32.xlu0 %v1756, 99
    %v5814 = vpop.permute.xlu0 %5813
    %5815 = vrot.lane.b32.xlu0 %v1757, 99
    %v5816 = vpop.permute.xlu0 %5815
    %vm5817 = vcmask 809984
    %v5818 = vsel %vm5817, %v5810, %v5812
    %v5819 = vsel %vm5817, %v5812, %v5814
    %v5820 = vsel %vm5817, %v5814, %v5816
    %5823 = vrot.lane.b32.xlu0 %v1754, 107
    %v5824 = vpop.permute.xlu0 %5823
    %vm5826 = vcmask 875520
    %v5829 = vsel %vm5826, %v5820, %v5824
    %v5831 = vshrl.u32 %v5656, 16
    %v5832 = vpack.i.b16 %v5831, %v5831
    %v5834 = vlaneseq
    %v5835 = vshrl.u32 %v5834, 7
    %v5836 = vsub.s32 3, %v5835
    %v5837 = vrot.slane %v5832, %v5836
    %v5838 = vshrl.u32 %v5657, 16
    %v5839 = vpack.i.b16 %v5838, %v5838
    %v5841 = vlaneseq
    %v5842 = vshrl.u32 %v5841, 7
    %v5843 = vsub.s32 3, %v5842
    %v5844 = vrot.slane %v5839, %v5843
    %v5845 = vshrl.u32 %v5658, 16
    %v5846 = vpack.i.b16 %v5845, %v5845
    %v5848 = vlaneseq
    %v5849 = vshrl.u32 %v5848, 7
    %v5850 = vsub.s32 3, %v5849
    %v5851 = vrot.slane %v5846, %v5850
    %v5852 = vshrl.u32 %v5659, 16
    %v5853 = vpack.i.b16 %v5852, %v5852
    %v5855 = vlaneseq
    %v5856 = vshrl.u32 %v5855, 7
    %v5857 = vsub.s32 3, %v5856
    %v5858 = vrot.slane %v5853, %v5857
    %v5859 = vmul.bf16 %v5818, %v5837
    %v5860 = vmul.bf16 %v5819, %v5844
    %v5861 = vmul.bf16 %v5829, %v5851
    %v5862 = vmul.bf16 %v5824, %v5858
    %s5863 = scalar_lea.vmem %s5, 184
    %v5864 = vld [vmem:[%s5863] sm:$0xf]
    %v5865 = vld [vmem:[%s5863 + $0x4] sm:$0xf]
    %v5868 = vunpack.c.l.b16 %v5864
    %v5869 = vunpack.c.l.b16 %v5865
    %v5870 = vpack.c.b16 %v5869, %v5868
    %v5872 = vsel %vm1894, %v5870, 0
    %v5875 = vsel %vm1898, %v5859, 0
    %v5878 = vsel %vm1898, %v5860, 0
    %v5881 = vsel %vm1898, %v5861, 0
    %v5884 = vsel %vm1898, %v5862, 0
    %5886 = vmatprep.subr.bf16.mxu0 %v5878
    %5887 = vmatpush1.bf16.msra.mxu0 %v5875
    %5888 = vmatprep.subr.bf16.mxu0 0
    %5889 = vmatpush1.bf16.msra.mxu0 0
    %5890 = vmatprep.subr.bf16.mxu0 0
    %5891 = vmatpush1.bf16.msra.mxu0 0
    %5892 = vmatprep.subr.bf16.mxu0 0
    %5893 = vmatpush1.bf16.msra.mxu0 0
    %5894 = vmatprep.subr.bf16.mxu0 0
    %5895 = vmatpush1.bf16.msra.mxu0 0
    %5896 = vmatprep.subr.bf16.mxu0 0
    %5897 = vmatpush1.bf16.msra.mxu0 0
    %5898 = vmatprep.subr.bf16.mxu0 0
    %5899 = vmatpush1.bf16.msra.mxu0 0
    %5900 = vmatprep.subr.bf16.mxu0 0
    %5901 = vmatpush1.bf16.msra.mxu0 0
    %5902 = vmatprep.subr.bf16.mxu0 0
    %5903 = vmatpush1.bf16.msra.mxu0 0
    %5904 = vmatprep.subr.bf16.mxu0 0
    %5905 = vmatpush1.bf16.msra.mxu0 0
    %5906 = vmatprep.subr.bf16.mxu0 0
    %5907 = vmatpush1.bf16.msra.mxu0 0
    %5908 = vmatprep.subr.bf16.mxu0 0
    %5909 = vmatpush1.bf16.msra.mxu0 0
    %5910 = vmatprep.subr.bf16.mxu0 0
    %5911 = vmatpush1.bf16.msra.mxu0 0
    %5912 = vmatprep.subr.bf16.mxu0 0
    %5913 = vmatpush1.bf16.msra.mxu0 0
    %5914 = vmatprep.subr.bf16.mxu0 0
    %5915 = vmatpush1.bf16.msra.mxu0 0
    %5916 = vmatprep.subr.bf16.mxu0 0
    %5917 = vmatpush1.bf16.msra.mxu0 0
    %5918 = vmatprep.mubr.bf16.mxu0 0
    %5919 = vmatmul.mubr.bf16.gmra.mrb[0].mxu0 %v5872
    %v5920 = vpop.f32.mrb[0].mxu0
    %v5921 = vadd.f32 0.0, %v5920
    %v5922 = vpop.f32.mrb[0].mxu0
    %v5923 = vadd.f32 0.0, %v5922
    %v5924 = vpop.f32.mrb[0].mxu0
    %v5925 = vadd.f32 0.0, %v5924
    %v5926 = vpop.f32.mrb[0].mxu0
    %v5927 = vadd.f32 0.0, %v5926
    %5928 = vdwg.mxu0
    %5929 = vmatprep.subr.bf16.mxu0 %v5884
    %5930 = vmatpush1.bf16.msra.mxu0 %v5881
    %5931 = vmatprep.subr.bf16.mxu0 0
    %5932 = vmatpush1.bf16.msra.mxu0 0
    %5933 = vmatprep.subr.bf16.mxu0 0
    %5934 = vmatpush1.bf16.msra.mxu0 0
    %5935 = vmatprep.subr.bf16.mxu0 0
    %5936 = vmatpush1.bf16.msra.mxu0 0
    %5937 = vmatprep.subr.bf16.mxu0 0
    %5938 = vmatpush1.bf16.msra.mxu0 0
    %5939 = vmatprep.subr.bf16.mxu0 0
    %5940 = vmatpush1.bf16.msra.mxu0 0
    %5941 = vmatprep.subr.bf16.mxu0 0
    %5942 = vmatpush1.bf16.msra.mxu0 0
    %5943 = vmatprep.subr.bf16.mxu0 0
    %5944 = vmatpush1.bf16.msra.mxu0 0
    %5945 = vmatprep.subr.bf16.mxu0 0
    %5946 = vmatpush1.bf16.msra.mxu0 0
    %5947 = vmatprep.subr.bf16.mxu0 0
    %5948 = vmatpush1.bf16.msra.mxu0 0
    %5949 = vmatprep.subr.bf16.mxu0 0
    %5950 = vmatpush1.bf16.msra.mxu0 0
    %5951 = vmatprep.subr.bf16.mxu0 0
    %5952 = vmatpush1.bf16.msra.mxu0 0
    %5953 = vmatprep.subr.bf16.mxu0 0
    %5954 = vmatpush1.bf16.msra.mxu0 0
    %5955 = vmatprep.subr.bf16.mxu0 0
    %5956 = vmatpush1.bf16.msra.mxu0 0
    %5957 = vmatprep.subr.bf16.mxu0 0
    %5958 = vmatpush1.bf16.msra.mxu0 0
    %5959 = vmatprep.subr.bf16.mxu0 0
    %5960 = vmatpush1.bf16.msra.mxu0 0
    %5961 = vmatprep.mubr.bf16.mxu0 0
    %5962 = vmatmul.mubr.bf16.gmra.mrb[0].mxu0 %v5872
    %v5963 = vpop.f32.mrb[0].mxu0
    %v5964 = vadd.f32 0.0, %v5963
    %v5965 = vpop.f32.mrb[0].mxu0
    %v5966 = vadd.f32 0.0, %v5965
    %v5967 = vpop.f32.mrb[0].mxu0
    %v5968 = vadd.f32 0.0, %v5967
    %v5969 = vpop.f32.mrb[0].mxu0
    %v5970 = vadd.f32 0.0, %v5969
    %5971 = vdwg.mxu0
    %v5972 = vadd.f32 %v5801, %v5921
    %v5973 = vadd.f32 %v5802, %v5923
    %v5974 = vadd.f32 %v5803, %v5964
    %v5975 = vadd.f32 %v5804, %v5966
    %v5976 = vadd.f32 %v5805, %v5925
    %v5977 = vadd.f32 %v5806, %v5927
    %v5978 = vadd.f32 %v5807, %v5968
    %v5979 = vadd.f32 %v5808, %v5970
    %5980 = vrot.lane.b32.xlu0 %v1754, 98
    %v5981 = vpop.permute.xlu0 %5980
    %5982 = vrot.lane.b32.xlu0 %v1755, 98
    %v5983 = vpop.permute.xlu0 %5982
    %5984 = vrot.lane.b32.xlu0 %v1756, 98
    %v5985 = vpop.permute.xlu0 %5984
    %5986 = vrot.lane.b32.xlu0 %v1757, 98
    %v5987 = vpop.permute.xlu0 %5986
    %vm5988 = vcmask 801792
    %v5989 = vsel %vm5988, %v5981, %v5983
    %v5990 = vsel %vm5988, %v5983, %v5985
    %v5991 = vsel %vm5988, %v5985, %v5987
    %5994 = vrot.lane.b32.xlu0 %v1754, 106
    %v5995 = vpop.permute.xlu0 %5994
    %vm5997 = vcmask 867328
    %v6000 = vsel %vm5997, %v5991, %v5995
    %v6002 = vld [vmem:[%s4 + $0x30] sm:$0x11]
    %v6003 = vld [vmem:[%s4 + $0x38] sm:$0x11]
    %v6006 = vunpack.c.l.b16 %v6002
    %v6007 = vunpack.c.h.b16 %v6002
    %v6008 = vunpack.c.l.b16 %v6003
    %v6009 = vunpack.c.h.b16 %v6003
    %v6010 = vpack.c.b16 %v6006, %v6006
    %v6011 = vpack.c.b16 %v6007, %v6007
    %v6012 = vpack.c.b16 %v6008, %v6008
    %v6013 = vpack.c.b16 %v6009, %v6009
    %v6015 = vpack.i.b16 %v6010, %v6010
    %v6017 = vlaneseq
    %v6018 = vshrl.u32 %v6017, 7
    %v6019 = vsub.s32 0, %v6018
    %v6020 = vrot.slane %v6015, %v6019
    %v6022 = vpack.i.b16 %v6011, %v6011
    %v6024 = vlaneseq
    %v6025 = vshrl.u32 %v6024, 7
    %v6026 = vsub.s32 0, %v6025
    %v6027 = vrot.slane %v6022, %v6026
    %v6029 = vpack.i.b16 %v6012, %v6012
    %v6031 = vlaneseq
    %v6032 = vshrl.u32 %v6031, 7
    %v6033 = vsub.s32 0, %v6032
    %v6034 = vrot.slane %v6029, %v6033
    %v6036 = vpack.i.b16 %v6013, %v6013
    %v6038 = vlaneseq
    %v6039 = vshrl.u32 %v6038, 7
    %v6040 = vsub.s32 0, %v6039
    %v6041 = vrot.slane %v6036, %v6040
    %v6042 = vmul.bf16 %v5989, %v6020
    %v6043 = vmul.bf16 %v5990, %v6027
    %v6044 = vmul.bf16 %v6000, %v6034
    %v6045 = vmul.bf16 %v5995, %v6041
    %s6046 = scalar_lea.vmem %s5, 192
    %v6047 = vld [vmem:[%s6046] sm:$0xf]
    %v6048 = vld [vmem:[%s6046 + $0x4] sm:$0xf]
    %v6051 = vunpack.c.l.b16 %v6047
    %v6052 = vunpack.c.l.b16 %v6048
    %v6053 = vpack.c.b16 %v6052, %v6051
    %v6055 = vsel %vm1894, %v6053, 0
    %v6058 = vsel %vm1898, %v6042, 0
    %v6061 = vsel %vm1898, %v6043, 0
    %v6064 = vsel %vm1898, %v6044, 0
    %v6067 = vsel %vm1898, %v6045, 0
    %6069 = vmatprep.subr.bf16.mxu0 %v6061
    %6070 = vmatpush1.bf16.msra.mxu0 %v6058
    %6071 = vmatprep.subr.bf16.mxu0 0
    %6072 = vmatpush1.bf16.msra.mxu0 0
    %6073 = vmatprep.subr.bf16.mxu0 0
    %6074 = vmatpush1.bf16.msra.mxu0 0
    %6075 = vmatprep.subr.bf16.mxu0 0
    %6076 = vmatpush1.bf16.msra.mxu0 0
    %6077 = vmatprep.subr.bf16.mxu0 0
    %6078 = vmatpush1.bf16.msra.mxu0 0
    %6079 = vmatprep.subr.bf16.mxu0 0
    %6080 = vmatpush1.bf16.msra.mxu0 0
    %6081 = vmatprep.subr.bf16.mxu0 0
    %6082 = vmatpush1.bf16.msra.mxu0 0
    %6083 = vmatprep.subr.bf16.mxu0 0
    %6084 = vmatpush1.bf16.msra.mxu0 0
    %6085 = vmatprep.subr.bf16.mxu0 0
    %6086 = vmatpush1.bf16.msra.mxu0 0
    %6087 = vmatprep.subr.bf16.mxu0 0
    %6088 = vmatpush1.bf16.msra.mxu0 0
    %6089 = vmatprep.subr.bf16.mxu0 0
    %6090 = vmatpush1.bf16.msra.mxu0 0
    %6091 = vmatprep.subr.bf16.mxu0 0
    %6092 = vmatpush1.bf16.msra.mxu0 0
    %6093 = vmatprep.subr.bf16.mxu0 0
    %6094 = vmatpush1.bf16.msra.mxu0 0
    %6095 = vmatprep.subr.bf16.mxu0 0
    %6096 = vmatpush1.bf16.msra.mxu0 0
    %6097 = vmatprep.subr.bf16.mxu0 0
    %6098 = vmatpush1.bf16.msra.mxu0 0
    %6099 = vmatprep.subr.bf16.mxu0 0
    %6100 = vmatpush1.bf16.msra.mxu0 0
    %6101 = vmatprep.mubr.bf16.mxu0 0
    %6102 = vmatmul.mubr.bf16.gmra.mrb[0].mxu0 %v6055
    %v6103 = vpop.f32.mrb[0].mxu0
    %v6104 = vadd.f32 0.0, %v6103
    %v6105 = vpop.f32.mrb[0].mxu0
    %v6106 = vadd.f32 0.0, %v6105
    %v6107 = vpop.f32.mrb[0].mxu0
    %v6108 = vadd.f32 0.0, %v6107
    %v6109 = vpop.f32.mrb[0].mxu0
    %v6110 = vadd.f32 0.0, %v6109
    %6111 = vdwg.mxu0
    %6112 = vmatprep.subr.bf16.mxu0 %v6067
    %6113 = vmatpush1.bf16.msra.mxu0 %v6064
    %6114 = vmatprep.subr.bf16.mxu0 0
    %6115 = vmatpush1.bf16.msra.mxu0 0
    %6116 = vmatprep.subr.bf16.mxu0 0
    %6117 = vmatpush1.bf16.msra.mxu0 0
    %6118 = vmatprep.subr.bf16.mxu0 0
    %6119 = vmatpush1.bf16.msra.mxu0 0
    %6120 = vmatprep.subr.bf16.mxu0 0
    %6121 = vmatpush1.bf16.msra.mxu0 0
    %6122 = vmatprep.subr.bf16.mxu0 0
    %6123 = vmatpush1.bf16.msra.mxu0 0
    %6124 = vmatprep.subr.bf16.mxu0 0
    %6125 = vmatpush1.bf16.msra.mxu0 0
    %6126 = vmatprep.subr.bf16.mxu0 0
    %6127 = vmatpush1.bf16.msra.mxu0 0
    %6128 = vmatprep.subr.bf16.mxu0 0
    %6129 = vmatpush1.bf16.msra.mxu0 0
    %6130 = vmatprep.subr.bf16.mxu0 0
    %6131 = vmatpush1.bf16.msra.mxu0 0
    %6132 = vmatprep.subr.bf16.mxu0 0
    %6133 = vmatpush1.bf16.msra.mxu0 0
    %6134 = vmatprep.subr.bf16.mxu0 0
    %6135 = vmatpush1.bf16.msra.mxu0 0
    %6136 = vmatprep.subr.bf16.mxu0 0
    %6137 = vmatpush1.bf16.msra.mxu0 0
    %6138 = vmatprep.subr.bf16.mxu0 0
    %6139 = vmatpush1.bf16.msra.mxu0 0
    %6140 = vmatprep.subr.bf16.mxu0 0
    %6141 = vmatpush1.bf16.msra.mxu0 0
    %6142 = vmatprep.subr.bf16.mxu0 0
    %6143 = vmatpush1.bf16.msra.mxu0 0
    %6144 = vmatprep.mubr.bf16.mxu0 0
    %6145 = vmatmul.mubr.bf16.gmra.mrb[0].mxu0 %v6055
    %v6146 = vpop.f32.mrb[0].mxu0
    %v6147 = vadd.f32 0.0, %v6146
    %v6148 = vpop.f32.mrb[0].mxu0
    %v6149 = vadd.f32 0.0, %v6148
    %v6150 = vpop.f32.mrb[0].mxu0
    %v6151 = vadd.f32 0.0, %v6150
    %v6152 = vpop.f32.mrb[0].mxu0
    %v6153 = vadd.f32 0.0, %v6152
    %6154 = vdwg.mxu0
    %v6155 = vadd.f32 %v5972, %v6104
    %v6156 = vadd.f32 %v5973, %v6106
    %v6157 = vadd.f32 %v5974, %v6147
    %v6158 = vadd.f32 %v5975, %v6149
    %v6159 = vadd.f32 %v5976, %v6108
    %v6160 = vadd.f32 %v5977, %v6110
    %v6161 = vadd.f32 %v5978, %v6151
    %v6162 = vadd.f32 %v5979, %v6153
    %v6163 = vld [vmem:[%s6] sm:$0xff]
    %v6164 = vld [vmem:[%s6 + $0x8] sm:$0xff]
    %6166 = vset.pattern.permute.xlu0 0
    %6167 = vperm.xlu0 %6166, %v6163
    %v6168 = vpop.permute.xlu0 %6167
    %6171 = vset.pattern.permute.xlu0 0
    %6172 = vperm.xlu0 %6171, %v6164
    %v6173 = vpop.permute.xlu0 %6172
    %v6175 = vadd.f32 %v6155, %v6168
    %v6176 = vadd.f32 %v6156, %v6168
    %v6177 = vadd.f32 %v6157, %v6168
    %v6178 = vadd.f32 %v6158, %v6168
    %v6179 = vadd.f32 %v6159, %v6173
    %v6180 = vadd.f32 %v6160, %v6173
    %v6181 = vadd.f32 %v6161, %v6173
    %v6182 = vadd.f32 %v6162, %v6173
    %v6183 = vmax.f32 %v6175, 0.0
    %v6184 = vmax.f32 %v6176, 0.0
    %v6185 = vmax.f32 %v6177, 0.0
    %v6186 = vmax.f32 %v6178, 0.0
    %v6187 = vmax.f32 %v6179, 0.0
    %v6188 = vmax.f32 %v6180, 0.0
    %v6189 = vmax.f32 %v6181, 0.0
    %v6190 = vmax.f32 %v6182, 0.0
    %6199 = vrot.lane.b32.xlu0 %v6183, 127
    %v6200 = vpop.permute.xlu0 %6199
    %6201 = vrot.lane.b32.xlu0 %v6184, 127
    %v6202 = vpop.permute.xlu0 %6201
    %6203 = vrot.lane.b32.xlu0 %v6185, 127
    %v6204 = vpop.permute.xlu0 %6203
    %6205 = vrot.lane.b32.xlu0 %v6186, 127
    %v6206 = vpop.permute.xlu0 %6205
    %6207 = vrot.lane.b32.xlu0 %v6187, 127
    %v6208 = vpop.permute.xlu0 %6207
    %6209 = vrot.lane.b32.xlu0 %v6188, 127
    %v6210 = vpop.permute.xlu0 %6209
    %6211 = vrot.lane.b32.xlu0 %v6189, 127
    %v6212 = vpop.permute.xlu0 %6211
    %6213 = vrot.lane.b32.xlu0 %v6190, 127
    %v6214 = vpop.permute.xlu0 %6213
    %v6215 = vsel %vm588, %v6200, %v6202
    %v6216 = vsel %vm588, %v6202, %v6204
    %v6217 = vsel %vm588, %v6204, %v6206
    %v6218 = vsel %vm588, %v6208, %v6210
    %v6219 = vsel %vm588, %v6210, %v6212
    %v6220 = vsel %vm588, %v6212, %v6214
    %6229 = vrot.lane.b32.xlu0 %v6183, 7
    %v6230 = vpop.permute.xlu0 %6229
    %6231 = vrot.lane.b32.xlu0 %v6187, 7
    %v6232 = vpop.permute.xlu0 %6231
    %v6235 = vsel %vm4058, %v6206, %v6230
    %v6236 = vsel %vm4058, %v6214, %v6232
    %v6237 = vmax.f32 %v6183, %v6215
    %v6238 = vmax.f32 %v6184, %v6216
    %v6239 = vmax.f32 %v6185, %v6217
    %v6240 = vmax.f32 %v6186, %v6235
    %v6241 = vmax.f32 %v6187, %v6218
    %v6242 = vmax.f32 %v6188, %v6219
    %v6243 = vmax.f32 %v6189, %v6220
    %v6244 = vmax.f32 %v6190, %v6236
    %6245 = vrot.lane.b32.xlu0 %v6183, 114
    %v6246 = vpop.permute.xlu0 %6245
    %6247 = vrot.lane.b32.xlu0 %v6184, 114
    %v6248 = vpop.permute.xlu0 %6247
    %6249 = vrot.lane.b32.xlu0 %v6185, 114
    %v6250 = vpop.permute.xlu0 %6249
    %6251 = vrot.lane.b32.xlu0 %v6186, 114
    %v6252 = vpop.permute.xlu0 %6251
    %6253 = vrot.lane.b32.xlu0 %v6187, 114
    %v6254 = vpop.permute.xlu0 %6253
    %6255 = vrot.lane.b32.xlu0 %v6188, 114
    %v6256 = vpop.permute.xlu0 %6255
    %6257 = vrot.lane.b32.xlu0 %v6189, 114
    %v6258 = vpop.permute.xlu0 %6257
    %6259 = vrot.lane.b32.xlu0 %v6190, 114
    %v6260 = vpop.permute.xlu0 %6259
    %vm6261 = vcmask 932864
    %v6262 = vsel %vm6261, %v6246, %v6248
    %v6263 = vsel %vm6261, %v6248, %v6250
    %v6264 = vsel %vm6261, %v6250, %v6252
    %v6265 = vsel %vm6261, %v6254, %v6256
    %v6266 = vsel %vm6261, %v6256, %v6258
    %v6267 = vsel %vm6261, %v6258, %v6260
    %6274 = vrot.lane.b32.xlu0 %v6183, 122
    %v6275 = vpop.permute.xlu0 %6274
    %6276 = vrot.lane.b32.xlu0 %v6187, 122
    %v6277 = vpop.permute.xlu0 %6276
    %v6280 = vsel %vm4765, %v6264, %v6275
    %v6281 = vsel %vm4765, %v6267, %v6277
    %6282 = vrot.lane.b32.xlu0 %v6183, 113
    %v6283 = vpop.permute.xlu0 %6282
    %6284 = vrot.lane.b32.xlu0 %v6184, 113
    %v6285 = vpop.permute.xlu0 %6284
    %6286 = vrot.lane.b32.xlu0 %v6185, 113
    %v6287 = vpop.permute.xlu0 %6286
    %6288 = vrot.lane.b32.xlu0 %v6186, 113
    %v6289 = vpop.permute.xlu0 %6288
    %6290 = vrot.lane.b32.xlu0 %v6187, 113
    %v6291 = vpop.permute.xlu0 %6290
    %6292 = vrot.lane.b32.xlu0 %v6188, 113
    %v6293 = vpop.permute.xlu0 %6292
    %6294 = vrot.lane.b32.xlu0 %v6189, 113
    %v6295 = vpop.permute.xlu0 %6294
    %6296 = vrot.lane.b32.xlu0 %v6190, 113
    %v6297 = vpop.permute.xlu0 %6296
    %vm6298 = vcmask 924672
    %v6299 = vsel %vm6298, %v6283, %v6285
    %v6300 = vsel %vm6298, %v6285, %v6287
    %v6301 = vsel %vm6298, %v6287, %v6289
    %v6302 = vsel %vm6298, %v6291, %v6293
    %v6303 = vsel %vm6298, %v6293, %v6295
    %v6304 = vsel %vm6298, %v6295, %v6297
    %6311 = vrot.lane.b32.xlu0 %v6183, 121
    %v6312 = vpop.permute.xlu0 %6311
    %6313 = vrot.lane.b32.xlu0 %v6187, 121
    %v6314 = vpop.permute.xlu0 %6313
    %v6317 = vsel %vm4936, %v6301, %v6312
    %v6318 = vsel %vm4936, %v6304, %v6314
    %v6319 = vmax.f32 %v6262, %v6299
    %v6320 = vmax.f32 %v6263, %v6300
    %v6321 = vmax.f32 %v6280, %v6317
    %v6322 = vmax.f32 %v6275, %v6312
    %v6323 = vmax.f32 %v6265, %v6302
    %v6324 = vmax.f32 %v6266, %v6303
    %v6325 = vmax.f32 %v6281, %v6318
    %v6326 = vmax.f32 %v6277, %v6314
    %v6327 = vmax.f32 %v6237, %v6319
    %v6328 = vmax.f32 %v6238, %v6320
    %v6329 = vmax.f32 %v6239, %v6321
    %v6330 = vmax.f32 %v6240, %v6322
    %v6331 = vmax.f32 %v6241, %v6323
    %v6332 = vmax.f32 %v6242, %v6324
    %v6333 = vmax.f32 %v6243, %v6325
    %v6334 = vmax.f32 %v6244, %v6326
    %v6335 = vpack.c.bf16 %v6331, %v6327
    %v6336 = vpack.c.bf16 %v6332, %v6328
    %v6337 = vld [vmem:[%s7] sm:$0xf]
    %v6338 = vld [vmem:[%s7 + $0x4] sm:$0xf]
    %v6339 = vld [vmem:[%s7 + $0x8] sm:$0xf]
    %v6340 = vld [vmem:[%s7 + $0xc] sm:$0xf]
    %v6341 = vld [vmem:[%s7 + $0x10] sm:$0xf]
    %v6342 = vld [vmem:[%s7 + $0x14] sm:$0xf]
    %v6343 = vld [vmem:[%s7 + $0x18] sm:$0xf]
    %v6344 = vld [vmem:[%s7 + $0x1c] sm:$0xf]
    %v6345 = vld [vmem:[%s7 + $0x20] sm:$0xf]
    %v6346 = vld [vmem:[%s7 + $0x24] sm:$0xf]
    %v6347 = vld [vmem:[%s7 + $0x28] sm:$0xf]
    %v6348 = vld [vmem:[%s7 + $0x2c] sm:$0xf]
    %v6349 = vld [vmem:[%s7 + $0x30] sm:$0xf]
    %v6350 = vld [vmem:[%s7 + $0x34] sm:$0xf]
    %v6351 = vld [vmem:[%s7 + $0x38] sm:$0xf]
    %v6352 = vld [vmem:[%s7 + $0x3c] sm:$0xf]
    %v6353 = vld [vmem:[%s7 + $0x40] sm:$0xf]
    %v6354 = vld [vmem:[%s7 + $0x44] sm:$0xf]
    %v6355 = vld [vmem:[%s7 + $0x48] sm:$0xf]
    %v6356 = vld [vmem:[%s7 + $0x4c] sm:$0xf]
    %v6357 = vld [vmem:[%s7 + $0x50] sm:$0xf]
    %v6358 = vld [vmem:[%s7 + $0x54] sm:$0xf]
    %v6359 = vld [vmem:[%s7 + $0x58] sm:$0xf]
    %v6360 = vld [vmem:[%s7 + $0x5c] sm:$0xf]
    %v6361 = vld [vmem:[%s7 + $0x60] sm:$0x3]
    %v6387 = vunpack.c.l.b16 %v6337
    %v6388 = vunpack.c.l.b16 %v6338
    %v6389 = vunpack.c.l.b16 %v6339
    %v6390 = vunpack.c.l.b16 %v6340
    %v6391 = vunpack.c.l.b16 %v6341
    %v6392 = vunpack.c.l.b16 %v6342
    %v6393 = vunpack.c.l.b16 %v6343
    %v6394 = vunpack.c.l.b16 %v6344
    %v6395 = vunpack.c.l.b16 %v6345
    %v6396 = vunpack.c.l.b16 %v6346
    %v6397 = vunpack.c.l.b16 %v6347
    %v6398 = vunpack.c.l.b16 %v6348
    %v6399 = vunpack.c.l.b16 %v6349
    %v6400 = vunpack.c.l.b16 %v6350
    %v6401 = vunpack.c.l.b16 %v6351
    %v6402 = vunpack.c.l.b16 %v6352
    %v6403 = vunpack.c.l.b16 %v6353
    %v6404 = vunpack.c.l.b16 %v6354
    %v6405 = vunpack.c.l.b16 %v6355
    %v6406 = vunpack.c.l.b16 %v6356
    %v6407 = vunpack.c.l.b16 %v6357
    %v6408 = vunpack.c.l.b16 %v6358
    %v6409 = vunpack.c.l.b16 %v6359
    %v6410 = vunpack.c.l.b16 %v6360
    %v6411 = vunpack.c.l.b16 %v6361
    %v6412 = vpack.c.b16 %v6388, %v6387
    %v6413 = vpack.c.b16 %v6390, %v6389
    %v6414 = vpack.c.b16 %v6392, %v6391
    %v6415 = vpack.c.b16 %v6394, %v6393
    %v6416 = vpack.c.b16 %v6396, %v6395
    %v6417 = vpack.c.b16 %v6398, %v6397
    %v6418 = vpack.c.b16 %v6400, %v6399
    %v6419 = vpack.c.b16 %v6402, %v6401
    %v6420 = vpack.c.b16 %v6404, %v6403
    %v6421 = vpack.c.b16 %v6406, %v6405
    %v6422 = vpack.c.b16 %v6408, %v6407
    %v6423 = vpack.c.b16 %v6410, %v6409
    %v6424 = vpack.c.b16 %v6411, %v6411
    %v6438 = vsel %vm1748, %v6336, 0
    %vm6440 = vcmask 1041408
    %v6442 = vsel %vm6440, %v6424, 0
    %6444 = vmatprep.subr.bf16.mxu0 0
    %6445 = vmatpush1.bf16.msra.mxu0 %v6412
    %6446 = vmatprep.subr.bf16.mxu0 0
    %6447 = vmatpush1.bf16.msra.mxu0 %v6413
    %6448 = vmatprep.subr.bf16.mxu0 0
    %6449 = vmatpush1.bf16.msra.mxu0 %v6414
    %6450 = vmatprep.subr.bf16.mxu0 0
    %6451 = vmatpush1.bf16.msra.mxu0 %v6415
    %6452 = vmatprep.subr.bf16.mxu0 0
    %6453 = vmatpush1.bf16.msra.mxu0 %v6416
    %6454 = vmatprep.subr.bf16.mxu0 0
    %6455 = vmatpush1.bf16.msra.mxu0 %v6417
    %6456 = vmatprep.subr.bf16.mxu0 0
    %6457 = vmatpush1.bf16.msra.mxu0 %v6418
    %6458 = vmatprep.subr.bf16.mxu0 0
    %6459 = vmatpush1.bf16.msra.mxu0 %v6419
    %6460 = vmatprep.subr.bf16.mxu0 0
    %6461 = vmatpush1.bf16.msra.mxu0 %v6420
    %6462 = vmatprep.subr.bf16.mxu0 0
    %6463 = vmatpush1.bf16.msra.mxu0 %v6421
    %6464 = vmatprep.subr.bf16.mxu0 0
    %6465 = vmatpush1.bf16.msra.mxu0 %v6422
    %6466 = vmatprep.subr.bf16.mxu0 0
    %6467 = vmatpush1.bf16.msra.mxu0 %v6423
    %6468 = vmatprep.subr.bf16.mxu0 0
    %6469 = vmatpush1.bf16.msra.mxu0 %v6442
    %6470 = vmatprep.subr.bf16.mxu0 0
    %6471 = vmatpush1.bf16.msra.mxu0 0
    %6472 = vmatprep.subr.bf16.mxu0 0
    %6473 = vmatpush1.bf16.msra.mxu0 0
    %6474 = vmatprep.subr.bf16.mxu0 0
    %6475 = vmatpush1.bf16.msra.mxu0 0
    %6476 = vmatprep.mubr.bf16.mxu0 %v6438
    %6477 = vmatmul.mubr.bf16.gmra.mrb[0].mxu0 %v6335
    %v6478 = vpop.f32.mrb[0].mxu0
    %v6479 = vadd.f32 0.0, %v6478
    %v6480 = vpop.f32.mrb[0].mxu0
    %v6481 = vpop.f32.mrb[0].mxu0
    %v6482 = vadd.f32 0.0, %v6481
    %v6483 = vpop.f32.mrb[0].mxu0
    %6484 = vdwg.mxu0
    %vm6485 = vcmask 393216
    %6486 = vst.msk [vmem:[#allocation2] sm:$0x1] %vm6485, %v6479
    %v6489 = vunpack.c.l.s4 1983009808
    %v6490 = vunpack.c.0.s8 %v6489
    %v6491 = vlaneseq
    %v6492 = vshrl.u32 %v6491, 7
    %v6493 = vsub.s32 %v6490, %v6492
    %v6494 = vrot.slane %v6479, %v6493
    %v6495 = vrot.slane %v6494, 7
    %v6496 = vrot.slane %v6495, 2
    %6497 = vrot.lane.b32.xlu0 %v6496, 49
    %v6498 = vpop.permute.xlu0 %6497
    %vm6500 = vcmask 795016
    %6501 = vst.msk [vmem:[#allocation2] sm:$0x1] %vm6500, %v6498
    %v6502 = vcombine.high %v6494, %v6494
    %6503 = vrot.lane.b32.xlu0 %v6502, 98
    %v6504 = vpop.permute.xlu0 %6503
    %v6505 = vrot.slane %v6504, 6
    %vm6506 = vcmask 801792
    %v6507 = vsel %vm6506, %v6505, %v6504
    %vm6509 = vcmask 1041168
    %vm6510 = vcmask 149506
    %vm6511 = vmor %vm6510, %vm6509
    %6512 = vst.msk [vmem:[#allocation2] sm:$0x5] %vm6511, %v6507
    %v6513 = vrot.slane %v6502, 7
    %v6514 = vrot.slane %v6513, 2
    %6515 = vrot.lane.b32.xlu0 %v6514, 19
    %v6516 = vpop.permute.xlu0 %6515
    %vm6518 = vcmask 549016
    %6519 = vst.msk [vmem:[#allocation2 + $0x2] sm:$0x1] %vm6518, %v6516
    %v6520 = vcombine.high %v6479, %v6479
    %v6522 = vunpack.c.l.s4 1983009808
    %v6523 = vunpack.c.0.s8 %v6522
    %v6524 = vlaneseq
    %v6525 = vshrl.u32 %v6524, 7
    %v6526 = vsub.s32 %v6523, %v6525
    %v6527 = vrot.slane %v6520, %v6526
    %6528 = vrot.lane.b32.xlu0 %v6527, 68
    %v6529 = vpop.permute.xlu0 %6528
    %vm6531 = vcmask 950816
    %6532 = vst.msk [vmem:[#allocation2 + $0x2] sm:$0x1] %vm6531, %v6529
    %v6533 = vrot.slane %v6527, 7
    %v6534 = vrot.slane %v6533, 2
    %6535 = vrot.lane.b32.xlu0 %v6534, 117
    %v6536 = vpop.permute.xlu0 %6535
    %v6537 = vrot.slane %v6536, 6
    %vm6538 = vcmask 957440
    %v6539 = vsel %vm6538, %v6537, %v6536
    %vm6541 = vcmask 1041320
    %vm6542 = vcmask 305154
    %vm6543 = vmor %vm6542, %vm6541
    %6544 = vst.msk [vmem:[#allocation2 + $0x2] sm:$0x5] %vm6543, %v6539
    %v6545 = vcombine.high %v6527, %v6527
    %6546 = vrot.lane.b32.xlu0 %v6545, 38
    %v6547 = vpop.permute.xlu0 %6546
    %vm6549 = vcmask 704816
    %6550 = vst.msk [vmem:[#allocation2 + $0x4] sm:$0x1] %vm6549, %v6547
    %v6551 = vrot.slane %v6545, 7
    %v6552 = vrot.slane %v6551, 2
    %6553 = vrot.lane.b32.xlu0 %v6552, 87
    %v6554 = vpop.permute.xlu0 %6553
    %v6555 = vrot.slane %v6554, 6
    %vm6556 = vcmask 711680
    %v6557 = vsel %vm6556, %v6555, %v6554
    %vm6559 = vcmask 1041080
    %vm6560 = vcmask 59394
    %vm6561 = vmor %vm6560, %vm6559
    %6562 = vst.msk [vmem:[#allocation2 + $0x4] sm:$0x5] %vm6561, %v6557
    %v6565 = vunpack.c.l.s4 1983009808
    %v6566 = vunpack.c.0.s8 %v6565
    %v6567 = vlaneseq
    %v6568 = vshrl.u32 %v6567, 7
    %v6569 = vsub.s32 %v6566, %v6568
    %v6570 = vrot.slane %v6482, %v6569
    %6571 = vrot.lane.b32.xlu0 %v6570, 8
    %v6572 = vpop.permute.xlu0 %6571
    %vm6574 = vcmask 458816
    %6575 = vst.msk [vmem:[#allocation2 + $0x6] sm:$0x1] %vm6574, %v6572
    %v6576 = vrot.slane %v6570, 7
    %v6577 = vrot.slane %v6576, 2
    %6578 = vrot.lane.b32.xlu0 %v6577, 57
    %v6579 = vpop.permute.xlu0 %6578
    %vm6581 = vcmask 860616
    %6582 = vst.msk [vmem:[#allocation2 + $0x6] sm:$0x1] %vm6581, %v6579
    %v6583 = vcombine.high %v6570, %v6570
    %6584 = vrot.lane.b32.xlu0 %v6583, 106
    %v6585 = vpop.permute.xlu0 %6584
    %v6586 = vrot.slane %v6585, 6
    %v6587 = vsel %vm5997, %v6586, %v6585
    %vm6589 = vcmask 1041232
    %vm6590 = vcmask 215042
    %vm6591 = vmor %vm6590, %vm6589
    %6592 = vst.msk [vmem:[#allocation2 + $0x6] sm:$0x5] %vm6591, %v6587
    %v6593 = vrot.slane %v6583, 7
    %v6594 = vrot.slane %v6593, 2
    %6595 = vrot.lane.b32.xlu0 %v6594, 27
    %v6596 = vpop.permute.xlu0 %6595
    %vm6598 = vcmask 614616
    %6599 = vst.msk [vmem:[#allocation2 + $0x8] sm:$0x1] %vm6598, %v6596
    %v6600 = vcombine.high %v6482, %v6482
    %v6602 = vunpack.c.l.s4 1983009808
    %v6603 = vunpack.c.0.s8 %v6602
    %v6604 = vlaneseq
    %v6605 = vshrl.u32 %v6604, 7
    %v6606 = vsub.s32 %v6603, %v6605
    %v6607 = vrot.slane %v6600, %v6606
    %6608 = vrot.lane.b32.xlu0 %v6607, 76
    %v6609 = vpop.permute.xlu0 %6608
    %vm6611 = vcmask 1016416
    %6612 = vst.msk [vmem:[#allocation2 + $0x8] sm:$0x1] %vm6611, %v6609
    %v6613 = vrot.slane %v6607, 7
    %v6614 = vrot.slane %v6613, 2
    %6615 = vrot.lane.b32.xlu0 %v6614, 125
    %v6616 = vpop.permute.xlu0 %6615
    %v6617 = vrot.slane %v6616, 6
    %vm6618 = vcmask 1022976
    %v6619 = vsel %vm6618, %v6617, %v6616
    %vm6621 = vcmask 1041384
    %vm6622 = vcmask 370690
    %vm6623 = vmor %vm6622, %vm6621
    %6624 = vst.msk [vmem:[#allocation2 + $0x8] sm:$0x5] %vm6623, %v6619
    %v6625 = vcombine.high %v6607, %v6607
    %6626 = vrot.lane.b32.xlu0 %v6625, 46
    %v6627 = vpop.permute.xlu0 %6626
    %vm6629 = vcmask 770416
    %6630 = vst.msk [vmem:[#allocation2 + $0xa] sm:$0x1] %vm6629, %v6627
    %v6631 = vrot.slane %v6625, 7
    %v6632 = vrot.slane %v6631, 2
    %6633 = vrot.lane.b32.xlu0 %v6632, 95
    %v6634 = vpop.permute.xlu0 %6633
    %v6635 = vrot.slane %v6634, 6
    %vm6636 = vcmask 777216
    %v6637 = vsel %vm6636, %v6635, %v6634
    %vm6639 = vcmask 1041144
    %vm6640 = vcmask 124930
    %vm6641 = vmor %vm6640, %vm6639
    %6642 = vst.msk [vmem:[#allocation2 + $0xa] sm:$0x5] %vm6641, %v6637
    %v6643 = vpack.c.bf16 %v6333, %v6329
    %v6644 = vpack.c.bf16 %v6334, %v6330
    %v6645 = vld [vmem:[%s7] sm:$0xf]
    %v6646 = vld [vmem:[%s7 + $0x4] sm:$0xf]
    %v6647 = vld [vmem:[%s7 + $0x8] sm:$0xf]
    %v6648 = vld [vmem:[%s7 + $0xc] sm:$0xf]
    %v6649 = vld [vmem:[%s7 + $0x10] sm:$0xf]
    %v6650 = vld [vmem:[%s7 + $0x14] sm:$0xf]
    %v6651 = vld [vmem:[%s7 + $0x18] sm:$0xf]
    %v6652 = vld [vmem:[%s7 + $0x1c] sm:$0xf]
    %v6653 = vld [vmem:[%s7 + $0x20] sm:$0xf]
    %v6654 = vld [vmem:[%s7 + $0x24] sm:$0xf]
    %v6655 = vld [vmem:[%s7 + $0x28] sm:$0xf]
    %v6656 = vld [vmem:[%s7 + $0x2c] sm:$0xf]
    %v6657 = vld [vmem:[%s7 + $0x30] sm:$0xf]
    %v6658 = vld [vmem:[%s7 + $0x34] sm:$0xf]
    %v6659 = vld [vmem:[%s7 + $0x38] sm:$0xf]
    %v6660 = vld [vmem:[%s7 + $0x3c] sm:$0xf]
    %v6661 = vld [vmem:[%s7 + $0x40] sm:$0xf]
    %v6662 = vld [vmem:[%s7 + $0x44] sm:$0xf]
    %v6663 = vld [vmem:[%s7 + $0x48] sm:$0xf]
    %v6664 = vld [vmem:[%s7 + $0x4c] sm:$0xf]
    %v6665 = vld [vmem:[%s7 + $0x50] sm:$0xf]
    %v6666 = vld [vmem:[%s7 + $0x54] sm:$0xf]
    %v6667 = vld [vmem:[%s7 + $0x58] sm:$0xf]
    %v6668 = vld [vmem:[%s7 + $0x5c] sm:$0xf]
    %v6669 = vld [vmem:[%s7 + $0x60] sm:$0x3]
    %6673 = vrot.lane.b32.xlu0 %v6336, 60
    %v6674 = vpop.permute.xlu0 %6673
    %6675 = vrot.lane.b32.xlu0 %v6643, 60
    %v6676 = vpop.permute.xlu0 %6675
    %6677 = vrot.lane.b32.xlu0 %v6644, 60
    %v6678 = vpop.permute.xlu0 %6677
    %vm6679 = vcmask 490496
    %v6680 = vsel %vm6679, %v6674, %v6676
    %v6681 = vsel %vm6679, %v6676, %v6678
    %v6708 = vunpack.c.l.b16 %v6645
    %v6709 = vunpack.c.l.b16 %v6646
    %v6710 = vunpack.c.l.b16 %v6647
    %v6711 = vunpack.c.l.b16 %v6648
    %v6712 = vunpack.c.l.b16 %v6649
    %v6713 = vunpack.c.l.b16 %v6650
    %v6714 = vunpack.c.l.b16 %v6651
    %v6715 = vunpack.c.l.b16 %v6652
    %v6716 = vunpack.c.l.b16 %v6653
    %v6717 = vunpack.c.l.b16 %v6654
    %v6718 = vunpack.c.l.b16 %v6655
    %v6719 = vunpack.c.l.b16 %v6656
    %v6720 = vunpack.c.l.b16 %v6657
    %v6721 = vunpack.c.l.b16 %v6658
    %v6722 = vunpack.c.l.b16 %v6659
    %v6723 = vunpack.c.l.b16 %v6660
    %v6724 = vunpack.c.l.b16 %v6661
    %v6725 = vunpack.c.l.b16 %v6662
    %v6726 = vunpack.c.l.b16 %v6663
    %v6727 = vunpack.c.l.b16 %v6664
    %v6728 = vunpack.c.l.b16 %v6665
    %v6729 = vunpack.c.l.b16 %v6666
    %v6730 = vunpack.c.l.b16 %v6667
    %v6731 = vunpack.c.l.b16 %v6668
    %v6732 = vunpack.c.l.b16 %v6669
    %v6733 = vpack.c.b16 %v6709, %v6708
    %v6734 = vpack.c.b16 %v6711, %v6710
    %v6735 = vpack.c.b16 %v6713, %v6712
    %v6736 = vpack.c.b16 %v6715, %v6714
    %v6737 = vpack.c.b16 %v6717, %v6716
    %v6738 = vpack.c.b16 %v6719, %v6718
    %v6739 = vpack.c.b16 %v6721, %v6720
    %v6740 = vpack.c.b16 %v6723, %v6722
    %v6741 = vpack.c.b16 %v6725, %v6724
    %v6742 = vpack.c.b16 %v6727, %v6726
    %v6743 = vpack.c.b16 %v6729, %v6728
    %v6744 = vpack.c.b16 %v6731, %v6730
    %v6745 = vpack.c.b16 %v6732, %v6732
    %v6759 = vsel %vm1748, %v6681, 0
    %v6762 = vsel %vm6440, %v6745, 0
    %6764 = vmatprep.subr.bf16.mxu0 0
    %6765 = vmatpush1.bf16.msra.mxu0 %v6733
    %6766 = vmatprep.subr.bf16.mxu0 0
    %6767 = vmatpush1.bf16.msra.mxu0 %v6734
    %6768 = vmatprep.subr.bf16.mxu0 0
    %6769 = vmatpush1.bf16.msra.mxu0 %v6735
    %6770 = vmatprep.subr.bf16.mxu0 0
    %6771 = vmatpush1.bf16.msra.mxu0 %v6736
    %6772 = vmatprep.subr.bf16.mxu0 0
    %6773 = vmatpush1.bf16.msra.mxu0 %v6737
    %6774 = vmatprep.subr.bf16.mxu0 0
    %6775 = vmatpush1.bf16.msra.mxu0 %v6738
    %6776 = vmatprep.subr.bf16.mxu0 0
    %6777 = vmatpush1.bf16.msra.mxu0 %v6739
    %6778 = vmatprep.subr.bf16.mxu0 0
    %6779 = vmatpush1.bf16.msra.mxu0 %v6740
    %6780 = vmatprep.subr.bf16.mxu0 0
    %6781 = vmatpush1.bf16.msra.mxu0 %v6741
    %6782 = vmatprep.subr.bf16.mxu0 0
    %6783 = vmatpush1.bf16.msra.mxu0 %v6742
    %6784 = vmatprep.subr.bf16.mxu0 0
    %6785 = vmatpush1.bf16.msra.mxu0 %v6743
    %6786 = vmatprep.subr.bf16.mxu0 0
    %6787 = vmatpush1.bf16.msra.mxu0 %v6744
    %6788 = vmatprep.subr.bf16.mxu0 0
    %6789 = vmatpush1.bf16.msra.mxu0 %v6762
    %6790 = vmatprep.subr.bf16.mxu0 0
    %6791 = vmatpush1.bf16.msra.mxu0 0
    %6792 = vmatprep.subr.bf16.mxu0 0
    %6793 = vmatpush1.bf16.msra.mxu0 0
    %6794 = vmatprep.subr.bf16.mxu0 0
    %6795 = vmatpush1.bf16.msra.mxu0 0
    %6796 = vmatprep.mubr.bf16.mxu0 %v6759
    %6797 = vmatmul.mubr.bf16.gmra.mrb[0].mxu0 %v6680
    %v6798 = vpop.f32.mrb[0].mxu0
    %v6799 = vadd.f32 0.0, %v6798
    %v6800 = vpop.f32.mrb[0].mxu0
    %v6801 = vpop.f32.mrb[0].mxu0
    %v6802 = vadd.f32 0.0, %v6801
    %v6803 = vpop.f32.mrb[0].mxu0
    %6804 = vdwg.mxu0
    %6805 = vst.msk [vmem:[#allocation2 + $0x1] sm:$0x1] %vm6485, %v6799
    %v6808 = vunpack.c.l.s4 1983009808
    %v6809 = vunpack.c.0.s8 %v6808
    %v6810 = vlaneseq
    %v6811 = vshrl.u32 %v6810, 7
    %v6812 = vsub.s32 %v6809, %v6811
    %v6813 = vrot.slane %v6799, %v6812
    %v6814 = vrot.slane %v6813, 7
    %v6815 = vrot.slane %v6814, 2
    %6816 = vrot.lane.b32.xlu0 %v6815, 49
    %v6817 = vpop.permute.xlu0 %6816
    %6819 = vst.msk [vmem:[#allocation2 + $0x1] sm:$0x1] %vm6500, %v6817
    %v6820 = vcombine.high %v6813, %v6813
    %6821 = vrot.lane.b32.xlu0 %v6820, 98
    %v6822 = vpop.permute.xlu0 %6821
    %v6823 = vrot.slane %v6822, 6
    %v6824 = vsel %vm6506, %v6823, %v6822
    %6826 = vst.msk [vmem:[#allocation2 + $0x1] sm:$0x5] %vm6511, %v6824
    %v6827 = vrot.slane %v6820, 7
    %v6828 = vrot.slane %v6827, 2
    %6829 = vrot.lane.b32.xlu0 %v6828, 19
    %v6830 = vpop.permute.xlu0 %6829
    %6832 = vst.msk [vmem:[#allocation2 + $0x3] sm:$0x1] %vm6518, %v6830
    %v6833 = vcombine.high %v6799, %v6799
    %v6835 = vunpack.c.l.s4 1983009808
    %v6836 = vunpack.c.0.s8 %v6835
    %v6837 = vlaneseq
    %v6838 = vshrl.u32 %v6837, 7
    %v6839 = vsub.s32 %v6836, %v6838
    %v6840 = vrot.slane %v6833, %v6839
    %6841 = vrot.lane.b32.xlu0 %v6840, 68
    %v6842 = vpop.permute.xlu0 %6841
    %6844 = vst.msk [vmem:[#allocation2 + $0x3] sm:$0x1] %vm6531, %v6842
    %v6845 = vrot.slane %v6840, 7
    %v6846 = vrot.slane %v6845, 2
    %6847 = vrot.lane.b32.xlu0 %v6846, 117
    %v6848 = vpop.permute.xlu0 %6847
    %v6849 = vrot.slane %v6848, 6
    %v6850 = vsel %vm6538, %v6849, %v6848
    %6852 = vst.msk [vmem:[#allocation2 + $0x3] sm:$0x5] %vm6543, %v6850
    %v6853 = vcombine.high %v6840, %v6840
    %6854 = vrot.lane.b32.xlu0 %v6853, 38
    %v6855 = vpop.permute.xlu0 %6854
    %6857 = vst.msk [vmem:[#allocation2 + $0x5] sm:$0x1] %vm6549, %v6855
    %v6858 = vrot.slane %v6853, 7
    %v6859 = vrot.slane %v6858, 2
    %6860 = vrot.lane.b32.xlu0 %v6859, 87
    %v6861 = vpop.permute.xlu0 %6860
    %v6862 = vrot.slane %v6861, 6
    %v6863 = vsel %vm6556, %v6862, %v6861
    %6865 = vst.msk [vmem:[#allocation2 + $0x5] sm:$0x5] %vm6561, %v6863
    %v6868 = vunpack.c.l.s4 1983009808
    %v6869 = vunpack.c.0.s8 %v6868
    %v6870 = vlaneseq
    %v6871 = vshrl.u32 %v6870, 7
    %v6872 = vsub.s32 %v6869, %v6871
    %v6873 = vrot.slane %v6802, %v6872
    %6874 = vrot.lane.b32.xlu0 %v6873, 8
    %v6875 = vpop.permute.xlu0 %6874
    %6877 = vst.msk [vmem:[#allocation2 + $0x7] sm:$0x1] %vm6574, %v6875
    %v6878 = vrot.slane %v6873, 7
    %v6879 = vrot.slane %v6878, 2
    %6880 = vrot.lane.b32.xlu0 %v6879, 57
    %v6881 = vpop.permute.xlu0 %6880
    %6883 = vst.msk [vmem:[#allocation2 + $0x7] sm:$0x1] %vm6581, %v6881
    %v6884 = vcombine.high %v6873, %v6873
    %6885 = vrot.lane.b32.xlu0 %v6884, 106
    %v6886 = vpop.permute.xlu0 %6885
    %v6887 = vrot.slane %v6886, 6
    %v6888 = vsel %vm5997, %v6887, %v6886
    %6890 = vst.msk [vmem:[#allocation2 + $0x7] sm:$0x5] %vm6591, %v6888
    %v6891 = vrot.slane %v6884, 7
    %v6892 = vrot.slane %v6891, 2
    %6893 = vrot.lane.b32.xlu0 %v6892, 27
    %v6894 = vpop.permute.xlu0 %6893
    %6896 = vst.msk [vmem:[#allocation2 + $0x9] sm:$0x1] %vm6598, %v6894
    %v6897 = vcombine.high %v6802, %v6802
    %v6899 = vunpack.c.l.s4 1983009808
    %v6900 = vunpack.c.0.s8 %v6899
    %v6901 = vlaneseq
    %v6902 = vshrl.u32 %v6901, 7
    %v6903 = vsub.s32 %v6900, %v6902
    %v6904 = vrot.slane %v6897, %v6903
    %6905 = vrot.lane.b32.xlu0 %v6904, 76
    %v6906 = vpop.permute.xlu0 %6905
    %6908 = vst.msk [vmem:[#allocation2 + $0x9] sm:$0x1] %vm6611, %v6906
    %v6909 = vrot.slane %v6904, 7
    %v6910 = vrot.slane %v6909, 2
    %6911 = vrot.lane.b32.xlu0 %v6910, 125
    %v6912 = vpop.permute.xlu0 %6911
    %v6913 = vrot.slane %v6912, 6
    %v6914 = vsel %vm6618, %v6913, %v6912
    %6916 = vst.msk [vmem:[#allocation2 + $0x9] sm:$0x5] %vm6623, %v6914
    %v6917 = vcombine.high %v6904, %v6904
    %6918 = vrot.lane.b32.xlu0 %v6917, 46
    %v6919 = vpop.permute.xlu0 %6918
    %6921 = vst.msk [vmem:[#allocation2 + $0xb] sm:$0x1] %vm6629, %v6919
    %v6922 = vrot.slane %v6917, 7
    %v6923 = vrot.slane %v6922, 2
    %6924 = vrot.lane.b32.xlu0 %v6923, 95
    %v6925 = vpop.permute.xlu0 %6924
    %v6926 = vrot.slane %v6925, 6
    %v6927 = vsel %vm6636, %v6926, %v6925
    %6929 = vst.msk [vmem:[#allocation2 + $0xb] sm:$0x5] %vm6641, %v6927
    %v6930 = vld [vmem:[#allocation2] sm:$0xff]
    %v6931 = vld [vmem:[#allocation2 + $0x8] sm:$0x3f]
    %v6934 = vcombine.high %v6930, %v6930
    %v6936 = vunpack.c.l.s4 1983009808
    %v6937 = vunpack.c.0.s8 %v6936
    %v6938 = vlaneseq
    %v6939 = vshrl.u32 %v6938, 7
    %v6940 = vsub.s32 %v6937, %v6939
    %v6941 = vrot.slane %v6930, %v6940
    %v6943 = vunpack.c.l.s4 1983009808
    %v6944 = vunpack.c.0.s8 %v6943
    %v6945 = vlaneseq
    %v6946 = vshrl.u32 %v6945, 7
    %v6947 = vsub.s32 %v6944, %v6946
    %v6948 = vrot.slane %v6934, %v6947
    %v6949 = vcombine.high %v6941, %v6941
    %v6950 = vcombine.high %v6948, %v6948
    %v6951 = vcombine.high %v6931, %v6931
    %v6953 = vunpack.c.l.s4 1983009808
    %v6954 = vunpack.c.0.s8 %v6953
    %v6955 = vlaneseq
    %v6956 = vshrl.u32 %v6955, 7
    %v6957 = vsub.s32 %v6954, %v6956
    %v6958 = vrot.slane %v6931, %v6957
    %v6960 = vunpack.c.l.s4 1983009808
    %v6961 = vunpack.c.0.s8 %v6960
    %v6962 = vlaneseq
    %v6963 = vshrl.u32 %v6962, 7
    %v6964 = vsub.s32 %v6961, %v6963
    %v6965 = vrot.slane %v6951, %v6964
    %v6966 = vcombine.high %v6958, %v6958
    %v6974 = vpack.c.bf16 %v6941, %v6941
    %v6975 = vpack.c.bf16 %v6949, %v6949
    %v6976 = vpack.c.bf16 %v6948, %v6948
    %v6977 = vpack.c.bf16 %v6950, %v6950
    %v6978 = vpack.c.bf16 %v6958, %v6958
    %v6979 = vpack.c.bf16 %v6966, %v6966
    %v6980 = vpack.c.bf16 %v6965, %v6965
    %v6981 = vld [vmem:[%s8] sm:$0xf]
    %v6982 = vld [vmem:[%s8 + $0x4] sm:$0xf]
    %v6983 = vld [vmem:[%s8 + $0x8] sm:$0xf]
    %v6984 = vld [vmem:[%s8 + $0xc] sm:$0xf]
    %v6985 = vld [vmem:[%s8 + $0x10] sm:$0xf]
    %v6986 = vld [vmem:[%s8 + $0x14] sm:$0xf]
    %v6987 = vld [vmem:[%s8 + $0x18] sm:$0xf]
    %v6988 = vld [vmem:[%s8 + $0x1c] sm:$0xf]
    %v6989 = vld [vmem:[%s8 + $0x20] sm:$0xf]
    %v6990 = vld [vmem:[%s8 + $0x24] sm:$0xf]
    %v6991 = vld [vmem:[%s8 + $0x28] sm:$0xf]
    %v6992 = vld [vmem:[%s8 + $0x2c] sm:$0xf]
    %v6993 = vld [vmem:[%s8 + $0x30] sm:$0xf]
    %v6994 = vld [vmem:[%s8 + $0x34] sm:$0xf]
    %v6995 = vld [vmem:[%s8 + $0x38] sm:$0xf]
    %v6996 = vld [vmem:[%s8 + $0x3c] sm:$0xf]
    %v6997 = vld [vmem:[%s8 + $0x40] sm:$0xf]
    %v6998 = vld [vmem:[%s8 + $0x44] sm:$0xf]
    %v6999 = vld [vmem:[%s8 + $0x48] sm:$0xf]
    %v7000 = vld [vmem:[%s8 + $0x4c] sm:$0xf]
    %v7001 = vld [vmem:[%s8 + $0x50] sm:$0xf]
    %v7002 = vld [vmem:[%s8 + $0x54] sm:$0xf]
    %v7003 = vld [vmem:[%s8 + $0x58] sm:$0xf]
    %v7004 = vld [vmem:[%s8 + $0x5c] sm:$0xf]
    %v7005 = vld [vmem:[%s8 + $0x60] sm:$0xf]
    %v7006 = vld [vmem:[%s8 + $0x64] sm:$0xf]
    %v7007 = vld [vmem:[%s8 + $0x68] sm:$0xf]
    %v7008 = vld [vmem:[%s8 + $0x6c] sm:$0xf]
    %v7009 = vld [vmem:[%s8 + $0x70] sm:$0xf]
    %v7010 = vld [vmem:[%s8 + $0x74] sm:$0xf]
    %v7011 = vld [vmem:[%s8 + $0x78] sm:$0xf]
    %v7012 = vld [vmem:[%s8 + $0x7c] sm:$0xf]
    %v7013 = vld [vmem:[%s8 + $0x80] sm:$0xf]
    %v7014 = vld [vmem:[%s8 + $0x84] sm:$0xf]
    %v7015 = vld [vmem:[%s8 + $0x88] sm:$0xf]
    %v7016 = vld [vmem:[%s8 + $0x8c] sm:$0xf]
    %v7017 = vld [vmem:[%s8 + $0x90] sm:$0xf]
    %v7018 = vld [vmem:[%s8 + $0x94] sm:$0xf]
    %v7019 = vld [vmem:[%s8 + $0x98] sm:$0xf]
    %v7020 = vld [vmem:[%s8 + $0x9c] sm:$0xf]
    %v7021 = vld [vmem:[%s8 + $0xa0] sm:$0xf]
    %v7022 = vld [vmem:[%s8 + $0xa4] sm:$0xf]
    %v7023 = vld [vmem:[%s8 + $0xa8] sm:$0xf]
    %v7024 = vld [vmem:[%s8 + $0xac] sm:$0xf]
    %v7025 = vld [vmem:[%s8 + $0xb0] sm:$0xf]
    %v7026 = vld [vmem:[%s8 + $0xb4] sm:$0xf]
    %v7027 = vld [vmem:[%s8 + $0xb8] sm:$0xf]
    %v7028 = vld [vmem:[%s8 + $0xbc] sm:$0xf]
    %v7029 = vld [vmem:[%s8 + $0xc0] sm:$0xf]
    %v7030 = vld [vmem:[%s8 + $0xc4] sm:$0xf]
    %v7031 = vld [vmem:[%s8 + $0xc8] sm:$0xf]
    %v7032 = vld [vmem:[%s8 + $0xcc] sm:$0xf]
    %v7033 = vld [vmem:[%s8 + $0xd0] sm:$0xf]
    %v7034 = vld [vmem:[%s8 + $0xd4] sm:$0xf]
    %v7035 = vld [vmem:[%s8 + $0xd8] sm:$0xf]
    %v7036 = vld [vmem:[%s8 + $0xdc] sm:$0xf]
    %v7037 = vld [vmem:[%s8 + $0xe0] sm:$0xf]
    %v7038 = vld [vmem:[%s8 + $0xe4] sm:$0xf]
    %v7039 = vld [vmem:[%s8 + $0xe8] sm:$0xf]
    %v7040 = vld [vmem:[%s8 + $0xec] sm:$0xf]
    %v7041 = vld [vmem:[%s8 + $0xf0] sm:$0xf]
    %v7042 = vld [vmem:[%s8 + $0xf4] sm:$0xf]
    %v7043 = vld [vmem:[%s8 + $0xf8] sm:$0xf]
    %v7044 = vld [vmem:[%s8 + $0xfc] sm:$0xf]
    %v7045 = vld [vmem:[%s8 + $0x100] sm:$0xf]
    %v7046 = vld [vmem:[%s8 + $0x104] sm:$0xf]
    %v7047 = vld [vmem:[%s8 + $0x108] sm:$0xf]
    %v7048 = vld [vmem:[%s8 + $0x10c] sm:$0xf]
    %v7049 = vld [vmem:[%s8 + $0x110] sm:$0xf]
    %v7050 = vld [vmem:[%s8 + $0x114] sm:$0xf]
    %v7051 = vld [vmem:[%s8 + $0x118] sm:$0xf]
    %v7052 = vld [vmem:[%s8 + $0x11c] sm:$0xf]
    %v7053 = vld [vmem:[%s8 + $0x120] sm:$0xf]
    %v7054 = vld [vmem:[%s8 + $0x124] sm:$0xf]
    %v7055 = vld [vmem:[%s8 + $0x128] sm:$0xf]
    %v7056 = vld [vmem:[%s8 + $0x12c] sm:$0xf]
    %v7057 = vld [vmem:[%s8 + $0x130] sm:$0xf]
    %v7058 = vld [vmem:[%s8 + $0x134] sm:$0xf]
    %v7059 = vld [vmem:[%s8 + $0x138] sm:$0xf]
    %v7060 = vld [vmem:[%s8 + $0x13c] sm:$0xf]
    %v7061 = vld [vmem:[%s8 + $0x140] sm:$0xf]
    %v7062 = vld [vmem:[%s8 + $0x144] sm:$0xf]
    %v7063 = vld [vmem:[%s8 + $0x148] sm:$0xf]
    %v7064 = vld [vmem:[%s8 + $0x14c] sm:$0xf]
    %v7065 = vld [vmem:[%s8 + $0x150] sm:$0xf]
    %v7066 = vld [vmem:[%s8 + $0x154] sm:$0xf]
    %v7067 = vld [vmem:[%s8 + $0x158] sm:$0xf]
    %v7068 = vld [vmem:[%s8 + $0x15c] sm:$0xf]
    %v7069 = vld [vmem:[%s8 + $0x160] sm:$0xf]
    %v7070 = vld [vmem:[%s8 + $0x164] sm:$0xf]
    %v7071 = vld [vmem:[%s8 + $0x168] sm:$0xf]
    %v7072 = vld [vmem:[%s8 + $0x16c] sm:$0xf]
    %v7073 = vld [vmem:[%s8 + $0x170] sm:$0xf]
    %v7074 = vld [vmem:[%s8 + $0x174] sm:$0xf]
    %v7075 = vld [vmem:[%s8 + $0x178] sm:$0xf]
    %v7076 = vld [vmem:[%s8 + $0x17c] sm:$0xf]
    %v7077 = vld [vmem:[%s8 + $0x180] sm:$0xf]
    %v7078 = vld [vmem:[%s8 + $0x184] sm:$0xf]
    %v7079 = vld [vmem:[%s9] sm:$0x1]
    %v7081 = vlaneseq
    %v7082 = vshrl.u32 %v7081, 7
    %v7083 = vsub.s32 0, %v7082
    %v7084 = vrot.slane %v7079, %v7083
    %v7184 = vunpack.c.l.b16 %v6981
    %v7185 = vunpack.c.l.b16 %v6982
    %v7186 = vunpack.c.l.b16 %v6983
    %v7187 = vunpack.c.l.b16 %v6984
    %v7188 = vunpack.c.l.b16 %v6985
    %v7189 = vunpack.c.l.b16 %v6986
    %v7190 = vunpack.c.l.b16 %v6987
    %v7191 = vunpack.c.l.b16 %v6988
    %v7192 = vunpack.c.l.b16 %v6989
    %v7193 = vunpack.c.l.b16 %v6990
    %v7194 = vunpack.c.l.b16 %v6991
    %v7195 = vunpack.c.l.b16 %v6992
    %v7196 = vunpack.c.l.b16 %v6993
    %v7197 = vunpack.c.l.b16 %v6994
    %v7198 = vunpack.c.l.b16 %v6995
    %v7199 = vunpack.c.l.b16 %v6996
    %v7200 = vunpack.c.l.b16 %v6997
    %v7201 = vunpack.c.l.b16 %v6998
    %v7202 = vunpack.c.l.b16 %v6999
    %v7203 = vunpack.c.l.b16 %v7000
    %v7204 = vunpack.c.l.b16 %v7001
    %v7205 = vunpack.c.l.b16 %v7002
    %v7206 = vunpack.c.l.b16 %v7003
    %v7207 = vunpack.c.l.b16 %v7004
    %v7208 = vunpack.c.l.b16 %v7005
    %v7209 = vunpack.c.l.b16 %v7006
    %v7210 = vunpack.c.l.b16 %v7007
    %v7211 = vunpack.c.l.b16 %v7008
    %v7212 = vunpack.c.l.b16 %v7009
    %v7213 = vunpack.c.l.b16 %v7010
    %v7214 = vunpack.c.l.b16 %v7011
    %v7215 = vunpack.c.l.b16 %v7012
    %v7216 = vunpack.c.l.b16 %v7013
    %v7217 = vunpack.c.l.b16 %v7014
    %v7218 = vunpack.c.l.b16 %v7015
    %v7219 = vunpack.c.l.b16 %v7016
    %v7220 = vunpack.c.l.b16 %v7017
    %v7221 = vunpack.c.l.b16 %v7018
    %v7222 = vunpack.c.l.b16 %v7019
    %v7223 = vunpack.c.l.b16 %v7020
    %v7224 = vunpack.c.l.b16 %v7021
    %v7225 = vunpack.c.l.b16 %v7022
    %v7226 = vunpack.c.l.b16 %v7023
    %v7227 = vunpack.c.l.b16 %v7024
    %v7228 = vunpack.c.l.b16 %v7025
    %v7229 = vunpack.c.l.b16 %v7026
    %v7230 = vunpack.c.l.b16 %v7027
    %v7231 = vunpack.c.l.b16 %v7028
    %v7232 = vunpack.c.l.b16 %v7029
    %v7233 = vunpack.c.l.b16 %v7030
    %v7234 = vunpack.c.l.b16 %v7031
    %v7235 = vunpack.c.l.b16 %v7032
    %v7236 = vunpack.c.l.b16 %v7033
    %v7237 = vunpack.c.l.b16 %v7034
    %v7238 = vunpack.c.l.b16 %v7035
    %v7239 = vunpack.c.l.b16 %v7036
    %v7240 = vunpack.c.l.b16 %v7037
    %v7241 = vunpack.c.l.b16 %v7038
    %v7242 = vunpack.c.l.b16 %v7039
    %v7243 = vunpack.c.l.b16 %v7040
    %v7244 = vunpack.c.l.b16 %v7041
    %v7245 = vunpack.c.l.b16 %v7042
    %v7246 = vunpack.c.l.b16 %v7043
    %v7247 = vunpack.c.l.b16 %v7044
    %v7248 = vunpack.c.l.b16 %v7045
    %v7249 = vunpack.c.l.b16 %v7046
    %v7250 = vunpack.c.l.b16 %v7047
    %v7251 = vunpack.c.l.b16 %v7048
    %v7252 = vunpack.c.l.b16 %v7049
    %v7253 = vunpack.c.l.b16 %v7050
    %v7254 = vunpack.c.l.b16 %v7051
    %v7255 = vunpack.c.l.b16 %v7052
    %v7256 = vunpack.c.l.b16 %v7053
    %v7257 = vunpack.c.l.b16 %v7054
    %v7258 = vunpack.c.l.b16 %v7055
    %v7259 = vunpack.c.l.b16 %v7056
    %v7260 = vunpack.c.l.b16 %v7057
    %v7261 = vunpack.c.l.b16 %v7058
    %v7262 = vunpack.c.l.b16 %v7059
    %v7263 = vunpack.c.l.b16 %v7060
    %v7264 = vunpack.c.l.b16 %v7061
    %v7265 = vunpack.c.l.b16 %v7062
    %v7266 = vunpack.c.l.b16 %v7063
    %v7267 = vunpack.c.l.b16 %v7064
    %v7268 = vunpack.c.l.b16 %v7065
    %v7269 = vunpack.c.l.b16 %v7066
    %v7270 = vunpack.c.l.b16 %v7067
    %v7271 = vunpack.c.l.b16 %v7068
    %v7272 = vunpack.c.l.b16 %v7069
    %v7273 = vunpack.c.l.b16 %v7070
    %v7274 = vunpack.c.l.b16 %v7071
    %v7275 = vunpack.c.l.b16 %v7072
    %v7276 = vunpack.c.l.b16 %v7073
    %v7277 = vunpack.c.l.b16 %v7074
    %v7278 = vunpack.c.l.b16 %v7075
    %v7279 = vunpack.c.l.b16 %v7076
    %v7280 = vunpack.c.l.b16 %v7077
    %v7281 = vunpack.c.l.b16 %v7078
    %v7282 = vpack.c.b16 %v7185, %v7184
    %v7283 = vpack.c.b16 %v7187, %v7186
    %v7284 = vpack.c.b16 %v7189, %v7188
    %v7285 = vpack.c.b16 %v7191, %v7190
    %v7286 = vpack.c.b16 %v7193, %v7192
    %v7287 = vpack.c.b16 %v7195, %v7194
    %v7288 = vpack.c.b16 %v7197, %v7196
    %v7289 = vpack.c.b16 %v7199, %v7198
    %v7290 = vpack.c.b16 %v7201, %v7200
    %v7291 = vpack.c.b16 %v7203, %v7202
    %v7292 = vpack.c.b16 %v7205, %v7204
    %v7293 = vpack.c.b16 %v7207, %v7206
    %v7294 = vpack.c.b16 %v7209, %v7208
    %v7295 = vpack.c.b16 %v7211, %v7210
    %v7296 = vpack.c.b16 %v7213, %v7212
    %v7297 = vpack.c.b16 %v7215, %v7214
    %v7298 = vpack.c.b16 %v7217, %v7216
    %v7299 = vpack.c.b16 %v7219, %v7218
    %v7300 = vpack.c.b16 %v7221, %v7220
    %v7301 = vpack.c.b16 %v7223, %v7222
    %v7302 = vpack.c.b16 %v7225, %v7224
    %v7303 = vpack.c.b16 %v7227, %v7226
    %v7304 = vpack.c.b16 %v7229, %v7228
    %v7305 = vpack.c.b16 %v7231, %v7230
    %v7306 = vpack.c.b16 %v7233, %v7232
    %v7307 = vpack.c.b16 %v7235, %v7234
    %v7308 = vpack.c.b16 %v7237, %v7236
    %v7309 = vpack.c.b16 %v7239, %v7238
    %v7310 = vpack.c.b16 %v7241, %v7240
    %v7311 = vpack.c.b16 %v7243, %v7242
    %v7312 = vpack.c.b16 %v7245, %v7244
    %v7313 = vpack.c.b16 %v7247, %v7246
    %v7314 = vpack.c.b16 %v7249, %v7248
    %v7315 = vpack.c.b16 %v7251, %v7250
    %v7316 = vpack.c.b16 %v7253, %v7252
    %v7317 = vpack.c.b16 %v7255, %v7254
    %v7318 = vpack.c.b16 %v7257, %v7256
    %v7319 = vpack.c.b16 %v7259, %v7258
    %v7320 = vpack.c.b16 %v7261, %v7260
    %v7321 = vpack.c.b16 %v7263, %v7262
    %v7322 = vpack.c.b16 %v7265, %v7264
    %v7323 = vpack.c.b16 %v7267, %v7266
    %v7324 = vpack.c.b16 %v7269, %v7268
    %v7325 = vpack.c.b16 %v7271, %v7270
    %v7326 = vpack.c.b16 %v7273, %v7272
    %v7327 = vpack.c.b16 %v7275, %v7274
    %v7328 = vpack.c.b16 %v7277, %v7276
    %v7329 = vpack.c.b16 %v7279, %v7278
    %v7330 = vpack.c.b16 %v7281, %v7280
    %v7381 = vsel %vm1367, %v6980, 0
    %7383 = vmatprep.subr.bf16.mxu0 0
    %7384 = vmatpush1.bf16.msra.mxu0 %v7282
    %7385 = vmatprep.subr.bf16.mxu0 0
    %7386 = vmatpush1.bf16.msra.mxu0 %v7283
    %7387 = vmatprep.subr.bf16.mxu0 0
    %7388 = vmatpush1.bf16.msra.mxu0 %v7284
    %7389 = vmatprep.subr.bf16.mxu0 0
    %7390 = vmatpush1.bf16.msra.mxu0 %v7285
    %7391 = vmatprep.subr.bf16.mxu0 0
    %7392 = vmatpush1.bf16.msra.mxu0 %v7286
    %7393 = vmatprep.subr.bf16.mxu0 0
    %7394 = vmatpush1.bf16.msra.mxu0 %v7287
    %7395 = vmatprep.subr.bf16.mxu0 0
    %7396 = vmatpush1.bf16.msra.mxu0 %v7288
    %7397 = vmatprep.subr.bf16.mxu0 0
    %7398 = vmatpush1.bf16.msra.mxu0 %v7289
    %7399 = vmatprep.subr.bf16.mxu0 0
    %7400 = vmatpush1.bf16.msra.mxu0 %v7290
    %7401 = vmatprep.subr.bf16.mxu0 0
    %7402 = vmatpush1.bf16.msra.mxu0 %v7291
    %7403 = vmatprep.subr.bf16.mxu0 0
    %7404 = vmatpush1.bf16.msra.mxu0 %v7292
    %7405 = vmatprep.subr.bf16.mxu0 0
    %7406 = vmatpush1.bf16.msra.mxu0 %v7293
    %7407 = vmatprep.subr.bf16.mxu0 0
    %7408 = vmatpush1.bf16.msra.mxu0 %v7294
    %7409 = vmatprep.subr.bf16.mxu0 0
    %7410 = vmatpush1.bf16.msra.mxu0 %v7295
    %7411 = vmatprep.subr.bf16.mxu0 0
    %7412 = vmatpush1.bf16.msra.mxu0 %v7296
    %7413 = vmatprep.subr.bf16.mxu0 0
    %7414 = vmatpush1.bf16.msra.mxu0 %v7297
    %7415 = vmatprep.mubr.bf16.mxu0 %v6975
    %7416 = vmatmul.mubr.bf16.gmra.mrb[0].mxu0 %v6974
    %v7417 = vpop.f32.mrb[0].mxu0
    %v7418 = vadd.f32 %v7084, %v7417
    %v7419 = vpop.f32.mrb[0].mxu0
    %v7420 = vpop.f32.mrb[0].mxu0
    %v7421 = vpop.f32.mrb[0].mxu0
    %7422 = vdwg.mxu0
    %7423 = vmatprep.subr.bf16.mxu0 0
    %7424 = vmatpush1.bf16.msra.mxu0 %v7298
    %7425 = vmatprep.subr.bf16.mxu0 0
    %7426 = vmatpush1.bf16.msra.mxu0 %v7299
    %7427 = vmatprep.subr.bf16.mxu0 0
    %7428 = vmatpush1.bf16.msra.mxu0 %v7300
    %7429 = vmatprep.subr.bf16.mxu0 0
    %7430 = vmatpush1.bf16.msra.mxu0 %v7301
    %7431 = vmatprep.subr.bf16.mxu0 0
    %7432 = vmatpush1.bf16.msra.mxu0 %v7302
    %7433 = vmatprep.subr.bf16.mxu0 0
    %7434 = vmatpush1.bf16.msra.mxu0 %v7303
    %7435 = vmatprep.subr.bf16.mxu0 0
    %7436 = vmatpush1.bf16.msra.mxu0 %v7304
    %7437 = vmatprep.subr.bf16.mxu0 0
    %7438 = vmatpush1.bf16.msra.mxu0 %v7305
    %7439 = vmatprep.subr.bf16.mxu0 0
    %7440 = vmatpush1.bf16.msra.mxu0 %v7306
    %7441 = vmatprep.subr.bf16.mxu0 0
    %7442 = vmatpush1.bf16.msra.mxu0 %v7307
    %7443 = vmatprep.subr.bf16.mxu0 0
    %7444 = vmatpush1.bf16.msra.mxu0 %v7308
    %7445 = vmatprep.subr.bf16.mxu0 0
    %7446 = vmatpush1.bf16.msra.mxu0 %v7309
    %7447 = vmatprep.subr.bf16.mxu0 0
    %7448 = vmatpush1.bf16.msra.mxu0 %v7310
    %7449 = vmatprep.subr.bf16.mxu0 0
    %7450 = vmatpush1.bf16.msra.mxu0 %v7311
    %7451 = vmatprep.subr.bf16.mxu0 0
    %7452 = vmatpush1.bf16.msra.mxu0 %v7312
    %7453 = vmatprep.subr.bf16.mxu0 0
    %7454 = vmatpush1.bf16.msra.mxu0 %v7313
    %7455 = vmatprep.mubr.bf16.mxu0 %v6977
    %7456 = vmatmul.mubr.bf16.gmra.mrb[0].mxu0 %v6976
    %v7457 = vpop.f32.mrb[0].mxu0
    %v7458 = vadd.f32 %v7418, %v7457
    %v7459 = vpop.f32.mrb[0].mxu0
    %v7460 = vpop.f32.mrb[0].mxu0
    %v7461 = vpop.f32.mrb[0].mxu0
    %7462 = vdwg.mxu0
    %7463 = vmatprep.subr.bf16.mxu0 0
    %7464 = vmatpush1.bf16.msra.mxu0 %v7314
    %7465 = vmatprep.subr.bf16.mxu0 0
    %7466 = vmatpush1.bf16.msra.mxu0 %v7315
    %7467 = vmatprep.subr.bf16.mxu0 0
    %7468 = vmatpush1.bf16.msra.mxu0 %v7316
    %7469 = vmatprep.subr.bf16.mxu0 0
    %7470 = vmatpush1.bf16.msra.mxu0 %v7317
    %7471 = vmatprep.subr.bf16.mxu0 0
    %7472 = vmatpush1.bf16.msra.mxu0 %v7318
    %7473 = vmatprep.subr.bf16.mxu0 0
    %7474 = vmatpush1.bf16.msra.mxu0 %v7319
    %7475 = vmatprep.subr.bf16.mxu0 0
    %7476 = vmatpush1.bf16.msra.mxu0 %v7320
    %7477 = vmatprep.subr.bf16.mxu0 0
    %7478 = vmatpush1.bf16.msra.mxu0 %v7321
    %7479 = vmatprep.subr.bf16.mxu0 0
    %7480 = vmatpush1.bf16.msra.mxu0 %v7322
    %7481 = vmatprep.subr.bf16.mxu0 0
    %7482 = vmatpush1.bf16.msra.mxu0 %v7323
    %7483 = vmatprep.subr.bf16.mxu0 0
    %7484 = vmatpush1.bf16.msra.mxu0 %v7324
    %7485 = vmatprep.subr.bf16.mxu0 0
    %7486 = vmatpush1.bf16.msra.mxu0 %v7325
    %7487 = vmatprep.subr.bf16.mxu0 0
    %7488 = vmatpush1.bf16.msra.mxu0 %v7326
    %7489 = vmatprep.subr.bf16.mxu0 0
    %7490 = vmatpush1.bf16.msra.mxu0 %v7327
    %7491 = vmatprep.subr.bf16.mxu0 0
    %7492 = vmatpush1.bf16.msra.mxu0 %v7328
    %7493 = vmatprep.subr.bf16.mxu0 0
    %7494 = vmatpush1.bf16.msra.mxu0 %v7329
    %7495 = vmatprep.mubr.bf16.mxu0 %v6979
    %7496 = vmatmul.mubr.bf16.gmra.mrb[0].mxu0 %v6978
    %v7497 = vpop.f32.mrb[0].mxu0
    %v7498 = vadd.f32 %v7458, %v7497
    %v7499 = vpop.f32.mrb[0].mxu0
    %v7500 = vpop.f32.mrb[0].mxu0
    %v7501 = vpop.f32.mrb[0].mxu0
    %7502 = vdwg.mxu0
    %7503 = vmatprep.subr.bf16.mxu0 0
    %7504 = vmatpush1.bf16.msra.mxu0 %v7330
    %7505 = vmatprep.subr.bf16.mxu0 0
    %7506 = vmatpush1.bf16.msra.mxu0 0
    %7507 = vmatprep.subr.bf16.mxu0 0
    %7508 = vmatpush1.bf16.msra.mxu0 0
    %7509 = vmatprep.subr.bf16.mxu0 0
    %7510 = vmatpush1.bf16.msra.mxu0 0
    %7511 = vmatprep.subr.bf16.mxu0 0
    %7512 = vmatpush1.bf16.msra.mxu0 0
    %7513 = vmatprep.subr.bf16.mxu0 0
    %7514 = vmatpush1.bf16.msra.mxu0 0
    %7515 = vmatprep.subr.bf16.mxu0 0
    %7516 = vmatpush1.bf16.msra.mxu0 0
    %7517 = vmatprep.subr.bf16.mxu0 0
    %7518 = vmatpush1.bf16.msra.mxu0 0
    %7519 = vmatprep.subr.bf16.mxu0 0
    %7520 = vmatpush1.bf16.msra.mxu0 0
    %7521 = vmatprep.subr.bf16.mxu0 0
    %7522 = vmatpush1.bf16.msra.mxu0 0
    %7523 = vmatprep.subr.bf16.mxu0 0
    %7524 = vmatpush1.bf16.msra.mxu0 0
    %7525 = vmatprep.subr.bf16.mxu0 0
    %7526 = vmatpush1.bf16.msra.mxu0 0
    %7527 = vmatprep.subr.bf16.mxu0 0
    %7528 = vmatpush1.bf16.msra.mxu0 0
    %7529 = vmatprep.subr.bf16.mxu0 0
    %7530 = vmatpush1.bf16.msra.mxu0 0
    %7531 = vmatprep.subr.bf16.mxu0 0
    %7532 = vmatpush1.bf16.msra.mxu0 0
    %7533 = vmatprep.subr.bf16.mxu0 0
    %7534 = vmatpush1.bf16.msra.mxu0 0
    %7535 = vmatprep.mubr.bf16.mxu0 0
    %7536 = vmatmul.mubr.bf16.gmra.mrb[0].mxu0 %v7381
    %v7537 = vpop.f32.mrb[0].mxu0
    %v7538 = vadd.f32 %v7498, %v7537
    %v7539 = vpop.f32.mrb[0].mxu0
    %v7540 = vpop.f32.mrb[0].mxu0
    %v7541 = vpop.f32.mrb[0].mxu0
    %7542 = vdwg.mxu0
    %v7543 = vmax.f32 %v7538, 0.0
    %v7544 = vpack.c.bf16 %v7543, %v7543
    %v7545 = vld [vmem:[%s10] sm:$0xf]
    %v7546 = vld [vmem:[%s10 + $0x4] sm:$0xf]
    %v7547 = vld [vmem:[%s10 + $0x8] sm:$0xf]
    %v7548 = vld [vmem:[%s10 + $0xc] sm:$0xf]
    %v7549 = vld [vmem:[%s10 + $0x10] sm:$0xf]
    %v7550 = vld [vmem:[%s10 + $0x14] sm:$0xf]
    %v7551 = vld [vmem:[%s10 + $0x18] sm:$0xf]
    %v7552 = vld [vmem:[%s10 + $0x1c] sm:$0xf]
    %v7553 = vld [vmem:[%s10 + $0x20] sm:$0xf]
    %v7554 = vld [vmem:[%s10 + $0x24] sm:$0xf]
    %v7555 = vld [vmem:[%s10 + $0x28] sm:$0xf]
    %v7556 = vld [vmem:[%s10 + $0x2c] sm:$0xf]
    %v7557 = vld [vmem:[%s10 + $0x30] sm:$0xf]
    %v7558 = vld [vmem:[%s10 + $0x34] sm:$0xf]
    %v7559 = vld [vmem:[%s10 + $0x38] sm:$0xf]
    %v7560 = vld [vmem:[%s11] sm:$0x1]
    %v7562 = vlaneseq
    %v7563 = vshrl.u32 %v7562, 7
    %v7564 = vsub.s32 0, %v7563
    %v7565 = vrot.slane %v7560, %v7564
    %v7582 = vunpack.c.l.b16 %v7545
    %v7583 = vunpack.c.l.b16 %v7546
    %v7584 = vunpack.c.l.b16 %v7547
    %v7585 = vunpack.c.l.b16 %v7548
    %v7586 = vunpack.c.l.b16 %v7549
    %v7587 = vunpack.c.l.b16 %v7550
    %v7588 = vunpack.c.l.b16 %v7551
    %v7589 = vunpack.c.l.b16 %v7552
    %v7590 = vunpack.c.l.b16 %v7553
    %v7591 = vunpack.c.l.b16 %v7554
    %v7592 = vunpack.c.l.b16 %v7555
    %v7593 = vunpack.c.l.b16 %v7556
    %v7594 = vunpack.c.l.b16 %v7557
    %v7595 = vunpack.c.l.b16 %v7558
    %v7596 = vunpack.c.l.b16 %v7559
    %v7597 = vpack.c.b16 %v7583, %v7582
    %v7598 = vpack.c.b16 %v7585, %v7584
    %v7599 = vpack.c.b16 %v7587, %v7586
    %v7600 = vpack.c.b16 %v7589, %v7588
    %v7601 = vpack.c.b16 %v7591, %v7590
    %v7602 = vpack.c.b16 %v7593, %v7592
    %v7603 = vpack.c.b16 %v7595, %v7594
    %v7604 = vpack.c.b16 %v7596, %v7596
    %v7613 = vsel %vm5118, %v7544, 0
    %v7616 = vsel %vm207, %v7604, 0
    %7618 = vmatprep.subr.bf16.mxu0 0
    %7619 = vmatpush1.bf16.msra.mxu0 %v7597
    %7620 = vmatprep.subr.bf16.mxu0 0
    %7621 = vmatpush1.bf16.msra.mxu0 %v7598
    %7622 = vmatprep.subr.bf16.mxu0 0
    %7623 = vmatpush1.bf16.msra.mxu0 %v7599
    %7624 = vmatprep.subr.bf16.mxu0 0
    %7625 = vmatpush1.bf16.msra.mxu0 %v7600
    %7626 = vmatprep.subr.bf16.mxu0 0
    %7627 = vmatpush1.bf16.msra.mxu0 %v7601
    %7628 = vmatprep.subr.bf16.mxu0 0
    %7629 = vmatpush1.bf16.msra.mxu0 %v7602
    %7630 = vmatprep.subr.bf16.mxu0 0
    %7631 = vmatpush1.bf16.msra.mxu0 %v7603
    %7632 = vmatprep.subr.bf16.mxu0 0
    %7633 = vmatpush1.bf16.msra.mxu0 %v7616
    %7634 = vmatprep.subr.bf16.mxu0 0
    %7635 = vmatpush1.bf16.msra.mxu0 0
    %7636 = vmatprep.subr.bf16.mxu0 0
    %7637 = vmatpush1.bf16.msra.mxu0 0
    %7638 = vmatprep.subr.bf16.mxu0 0
    %7639 = vmatpush1.bf16.msra.mxu0 0
    %7640 = vmatprep.subr.bf16.mxu0 0
    %7641 = vmatpush1.bf16.msra.mxu0 0
    %7642 = vmatprep.subr.bf16.mxu0 0
    %7643 = vmatpush1.bf16.msra.mxu0 0
    %7644 = vmatprep.subr.bf16.mxu0 0
    %7645 = vmatpush1.bf16.msra.mxu0 0
    %7646 = vmatprep.subr.bf16.mxu0 0
    %7647 = vmatpush1.bf16.msra.mxu0 0
    %7648 = vmatprep.subr.bf16.mxu0 0
    %7649 = vmatpush1.bf16.msra.mxu0 0
    %7650 = vmatprep.mubr.bf16.mxu0 0
    %7651 = vmatmul.mubr.bf16.gmra.mrb[0].mxu0 %v7613
    %v7652 = vpop.f32.mrb[0].mxu0
    %v7653 = vadd.f32 %v7565, %v7652
    %v7654 = vpop.f32.mrb[0].mxu0
    %v7655 = vpop.f32.mrb[0].mxu0
    %v7656 = vpop.f32.mrb[0].mxu0
    %7657 = vdwg.mxu0
    %v7658 = vmax.f32 %v7653, 0.0
    %v7659 = vpack.c.bf16 %v7658, %v7658
    %v7660 = vld [vmem:[%s12] sm:$0xf]
    %v7661 = vld [vmem:[%s12 + $0x4] sm:$0xf]
    %v7662 = vld [vmem:[%s12 + $0x8] sm:$0xf]
    %v7663 = vld [vmem:[%s12 + $0xc] sm:$0xf]
    %v7664 = vld [vmem:[%s12 + $0x10] sm:$0xf]
    %v7665 = vld [vmem:[%s12 + $0x14] sm:$0xf]
    %v7666 = vld [vmem:[%s12 + $0x18] sm:$0xf]
    %v7667 = vld [vmem:[%s12 + $0x1c] sm:$0xf]
    %v7668 = vld [vmem:[%s12 + $0x20] sm:$0xf]
    %v7669 = vld [vmem:[%s12 + $0x24] sm:$0xf]
    %v7670 = vld [vmem:[%s12 + $0x28] sm:$0x3]
    %v7671 = vld [vmem:[%s13] sm:$0x1]
    %v7673 = vlaneseq
    %v7674 = vshrl.u32 %v7673, 7
    %v7675 = vsub.s32 0, %v7674
    %v7676 = vrot.slane %v7671, %v7675
    %v7689 = vunpack.c.l.b16 %v7660
    %v7690 = vunpack.c.l.b16 %v7661
    %v7691 = vunpack.c.l.b16 %v7662
    %v7692 = vunpack.c.l.b16 %v7663
    %v7693 = vunpack.c.l.b16 %v7664
    %v7694 = vunpack.c.l.b16 %v7665
    %v7695 = vunpack.c.l.b16 %v7666
    %v7696 = vunpack.c.l.b16 %v7667
    %v7697 = vunpack.c.l.b16 %v7668
    %v7698 = vunpack.c.l.b16 %v7669
    %v7699 = vunpack.c.l.b16 %v7670
    %v7700 = vpack.c.b16 %v7690, %v7689
    %v7701 = vpack.c.b16 %v7692, %v7691
    %v7702 = vpack.c.b16 %v7694, %v7693
    %v7703 = vpack.c.b16 %v7696, %v7695
    %v7704 = vpack.c.b16 %v7698, %v7697
    %v7705 = vpack.c.b16 %v7699, %v7699
    %vm7711 = vcmask 687104
    %v7713 = vsel %vm7711, %v7659, 0
    %v7716 = vsel %vm6440, %v7705, 0
    %7718 = vmatprep.subr.bf16.mxu0 0
    %7719 = vmatpush1.bf16.msra.mxu0 %v7700
    %7720 = vmatprep.subr.bf16.mxu0 0
    %7721 = vmatpush1.bf16.msra.mxu0 %v7701
    %7722 = vmatprep.subr.bf16.mxu0 0
    %7723 = vmatpush1.bf16.msra.mxu0 %v7702
    %7724 = vmatprep.subr.bf16.mxu0 0
    %7725 = vmatpush1.bf16.msra.mxu0 %v7703
    %7726 = vmatprep.subr.bf16.mxu0 0
    %7727 = vmatpush1.bf16.msra.mxu0 %v7704
    %7728 = vmatprep.subr.bf16.mxu0 0
    %7729 = vmatpush1.bf16.msra.mxu0 %v7716
    %7730 = vmatprep.subr.bf16.mxu0 0
    %7731 = vmatpush1.bf16.msra.mxu0 0
    %7732 = vmatprep.subr.bf16.mxu0 0
    %7733 = vmatpush1.bf16.msra.mxu0 0
    %7734 = vmatprep.subr.bf16.mxu0 0
    %7735 = vmatpush1.bf16.msra.mxu0 0
    %7736 = vmatprep.subr.bf16.mxu0 0
    %7737 = vmatpush1.bf16.msra.mxu0 0
    %7738 = vmatprep.subr.bf16.mxu0 0
    %7739 = vmatpush1.bf16.msra.mxu0 0
    %7740 = vmatprep.subr.bf16.mxu0 0
    %7741 = vmatpush1.bf16.msra.mxu0 0
    %7742 = vmatprep.subr.bf16.mxu0 0
    %7743 = vmatpush1.bf16.msra.mxu0 0
    %7744 = vmatprep.subr.bf16.mxu0 0
    %7745 = vmatpush1.bf16.msra.mxu0 0
    %7746 = vmatprep.subr.bf16.mxu0 0
    %7747 = vmatpush1.bf16.msra.mxu0 0
    %7748 = vmatprep.subr.bf16.mxu0 0
    %7749 = vmatpush1.bf16.msra.mxu0 0
    %7750 = vmatprep.mubr.bf16.mxu0 0
    %7751 = vmatmul.mubr.bf16.gmra.mrb[0].mxu0 %v7713
    %v7752 = vpop.f32.mrb[0].mxu0
    %v7753 = vadd.f32 %v7676, %v7752
    %v7754 = vpop.f32.mrb[0].mxu0
    %v7755 = vpop.f32.mrb[0].mxu0
    %v7756 = vpop.f32.mrb[0].mxu0
    %7757 = vdwg.mxu0
    %vm7758 = vcmask 74752
    %7759 = vst.msk [vmem:[#allocation3] sm:$0x3] %vm7758, %v7753
    // Predicated region
    $region58: #{cnn_forward.1} parent=1 // pred_check
      _
    $region59: #{cnn_forward.1} parent=1 // pred_check_branch
      %7761 = sbr.rel (0) target = $region61
    $region60: #{cnn_forward.1} parent=1 // pred_region
      %s7763 = ssub.s32 32, 32
      %7764 = vsyncadd [#allocation4], %s7763
      %s7766 = sshll.u32 [#allocation3], 4
      %s7767 = int_to_ptr.vmem [resolvable:$true] %s7766
      %7769 = dma.vmem_to_hbm [thread:$0]  %s7767, 32, %s14, [#allocation4]
    $region61: #{cnn_forward.1} parent=1 // pred_fallthru
      _
    // Predicated region
    $region62: #{cnn_forward.1} parent=1 // pred_check
      _
    $region63: #{cnn_forward.1} parent=1 // pred_check_branch
      %7771 = sbr.rel (0) target = $region65
    $region64: #{cnn_forward.1} parent=1 // pred_region
      %7772 = dma.done [#allocation4], 32
    $region65: #{cnn_forward.1} parent=1 // pred_fallthru
      _
    %7773 = vsyncpa [#allocation4], 1

</llo_original>
